<compile_context>
chip_gen: v5e
topology: v5e:2x2
jax: 0.10.0
libtpu: 0.0.40
codegen_flags: <defaults>
</compile_context>

<pallas_src>
import functools

import numpy as np

import jax
import jax.numpy as jnp
from jax import lax
from jax.experimental import pallas as pl
from jax.experimental.pallas import tpu as pltpu

_BN_EPS = 1e-5

# Generator_CNN layer configs: (kernel, stride, padding), all bias=False.
_LAYER_CFG = ((2, 1, 0), (4, 2, 1), (4, 2, 1), (4, 2, 1))


def _round_up(x, m):
    return (x + m - 1) // m * m


# ---------------------------------------------------------------------------
# In-kernel building blocks (all values live in VMEM / vregs)
# ---------------------------------------------------------------------------
def _deconv(x_bf16, w_ref, s_ref):
    """Transposed conv on a batched activation.

    x_bf16: (Cin, N*Hi*Wi) bf16, lane index = n*Hi*Wi + ih*Wi + iw.
    w_ref : (K*K*Cout, Cin)  bf16 tap-stacked weights.
    s_ref : (K*K, N*Hi*Wi, N*Ho*Wo) bf16 0/1 placement matrices
            (block-diagonal over the batch).
    Returns (Cout, N*Ho*Wo) f32.
    """
    k2 = s_ref.shape[0]
    cout = w_ref.shape[0] // k2
    # One tap-stacked MXU matmul for the whole batch (contraction over Cin).
    t = jnp.dot(w_ref[...], x_bf16, preferred_element_type=jnp.float32)
    t = t.astype(jnp.bfloat16)          # placement matrices are exact 0/1 -> bf16 ok
    acc = None
    for k in range(k2):                 # aligned row slices (Cout is a multiple of 8)
        yk = jnp.dot(t[k * cout:(k + 1) * cout, :], s_ref[k],
                     preferred_element_type=jnp.float32)
        acc = yk if acc is None else acc + yk
    return acc


def _bn_relu(y, g_ref, b_ref):
    """Training-mode BatchNorm2d (+ReLU): exact full-batch stats, single pass."""
    count = y.shape[1]                  # N * Ho * Wo
    mean = jnp.sum(y, axis=1, keepdims=True) / count
    var = jnp.sum(y * y, axis=1, keepdims=True) / count - mean * mean
    var = jnp.maximum(var, 0.0)         # guard E[x^2]-E[x]^2 cancellation
    scale = g_ref[...] * lax.rsqrt(var + _BN_EPS)
    shift = b_ref[...] - mean * scale
    return jnp.maximum(y * scale + shift, 0.0)


def _generator_kernel(x_ref,
                      w1_ref, s1_ref, g1_ref, b1_ref,
                      w2_ref, s2_ref, g2_ref, b2_ref,
                      w3_ref, s3_ref, g3_ref, b3_ref,
                      w4_ref, s4_ref,
                      o_ref):
    x = x_ref[...].astype(jnp.bfloat16)                                    # (nz, N)
    y = _bn_relu(_deconv(x, w1_ref, s1_ref), g1_ref, b1_ref)               # (C1, N*4)
    y = _bn_relu(_deconv(y.astype(jnp.bfloat16), w2_ref, s2_ref), g2_ref, b2_ref)
    y = _bn_relu(_deconv(y.astype(jnp.bfloat16), w3_ref, s3_ref), g3_ref, b3_ref)
    y = _deconv(y.astype(jnp.bfloat16), w4_ref, s4_ref)                    # (Cp, N*256)
    o_ref[...] = jnp.tanh(y)            # single lane/sublane-dense f32 store


# ---------------------------------------------------------------------------
# Wrapper-side parameter preprocessing (no activation math here)
# ---------------------------------------------------------------------------
def _placement_matrices(hi, wi, k, s, p, n):
    """0/1 placement matrices (K*K, N*Hi*Wi, N*Ho*Wo), block-diag over batch."""
    ho = (hi - 1) * s - 2 * p + k
    wo = (wi - 1) * s - 2 * p + k
    m = np.zeros((k * k, n * hi * wi, n * ho * wo), np.float32)
    for kh in range(k):
        for kw in range(k):
            for ih in range(hi):
                oh = ih * s + kh - p
                if oh < 0 or oh >= ho:
                    continue
                for iw in range(wi):
                    ow = iw * s + kw - p
                    if ow < 0 or ow >= wo:
                        continue
                    for b in range(n):
                        m[kh * k + kw,
                          b * hi * wi + ih * wi + iw,
                          b * ho * wo + oh * wo + ow] = 1.0
    return jnp.asarray(m, dtype=jnp.bfloat16), ho, wo


def _stack_weights(w, cin_pad, cout_pad):
    """PyTorch ConvTranspose2d weight (Cin, Cout, K, K) -> (K*K*Cout_pad, Cin_pad) bf16."""
    cin, cout, k, _ = w.shape
    wt = jnp.transpose(w, (2, 3, 1, 0)).reshape(k * k, cout, cin)
    wt = jnp.pad(wt, ((0, 0), (0, cout_pad - cout), (0, cin_pad - cin)))
    return wt.reshape(k * k * cout_pad, cin_pad).astype(jnp.bfloat16)


def _vspec(shape):
    nd = len(shape)
    return pl.BlockSpec(shape, lambda i, _n=nd: (0,) * _n)


# ---------------------------------------------------------------------------
# Generator_CNN forward (public boundary: NCHW, like PyTorch)
# ---------------------------------------------------------------------------
def generator_cnn_forward(x_nchw, params):
    (w1, g1, b1), (w2, g2, b2), (w3, g3, b3), w4 = params
    n, nz, h, w = x_nchw.shape
    # (N, Cin, H, W) -> (Cin, N*H*W), lane index = n*H*W + spatial (row-major).
    x = jnp.transpose(x_nchw.reshape(n, nz, h * w), (1, 0, 2)).reshape(nz, n * h * w)
    x = x.astype(jnp.float32)

    weights = (w1, w2, w3, w4)
    bn = ((g1, b1), (g2, b2), (g3, b3))

    args = [x]
    cur_h, cur_w = h, w
    cin_pad = nz
    for li, (wt, (k, s, p)) in enumerate(zip(weights, _LAYER_CFG)):
        cout = wt.shape[1]
        cout_pad = _round_up(cout, 8)
        args.append(_stack_weights(wt, cin_pad, cout_pad))
        scat, cur_h, cur_w = _placement_matrices(cur_h, cur_w, k, s, p, n)
        args.append(scat)
        if li < 3:
            gamma, beta = bn[li]
            gp = jnp.pad(gamma.astype(jnp.float32), (0, cout_pad - cout))
            bp = jnp.pad(beta.astype(jnp.float32), (0, cout_pad - cout))
            args.append(gp.reshape(cout_pad, 1))
            args.append(bp.reshape(cout_pad, 1))
        cin_pad = cout_pad

    nc = w4.shape[1]
    cout4 = _round_up(nc, 8)
    out = pl.pallas_call(
        _generator_kernel,
        grid=(1,),
        in_specs=[_vspec(a.shape) for a in args],
        out_specs=_vspec((cout4, n * cur_h * cur_w)),
        out_shape=jax.ShapeDtypeStruct((cout4, n * cur_h * cur_w), jnp.float32),
        compiler_params=pltpu.CompilerParams(
            dimension_semantics=("arbitrary",),
            vmem_limit_bytes=32 * 1024 * 1024),
    )(*args)
    # (Cpad, N*Ho*Wo) -> (N, nc, Ho, Wo): pure layout plumbing, handled by XLA.
    out = out.reshape(cout4, n, cur_h, cur_w)
    return jnp.transpose(out, (1, 0, 2, 3))[:, :nc]


def init_params(key, nz, ngf, nc):
    ks = jax.random.split(key, 4)

    def conv_w(k, cin, cout, ksize):
        # PyTorch ConvTranspose2d weight shape: (in_channels, out_channels, K, K)
        return 0.02 * jax.random.normal(k, (cin, cout, ksize, ksize), jnp.float32)

    w1 = conv_w(ks[0], nz, ngf * 8, 2)
    g1, b1 = jnp.ones((ngf * 8,), jnp.float32), jnp.zeros((ngf * 8,), jnp.float32)
    w2 = conv_w(ks[1], ngf * 8, ngf * 4, 4)
    g2, b2 = jnp.ones((ngf * 4,), jnp.float32), jnp.zeros((ngf * 4,), jnp.float32)
    w3 = conv_w(ks[2], ngf * 4, ngf * 2, 4)
    g3, b3 = jnp.ones((ngf * 2,), jnp.float32), jnp.zeros((ngf * 2,), jnp.float32)
    w4 = conv_w(ks[3], ngf * 2, nc, 4)
    return (w1, g1, b1), (w2, g2, b2), (w3, g3, b3), w4


if __name__ == "__main__":
    key = jax.random.PRNGKey(0)
    k_in, k_par = jax.random.split(key)

    N, nz, ngf, nc = 2, 8, 8, 3
    x = jax.random.normal(k_in, (N, nz, 1, 1), jnp.float32)   # DCGAN latent (N, nz, 1, 1)
    params = init_params(k_par, nz, ngf, nc)

    fwd = jax.jit(functools.partial(generator_cnn_forward, params=params))
    out = jax.block_until_ready(fwd(x))

    assert out.shape == (N, nc, 16, 16), out.shape
    assert out.dtype == jnp.float32
    assert bool(jnp.all(jnp.isfinite(out)))
    assert bool(jnp.all(jnp.abs(out) <= 1.0 + 1e-6))          # tanh range
    print("KERNEL_OK")
</pallas_src>

<mosaic_0001>
module attributes {stable_mosaic.version = 11 : i64} {
  func.func @_generator_kernel(%arg0: i32, %arg1: memref<8x2xf32, #tpu.memory_space<vmem>>, %arg2: memref<256x8xbf16, #tpu.memory_space<vmem>>, %arg3: memref<4x2x8xbf16, #tpu.memory_space<vmem>>, %arg4: memref<64x1xf32, #tpu.memory_space<vmem>>, %arg5: memref<64x1xf32, #tpu.memory_space<vmem>>, %arg6: memref<512x64xbf16, #tpu.memory_space<vmem>>, %arg7: memref<16x8x32xbf16, #tpu.memory_space<vmem>>, %arg8: memref<32x1xf32, #tpu.memory_space<vmem>>, %arg9: memref<32x1xf32, #tpu.memory_space<vmem>>, %arg10: memref<256x32xbf16, #tpu.memory_space<vmem>>, %arg11: memref<16x32x128xbf16, #tpu.memory_space<vmem>>, %arg12: memref<16x1xf32, #tpu.memory_space<vmem>>, %arg13: memref<16x1xf32, #tpu.memory_space<vmem>>, %arg14: memref<128x16xbf16, #tpu.memory_space<vmem>>, %arg15: memref<16x128x512xbf16, #tpu.memory_space<vmem>>, %arg16: memref<8x512xf32, #tpu.memory_space<vmem>>) attributes {dimension_semantics = [#tpu.dimension_semantics<arbitrary>], iteration_bounds = array<i64: 1>, scalar_prefetch = 0 : i64, scratch_operands = 0 : i64, tpu.core_type = #tpu.core_type<tc>, window_params = [{pipeline_mode = #tpu.pipeline_mode<synchronous>, transform_indices = @transform_0, window_bounds = array<i64: 8, 2>}, {pipeline_mode = #tpu.pipeline_mode<synchronous>, transform_indices = @transform_1, window_bounds = array<i64: 256, 8>}, {pipeline_mode = #tpu.pipeline_mode<synchronous>, transform_indices = @transform_2, window_bounds = array<i64: 4, 2, 8>}, {pipeline_mode = #tpu.pipeline_mode<synchronous>, transform_indices = @transform_3, window_bounds = array<i64: 64, 1>}, {pipeline_mode = #tpu.pipeline_mode<synchronous>, transform_indices = @transform_4, window_bounds = array<i64: 64, 1>}, {pipeline_mode = #tpu.pipeline_mode<synchronous>, transform_indices = @transform_5, window_bounds = array<i64: 512, 64>}, {pipeline_mode = #tpu.pipeline_mode<synchronous>, transform_indices = @transform_6, window_bounds = array<i64: 16, 8, 32>}, {pipeline_mode = #tpu.pipeline_mode<synchronous>, transform_indices = @transform_7, window_bounds = array<i64: 32, 1>}, {pipeline_mode = #tpu.pipeline_mode<synchronous>, transform_indices = @transform_8, window_bounds = array<i64: 32, 1>}, {pipeline_mode = #tpu.pipeline_mode<synchronous>, transform_indices = @transform_9, window_bounds = array<i64: 256, 32>}, {pipeline_mode = #tpu.pipeline_mode<synchronous>, transform_indices = @transform_10, window_bounds = array<i64: 16, 32, 128>}, {pipeline_mode = #tpu.pipeline_mode<synchronous>, transform_indices = @transform_11, window_bounds = array<i64: 16, 1>}, {pipeline_mode = #tpu.pipeline_mode<synchronous>, transform_indices = @transform_12, window_bounds = array<i64: 16, 1>}, {pipeline_mode = #tpu.pipeline_mode<synchronous>, transform_indices = @transform_13, window_bounds = array<i64: 128, 16>}, {pipeline_mode = #tpu.pipeline_mode<synchronous>, transform_indices = @transform_14, window_bounds = array<i64: 16, 128, 512>}, {pipeline_mode = #tpu.pipeline_mode<synchronous>, transform_indices = @transform_15, window_bounds = array<i64: 8, 512>}]} {
    %c0 = arith.constant 0 : index
    %c0_0 = arith.constant 0 : index
    %0 = vector.load %arg1[%c0, %c0_0] : memref<8x2xf32, #tpu.memory_space<vmem>>, vector<8x2xf32>
    %1 = arith.truncf %0 : vector<8x2xf32> to vector<8x2xbf16>
    %c0_1 = arith.constant 0 : index
    %c0_2 = arith.constant 0 : index
    %2 = vector.load %arg2[%c0_1, %c0_2] : memref<256x8xbf16, #tpu.memory_space<vmem>>, vector<256x8xbf16>
    %cst = arith.constant dense<0.000000e+00> : vector<256x2xf32>
    %3 = tpu.matmul %2, %1, %cst {dimension_numbers = #tpu.dot_dimension_numbers<[1], [0], [0], [1], [0, 0, 1, 1], [], []>} : vector<256x8xbf16>, vector<8x2xbf16>, vector<256x2xf32> -> vector<256x2xf32>
    %4 = arith.truncf %3 : vector<256x2xf32> to vector<256x2xbf16>
    %5 = vector.extract_strided_slice %4 {offsets = [0, 0], sizes = [64, 2], strides = [1, 1]} : vector<256x2xbf16> to vector<64x2xbf16>
    %c0_3 = arith.constant 0 : index
    %c0_4 = arith.constant 0 : index
    %c0_5 = arith.constant 0 : index
    %6 = vector.load %arg3[%c0_3, %c0_4, %c0_5] : memref<4x2x8xbf16, #tpu.memory_space<vmem>>, vector<1x2x8xbf16>
    %7 = vector.shape_cast %6 : vector<1x2x8xbf16> to vector<2x8xbf16>
    %cst_6 = arith.constant dense<0.000000e+00> : vector<64x8xf32>
    %8 = tpu.matmul %5, %7, %cst_6 {dimension_numbers = #tpu.dot_dimension_numbers<[1], [0], [0], [1], [0, 0, 1, 1], [], []>} : vector<64x2xbf16>, vector<2x8xbf16>, vector<64x8xf32> -> vector<64x8xf32>
    %9 = vector.extract_strided_slice %4 {offsets = [64, 0], sizes = [64, 2], strides = [1, 1]} : vector<256x2xbf16> to vector<64x2xbf16>
    %c1 = arith.constant 1 : index
    %c0_7 = arith.constant 0 : index
    %c0_8 = arith.constant 0 : index
    %10 = vector.load %arg3[%c1, %c0_7, %c0_8] : memref<4x2x8xbf16, #tpu.memory_space<vmem>>, vector<1x2x8xbf16>
    %11 = vector.shape_cast %10 : vector<1x2x8xbf16> to vector<2x8xbf16>
    %cst_9 = arith.constant dense<0.000000e+00> : vector<64x8xf32>
    %12 = tpu.matmul %9, %11, %cst_9 {dimension_numbers = #tpu.dot_dimension_numbers<[1], [0], [0], [1], [0, 0, 1, 1], [], []>} : vector<64x2xbf16>, vector<2x8xbf16>, vector<64x8xf32> -> vector<64x8xf32>
    %13 = arith.addf %8, %12 : vector<64x8xf32>
    %14 = vector.extract_strided_slice %4 {offsets = [128, 0], sizes = [64, 2], strides = [1, 1]} : vector<256x2xbf16> to vector<64x2xbf16>
    %c2 = arith.constant 2 : index
    %c0_10 = arith.constant 0 : index
    %c0_11 = arith.constant 0 : index
    %15 = vector.load %arg3[%c2, %c0_10, %c0_11] : memref<4x2x8xbf16, #tpu.memory_space<vmem>>, vector<1x2x8xbf16>
    %16 = vector.shape_cast %15 : vector<1x2x8xbf16> to vector<2x8xbf16>
    %cst_12 = arith.constant dense<0.000000e+00> : vector<64x8xf32>
    %17 = tpu.matmul %14, %16, %cst_12 {dimension_numbers = #tpu.dot_dimension_numbers<[1], [0], [0], [1], [0, 0, 1, 1], [], []>} : vector<64x2xbf16>, vector<2x8xbf16>, vector<64x8xf32> -> vector<64x8xf32>
    %18 = arith.addf %13, %17 : vector<64x8xf32>
    %19 = vector.extract_strided_slice %4 {offsets = [192, 0], sizes = [64, 2], strides = [1, 1]} : vector<256x2xbf16> to vector<64x2xbf16>
    %c3 = arith.constant 3 : index
    %c0_13 = arith.constant 0 : index
    %c0_14 = arith.constant 0 : index
    %20 = vector.load %arg3[%c3, %c0_13, %c0_14] : memref<4x2x8xbf16, #tpu.memory_space<vmem>>, vector<1x2x8xbf16>
    %21 = vector.shape_cast %20 : vector<1x2x8xbf16> to vector<2x8xbf16>
    %cst_15 = arith.constant dense<0.000000e+00> : vector<64x8xf32>
    %22 = tpu.matmul %19, %21, %cst_15 {dimension_numbers = #tpu.dot_dimension_numbers<[1], [0], [0], [1], [0, 0, 1, 1], [], []>} : vector<64x2xbf16>, vector<2x8xbf16>, vector<64x8xf32> -> vector<64x8xf32>
    %23 = arith.addf %18, %22 : vector<64x8xf32>
    %cst_16 = arith.constant dense<0.000000e+00> : vector<64xf32>
    %24 = vector.multi_reduction <add>, %23, %cst_16 [1] : vector<64x8xf32> to vector<64xf32>
    %25 = vector.shape_cast %24 : vector<64xf32> to vector<64x1xf32>
    %cst_17 = arith.constant 8.000000e+00 : f32
    %26 = vector.broadcast %cst_17 : f32 to vector<64x1xf32>
    %27 = arith.divf %25, %26 : vector<64x1xf32>
    %28 = arith.mulf %23, %23 : vector<64x8xf32>
    %cst_18 = arith.constant dense<0.000000e+00> : vector<64xf32>
    %29 = vector.multi_reduction <add>, %28, %cst_18 [1] : vector<64x8xf32> to vector<64xf32>
    %30 = vector.shape_cast %29 : vector<64xf32> to vector<64x1xf32>
    %cst_19 = arith.constant 8.000000e+00 : f32
    %31 = vector.broadcast %cst_19 : f32 to vector<64x1xf32>
    %32 = arith.divf %30, %31 : vector<64x1xf32>
    %33 = arith.mulf %27, %27 : vector<64x1xf32>
    %34 = arith.subf %32, %33 : vector<64x1xf32>
    %cst_20 = arith.constant 0.000000e+00 : f32
    %35 = vector.broadcast %cst_20 : f32 to vector<64x1xf32>
    %36 = arith.maximumf %34, %35 : vector<64x1xf32>
    %c0_21 = arith.constant 0 : index
    %c0_22 = arith.constant 0 : index
    %37 = vector.load %arg4[%c0_21, %c0_22] : memref<64x1xf32, #tpu.memory_space<vmem>>, vector<64x1xf32>
    %cst_23 = arith.constant 9.99999974E-6 : f32
    %38 = vector.broadcast %cst_23 : f32 to vector<64x1xf32>
    %39 = arith.addf %36, %38 : vector<64x1xf32>
    %40 = math.rsqrt %39 : vector<64x1xf32>
    %41 = arith.mulf %37, %40 : vector<64x1xf32>
    %c0_24 = arith.constant 0 : index
    %c0_25 = arith.constant 0 : index
    %42 = vector.load %arg5[%c0_24, %c0_25] : memref<64x1xf32, #tpu.memory_space<vmem>>, vector<64x1xf32>
    %43 = arith.mulf %27, %41 : vector<64x1xf32>
    %44 = arith.subf %42, %43 : vector<64x1xf32>
    %45 = vector.broadcast %41 : vector<64x1xf32> to vector<64x8xf32>
    %46 = arith.mulf %23, %45 : vector<64x8xf32>
    %47 = vector.broadcast %44 : vector<64x1xf32> to vector<64x8xf32>
    %48 = arith.addf %46, %47 : vector<64x8xf32>
    %cst_26 = arith.constant 0.000000e+00 : f32
    %49 = vector.broadcast %cst_26 : f32 to vector<64x8xf32>
    %50 = arith.maximumf %48, %49 : vector<64x8xf32>
    %51 = arith.truncf %50 : vector<64x8xf32> to vector<64x8xbf16>
    %c0_27 = arith.constant 0 : index
    %c0_28 = arith.constant 0 : index
    %52 = vector.load %arg6[%c0_27, %c0_28] : memref<512x64xbf16, #tpu.memory_space<vmem>>, vector<512x64xbf16>
    %cst_29 = arith.constant dense<0.000000e+00> : vector<512x8xf32>
    %53 = tpu.matmul %52, %51, %cst_29 {dimension_numbers = #tpu.dot_dimension_numbers<[1], [0], [0], [1], [0, 0, 1, 1], [], []>} : vector<512x64xbf16>, vector<64x8xbf16>, vector<512x8xf32> -> vector<512x8xf32>
    %54 = arith.truncf %53 : vector<512x8xf32> to vector<512x8xbf16>
    %55 = vector.extract_strided_slice %54 {offsets = [0, 0], sizes = [32, 8], strides = [1, 1]} : vector<512x8xbf16> to vector<32x8xbf16>
    %c0_30 = arith.constant 0 : index
    %c0_31 = arith.constant 0 : index
    %c0_32 = arith.constant 0 : index
    %56 = vector.load %arg7[%c0_30, %c0_31, %c0_32] : memref<16x8x32xbf16, #tpu.memory_space<vmem>>, vector<1x8x32xbf16>
    %57 = vector.shape_cast %56 : vector<1x8x32xbf16> to vector<8x32xbf16>
    %cst_33 = arith.constant dense<0.000000e+00> : vector<32x32xf32>
    %58 = tpu.matmul %55, %57, %cst_33 {dimension_numbers = #tpu.dot_dimension_numbers<[1], [0], [0], [1], [0, 0, 1, 1], [], []>} : vector<32x8xbf16>, vector<8x32xbf16>, vector<32x32xf32> -> vector<32x32xf32>
    %59 = vector.extract_strided_slice %54 {offsets = [32, 0], sizes = [32, 8], strides = [1, 1]} : vector<512x8xbf16> to vector<32x8xbf16>
    %c1_34 = arith.constant 1 : index
    %c0_35 = arith.constant 0 : index
    %c0_36 = arith.constant 0 : index
    %60 = vector.load %arg7[%c1_34, %c0_35, %c0_36] : memref<16x8x32xbf16, #tpu.memory_space<vmem>>, vector<1x8x32xbf16>
    %61 = vector.shape_cast %60 : vector<1x8x32xbf16> to vector<8x32xbf16>
    %cst_37 = arith.constant dense<0.000000e+00> : vector<32x32xf32>
    %62 = tpu.matmul %59, %61, %cst_37 {dimension_numbers = #tpu.dot_dimension_numbers<[1], [0], [0], [1], [0, 0, 1, 1], [], []>} : vector<32x8xbf16>, vector<8x32xbf16>, vector<32x32xf32> -> vector<32x32xf32>
    %63 = arith.addf %58, %62 : vector<32x32xf32>
    %64 = vector.extract_strided_slice %54 {offsets = [64, 0], sizes = [32, 8], strides = [1, 1]} : vector<512x8xbf16> to vector<32x8xbf16>
    %c2_38 = arith.constant 2 : index
    %c0_39 = arith.constant 0 : index
    %c0_40 = arith.constant 0 : index
    %65 = vector.load %arg7[%c2_38, %c0_39, %c0_40] : memref<16x8x32xbf16, #tpu.memory_space<vmem>>, vector<1x8x32xbf16>
    %66 = vector.shape_cast %65 : vector<1x8x32xbf16> to vector<8x32xbf16>
    %cst_41 = arith.constant dense<0.000000e+00> : vector<32x32xf32>
    %67 = tpu.matmul %64, %66, %cst_41 {dimension_numbers = #tpu.dot_dimension_numbers<[1], [0], [0], [1], [0, 0, 1, 1], [], []>} : vector<32x8xbf16>, vector<8x32xbf16>, vector<32x32xf32> -> vector<32x32xf32>
    %68 = arith.addf %63, %67 : vector<32x32xf32>
    %69 = vector.extract_strided_slice %54 {offsets = [96, 0], sizes = [32, 8], strides = [1, 1]} : vector<512x8xbf16> to vector<32x8xbf16>
    %c3_42 = arith.constant 3 : index
    %c0_43 = arith.constant 0 : index
    %c0_44 = arith.constant 0 : index
    %70 = vector.load %arg7[%c3_42, %c0_43, %c0_44] : memref<16x8x32xbf16, #tpu.memory_space<vmem>>, vector<1x8x32xbf16>
    %71 = vector.shape_cast %70 : vector<1x8x32xbf16> to vector<8x32xbf16>
    %cst_45 = arith.constant dense<0.000000e+00> : vector<32x32xf32>
    %72 = tpu.matmul %69, %71, %cst_45 {dimension_numbers = #tpu.dot_dimension_numbers<[1], [0], [0], [1], [0, 0, 1, 1], [], []>} : vector<32x8xbf16>, vector<8x32xbf16>, vector<32x32xf32> -> vector<32x32xf32>
    %73 = arith.addf %68, %72 : vector<32x32xf32>
    %74 = vector.extract_strided_slice %54 {offsets = [128, 0], sizes = [32, 8], strides = [1, 1]} : vector<512x8xbf16> to vector<32x8xbf16>
    %c4 = arith.constant 4 : index
    %c0_46 = arith.constant 0 : index
    %c0_47 = arith.constant 0 : index
    %75 = vector.load %arg7[%c4, %c0_46, %c0_47] : memref<16x8x32xbf16, #tpu.memory_space<vmem>>, vector<1x8x32xbf16>
    %76 = vector.shape_cast %75 : vector<1x8x32xbf16> to vector<8x32xbf16>
    %cst_48 = arith.constant dense<0.000000e+00> : vector<32x32xf32>
    %77 = tpu.matmul %74, %76, %cst_48 {dimension_numbers = #tpu.dot_dimension_numbers<[1], [0], [0], [1], [0, 0, 1, 1], [], []>} : vector<32x8xbf16>, vector<8x32xbf16>, vector<32x32xf32> -> vector<32x32xf32>
    %78 = arith.addf %73, %77 : vector<32x32xf32>
    %79 = vector.extract_strided_slice %54 {offsets = [160, 0], sizes = [32, 8], strides = [1, 1]} : vector<512x8xbf16> to vector<32x8xbf16>
    %c5 = arith.constant 5 : index
    %c0_49 = arith.constant 0 : index
    %c0_50 = arith.constant 0 : index
    %80 = vector.load %arg7[%c5, %c0_49, %c0_50] : memref<16x8x32xbf16, #tpu.memory_space<vmem>>, vector<1x8x32xbf16>
    %81 = vector.shape_cast %80 : vector<1x8x32xbf16> to vector<8x32xbf16>
    %cst_51 = arith.constant dense<0.000000e+00> : vector<32x32xf32>
    %82 = tpu.matmul %79, %81, %cst_51 {dimension_numbers = #tpu.dot_dimension_numbers<[1], [0], [0], [1], [0, 0, 1, 1], [], []>} : vector<32x8xbf16>, vector<8x32xbf16>, vector<32x32xf32> -> vector<32x32xf32>
    %83 = arith.addf %78, %82 : vector<32x32xf32>
    %84 = vector.extract_strided_slice %54 {offsets = [192, 0], sizes = [32, 8], strides = [1, 1]} : vector<512x8xbf16> to vector<32x8xbf16>
    %c6 = arith.constant 6 : index
    %c0_52 = arith.constant 0 : index
    %c0_53 = arith.constant 0 : index
    %85 = vector.load %arg7[%c6, %c0_52, %c0_53] : memref<16x8x32xbf16, #tpu.memory_space<vmem>>, vector<1x8x32xbf16>
    %86 = vector.shape_cast %85 : vector<1x8x32xbf16> to vector<8x32xbf16>
    %cst_54 = arith.constant dense<0.000000e+00> : vector<32x32xf32>
    %87 = tpu.matmul %84, %86, %cst_54 {dimension_numbers = #tpu.dot_dimension_numbers<[1], [0], [0], [1], [0, 0, 1, 1], [], []>} : vector<32x8xbf16>, vector<8x32xbf16>, vector<32x32xf32> -> vector<32x32xf32>
    %88 = arith.addf %83, %87 : vector<32x32xf32>
    %89 = vector.extract_strided_slice %54 {offsets = [224, 0], sizes = [32, 8], strides = [1, 1]} : vector<512x8xbf16> to vector<32x8xbf16>
    %c7 = arith.constant 7 : index
    %c0_55 = arith.constant 0 : index
    %c0_56 = arith.constant 0 : index
    %90 = vector.load %arg7[%c7, %c0_55, %c0_56] : memref<16x8x32xbf16, #tpu.memory_space<vmem>>, vector<1x8x32xbf16>
    %91 = vector.shape_cast %90 : vector<1x8x32xbf16> to vector<8x32xbf16>
    %cst_57 = arith.constant dense<0.000000e+00> : vector<32x32xf32>
    %92 = tpu.matmul %89, %91, %cst_57 {dimension_numbers = #tpu.dot_dimension_numbers<[1], [0], [0], [1], [0, 0, 1, 1], [], []>} : vector<32x8xbf16>, vector<8x32xbf16>, vector<32x32xf32> -> vector<32x32xf32>
    %93 = arith.addf %88, %92 : vector<32x32xf32>
    %94 = vector.extract_strided_slice %54 {offsets = [256, 0], sizes = [32, 8], strides = [1, 1]} : vector<512x8xbf16> to vector<32x8xbf16>
    %c8 = arith.constant 8 : index
    %c0_58 = arith.constant 0 : index
    %c0_59 = arith.constant 0 : index
    %95 = vector.load %arg7[%c8, %c0_58, %c0_59] : memref<16x8x32xbf16, #tpu.memory_space<vmem>>, vector<1x8x32xbf16>
    %96 = vector.shape_cast %95 : vector<1x8x32xbf16> to vector<8x32xbf16>
    %cst_60 = arith.constant dense<0.000000e+00> : vector<32x32xf32>
    %97 = tpu.matmul %94, %96, %cst_60 {dimension_numbers = #tpu.dot_dimension_numbers<[1], [0], [0], [1], [0, 0, 1, 1], [], []>} : vector<32x8xbf16>, vector<8x32xbf16>, vector<32x32xf32> -> vector<32x32xf32>
    %98 = arith.addf %93, %97 : vector<32x32xf32>
    %99 = vector.extract_strided_slice %54 {offsets = [288, 0], sizes = [32, 8], strides = [1, 1]} : vector<512x8xbf16> to vector<32x8xbf16>
    %c9 = arith.constant 9 : index
    %c0_61 = arith.constant 0 : index
    %c0_62 = arith.constant 0 : index
    %100 = vector.load %arg7[%c9, %c0_61, %c0_62] : memref<16x8x32xbf16, #tpu.memory_space<vmem>>, vector<1x8x32xbf16>
    %101 = vector.shape_cast %100 : vector<1x8x32xbf16> to vector<8x32xbf16>
    %cst_63 = arith.constant dense<0.000000e+00> : vector<32x32xf32>
    %102 = tpu.matmul %99, %101, %cst_63 {dimension_numbers = #tpu.dot_dimension_numbers<[1], [0], [0], [1], [0, 0, 1, 1], [], []>} : vector<32x8xbf16>, vector<8x32xbf16>, vector<32x32xf32> -> vector<32x32xf32>
    %103 = arith.addf %98, %102 : vector<32x32xf32>
    %104 = vector.extract_strided_slice %54 {offsets = [320, 0], sizes = [32, 8], strides = [1, 1]} : vector<512x8xbf16> to vector<32x8xbf16>
    %c10 = arith.constant 10 : index
    %c0_64 = arith.constant 0 : index
    %c0_65 = arith.constant 0 : index
    %105 = vector.load %arg7[%c10, %c0_64, %c0_65] : memref<16x8x32xbf16, #tpu.memory_space<vmem>>, vector<1x8x32xbf16>
    %106 = vector.shape_cast %105 : vector<1x8x32xbf16> to vector<8x32xbf16>
    %cst_66 = arith.constant dense<0.000000e+00> : vector<32x32xf32>
    %107 = tpu.matmul %104, %106, %cst_66 {dimension_numbers = #tpu.dot_dimension_numbers<[1], [0], [0], [1], [0, 0, 1, 1], [], []>} : vector<32x8xbf16>, vector<8x32xbf16>, vector<32x32xf32> -> vector<32x32xf32>
    %108 = arith.addf %103, %107 : vector<32x32xf32>
    %109 = vector.extract_strided_slice %54 {offsets = [352, 0], sizes = [32, 8], strides = [1, 1]} : vector<512x8xbf16> to vector<32x8xbf16>
    %c11 = arith.constant 11 : index
    %c0_67 = arith.constant 0 : index
    %c0_68 = arith.constant 0 : index
    %110 = vector.load %arg7[%c11, %c0_67, %c0_68] : memref<16x8x32xbf16, #tpu.memory_space<vmem>>, vector<1x8x32xbf16>
    %111 = vector.shape_cast %110 : vector<1x8x32xbf16> to vector<8x32xbf16>
    %cst_69 = arith.constant dense<0.000000e+00> : vector<32x32xf32>
    %112 = tpu.matmul %109, %111, %cst_69 {dimension_numbers = #tpu.dot_dimension_numbers<[1], [0], [0], [1], [0, 0, 1, 1], [], []>} : vector<32x8xbf16>, vector<8x32xbf16>, vector<32x32xf32> -> vector<32x32xf32>
    %113 = arith.addf %108, %112 : vector<32x32xf32>
    %114 = vector.extract_strided_slice %54 {offsets = [384, 0], sizes = [32, 8], strides = [1, 1]} : vector<512x8xbf16> to vector<32x8xbf16>
    %c12 = arith.constant 12 : index
    %c0_70 = arith.constant 0 : index
    %c0_71 = arith.constant 0 : index
    %115 = vector.load %arg7[%c12, %c0_70, %c0_71] : memref<16x8x32xbf16, #tpu.memory_space<vmem>>, vector<1x8x32xbf16>
    %116 = vector.shape_cast %115 : vector<1x8x32xbf16> to vector<8x32xbf16>
    %cst_72 = arith.constant dense<0.000000e+00> : vector<32x32xf32>
    %117 = tpu.matmul %114, %116, %cst_72 {dimension_numbers = #tpu.dot_dimension_numbers<[1], [0], [0], [1], [0, 0, 1, 1], [], []>} : vector<32x8xbf16>, vector<8x32xbf16>, vector<32x32xf32> -> vector<32x32xf32>
    %118 = arith.addf %113, %117 : vector<32x32xf32>
    %119 = vector.extract_strided_slice %54 {offsets = [416, 0], sizes = [32, 8], strides = [1, 1]} : vector<512x8xbf16> to vector<32x8xbf16>
    %c13 = arith.constant 13 : index
    %c0_73 = arith.constant 0 : index
    %c0_74 = arith.constant 0 : index
    %120 = vector.load %arg7[%c13, %c0_73, %c0_74] : memref<16x8x32xbf16, #tpu.memory_space<vmem>>, vector<1x8x32xbf16>
    %121 = vector.shape_cast %120 : vector<1x8x32xbf16> to vector<8x32xbf16>
    %cst_75 = arith.constant dense<0.000000e+00> : vector<32x32xf32>
    %122 = tpu.matmul %119, %121, %cst_75 {dimension_numbers = #tpu.dot_dimension_numbers<[1], [0], [0], [1], [0, 0, 1, 1], [], []>} : vector<32x8xbf16>, vector<8x32xbf16>, vector<32x32xf32> -> vector<32x32xf32>
    %123 = arith.addf %118, %122 : vector<32x32xf32>
    %124 = vector.extract_strided_slice %54 {offsets = [448, 0], sizes = [32, 8], strides = [1, 1]} : vector<512x8xbf16> to vector<32x8xbf16>
    %c14 = arith.constant 14 : index
    %c0_76 = arith.constant 0 : index
    %c0_77 = arith.constant 0 : index
    %125 = vector.load %arg7[%c14, %c0_76, %c0_77] : memref<16x8x32xbf16, #tpu.memory_space<vmem>>, vector<1x8x32xbf16>
    %126 = vector.shape_cast %125 : vector<1x8x32xbf16> to vector<8x32xbf16>
    %cst_78 = arith.constant dense<0.000000e+00> : vector<32x32xf32>
    %127 = tpu.matmul %124, %126, %cst_78 {dimension_numbers = #tpu.dot_dimension_numbers<[1], [0], [0], [1], [0, 0, 1, 1], [], []>} : vector<32x8xbf16>, vector<8x32xbf16>, vector<32x32xf32> -> vector<32x32xf32>
    %128 = arith.addf %123, %127 : vector<32x32xf32>
    %129 = vector.extract_strided_slice %54 {offsets = [480, 0], sizes = [32, 8], strides = [1, 1]} : vector<512x8xbf16> to vector<32x8xbf16>
    %c15 = arith.constant 15 : index
    %c0_79 = arith.constant 0 : index
    %c0_80 = arith.constant 0 : index
    %130 = vector.load %arg7[%c15, %c0_79, %c0_80] : memref<16x8x32xbf16, #tpu.memory_space<vmem>>, vector<1x8x32xbf16>
    %131 = vector.shape_cast %130 : vector<1x8x32xbf16> to vector<8x32xbf16>
    %cst_81 = arith.constant dense<0.000000e+00> : vector<32x32xf32>
    %132 = tpu.matmul %129, %131, %cst_81 {dimension_numbers = #tpu.dot_dimension_numbers<[1], [0], [0], [1], [0, 0, 1, 1], [], []>} : vector<32x8xbf16>, vector<8x32xbf16>, vector<32x32xf32> -> vector<32x32xf32>
    %133 = arith.addf %128, %132 : vector<32x32xf32>
    %cst_82 = arith.constant dense<0.000000e+00> : vector<32xf32>
    %134 = vector.multi_reduction <add>, %133, %cst_82 [1] : vector<32x32xf32> to vector<32xf32>
    %135 = vector.shape_cast %134 : vector<32xf32> to vector<32x1xf32>
    %cst_83 = arith.constant 3.200000e+01 : f32
    %136 = vector.broadcast %cst_83 : f32 to vector<32x1xf32>
    %137 = arith.divf %135, %136 : vector<32x1xf32>
    %138 = arith.mulf %133, %133 : vector<32x32xf32>
    %cst_84 = arith.constant dense<0.000000e+00> : vector<32xf32>
    %139 = vector.multi_reduction <add>, %138, %cst_84 [1] : vector<32x32xf32> to vector<32xf32>
    %140 = vector.shape_cast %139 : vector<32xf32> to vector<32x1xf32>
    %cst_85 = arith.constant 3.200000e+01 : f32
    %141 = vector.broadcast %cst_85 : f32 to vector<32x1xf32>
    %142 = arith.divf %140, %141 : vector<32x1xf32>
    %143 = arith.mulf %137, %137 : vector<32x1xf32>
    %144 = arith.subf %142, %143 : vector<32x1xf32>
    %cst_86 = arith.constant 0.000000e+00 : f32
    %145 = vector.broadcast %cst_86 : f32 to vector<32x1xf32>
    %146 = arith.maximumf %144, %145 : vector<32x1xf32>
    %c0_87 = arith.constant 0 : index
    %c0_88 = arith.constant 0 : index
    %147 = vector.load %arg8[%c0_87, %c0_88] : memref<32x1xf32, #tpu.memory_space<vmem>>, vector<32x1xf32>
    %cst_89 = arith.constant 9.99999974E-6 : f32
    %148 = vector.broadcast %cst_89 : f32 to vector<32x1xf32>
    %149 = arith.addf %146, %148 : vector<32x1xf32>
    %150 = math.rsqrt %149 : vector<32x1xf32>
    %151 = arith.mulf %147, %150 : vector<32x1xf32>
    %c0_90 = arith.constant 0 : index
    %c0_91 = arith.constant 0 : index
    %152 = vector.load %arg9[%c0_90, %c0_91] : memref<32x1xf32, #tpu.memory_space<vmem>>, vector<32x1xf32>
    %153 = arith.mulf %137, %151 : vector<32x1xf32>
    %154 = arith.subf %152, %153 : vector<32x1xf32>
    %155 = vector.broadcast %151 : vector<32x1xf32> to vector<32x32xf32>
    %156 = arith.mulf %133, %155 : vector<32x32xf32>
    %157 = vector.broadcast %154 : vector<32x1xf32> to vector<32x32xf32>
    %158 = arith.addf %156, %157 : vector<32x32xf32>
    %cst_92 = arith.constant 0.000000e+00 : f32
    %159 = vector.broadcast %cst_92 : f32 to vector<32x32xf32>
    %160 = arith.maximumf %158, %159 : vector<32x32xf32>
    %161 = arith.truncf %160 : vector<32x32xf32> to vector<32x32xbf16>
    %c0_93 = arith.constant 0 : index
    %c0_94 = arith.constant 0 : index
    %162 = vector.load %arg10[%c0_93, %c0_94] : memref<256x32xbf16, #tpu.memory_space<vmem>>, vector<256x32xbf16>
    %cst_95 = arith.constant dense<0.000000e+00> : vector<256x32xf32>
    %163 = tpu.matmul %162, %161, %cst_95 {dimension_numbers = #tpu.dot_dimension_numbers<[1], [0], [0], [1], [0, 0, 1, 1], [], []>} : vector<256x32xbf16>, vector<32x32xbf16>, vector<256x32xf32> -> vector<256x32xf32>
    %164 = arith.truncf %163 : vector<256x32xf32> to vector<256x32xbf16>
    %165 = vector.extract_strided_slice %164 {offsets = [0, 0], sizes = [16, 32], strides = [1, 1]} : vector<256x32xbf16> to vector<16x32xbf16>
    %c0_96 = arith.constant 0 : index
    %c0_97 = arith.constant 0 : index
    %c0_98 = arith.constant 0 : index
    %166 = vector.load %arg11[%c0_96, %c0_97, %c0_98] : memref<16x32x128xbf16, #tpu.memory_space<vmem>>, vector<1x32x128xbf16>
    %167 = vector.shape_cast %166 : vector<1x32x128xbf16> to vector<32x128xbf16>
    %cst_99 = arith.constant dense<0.000000e+00> : vector<16x128xf32>
    %168 = tpu.matmul %165, %167, %cst_99 {dimension_numbers = #tpu.dot_dimension_numbers<[1], [0], [0], [1], [0, 0, 1, 1], [], []>} : vector<16x32xbf16>, vector<32x128xbf16>, vector<16x128xf32> -> vector<16x128xf32>
    %169 = vector.extract_strided_slice %164 {offsets = [16, 0], sizes = [16, 32], strides = [1, 1]} : vector<256x32xbf16> to vector<16x32xbf16>
    %c1_100 = arith.constant 1 : index
    %c0_101 = arith.constant 0 : index
    %c0_102 = arith.constant 0 : index
    %170 = vector.load %arg11[%c1_100, %c0_101, %c0_102] : memref<16x32x128xbf16, #tpu.memory_space<vmem>>, vector<1x32x128xbf16>
    %171 = vector.shape_cast %170 : vector<1x32x128xbf16> to vector<32x128xbf16>
    %cst_103 = arith.constant dense<0.000000e+00> : vector<16x128xf32>
    %172 = tpu.matmul %169, %171, %cst_103 {dimension_numbers = #tpu.dot_dimension_numbers<[1], [0], [0], [1], [0, 0, 1, 1], [], []>} : vector<16x32xbf16>, vector<32x128xbf16>, vector<16x128xf32> -> vector<16x128xf32>
    %173 = arith.addf %168, %172 : vector<16x128xf32>
    %174 = vector.extract_strided_slice %164 {offsets = [32, 0], sizes = [16, 32], strides = [1, 1]} : vector<256x32xbf16> to vector<16x32xbf16>
    %c2_104 = arith.constant 2 : index
    %c0_105 = arith.constant 0 : index
    %c0_106 = arith.constant 0 : index
    %175 = vector.load %arg11[%c2_104, %c0_105, %c0_106] : memref<16x32x128xbf16, #tpu.memory_space<vmem>>, vector<1x32x128xbf16>
    %176 = vector.shape_cast %175 : vector<1x32x128xbf16> to vector<32x128xbf16>
    %cst_107 = arith.constant dense<0.000000e+00> : vector<16x128xf32>
    %177 = tpu.matmul %174, %176, %cst_107 {dimension_numbers = #tpu.dot_dimension_numbers<[1], [0], [0], [1], [0, 0, 1, 1], [], []>} : vector<16x32xbf16>, vector<32x128xbf16>, vector<16x128xf32> -> vector<16x128xf32>
    %178 = arith.addf %173, %177 : vector<16x128xf32>
    %179 = vector.extract_strided_slice %164 {offsets = [48, 0], sizes = [16, 32], strides = [1, 1]} : vector<256x32xbf16> to vector<16x32xbf16>
    %c3_108 = arith.constant 3 : index
    %c0_109 = arith.constant 0 : index
    %c0_110 = arith.constant 0 : index
    %180 = vector.load %arg11[%c3_108, %c0_109, %c0_110] : memref<16x32x128xbf16, #tpu.memory_space<vmem>>, vector<1x32x128xbf16>
    %181 = vector.shape_cast %180 : vector<1x32x128xbf16> to vector<32x128xbf16>
    %cst_111 = arith.constant dense<0.000000e+00> : vector<16x128xf32>
    %182 = tpu.matmul %179, %181, %cst_111 {dimension_numbers = #tpu.dot_dimension_numbers<[1], [0], [0], [1], [0, 0, 1, 1], [], []>} : vector<16x32xbf16>, vector<32x128xbf16>, vector<16x128xf32> -> vector<16x128xf32>
    %183 = arith.addf %178, %182 : vector<16x128xf32>
    %184 = vector.extract_strided_slice %164 {offsets = [64, 0], sizes = [16, 32], strides = [1, 1]} : vector<256x32xbf16> to vector<16x32xbf16>
    %c4_112 = arith.constant 4 : index
    %c0_113 = arith.constant 0 : index
    %c0_114 = arith.constant 0 : index
    %185 = vector.load %arg11[%c4_112, %c0_113, %c0_114] : memref<16x32x128xbf16, #tpu.memory_space<vmem>>, vector<1x32x128xbf16>
    %186 = vector.shape_cast %185 : vector<1x32x128xbf16> to vector<32x128xbf16>
    %cst_115 = arith.constant dense<0.000000e+00> : vector<16x128xf32>
    %187 = tpu.matmul %184, %186, %cst_115 {dimension_numbers = #tpu.dot_dimension_numbers<[1], [0], [0], [1], [0, 0, 1, 1], [], []>} : vector<16x32xbf16>, vector<32x128xbf16>, vector<16x128xf32> -> vector<16x128xf32>
    %188 = arith.addf %183, %187 : vector<16x128xf32>
    %189 = vector.extract_strided_slice %164 {offsets = [80, 0], sizes = [16, 32], strides = [1, 1]} : vector<256x32xbf16> to vector<16x32xbf16>
    %c5_116 = arith.constant 5 : index
    %c0_117 = arith.constant 0 : index
    %c0_118 = arith.constant 0 : index
    %190 = vector.load %arg11[%c5_116, %c0_117, %c0_118] : memref<16x32x128xbf16, #tpu.memory_space<vmem>>, vector<1x32x128xbf16>
    %191 = vector.shape_cast %190 : vector<1x32x128xbf16> to vector<32x128xbf16>
    %cst_119 = arith.constant dense<0.000000e+00> : vector<16x128xf32>
    %192 = tpu.matmul %189, %191, %cst_119 {dimension_numbers = #tpu.dot_dimension_numbers<[1], [0], [0], [1], [0, 0, 1, 1], [], []>} : vector<16x32xbf16>, vector<32x128xbf16>, vector<16x128xf32> -> vector<16x128xf32>
    %193 = arith.addf %188, %192 : vector<16x128xf32>
    %194 = vector.extract_strided_slice %164 {offsets = [96, 0], sizes = [16, 32], strides = [1, 1]} : vector<256x32xbf16> to vector<16x32xbf16>
    %c6_120 = arith.constant 6 : index
    %c0_121 = arith.constant 0 : index
    %c0_122 = arith.constant 0 : index
    %195 = vector.load %arg11[%c6_120, %c0_121, %c0_122] : memref<16x32x128xbf16, #tpu.memory_space<vmem>>, vector<1x32x128xbf16>
    %196 = vector.shape_cast %195 : vector<1x32x128xbf16> to vector<32x128xbf16>
    %cst_123 = arith.constant dense<0.000000e+00> : vector<16x128xf32>
    %197 = tpu.matmul %194, %196, %cst_123 {dimension_numbers = #tpu.dot_dimension_numbers<[1], [0], [0], [1], [0, 0, 1, 1], [], []>} : vector<16x32xbf16>, vector<32x128xbf16>, vector<16x128xf32> -> vector<16x128xf32>
    %198 = arith.addf %193, %197 : vector<16x128xf32>
    %199 = vector.extract_strided_slice %164 {offsets = [112, 0], sizes = [16, 32], strides = [1, 1]} : vector<256x32xbf16> to vector<16x32xbf16>
    %c7_124 = arith.constant 7 : index
    %c0_125 = arith.constant 0 : index
    %c0_126 = arith.constant 0 : index
    %200 = vector.load %arg11[%c7_124, %c0_125, %c0_126] : memref<16x32x128xbf16, #tpu.memory_space<vmem>>, vector<1x32x128xbf16>
    %201 = vector.shape_cast %200 : vector<1x32x128xbf16> to vector<32x128xbf16>
    %cst_127 = arith.constant dense<0.000000e+00> : vector<16x128xf32>
    %202 = tpu.matmul %199, %201, %cst_127 {dimension_numbers = #tpu.dot_dimension_numbers<[1], [0], [0], [1], [0, 0, 1, 1], [], []>} : vector<16x32xbf16>, vector<32x128xbf16>, vector<16x128xf32> -> vector<16x128xf32>
    %203 = arith.addf %198, %202 : vector<16x128xf32>
    %204 = vector.extract_strided_slice %164 {offsets = [128, 0], sizes = [16, 32], strides = [1, 1]} : vector<256x32xbf16> to vector<16x32xbf16>
    %c8_128 = arith.constant 8 : index
    %c0_129 = arith.constant 0 : index
    %c0_130 = arith.constant 0 : index
    %205 = vector.load %arg11[%c8_128, %c0_129, %c0_130] : memref<16x32x128xbf16, #tpu.memory_space<vmem>>, vector<1x32x128xbf16>
    %206 = vector.shape_cast %205 : vector<1x32x128xbf16> to vector<32x128xbf16>
    %cst_131 = arith.constant dense<0.000000e+00> : vector<16x128xf32>
    %207 = tpu.matmul %204, %206, %cst_131 {dimension_numbers = #tpu.dot_dimension_numbers<[1], [0], [0], [1], [0, 0, 1, 1], [], []>} : vector<16x32xbf16>, vector<32x128xbf16>, vector<16x128xf32> -> vector<16x128xf32>
    %208 = arith.addf %203, %207 : vector<16x128xf32>
    %209 = vector.extract_strided_slice %164 {offsets = [144, 0], sizes = [16, 32], strides = [1, 1]} : vector<256x32xbf16> to vector<16x32xbf16>
    %c9_132 = arith.constant 9 : index
    %c0_133 = arith.constant 0 : index
    %c0_134 = arith.constant 0 : index
    %210 = vector.load %arg11[%c9_132, %c0_133, %c0_134] : memref<16x32x128xbf16, #tpu.memory_space<vmem>>, vector<1x32x128xbf16>
    %211 = vector.shape_cast %210 : vector<1x32x128xbf16> to vector<32x128xbf16>
    %cst_135 = arith.constant dense<0.000000e+00> : vector<16x128xf32>
    %212 = tpu.matmul %209, %211, %cst_135 {dimension_numbers = #tpu.dot_dimension_numbers<[1], [0], [0], [1], [0, 0, 1, 1], [], []>} : vector<16x32xbf16>, vector<32x128xbf16>, vector<16x128xf32> -> vector<16x128xf32>
    %213 = arith.addf %208, %212 : vector<16x128xf32>
    %214 = vector.extract_strided_slice %164 {offsets = [160, 0], sizes = [16, 32], strides = [1, 1]} : vector<256x32xbf16> to vector<16x32xbf16>
    %c10_136 = arith.constant 10 : index
    %c0_137 = arith.constant 0 : index
    %c0_138 = arith.constant 0 : index
    %215 = vector.load %arg11[%c10_136, %c0_137, %c0_138] : memref<16x32x128xbf16, #tpu.memory_space<vmem>>, vector<1x32x128xbf16>
    %216 = vector.shape_cast %215 : vector<1x32x128xbf16> to vector<32x128xbf16>
    %cst_139 = arith.constant dense<0.000000e+00> : vector<16x128xf32>
    %217 = tpu.matmul %214, %216, %cst_139 {dimension_numbers = #tpu.dot_dimension_numbers<[1], [0], [0], [1], [0, 0, 1, 1], [], []>} : vector<16x32xbf16>, vector<32x128xbf16>, vector<16x128xf32> -> vector<16x128xf32>
    %218 = arith.addf %213, %217 : vector<16x128xf32>
    %219 = vector.extract_strided_slice %164 {offsets = [176, 0], sizes = [16, 32], strides = [1, 1]} : vector<256x32xbf16> to vector<16x32xbf16>
    %c11_140 = arith.constant 11 : index
    %c0_141 = arith.constant 0 : index
    %c0_142 = arith.constant 0 : index
    %220 = vector.load %arg11[%c11_140, %c0_141, %c0_142] : memref<16x32x128xbf16, #tpu.memory_space<vmem>>, vector<1x32x128xbf16>
    %221 = vector.shape_cast %220 : vector<1x32x128xbf16> to vector<32x128xbf16>
    %cst_143 = arith.constant dense<0.000000e+00> : vector<16x128xf32>
    %222 = tpu.matmul %219, %221, %cst_143 {dimension_numbers = #tpu.dot_dimension_numbers<[1], [0], [0], [1], [0, 0, 1, 1], [], []>} : vector<16x32xbf16>, vector<32x128xbf16>, vector<16x128xf32> -> vector<16x128xf32>
    %223 = arith.addf %218, %222 : vector<16x128xf32>
    %224 = vector.extract_strided_slice %164 {offsets = [192, 0], sizes = [16, 32], strides = [1, 1]} : vector<256x32xbf16> to vector<16x32xbf16>
    %c12_144 = arith.constant 12 : index
    %c0_145 = arith.constant 0 : index
    %c0_146 = arith.constant 0 : index
    %225 = vector.load %arg11[%c12_144, %c0_145, %c0_146] : memref<16x32x128xbf16, #tpu.memory_space<vmem>>, vector<1x32x128xbf16>
    %226 = vector.shape_cast %225 : vector<1x32x128xbf16> to vector<32x128xbf16>
    %cst_147 = arith.constant dense<0.000000e+00> : vector<16x128xf32>
    %227 = tpu.matmul %224, %226, %cst_147 {dimension_numbers = #tpu.dot_dimension_numbers<[1], [0], [0], [1], [0, 0, 1, 1], [], []>} : vector<16x32xbf16>, vector<32x128xbf16>, vector<16x128xf32> -> vector<16x128xf32>
    %228 = arith.addf %223, %227 : vector<16x128xf32>
    %229 = vector.extract_strided_slice %164 {offsets = [208, 0], sizes = [16, 32], strides = [1, 1]} : vector<256x32xbf16> to vector<16x32xbf16>
    %c13_148 = arith.constant 13 : index
    %c0_149 = arith.constant 0 : index
    %c0_150 = arith.constant 0 : index
    %230 = vector.load %arg11[%c13_148, %c0_149, %c0_150] : memref<16x32x128xbf16, #tpu.memory_space<vmem>>, vector<1x32x128xbf16>
    %231 = vector.shape_cast %230 : vector<1x32x128xbf16> to vector<32x128xbf16>
    %cst_151 = arith.constant dense<0.000000e+00> : vector<16x128xf32>
    %232 = tpu.matmul %229, %231, %cst_151 {dimension_numbers = #tpu.dot_dimension_numbers<[1], [0], [0], [1], [0, 0, 1, 1], [], []>} : vector<16x32xbf16>, vector<32x128xbf16>, vector<16x128xf32> -> vector<16x128xf32>
    %233 = arith.addf %228, %232 : vector<16x128xf32>
    %234 = vector.extract_strided_slice %164 {offsets = [224, 0], sizes = [16, 32], strides = [1, 1]} : vector<256x32xbf16> to vector<16x32xbf16>
    %c14_152 = arith.constant 14 : index
    %c0_153 = arith.constant 0 : index
    %c0_154 = arith.constant 0 : index
    %235 = vector.load %arg11[%c14_152, %c0_153, %c0_154] : memref<16x32x128xbf16, #tpu.memory_space<vmem>>, vector<1x32x128xbf16>
    %236 = vector.shape_cast %235 : vector<1x32x128xbf16> to vector<32x128xbf16>
    %cst_155 = arith.constant dense<0.000000e+00> : vector<16x128xf32>
    %237 = tpu.matmul %234, %236, %cst_155 {dimension_numbers = #tpu.dot_dimension_numbers<[1], [0], [0], [1], [0, 0, 1, 1], [], []>} : vector<16x32xbf16>, vector<32x128xbf16>, vector<16x128xf32> -> vector<16x128xf32>
    %238 = arith.addf %233, %237 : vector<16x128xf32>
    %239 = vector.extract_strided_slice %164 {offsets = [240, 0], sizes = [16, 32], strides = [1, 1]} : vector<256x32xbf16> to vector<16x32xbf16>
    %c15_156 = arith.constant 15 : index
    %c0_157 = arith.constant 0 : index
    %c0_158 = arith.constant 0 : index
    %240 = vector.load %arg11[%c15_156, %c0_157, %c0_158] : memref<16x32x128xbf16, #tpu.memory_space<vmem>>, vector<1x32x128xbf16>
    %241 = vector.shape_cast %240 : vector<1x32x128xbf16> to vector<32x128xbf16>
    %cst_159 = arith.constant dense<0.000000e+00> : vector<16x128xf32>
    %242 = tpu.matmul %239, %241, %cst_159 {dimension_numbers = #tpu.dot_dimension_numbers<[1], [0], [0], [1], [0, 0, 1, 1], [], []>} : vector<16x32xbf16>, vector<32x128xbf16>, vector<16x128xf32> -> vector<16x128xf32>
    %243 = arith.addf %238, %242 : vector<16x128xf32>
    %cst_160 = arith.constant dense<0.000000e+00> : vector<16xf32>
    %244 = vector.multi_reduction <add>, %243, %cst_160 [1] : vector<16x128xf32> to vector<16xf32>
    %245 = vector.shape_cast %244 : vector<16xf32> to vector<16x1xf32>
    %cst_161 = arith.constant 1.280000e+02 : f32
    %246 = vector.broadcast %cst_161 : f32 to vector<16x1xf32>
    %247 = arith.divf %245, %246 : vector<16x1xf32>
    %248 = arith.mulf %243, %243 : vector<16x128xf32>
    %cst_162 = arith.constant dense<0.000000e+00> : vector<16xf32>
    %249 = vector.multi_reduction <add>, %248, %cst_162 [1] : vector<16x128xf32> to vector<16xf32>
    %250 = vector.shape_cast %249 : vector<16xf32> to vector<16x1xf32>
    %cst_163 = arith.constant 1.280000e+02 : f32
    %251 = vector.broadcast %cst_163 : f32 to vector<16x1xf32>
    %252 = arith.divf %250, %251 : vector<16x1xf32>
    %253 = arith.mulf %247, %247 : vector<16x1xf32>
    %254 = arith.subf %252, %253 : vector<16x1xf32>
    %cst_164 = arith.constant 0.000000e+00 : f32
    %255 = vector.broadcast %cst_164 : f32 to vector<16x1xf32>
    %256 = arith.maximumf %254, %255 : vector<16x1xf32>
    %c0_165 = arith.constant 0 : index
    %c0_166 = arith.constant 0 : index
    %257 = vector.load %arg12[%c0_165, %c0_166] : memref<16x1xf32, #tpu.memory_space<vmem>>, vector<16x1xf32>
    %cst_167 = arith.constant 9.99999974E-6 : f32
    %258 = vector.broadcast %cst_167 : f32 to vector<16x1xf32>
    %259 = arith.addf %256, %258 : vector<16x1xf32>
    %260 = math.rsqrt %259 : vector<16x1xf32>
    %261 = arith.mulf %257, %260 : vector<16x1xf32>
    %c0_168 = arith.constant 0 : index
    %c0_169 = arith.constant 0 : index
    %262 = vector.load %arg13[%c0_168, %c0_169] : memref<16x1xf32, #tpu.memory_space<vmem>>, vector<16x1xf32>
    %263 = arith.mulf %247, %261 : vector<16x1xf32>
    %264 = arith.subf %262, %263 : vector<16x1xf32>
    %265 = vector.broadcast %261 : vector<16x1xf32> to vector<16x128xf32>
    %266 = arith.mulf %243, %265 : vector<16x128xf32>
    %267 = vector.broadcast %264 : vector<16x1xf32> to vector<16x128xf32>
    %268 = arith.addf %266, %267 : vector<16x128xf32>
    %cst_170 = arith.constant 0.000000e+00 : f32
    %269 = vector.broadcast %cst_170 : f32 to vector<16x128xf32>
    %270 = arith.maximumf %268, %269 : vector<16x128xf32>
    %271 = arith.truncf %270 : vector<16x128xf32> to vector<16x128xbf16>
    %c0_171 = arith.constant 0 : index
    %c0_172 = arith.constant 0 : index
    %272 = vector.load %arg14[%c0_171, %c0_172] : memref<128x16xbf16, #tpu.memory_space<vmem>>, vector<128x16xbf16>
    %cst_173 = arith.constant dense<0.000000e+00> : vector<128x128xf32>
    %273 = tpu.matmul %272, %271, %cst_173 {dimension_numbers = #tpu.dot_dimension_numbers<[1], [0], [0], [1], [0, 0, 1, 1], [], []>} : vector<128x16xbf16>, vector<16x128xbf16>, vector<128x128xf32> -> vector<128x128xf32>
    %274 = arith.truncf %273 : vector<128x128xf32> to vector<128x128xbf16>
    %275 = vector.extract_strided_slice %274 {offsets = [0, 0], sizes = [8, 128], strides = [1, 1]} : vector<128x128xbf16> to vector<8x128xbf16>
    %c0_174 = arith.constant 0 : index
    %c0_175 = arith.constant 0 : index
    %c0_176 = arith.constant 0 : index
    %276 = vector.load %arg15[%c0_174, %c0_175, %c0_176] : memref<16x128x512xbf16, #tpu.memory_space<vmem>>, vector<1x128x512xbf16>
    %277 = vector.shape_cast %276 : vector<1x128x512xbf16> to vector<128x512xbf16>
    %cst_177 = arith.constant dense<0.000000e+00> : vector<8x512xf32>
    %278 = tpu.matmul %275, %277, %cst_177 {dimension_numbers = #tpu.dot_dimension_numbers<[1], [0], [0], [1], [0, 0, 1, 1], [], []>} : vector<8x128xbf16>, vector<128x512xbf16>, vector<8x512xf32> -> vector<8x512xf32>
    %279 = vector.extract_strided_slice %274 {offsets = [8, 0], sizes = [8, 128], strides = [1, 1]} : vector<128x128xbf16> to vector<8x128xbf16>
    %c1_178 = arith.constant 1 : index
    %c0_179 = arith.constant 0 : index
    %c0_180 = arith.constant 0 : index
    %280 = vector.load %arg15[%c1_178, %c0_179, %c0_180] : memref<16x128x512xbf16, #tpu.memory_space<vmem>>, vector<1x128x512xbf16>
    %281 = vector.shape_cast %280 : vector<1x128x512xbf16> to vector<128x512xbf16>
    %cst_181 = arith.constant dense<0.000000e+00> : vector<8x512xf32>
    %282 = tpu.matmul %279, %281, %cst_181 {dimension_numbers = #tpu.dot_dimension_numbers<[1], [0], [0], [1], [0, 0, 1, 1], [], []>} : vector<8x128xbf16>, vector<128x512xbf16>, vector<8x512xf32> -> vector<8x512xf32>
    %283 = arith.addf %278, %282 : vector<8x512xf32>
    %284 = vector.extract_strided_slice %274 {offsets = [16, 0], sizes = [8, 128], strides = [1, 1]} : vector<128x128xbf16> to vector<8x128xbf16>
    %c2_182 = arith.constant 2 : index
    %c0_183 = arith.constant 0 : index
    %c0_184 = arith.constant 0 : index
    %285 = vector.load %arg15[%c2_182, %c0_183, %c0_184] : memref<16x128x512xbf16, #tpu.memory_space<vmem>>, vector<1x128x512xbf16>
    %286 = vector.shape_cast %285 : vector<1x128x512xbf16> to vector<128x512xbf16>
    %cst_185 = arith.constant dense<0.000000e+00> : vector<8x512xf32>
    %287 = tpu.matmul %284, %286, %cst_185 {dimension_numbers = #tpu.dot_dimension_numbers<[1], [0], [0], [1], [0, 0, 1, 1], [], []>} : vector<8x128xbf16>, vector<128x512xbf16>, vector<8x512xf32> -> vector<8x512xf32>
    %288 = arith.addf %283, %287 : vector<8x512xf32>
    %289 = vector.extract_strided_slice %274 {offsets = [24, 0], sizes = [8, 128], strides = [1, 1]} : vector<128x128xbf16> to vector<8x128xbf16>
    %c3_186 = arith.constant 3 : index
    %c0_187 = arith.constant 0 : index
    %c0_188 = arith.constant 0 : index
    %290 = vector.load %arg15[%c3_186, %c0_187, %c0_188] : memref<16x128x512xbf16, #tpu.memory_space<vmem>>, vector<1x128x512xbf16>
    %291 = vector.shape_cast %290 : vector<1x128x512xbf16> to vector<128x512xbf16>
    %cst_189 = arith.constant dense<0.000000e+00> : vector<8x512xf32>
    %292 = tpu.matmul %289, %291, %cst_189 {dimension_numbers = #tpu.dot_dimension_numbers<[1], [0], [0], [1], [0, 0, 1, 1], [], []>} : vector<8x128xbf16>, vector<128x512xbf16>, vector<8x512xf32> -> vector<8x512xf32>
    %293 = arith.addf %288, %292 : vector<8x512xf32>
    %294 = vector.extract_strided_slice %274 {offsets = [32, 0], sizes = [8, 128], strides = [1, 1]} : vector<128x128xbf16> to vector<8x128xbf16>
    %c4_190 = arith.constant 4 : index
    %c0_191 = arith.constant 0 : index
    %c0_192 = arith.constant 0 : index
    %295 = vector.load %arg15[%c4_190, %c0_191, %c0_192] : memref<16x128x512xbf16, #tpu.memory_space<vmem>>, vector<1x128x512xbf16>
    %296 = vector.shape_cast %295 : vector<1x128x512xbf16> to vector<128x512xbf16>
    %cst_193 = arith.constant dense<0.000000e+00> : vector<8x512xf32>
    %297 = tpu.matmul %294, %296, %cst_193 {dimension_numbers = #tpu.dot_dimension_numbers<[1], [0], [0], [1], [0, 0, 1, 1], [], []>} : vector<8x128xbf16>, vector<128x512xbf16>, vector<8x512xf32> -> vector<8x512xf32>
    %298 = arith.addf %293, %297 : vector<8x512xf32>
    %299 = vector.extract_strided_slice %274 {offsets = [40, 0], sizes = [8, 128], strides = [1, 1]} : vector<128x128xbf16> to vector<8x128xbf16>
    %c5_194 = arith.constant 5 : index
    %c0_195 = arith.constant 0 : index
    %c0_196 = arith.constant 0 : index
    %300 = vector.load %arg15[%c5_194, %c0_195, %c0_196] : memref<16x128x512xbf16, #tpu.memory_space<vmem>>, vector<1x128x512xbf16>
    %301 = vector.shape_cast %300 : vector<1x128x512xbf16> to vector<128x512xbf16>
    %cst_197 = arith.constant dense<0.000000e+00> : vector<8x512xf32>
    %302 = tpu.matmul %299, %301, %cst_197 {dimension_numbers = #tpu.dot_dimension_numbers<[1], [0], [0], [1], [0, 0, 1, 1], [], []>} : vector<8x128xbf16>, vector<128x512xbf16>, vector<8x512xf32> -> vector<8x512xf32>
    %303 = arith.addf %298, %302 : vector<8x512xf32>
    %304 = vector.extract_strided_slice %274 {offsets = [48, 0], sizes = [8, 128], strides = [1, 1]} : vector<128x128xbf16> to vector<8x128xbf16>
    %c6_198 = arith.constant 6 : index
    %c0_199 = arith.constant 0 : index
    %c0_200 = arith.constant 0 : index
    %305 = vector.load %arg15[%c6_198, %c0_199, %c0_200] : memref<16x128x512xbf16, #tpu.memory_space<vmem>>, vector<1x128x512xbf16>
    %306 = vector.shape_cast %305 : vector<1x128x512xbf16> to vector<128x512xbf16>
    %cst_201 = arith.constant dense<0.000000e+00> : vector<8x512xf32>
    %307 = tpu.matmul %304, %306, %cst_201 {dimension_numbers = #tpu.dot_dimension_numbers<[1], [0], [0], [1], [0, 0, 1, 1], [], []>} : vector<8x128xbf16>, vector<128x512xbf16>, vector<8x512xf32> -> vector<8x512xf32>
    %308 = arith.addf %303, %307 : vector<8x512xf32>
    %309 = vector.extract_strided_slice %274 {offsets = [56, 0], sizes = [8, 128], strides = [1, 1]} : vector<128x128xbf16> to vector<8x128xbf16>
    %c7_202 = arith.constant 7 : index
    %c0_203 = arith.constant 0 : index
    %c0_204 = arith.constant 0 : index
    %310 = vector.load %arg15[%c7_202, %c0_203, %c0_204] : memref<16x128x512xbf16, #tpu.memory_space<vmem>>, vector<1x128x512xbf16>
    %311 = vector.shape_cast %310 : vector<1x128x512xbf16> to vector<128x512xbf16>
    %cst_205 = arith.constant dense<0.000000e+00> : vector<8x512xf32>
    %312 = tpu.matmul %309, %311, %cst_205 {dimension_numbers = #tpu.dot_dimension_numbers<[1], [0], [0], [1], [0, 0, 1, 1], [], []>} : vector<8x128xbf16>, vector<128x512xbf16>, vector<8x512xf32> -> vector<8x512xf32>
    %313 = arith.addf %308, %312 : vector<8x512xf32>
    %314 = vector.extract_strided_slice %274 {offsets = [64, 0], sizes = [8, 128], strides = [1, 1]} : vector<128x128xbf16> to vector<8x128xbf16>
    %c8_206 = arith.constant 8 : index
    %c0_207 = arith.constant 0 : index
    %c0_208 = arith.constant 0 : index
    %315 = vector.load %arg15[%c8_206, %c0_207, %c0_208] : memref<16x128x512xbf16, #tpu.memory_space<vmem>>, vector<1x128x512xbf16>
    %316 = vector.shape_cast %315 : vector<1x128x512xbf16> to vector<128x512xbf16>
    %cst_209 = arith.constant dense<0.000000e+00> : vector<8x512xf32>
    %317 = tpu.matmul %314, %316, %cst_209 {dimension_numbers = #tpu.dot_dimension_numbers<[1], [0], [0], [1], [0, 0, 1, 1], [], []>} : vector<8x128xbf16>, vector<128x512xbf16>, vector<8x512xf32> -> vector<8x512xf32>
    %318 = arith.addf %313, %317 : vector<8x512xf32>
    %319 = vector.extract_strided_slice %274 {offsets = [72, 0], sizes = [8, 128], strides = [1, 1]} : vector<128x128xbf16> to vector<8x128xbf16>
    %c9_210 = arith.constant 9 : index
    %c0_211 = arith.constant 0 : index
    %c0_212 = arith.constant 0 : index
    %320 = vector.load %arg15[%c9_210, %c0_211, %c0_212] : memref<16x128x512xbf16, #tpu.memory_space<vmem>>, vector<1x128x512xbf16>
    %321 = vector.shape_cast %320 : vector<1x128x512xbf16> to vector<128x512xbf16>
    %cst_213 = arith.constant dense<0.000000e+00> : vector<8x512xf32>
    %322 = tpu.matmul %319, %321, %cst_213 {dimension_numbers = #tpu.dot_dimension_numbers<[1], [0], [0], [1], [0, 0, 1, 1], [], []>} : vector<8x128xbf16>, vector<128x512xbf16>, vector<8x512xf32> -> vector<8x512xf32>
    %323 = arith.addf %318, %322 : vector<8x512xf32>
    %324 = vector.extract_strided_slice %274 {offsets = [80, 0], sizes = [8, 128], strides = [1, 1]} : vector<128x128xbf16> to vector<8x128xbf16>
    %c10_214 = arith.constant 10 : index
    %c0_215 = arith.constant 0 : index
    %c0_216 = arith.constant 0 : index
    %325 = vector.load %arg15[%c10_214, %c0_215, %c0_216] : memref<16x128x512xbf16, #tpu.memory_space<vmem>>, vector<1x128x512xbf16>
    %326 = vector.shape_cast %325 : vector<1x128x512xbf16> to vector<128x512xbf16>
    %cst_217 = arith.constant dense<0.000000e+00> : vector<8x512xf32>
    %327 = tpu.matmul %324, %326, %cst_217 {dimension_numbers = #tpu.dot_dimension_numbers<[1], [0], [0], [1], [0, 0, 1, 1], [], []>} : vector<8x128xbf16>, vector<128x512xbf16>, vector<8x512xf32> -> vector<8x512xf32>
    %328 = arith.addf %323, %327 : vector<8x512xf32>
    %329 = vector.extract_strided_slice %274 {offsets = [88, 0], sizes = [8, 128], strides = [1, 1]} : vector<128x128xbf16> to vector<8x128xbf16>
    %c11_218 = arith.constant 11 : index
    %c0_219 = arith.constant 0 : index
    %c0_220 = arith.constant 0 : index
    %330 = vector.load %arg15[%c11_218, %c0_219, %c0_220] : memref<16x128x512xbf16, #tpu.memory_space<vmem>>, vector<1x128x512xbf16>
    %331 = vector.shape_cast %330 : vector<1x128x512xbf16> to vector<128x512xbf16>
    %cst_221 = arith.constant dense<0.000000e+00> : vector<8x512xf32>
    %332 = tpu.matmul %329, %331, %cst_221 {dimension_numbers = #tpu.dot_dimension_numbers<[1], [0], [0], [1], [0, 0, 1, 1], [], []>} : vector<8x128xbf16>, vector<128x512xbf16>, vector<8x512xf32> -> vector<8x512xf32>
    %333 = arith.addf %328, %332 : vector<8x512xf32>
    %334 = vector.extract_strided_slice %274 {offsets = [96, 0], sizes = [8, 128], strides = [1, 1]} : vector<128x128xbf16> to vector<8x128xbf16>
    %c12_222 = arith.constant 12 : index
    %c0_223 = arith.constant 0 : index
    %c0_224 = arith.constant 0 : index
    %335 = vector.load %arg15[%c12_222, %c0_223, %c0_224] : memref<16x128x512xbf16, #tpu.memory_space<vmem>>, vector<1x128x512xbf16>
    %336 = vector.shape_cast %335 : vector<1x128x512xbf16> to vector<128x512xbf16>
    %cst_225 = arith.constant dense<0.000000e+00> : vector<8x512xf32>
    %337 = tpu.matmul %334, %336, %cst_225 {dimension_numbers = #tpu.dot_dimension_numbers<[1], [0], [0], [1], [0, 0, 1, 1], [], []>} : vector<8x128xbf16>, vector<128x512xbf16>, vector<8x512xf32> -> vector<8x512xf32>
    %338 = arith.addf %333, %337 : vector<8x512xf32>
    %339 = vector.extract_strided_slice %274 {offsets = [104, 0], sizes = [8, 128], strides = [1, 1]} : vector<128x128xbf16> to vector<8x128xbf16>
    %c13_226 = arith.constant 13 : index
    %c0_227 = arith.constant 0 : index
    %c0_228 = arith.constant 0 : index
    %340 = vector.load %arg15[%c13_226, %c0_227, %c0_228] : memref<16x128x512xbf16, #tpu.memory_space<vmem>>, vector<1x128x512xbf16>
    %341 = vector.shape_cast %340 : vector<1x128x512xbf16> to vector<128x512xbf16>
    %cst_229 = arith.constant dense<0.000000e+00> : vector<8x512xf32>
    %342 = tpu.matmul %339, %341, %cst_229 {dimension_numbers = #tpu.dot_dimension_numbers<[1], [0], [0], [1], [0, 0, 1, 1], [], []>} : vector<8x128xbf16>, vector<128x512xbf16>, vector<8x512xf32> -> vector<8x512xf32>
    %343 = arith.addf %338, %342 : vector<8x512xf32>
    %344 = vector.extract_strided_slice %274 {offsets = [112, 0], sizes = [8, 128], strides = [1, 1]} : vector<128x128xbf16> to vector<8x128xbf16>
    %c14_230 = arith.constant 14 : index
    %c0_231 = arith.constant 0 : index
    %c0_232 = arith.constant 0 : index
    %345 = vector.load %arg15[%c14_230, %c0_231, %c0_232] : memref<16x128x512xbf16, #tpu.memory_space<vmem>>, vector<1x128x512xbf16>
    %346 = vector.shape_cast %345 : vector<1x128x512xbf16> to vector<128x512xbf16>
    %cst_233 = arith.constant dense<0.000000e+00> : vector<8x512xf32>
    %347 = tpu.matmul %344, %346, %cst_233 {dimension_numbers = #tpu.dot_dimension_numbers<[1], [0], [0], [1], [0, 0, 1, 1], [], []>} : vector<8x128xbf16>, vector<128x512xbf16>, vector<8x512xf32> -> vector<8x512xf32>
    %348 = arith.addf %343, %347 : vector<8x512xf32>
    %349 = vector.extract_strided_slice %274 {offsets = [120, 0], sizes = [8, 128], strides = [1, 1]} : vector<128x128xbf16> to vector<8x128xbf16>
    %c15_234 = arith.constant 15 : index
    %c0_235 = arith.constant 0 : index
    %c0_236 = arith.constant 0 : index
    %350 = vector.load %arg15[%c15_234, %c0_235, %c0_236] : memref<16x128x512xbf16, #tpu.memory_space<vmem>>, vector<1x128x512xbf16>
    %351 = vector.shape_cast %350 : vector<1x128x512xbf16> to vector<128x512xbf16>
    %cst_237 = arith.constant dense<0.000000e+00> : vector<8x512xf32>
    %352 = tpu.matmul %349, %351, %cst_237 {dimension_numbers = #tpu.dot_dimension_numbers<[1], [0], [0], [1], [0, 0, 1, 1], [], []>} : vector<8x128xbf16>, vector<128x512xbf16>, vector<8x512xf32> -> vector<8x512xf32>
    %353 = arith.addf %348, %352 : vector<8x512xf32>
    %354 = math.tanh %353 : vector<8x512xf32>
    %c0_238 = arith.constant 0 : index
    %c0_239 = arith.constant 0 : index
    %355 = vector.load %arg16[%c0_238, %c0_239] : memref<8x512xf32, #tpu.memory_space<vmem>>, vector<8x512xf32>
    tpu.vector_store %arg16[%c0_238, %c0_239], %354 {strides = array<i32>} : memref<8x512xf32, #tpu.memory_space<vmem>>, vector<8x512xf32>,
    return
  }
  func.func @transform_0(%arg0: i32) -> (i32, i32) {
    %c0_i32 = arith.constant 0 : i32
    %c0_i32_0 = arith.constant 0 : i32
    %c0_i32_1 = arith.constant 0 : i32
    return %c0_i32, %c0_i32_0 : i32, i32
  }
  func.func @transform_1(%arg0: i32) -> (i32, i32) {
    %c0_i32 = arith.constant 0 : i32
    %c0_i32_0 = arith.constant 0 : i32
    %c0_i32_1 = arith.constant 0 : i32
    return %c0_i32, %c0_i32_0 : i32, i32
  }
  func.func @transform_2(%arg0: i32) -> (i32, i32, i32) {
    %c0_i32 = arith.constant 0 : i32
    %c0_i32_0 = arith.constant 0 : i32
    %c0_i32_1 = arith.constant 0 : i32
    %c0_i32_2 = arith.constant 0 : i32
    return %c0_i32, %c0_i32_0, %c0_i32_1 : i32, i32, i32
  }
  func.func @transform_3(%arg0: i32) -> (i32, i32) {
    %c0_i32 = arith.constant 0 : i32
    %c0_i32_0 = arith.constant 0 : i32
    %c0_i32_1 = arith.constant 0 : i32
    return %c0_i32, %c0_i32_0 : i32, i32
  }
  func.func @transform_4(%arg0: i32) -> (i32, i32) {
    %c0_i32 = arith.constant 0 : i32
    %c0_i32_0 = arith.constant 0 : i32
    %c0_i32_1 = arith.constant 0 : i32
    return %c0_i32, %c0_i32_0 : i32, i32
  }
  func.func @transform_5(%arg0: i32) -> (i32, i32) {
    %c0_i32 = arith.constant 0 : i32
    %c0_i32_0 = arith.constant 0 : i32
    %c0_i32_1 = arith.constant 0 : i32
    return %c0_i32, %c0_i32_0 : i32, i32
  }
  func.func @transform_6(%arg0: i32) -> (i32, i32, i32) {
    %c0_i32 = arith.constant 0 : i32
    %c0_i32_0 = arith.constant 0 : i32
    %c0_i32_1 = arith.constant 0 : i32
    %c0_i32_2 = arith.constant 0 : i32
    return %c0_i32, %c0_i32_0, %c0_i32_1 : i32, i32, i32
  }
  func.func @transform_7(%arg0: i32) -> (i32, i32) {
    %c0_i32 = arith.constant 0 : i32
    %c0_i32_0 = arith.constant 0 : i32
    %c0_i32_1 = arith.constant 0 : i32
    return %c0_i32, %c0_i32_0 : i32, i32
  }
  func.func @transform_8(%arg0: i32) -> (i32, i32) {
    %c0_i32 = arith.constant 0 : i32
    %c0_i32_0 = arith.constant 0 : i32
    %c0_i32_1 = arith.constant 0 : i32
    return %c0_i32, %c0_i32_0 : i32, i32
  }
  func.func @transform_9(%arg0: i32) -> (i32, i32) {
    %c0_i32 = arith.constant 0 : i32
    %c0_i32_0 = arith.constant 0 : i32
    %c0_i32_1 = arith.constant 0 : i32
    return %c0_i32, %c0_i32_0 : i32, i32
  }
  func.func @transform_10(%arg0: i32) -> (i32, i32, i32) {
    %c0_i32 = arith.constant 0 : i32
    %c0_i32_0 = arith.constant 0 : i32
    %c0_i32_1 = arith.constant 0 : i32
    %c0_i32_2 = arith.constant 0 : i32
    return %c0_i32, %c0_i32_0, %c0_i32_1 : i32, i32, i32
  }
  func.func @transform_11(%arg0: i32) -> (i32, i32) {
    %c0_i32 = arith.constant 0 : i32
    %c0_i32_0 = arith.constant 0 : i32
    %c0_i32_1 = arith.constant 0 : i32
    return %c0_i32, %c0_i32_0 : i32, i32
  }
  func.func @transform_12(%arg0: i32) -> (i32, i32) {
    %c0_i32 = arith.constant 0 : i32
    %c0_i32_0 = arith.constant 0 : i32
    %c0_i32_1 = arith.constant 0 : i32
    return %c0_i32, %c0_i32_0 : i32, i32
  }
  func.func @transform_13(%arg0: i32) -> (i32, i32) {
    %c0_i32 = arith.constant 0 : i32
    %c0_i32_0 = arith.constant 0 : i32
    %c0_i32_1 = arith.constant 0 : i32
    return %c0_i32, %c0_i32_0 : i32, i32
  }
  func.func @transform_14(%arg0: i32) -> (i32, i32, i32) {
    %c0_i32 = arith.constant 0 : i32
    %c0_i32_0 = arith.constant 0 : i32
    %c0_i32_1 = arith.constant 0 : i32
    %c0_i32_2 = arith.constant 0 : i32
    return %c0_i32, %c0_i32_0, %c0_i32_1 : i32, i32, i32
  }
  func.func @transform_15(%arg0: i32) -> (i32, i32) {
    %c0_i32 = arith.constant 0 : i32
    %c0_i32_0 = arith.constant 0 : i32
    %c0_i32_1 = arith.constant 0 : i32
    return %c0_i32, %c0_i32_0 : i32, i32
  }
}

</mosaic_0001>

<llo_original>
// kernel: generator_cnn_forward.1
$region0: #{generator_cnn_forward.1}
  #allocation0 [shape = 'u32[]', space=smem, size = 0x4, offset = 0x4, fixed_abs, tag = 'smem constant byte address 0x4 - core index']
  #allocation1 [shape = 'u32[72,128]{1,0:T(1,128)}', space=vmem, size = 0x9000, scoped, tag = 'internal scratch']
  %s0 = inlined_call_operand.vmem [shape: f32[8,2], index: 0, kind: input, shape index: {}]
  %s1 = inlined_call_operand.hbm [shape: bf16[256,8], index: 1, kind: input, shape index: {}]
  %s2 = inlined_call_operand.hbm [shape: bf16[4,2,8], index: 2, kind: input, shape index: {}]
  %s3 = inlined_call_operand.vmem [shape: f32[64,1], index: 3, kind: input, shape index: {}]
  %s4 = inlined_call_operand.vmem [shape: f32[64,1], index: 4, kind: input, shape index: {}]
  %s5 = inlined_call_operand.hbm [shape: bf16[512,64], index: 5, kind: input, shape index: {}]
  %s6 = inlined_call_operand.hbm [shape: bf16[16,8,32], index: 6, kind: input, shape index: {}]
  %s7 = inlined_call_operand.vmem [shape: f32[32,1], index: 7, kind: input, shape index: {}]
  %s8 = inlined_call_operand.vmem [shape: f32[32,1], index: 8, kind: input, shape index: {}]
  %s9 = inlined_call_operand.hbm [shape: bf16[256,32], index: 9, kind: input, shape index: {}]
  %s10 = inlined_call_operand.hbm [shape: bf16[16,32,128], index: 10, kind: input, shape index: {}]
  %s11 = inlined_call_operand.vmem [shape: f32[16,1], index: 11, kind: input, shape index: {}]
  %s12 = inlined_call_operand.vmem [shape: f32[16,1], index: 12, kind: input, shape index: {}]
  %s13 = inlined_call_operand.hbm [shape: bf16[128,16], index: 13, kind: input, shape index: {}]
  %s14 = inlined_call_operand.hbm [shape: bf16[16,128,512], index: 14, kind: input, shape index: {}]
  %s15 = inlined_call_operand.vmem [shape: f32[8,512], index: 15, kind: output, shape index: {}]
  %s16 = sld [smem:[#allocation0]]
  $region102: #{generator_cnn_forward.1} parent=0
    _
  %s18 = ssub.s32 1, %s16
  %s19 = scalar_select 0, %s18, %s16
  $region1: #{generator_cnn_forward.1} parent=0
    #allocation2 [shape = 'u8[65536]{0}', space=vmem, size = 0x10000, scoped, tag = 'input window, operand 1, single buffered']
    #allocation3 [shape = 's32[1]{0}', space=sflag, size = 0x4, scoped, tag = 'scoped memory for generator_cnn_forward.1']
    #allocation4 [shape = 'u8[2048]{0}', space=vmem, size = 0x800, scoped, tag = 'input window, operand 2, single buffered']
    #allocation5 [shape = 's32[1]{0}', space=sflag, size = 0x4, scoped, tag = 'scoped memory for generator_cnn_forward.1']
    #allocation6 [shape = 'u8[131072]{0}', space=vmem, size = 0x20000, scoped, tag = 'input window, operand 5, single buffered']
    #allocation7 [shape = 'u8[32768]{0}', space=vmem, size = 0x8000, scoped, tag = 'input window, operand 6, single buffered']
    #allocation8 [shape = 's32[1]{0}', space=sflag, size = 0x4, scoped, tag = 'scoped memory for generator_cnn_forward.1']
    #allocation9 [shape = 'u8[65536]{0}', space=vmem, size = 0x10000, scoped, tag = 'input window, operand 9, single buffered']
    #allocation10 [shape = 'u8[131072]{0}', space=vmem, size = 0x20000, scoped, tag = 'input window, operand 10, single buffered']
    #allocation11 [shape = 's32[1]{0}', space=sflag, size = 0x4, scoped, tag = 'scoped memory for generator_cnn_forward.1']
    #allocation12 [shape = 'u8[32768]{0}', space=vmem, size = 0x8000, scoped, tag = 'input window, operand 13, single buffered']
    #allocation13 [shape = 'u8[2097152]{0}', space=vmem, size = 0x200000, scoped, tag = 'input window, operand 14, single buffered']
    #allocation14 [shape = 's32[1]{0}', space=sflag, size = 0x4, scoped, tag = 'scoped memory for generator_cnn_forward.1']
    %20 = vsyncpa [#allocation3], 0
    %21 = vsyncpa [#allocation5], 0
    %22 = vsyncpa [#allocation8], 0
    %23 = vsyncpa [#allocation11], 0
    %24 = vsyncpa [#allocation14], 0
    // Predicated region
    $region2: #{generator_cnn_forward.1} parent=1 // pred_check
      _
    $region3: #{generator_cnn_forward.1} parent=1 // pred_check_branch
      %26 = sbr.rel (0) target = $region5
    $region4: #{generator_cnn_forward.1} parent=1 // pred_region
      _
    $region5: #{generator_cnn_forward.1} parent=1 // pred_fallthru
      _
    // Predicated region
    $region6: #{generator_cnn_forward.1} parent=1 // pred_check
      _
    $region7: #{generator_cnn_forward.1} parent=1 // pred_check_branch
      %28 = sbr.rel (0) target = $region9
    $region8: #{generator_cnn_forward.1} parent=1 // pred_region
      %30 = vsyncadd [#allocation3], 0
      %s31 = sshll.u32 %s1, 4
      %s32 = int_to_ptr.hbm [resolvable:$true] %s31
      %s33 = sshll.u32 [#allocation2], 4
      %s34 = int_to_ptr.vmem [resolvable:$true] %s33
      %39 = dma.hbm_to_vmem [thread:$0]  %s32, 2048, %s34, [#allocation3], 64, 64, 4
    $region9: #{generator_cnn_forward.1} parent=1 // pred_fallthru
      _
    // Predicated region
    $region10: #{generator_cnn_forward.1} parent=1 // pred_check
      _
    $region11: #{generator_cnn_forward.1} parent=1 // pred_check_branch
      %41 = sbr.rel (0) target = $region13
    $region12: #{generator_cnn_forward.1} parent=1 // pred_region
      %43 = vsyncadd [#allocation5], 0
      %s44 = sshll.u32 %s2, 4
      %s45 = int_to_ptr.hbm [resolvable:$true] %s44
      %s46 = sshll.u32 [#allocation4], 4
      %s47 = int_to_ptr.vmem [resolvable:$true] %s46
      %52 = dma.hbm_to_vmem [thread:$0]  %s45, 64, %s47, [#allocation5], 16, 16, 1
    $region13: #{generator_cnn_forward.1} parent=1 // pred_fallthru
      _
    // Predicated region
    $region14: #{generator_cnn_forward.1} parent=1 // pred_check
      _
    $region15: #{generator_cnn_forward.1} parent=1 // pred_check_branch
      %54 = sbr.rel (0) target = $region17
    $region16: #{generator_cnn_forward.1} parent=1 // pred_region
      _
    $region17: #{generator_cnn_forward.1} parent=1 // pred_fallthru
      _
    // Predicated region
    $region18: #{generator_cnn_forward.1} parent=1 // pred_check
      _
    $region19: #{generator_cnn_forward.1} parent=1 // pred_check_branch
      %56 = sbr.rel (0) target = $region21
    $region20: #{generator_cnn_forward.1} parent=1 // pred_region
      _
    $region21: #{generator_cnn_forward.1} parent=1 // pred_fallthru
      _
    // Predicated region
    $region22: #{generator_cnn_forward.1} parent=1 // pred_check
      _
    $region23: #{generator_cnn_forward.1} parent=1 // pred_check_branch
      %58 = sbr.rel (0) target = $region25
    $region24: #{generator_cnn_forward.1} parent=1 // pred_region
      %60 = vsyncadd [#allocation5], 0
      %s61 = sshll.u32 %s5, 4
      %s62 = int_to_ptr.hbm [resolvable:$true] %s61
      %s63 = sshll.u32 [#allocation6], 4
      %s64 = int_to_ptr.vmem [resolvable:$true] %s63
      %69 = dma.hbm_to_vmem [thread:$0]  %s62, 4096, %s64, [#allocation5], 64, 64, 4
    $region25: #{generator_cnn_forward.1} parent=1 // pred_fallthru
      _
    // Predicated region
    $region26: #{generator_cnn_forward.1} parent=1 // pred_check
      _
    $region27: #{generator_cnn_forward.1} parent=1 // pred_check_branch
      %71 = sbr.rel (0) target = $region29
    $region28: #{generator_cnn_forward.1} parent=1 // pred_region
      %73 = vsyncadd [#allocation8], 0
      %s74 = sshll.u32 %s6, 4
      %s75 = int_to_ptr.hbm [resolvable:$true] %s74
      %s76 = sshll.u32 [#allocation7], 4
      %s77 = int_to_ptr.vmem [resolvable:$true] %s76
      %82 = dma.hbm_to_vmem [thread:$0]  %s75, 1024, %s77, [#allocation8], 64, 64, 4
    $region29: #{generator_cnn_forward.1} parent=1 // pred_fallthru
      _
    // Predicated region
    $region30: #{generator_cnn_forward.1} parent=1 // pred_check
      _
    $region31: #{generator_cnn_forward.1} parent=1 // pred_check_branch
      %84 = sbr.rel (0) target = $region33
    $region32: #{generator_cnn_forward.1} parent=1 // pred_region
      _
    $region33: #{generator_cnn_forward.1} parent=1 // pred_fallthru
      _
    // Predicated region
    $region34: #{generator_cnn_forward.1} parent=1 // pred_check
      _
    $region35: #{generator_cnn_forward.1} parent=1 // pred_check_branch
      %86 = sbr.rel (0) target = $region37
    $region36: #{generator_cnn_forward.1} parent=1 // pred_region
      _
    $region37: #{generator_cnn_forward.1} parent=1 // pred_fallthru
      _
    // Predicated region
    $region38: #{generator_cnn_forward.1} parent=1 // pred_check
      _
    $region39: #{generator_cnn_forward.1} parent=1 // pred_check_branch
      %88 = sbr.rel (0) target = $region41
    $region40: #{generator_cnn_forward.1} parent=1 // pred_region
      %90 = vsyncadd [#allocation8], 0
      %s91 = sshll.u32 %s9, 4
      %s92 = int_to_ptr.hbm [resolvable:$true] %s91
      %s93 = sshll.u32 [#allocation9], 4
      %s94 = int_to_ptr.vmem [resolvable:$true] %s93
      %99 = dma.hbm_to_vmem [thread:$0]  %s92, 2048, %s94, [#allocation8], 64, 64, 4
    $region41: #{generator_cnn_forward.1} parent=1 // pred_fallthru
      _
    // Predicated region
    $region42: #{generator_cnn_forward.1} parent=1 // pred_check
      _
    $region43: #{generator_cnn_forward.1} parent=1 // pred_check_branch
      %101 = sbr.rel (0) target = $region45
    $region44: #{generator_cnn_forward.1} parent=1 // pred_region
      %103 = vsyncadd [#allocation11], 0
      %s104 = sshll.u32 %s10, 4
      %s105 = int_to_ptr.hbm [resolvable:$true] %s104
      %s106 = sshll.u32 [#allocation10], 4
      %s107 = int_to_ptr.vmem [resolvable:$true] %s106
      %112 = dma.hbm_to_vmem [thread:$0]  %s105, 4096, %s107, [#allocation11], 64, 64, 4
    $region45: #{generator_cnn_forward.1} parent=1 // pred_fallthru
      _
    // Predicated region
    $region46: #{generator_cnn_forward.1} parent=1 // pred_check
      _
    $region47: #{generator_cnn_forward.1} parent=1 // pred_check_branch
      %114 = sbr.rel (0) target = $region49
    $region48: #{generator_cnn_forward.1} parent=1 // pred_region
      _
    $region49: #{generator_cnn_forward.1} parent=1 // pred_fallthru
      _
    // Predicated region
    $region50: #{generator_cnn_forward.1} parent=1 // pred_check
      _
    $region51: #{generator_cnn_forward.1} parent=1 // pred_check_branch
      %116 = sbr.rel (0) target = $region53
    $region52: #{generator_cnn_forward.1} parent=1 // pred_region
      _
    $region53: #{generator_cnn_forward.1} parent=1 // pred_fallthru
      _
    // Predicated region
    $region54: #{generator_cnn_forward.1} parent=1 // pred_check
      _
    $region55: #{generator_cnn_forward.1} parent=1 // pred_check_branch
      %118 = sbr.rel (0) target = $region57
    $region56: #{generator_cnn_forward.1} parent=1 // pred_region
      %120 = vsyncadd [#allocation11], 0
      %s121 = sshll.u32 %s13, 4
      %s122 = int_to_ptr.hbm [resolvable:$true] %s121
      %s123 = sshll.u32 [#allocation12], 4
      %s124 = int_to_ptr.vmem [resolvable:$true] %s123
      %129 = dma.hbm_to_vmem [thread:$0]  %s122, 1024, %s124, [#allocation11], 64, 64, 4
    $region57: #{generator_cnn_forward.1} parent=1 // pred_fallthru
      _
    // Predicated region
    $region58: #{generator_cnn_forward.1} parent=1 // pred_check
      _
    $region59: #{generator_cnn_forward.1} parent=1 // pred_check_branch
      %131 = sbr.rel (0) target = $region61
    $region60: #{generator_cnn_forward.1} parent=1 // pred_region
      %133 = vsyncadd [#allocation14], 0
      %s134 = sshll.u32 %s14, 4
      %s135 = int_to_ptr.hbm [resolvable:$true] %s134
      %s136 = sshll.u32 [#allocation13], 4
      %s137 = int_to_ptr.vmem [resolvable:$true] %s136
      %142 = dma.hbm_to_vmem [thread:$0]  %s135, 65536, %s137, [#allocation14], 256, 256, 16
    $region61: #{generator_cnn_forward.1} parent=1 // pred_fallthru
      _
    // Predicated region
    $region62: #{generator_cnn_forward.1} parent=1 // pred_check
      _
    $region63: #{generator_cnn_forward.1} parent=1 // pred_check_branch
      %144 = sbr.rel (0) target = $region65
    $region64: #{generator_cnn_forward.1} parent=1 // pred_region
      %146 = dma.done [#allocation3], 2048
    $region65: #{generator_cnn_forward.1} parent=1 // pred_fallthru
      _
    // Predicated region
    $region66: #{generator_cnn_forward.1} parent=1 // pred_check
      _
    $region67: #{generator_cnn_forward.1} parent=1 // pred_check_branch
      %148 = sbr.rel (0) target = $region69
    $region68: #{generator_cnn_forward.1} parent=1 // pred_region
      %150 = dma.done [#allocation5], 64
    $region69: #{generator_cnn_forward.1} parent=1 // pred_fallthru
      _
    // Predicated region
    $region70: #{generator_cnn_forward.1} parent=1 // pred_check
      _
    $region71: #{generator_cnn_forward.1} parent=1 // pred_check_branch
      %152 = sbr.rel (0) target = $region73
    $region72: #{generator_cnn_forward.1} parent=1 // pred_region
      %154 = dma.done [#allocation5], 4096
    $region73: #{generator_cnn_forward.1} parent=1 // pred_fallthru
      _
    // Predicated region
    $region74: #{generator_cnn_forward.1} parent=1 // pred_check
      _
    $region75: #{generator_cnn_forward.1} parent=1 // pred_check_branch
      %156 = sbr.rel (0) target = $region77
    $region76: #{generator_cnn_forward.1} parent=1 // pred_region
      %158 = dma.done [#allocation8], 1024
    $region77: #{generator_cnn_forward.1} parent=1 // pred_fallthru
      _
    // Predicated region
    $region78: #{generator_cnn_forward.1} parent=1 // pred_check
      _
    $region79: #{generator_cnn_forward.1} parent=1 // pred_check_branch
      %160 = sbr.rel (0) target = $region81
    $region80: #{generator_cnn_forward.1} parent=1 // pred_region
      %162 = dma.done [#allocation8], 2048
    $region81: #{generator_cnn_forward.1} parent=1 // pred_fallthru
      _
    // Predicated region
    $region82: #{generator_cnn_forward.1} parent=1 // pred_check
      _
    $region83: #{generator_cnn_forward.1} parent=1 // pred_check_branch
      %164 = sbr.rel (0) target = $region85
    $region84: #{generator_cnn_forward.1} parent=1 // pred_region
      %166 = dma.done [#allocation11], 4096
    $region85: #{generator_cnn_forward.1} parent=1 // pred_fallthru
      _
    // Predicated region
    $region86: #{generator_cnn_forward.1} parent=1 // pred_check
      _
    $region87: #{generator_cnn_forward.1} parent=1 // pred_check_branch
      %168 = sbr.rel (0) target = $region89
    $region88: #{generator_cnn_forward.1} parent=1 // pred_region
      %170 = dma.done [#allocation11], 1024
    $region89: #{generator_cnn_forward.1} parent=1 // pred_fallthru
      _
    // Predicated region
    $region90: #{generator_cnn_forward.1} parent=1 // pred_check
      _
    $region91: #{generator_cnn_forward.1} parent=1 // pred_check_branch
      %172 = sbr.rel (0) target = $region93
    $region92: #{generator_cnn_forward.1} parent=1 // pred_region
      %174 = dma.done [#allocation14], 65536
    $region93: #{generator_cnn_forward.1} parent=1 // pred_fallthru
      _
    %v176 = vld [vmem:[%s0] sm:$0xff]
    %v177 = vpack.c.bf16 %v176, %v176
    %v178 = vld [vmem:[#allocation2] sm:$0xf]
    %v179 = vld [vmem:[#allocation2 + $0x4] sm:$0xf]
    %v180 = vld [vmem:[#allocation2 + $0x8] sm:$0xf]
    %v181 = vld [vmem:[#allocation2 + $0xc] sm:$0xf]
    %v182 = vld [vmem:[#allocation2 + $0x10] sm:$0xf]
    %v183 = vld [vmem:[#allocation2 + $0x14] sm:$0xf]
    %v184 = vld [vmem:[#allocation2 + $0x18] sm:$0xf]
    %v185 = vld [vmem:[#allocation2 + $0x1c] sm:$0xf]
    %v186 = vld [vmem:[#allocation2 + $0x20] sm:$0xf]
    %v187 = vld [vmem:[#allocation2 + $0x24] sm:$0xf]
    %v188 = vld [vmem:[#allocation2 + $0x28] sm:$0xf]
    %v189 = vld [vmem:[#allocation2 + $0x2c] sm:$0xf]
    %v190 = vld [vmem:[#allocation2 + $0x30] sm:$0xf]
    %v191 = vld [vmem:[#allocation2 + $0x34] sm:$0xf]
    %v192 = vld [vmem:[#allocation2 + $0x38] sm:$0xf]
    %v193 = vld [vmem:[#allocation2 + $0x3c] sm:$0xf]
    %v194 = vld [vmem:[#allocation2 + $0x40] sm:$0xf]
    %v195 = vld [vmem:[#allocation2 + $0x44] sm:$0xf]
    %v196 = vld [vmem:[#allocation2 + $0x48] sm:$0xf]
    %v197 = vld [vmem:[#allocation2 + $0x4c] sm:$0xf]
    %v198 = vld [vmem:[#allocation2 + $0x50] sm:$0xf]
    %v199 = vld [vmem:[#allocation2 + $0x54] sm:$0xf]
    %v200 = vld [vmem:[#allocation2 + $0x58] sm:$0xf]
    %v201 = vld [vmem:[#allocation2 + $0x5c] sm:$0xf]
    %v202 = vld [vmem:[#allocation2 + $0x60] sm:$0xf]
    %v203 = vld [vmem:[#allocation2 + $0x64] sm:$0xf]
    %v204 = vld [vmem:[#allocation2 + $0x68] sm:$0xf]
    %v205 = vld [vmem:[#allocation2 + $0x6c] sm:$0xf]
    %v206 = vld [vmem:[#allocation2 + $0x70] sm:$0xf]
    %v207 = vld [vmem:[#allocation2 + $0x74] sm:$0xf]
    %v208 = vld [vmem:[#allocation2 + $0x78] sm:$0xf]
    %v209 = vld [vmem:[#allocation2 + $0x7c] sm:$0xf]
    %v242 = vunpack.c.l.b16 %v178
    %v243 = vunpack.c.l.b16 %v179
    %v244 = vunpack.c.l.b16 %v180
    %v245 = vunpack.c.l.b16 %v181
    %v246 = vunpack.c.l.b16 %v182
    %v247 = vunpack.c.l.b16 %v183
    %v248 = vunpack.c.l.b16 %v184
    %v249 = vunpack.c.l.b16 %v185
    %v250 = vunpack.c.l.b16 %v186
    %v251 = vunpack.c.l.b16 %v187
    %v252 = vunpack.c.l.b16 %v188
    %v253 = vunpack.c.l.b16 %v189
    %v254 = vunpack.c.l.b16 %v190
    %v255 = vunpack.c.l.b16 %v191
    %v256 = vunpack.c.l.b16 %v192
    %v257 = vunpack.c.l.b16 %v193
    %v258 = vunpack.c.l.b16 %v194
    %v259 = vunpack.c.l.b16 %v195
    %v260 = vunpack.c.l.b16 %v196
    %v261 = vunpack.c.l.b16 %v197
    %v262 = vunpack.c.l.b16 %v198
    %v263 = vunpack.c.l.b16 %v199
    %v264 = vunpack.c.l.b16 %v200
    %v265 = vunpack.c.l.b16 %v201
    %v266 = vunpack.c.l.b16 %v202
    %v267 = vunpack.c.l.b16 %v203
    %v268 = vunpack.c.l.b16 %v204
    %v269 = vunpack.c.l.b16 %v205
    %v270 = vunpack.c.l.b16 %v206
    %v271 = vunpack.c.l.b16 %v207
    %v272 = vunpack.c.l.b16 %v208
    %v273 = vunpack.c.l.b16 %v209
    %v274 = vpack.c.b16 %v243, %v242
    %v275 = vpack.c.b16 %v245, %v244
    %v276 = vpack.c.b16 %v247, %v246
    %v277 = vpack.c.b16 %v249, %v248
    %v278 = vpack.c.b16 %v251, %v250
    %v279 = vpack.c.b16 %v253, %v252
    %v280 = vpack.c.b16 %v255, %v254
    %v281 = vpack.c.b16 %v257, %v256
    %v282 = vpack.c.b16 %v259, %v258
    %v283 = vpack.c.b16 %v261, %v260
    %v284 = vpack.c.b16 %v263, %v262
    %v285 = vpack.c.b16 %v265, %v264
    %v286 = vpack.c.b16 %v267, %v266
    %v287 = vpack.c.b16 %v269, %v268
    %v288 = vpack.c.b16 %v271, %v270
    %v289 = vpack.c.b16 %v273, %v272
    %vm290 = vcmask 64512
    %v292 = vsel %vm290, %v274, 0
    %v295 = vsel %vm290, %v275, 0
    %v298 = vsel %vm290, %v276, 0
    %v301 = vsel %vm290, %v277, 0
    %v304 = vsel %vm290, %v278, 0
    %v307 = vsel %vm290, %v279, 0
    %v310 = vsel %vm290, %v280, 0
    %v313 = vsel %vm290, %v281, 0
    %v316 = vsel %vm290, %v282, 0
    %v319 = vsel %vm290, %v283, 0
    %v322 = vsel %vm290, %v284, 0
    %v325 = vsel %vm290, %v285, 0
    %v328 = vsel %vm290, %v286, 0
    %v331 = vsel %vm290, %v287, 0
    %v334 = vsel %vm290, %v288, 0
    %v337 = vsel %vm290, %v289, 0
    %vm339 = vcmask 1043456
    %v341 = vsel %vm339, %v177, 0
    %343 = vmatpush.bf16.msra.mxu0 0
    %344 = vmatpush.bf16.msra.mxu0 0
    %345 = vmatpush.bf16.msra.mxu0 0
    %346 = vmatpush.bf16.msra.mxu0 0
    %347 = vmatpush.bf16.msra.mxu0 0
    %348 = vmatpush.bf16.msra.mxu0 0
    %349 = vmatpush.bf16.msra.mxu0 0
    %350 = vmatpush.bf16.msra.mxu0 %v341
    %351 = vmatmul.bf16.gmra.mxu0 %v292
    %v352 = vpop.f32.mrf.mxu0
    %v353 = vadd.f32 0.0, %v352
    %v354 = vpop.f32.mrf.mxu0
    %v355 = vadd.f32 0.0, %v354
    %356 = vmatmul.bf16.gmra.mxu0 %v295
    %v357 = vpop.f32.mrf.mxu0
    %v358 = vadd.f32 0.0, %v357
    %v359 = vpop.f32.mrf.mxu0
    %v360 = vadd.f32 0.0, %v359
    %361 = vmatmul.bf16.gmra.mxu0 %v298
    %v362 = vpop.f32.mrf.mxu0
    %v363 = vadd.f32 0.0, %v362
    %v364 = vpop.f32.mrf.mxu0
    %v365 = vadd.f32 0.0, %v364
    %366 = vmatmul.bf16.gmra.mxu0 %v301
    %v367 = vpop.f32.mrf.mxu0
    %v368 = vadd.f32 0.0, %v367
    %v369 = vpop.f32.mrf.mxu0
    %v370 = vadd.f32 0.0, %v369
    %371 = vmatmul.bf16.gmra.mxu0 %v304
    %v372 = vpop.f32.mrf.mxu0
    %v373 = vadd.f32 0.0, %v372
    %v374 = vpop.f32.mrf.mxu0
    %v375 = vadd.f32 0.0, %v374
    %376 = vmatmul.bf16.gmra.mxu0 %v307
    %v377 = vpop.f32.mrf.mxu0
    %v378 = vadd.f32 0.0, %v377
    %v379 = vpop.f32.mrf.mxu0
    %v380 = vadd.f32 0.0, %v379
    %381 = vmatmul.bf16.gmra.mxu0 %v310
    %v382 = vpop.f32.mrf.mxu0
    %v383 = vadd.f32 0.0, %v382
    %v384 = vpop.f32.mrf.mxu0
    %v385 = vadd.f32 0.0, %v384
    %386 = vmatmul.bf16.gmra.mxu0 %v313
    %v387 = vpop.f32.mrf.mxu0
    %v388 = vadd.f32 0.0, %v387
    %v389 = vpop.f32.mrf.mxu0
    %v390 = vadd.f32 0.0, %v389
    %391 = vmatmul.bf16.gmra.mxu0 %v316
    %v392 = vpop.f32.mrf.mxu0
    %v393 = vadd.f32 0.0, %v392
    %v394 = vpop.f32.mrf.mxu0
    %v395 = vadd.f32 0.0, %v394
    %396 = vmatmul.bf16.gmra.mxu0 %v319
    %v397 = vpop.f32.mrf.mxu0
    %v398 = vadd.f32 0.0, %v397
    %v399 = vpop.f32.mrf.mxu0
    %v400 = vadd.f32 0.0, %v399
    %401 = vmatmul.bf16.gmra.mxu0 %v322
    %v402 = vpop.f32.mrf.mxu0
    %v403 = vadd.f32 0.0, %v402
    %v404 = vpop.f32.mrf.mxu0
    %v405 = vadd.f32 0.0, %v404
    %406 = vmatmul.bf16.gmra.mxu0 %v325
    %v407 = vpop.f32.mrf.mxu0
    %v408 = vadd.f32 0.0, %v407
    %v409 = vpop.f32.mrf.mxu0
    %v410 = vadd.f32 0.0, %v409
    %411 = vmatmul.bf16.gmra.mxu0 %v328
    %v412 = vpop.f32.mrf.mxu0
    %v413 = vadd.f32 0.0, %v412
    %v414 = vpop.f32.mrf.mxu0
    %v415 = vadd.f32 0.0, %v414
    %416 = vmatmul.bf16.gmra.mxu0 %v331
    %v417 = vpop.f32.mrf.mxu0
    %v418 = vadd.f32 0.0, %v417
    %v419 = vpop.f32.mrf.mxu0
    %v420 = vadd.f32 0.0, %v419
    %421 = vmatmul.bf16.gmra.mxu0 %v334
    %v422 = vpop.f32.mrf.mxu0
    %v423 = vadd.f32 0.0, %v422
    %v424 = vpop.f32.mrf.mxu0
    %v425 = vadd.f32 0.0, %v424
    %426 = vmatmul.bf16.gmra.mxu0 %v337
    %v427 = vpop.f32.mrf.mxu0
    %v428 = vadd.f32 0.0, %v427
    %v429 = vpop.f32.mrf.mxu0
    %v430 = vadd.f32 0.0, %v429
    %431 = vdwg.mxu0
    %v432 = vpack.c.bf16 %v353, %v353
    %v433 = vpack.c.bf16 %v355, %v355
    %v434 = vpack.c.bf16 %v358, %v358
    %v435 = vpack.c.bf16 %v360, %v360
    %v436 = vpack.c.bf16 %v363, %v363
    %v437 = vpack.c.bf16 %v365, %v365
    %v438 = vpack.c.bf16 %v368, %v368
    %v439 = vpack.c.bf16 %v370, %v370
    %v440 = vpack.c.bf16 %v373, %v373
    %v441 = vpack.c.bf16 %v375, %v375
    %v442 = vpack.c.bf16 %v378, %v378
    %v443 = vpack.c.bf16 %v380, %v380
    %v444 = vpack.c.bf16 %v383, %v383
    %v445 = vpack.c.bf16 %v385, %v385
    %v446 = vpack.c.bf16 %v388, %v388
    %v447 = vpack.c.bf16 %v390, %v390
    %v448 = vpack.c.bf16 %v393, %v393
    %v449 = vpack.c.bf16 %v395, %v395
    %v450 = vpack.c.bf16 %v398, %v398
    %v451 = vpack.c.bf16 %v400, %v400
    %v452 = vpack.c.bf16 %v403, %v403
    %v453 = vpack.c.bf16 %v405, %v405
    %v454 = vpack.c.bf16 %v408, %v408
    %v455 = vpack.c.bf16 %v410, %v410
    %v456 = vpack.c.bf16 %v413, %v413
    %v457 = vpack.c.bf16 %v415, %v415
    %v458 = vpack.c.bf16 %v418, %v418
    %v459 = vpack.c.bf16 %v420, %v420
    %v460 = vpack.c.bf16 %v423, %v423
    %v461 = vpack.c.bf16 %v425, %v425
    %v462 = vpack.c.bf16 %v428, %v428
    %v463 = vpack.c.bf16 %v430, %v430
    %v464 = vld [vmem:[#allocation4] sm:$0x1]
    %s465 = scalar_lea.vmem [#allocation4], 1
    %v466 = vld [vmem:[%s465] sm:$0x1]
    %v475 = vunpack.c.l.b16 %v440
    %v476 = vunpack.c.l.b16 %v441
    %v477 = vunpack.c.l.b16 %v442
    %v478 = vunpack.c.l.b16 %v443
    %v479 = vunpack.c.l.b16 %v444
    %v480 = vunpack.c.l.b16 %v445
    %v481 = vunpack.c.l.b16 %v446
    %v482 = vunpack.c.l.b16 %v447
    %v483 = vpack.c.b16 %v476, %v475
    %v484 = vpack.c.b16 %v478, %v477
    %v485 = vpack.c.b16 %v480, %v479
    %v486 = vpack.c.b16 %v482, %v481
    %vm487 = vcmask 15360
    %v489 = vsel %vm487, %v483, 0
    %v492 = vsel %vm487, %v484, 0
    %v495 = vsel %vm487, %v485, 0
    %v498 = vsel %vm487, %v486, 0
    %vm500 = vcmask 1040384
    %v502 = vsel %vm500, %v466, 0
    %504 = vmatpush.bf16.msra.mxu0 0
    %505 = vmatpush.bf16.msra.mxu0 0
    %506 = vmatpush.bf16.msra.mxu0 0
    %507 = vmatpush.bf16.msra.mxu0 0
    %508 = vmatpush.bf16.msra.mxu0 0
    %509 = vmatpush.bf16.msra.mxu0 0
    %510 = vmatpush.bf16.msra.mxu0 0
    %511 = vmatpush.bf16.msra.mxu0 %v502
    %512 = vmatmul.bf16.gmra.mxu0 %v489
    %v513 = vpop.f32.mrf.mxu0
    %v514 = vadd.f32 0.0, %v513
    %v515 = vpop.f32.mrf.mxu0
    %v516 = vadd.f32 0.0, %v515
    %517 = vmatmul.bf16.gmra.mxu0 %v492
    %v518 = vpop.f32.mrf.mxu0
    %v519 = vadd.f32 0.0, %v518
    %v520 = vpop.f32.mrf.mxu0
    %v521 = vadd.f32 0.0, %v520
    %522 = vmatmul.bf16.gmra.mxu0 %v495
    %v523 = vpop.f32.mrf.mxu0
    %v524 = vadd.f32 0.0, %v523
    %v525 = vpop.f32.mrf.mxu0
    %v526 = vadd.f32 0.0, %v525
    %527 = vmatmul.bf16.gmra.mxu0 %v498
    %v528 = vpop.f32.mrf.mxu0
    %v529 = vadd.f32 0.0, %v528
    %v530 = vpop.f32.mrf.mxu0
    %v531 = vadd.f32 0.0, %v530
    %532 = vdwg.mxu0
    %v541 = vunpack.c.l.b16 %v432
    %v542 = vunpack.c.l.b16 %v433
    %v543 = vunpack.c.l.b16 %v434
    %v544 = vunpack.c.l.b16 %v435
    %v545 = vunpack.c.l.b16 %v436
    %v546 = vunpack.c.l.b16 %v437
    %v547 = vunpack.c.l.b16 %v438
    %v548 = vunpack.c.l.b16 %v439
    %v549 = vpack.c.b16 %v542, %v541
    %v550 = vpack.c.b16 %v544, %v543
    %v551 = vpack.c.b16 %v546, %v545
    %v552 = vpack.c.b16 %v548, %v547
    %v554 = vsel %vm487, %v549, 0
    %v557 = vsel %vm487, %v550, 0
    %v560 = vsel %vm487, %v551, 0
    %v563 = vsel %vm487, %v552, 0
    %v566 = vsel %vm500, %v464, 0
    %568 = vmatpush.bf16.msra.mxu0 0
    %569 = vmatpush.bf16.msra.mxu0 0
    %570 = vmatpush.bf16.msra.mxu0 0
    %571 = vmatpush.bf16.msra.mxu0 0
    %572 = vmatpush.bf16.msra.mxu0 0
    %573 = vmatpush.bf16.msra.mxu0 0
    %574 = vmatpush.bf16.msra.mxu0 0
    %575 = vmatpush.bf16.msra.mxu0 %v566
    %576 = vmatmul.bf16.gmra.mxu0 %v554
    %v577 = vpop.f32.mrf.mxu0
    %v578 = vadd.f32 %v514, %v577
    %v579 = vpop.f32.mrf.mxu0
    %v580 = vadd.f32 %v516, %v579
    %581 = vmatmul.bf16.gmra.mxu0 %v557
    %v582 = vpop.f32.mrf.mxu0
    %v583 = vadd.f32 %v519, %v582
    %v584 = vpop.f32.mrf.mxu0
    %v585 = vadd.f32 %v521, %v584
    %586 = vmatmul.bf16.gmra.mxu0 %v560
    %v587 = vpop.f32.mrf.mxu0
    %v588 = vadd.f32 %v524, %v587
    %v589 = vpop.f32.mrf.mxu0
    %v590 = vadd.f32 %v526, %v589
    %591 = vmatmul.bf16.gmra.mxu0 %v563
    %v592 = vpop.f32.mrf.mxu0
    %v593 = vadd.f32 %v529, %v592
    %v594 = vpop.f32.mrf.mxu0
    %v595 = vadd.f32 %v531, %v594
    %596 = vdwg.mxu0
    %s597 = scalar_lea.vmem [#allocation4], 2
    %v598 = vld [vmem:[%s597] sm:$0x1]
    %v607 = vunpack.c.l.b16 %v448
    %v608 = vunpack.c.l.b16 %v449
    %v609 = vunpack.c.l.b16 %v450
    %v610 = vunpack.c.l.b16 %v451
    %v611 = vunpack.c.l.b16 %v452
    %v612 = vunpack.c.l.b16 %v453
    %v613 = vunpack.c.l.b16 %v454
    %v614 = vunpack.c.l.b16 %v455
    %v615 = vpack.c.b16 %v608, %v607
    %v616 = vpack.c.b16 %v610, %v609
    %v617 = vpack.c.b16 %v612, %v611
    %v618 = vpack.c.b16 %v614, %v613
    %v620 = vsel %vm487, %v615, 0
    %v623 = vsel %vm487, %v616, 0
    %v626 = vsel %vm487, %v617, 0
    %v629 = vsel %vm487, %v618, 0
    %v632 = vsel %vm500, %v598, 0
    %634 = vmatpush.bf16.msra.mxu0 0
    %635 = vmatpush.bf16.msra.mxu0 0
    %636 = vmatpush.bf16.msra.mxu0 0
    %637 = vmatpush.bf16.msra.mxu0 0
    %638 = vmatpush.bf16.msra.mxu0 0
    %639 = vmatpush.bf16.msra.mxu0 0
    %640 = vmatpush.bf16.msra.mxu0 0
    %641 = vmatpush.bf16.msra.mxu0 %v632
    %642 = vmatmul.bf16.gmra.mxu0 %v620
    %v643 = vpop.f32.mrf.mxu0
    %v644 = vadd.f32 0.0, %v643
    %v645 = vpop.f32.mrf.mxu0
    %v646 = vadd.f32 0.0, %v645
    %647 = vmatmul.bf16.gmra.mxu0 %v623
    %v648 = vpop.f32.mrf.mxu0
    %v649 = vadd.f32 0.0, %v648
    %v650 = vpop.f32.mrf.mxu0
    %v651 = vadd.f32 0.0, %v650
    %652 = vmatmul.bf16.gmra.mxu0 %v626
    %v653 = vpop.f32.mrf.mxu0
    %v654 = vadd.f32 0.0, %v653
    %v655 = vpop.f32.mrf.mxu0
    %v656 = vadd.f32 0.0, %v655
    %657 = vmatmul.bf16.gmra.mxu0 %v629
    %v658 = vpop.f32.mrf.mxu0
    %v659 = vadd.f32 0.0, %v658
    %v660 = vpop.f32.mrf.mxu0
    %v661 = vadd.f32 0.0, %v660
    %662 = vdwg.mxu0
    %v663 = vadd.f32 %v578, %v644
    %v664 = vadd.f32 %v580, %v646
    %v665 = vadd.f32 %v583, %v649
    %v666 = vadd.f32 %v585, %v651
    %v667 = vadd.f32 %v588, %v654
    %v668 = vadd.f32 %v590, %v656
    %v669 = vadd.f32 %v593, %v659
    %v670 = vadd.f32 %v595, %v661
    %s671 = scalar_lea.vmem [#allocation4], 3
    %v672 = vld [vmem:[%s671] sm:$0x1]
    %v681 = vunpack.c.l.b16 %v456
    %v682 = vunpack.c.l.b16 %v457
    %v683 = vunpack.c.l.b16 %v458
    %v684 = vunpack.c.l.b16 %v459
    %v685 = vunpack.c.l.b16 %v460
    %v686 = vunpack.c.l.b16 %v461
    %v687 = vunpack.c.l.b16 %v462
    %v688 = vunpack.c.l.b16 %v463
    %v689 = vpack.c.b16 %v682, %v681
    %v690 = vpack.c.b16 %v684, %v683
    %v691 = vpack.c.b16 %v686, %v685
    %v692 = vpack.c.b16 %v688, %v687
    %v694 = vsel %vm487, %v689, 0
    %v697 = vsel %vm487, %v690, 0
    %v700 = vsel %vm487, %v691, 0
    %v703 = vsel %vm487, %v692, 0
    %v706 = vsel %vm500, %v672, 0
    %708 = vmatpush.bf16.msra.mxu0 0
    %709 = vmatpush.bf16.msra.mxu0 0
    %710 = vmatpush.bf16.msra.mxu0 0
    %711 = vmatpush.bf16.msra.mxu0 0
    %712 = vmatpush.bf16.msra.mxu0 0
    %713 = vmatpush.bf16.msra.mxu0 0
    %714 = vmatpush.bf16.msra.mxu0 0
    %715 = vmatpush.bf16.msra.mxu0 %v706
    %716 = vmatmul.bf16.gmra.mxu0 %v694
    %v717 = vpop.f32.mrf.mxu0
    %v718 = vadd.f32 0.0, %v717
    %v719 = vpop.f32.mrf.mxu0
    %v720 = vadd.f32 0.0, %v719
    %721 = vmatmul.bf16.gmra.mxu0 %v697
    %v722 = vpop.f32.mrf.mxu0
    %v723 = vadd.f32 0.0, %v722
    %v724 = vpop.f32.mrf.mxu0
    %v725 = vadd.f32 0.0, %v724
    %726 = vmatmul.bf16.gmra.mxu0 %v700
    %v727 = vpop.f32.mrf.mxu0
    %v728 = vadd.f32 0.0, %v727
    %v729 = vpop.f32.mrf.mxu0
    %v730 = vadd.f32 0.0, %v729
    %731 = vmatmul.bf16.gmra.mxu0 %v703
    %v732 = vpop.f32.mrf.mxu0
    %v733 = vadd.f32 0.0, %v732
    %v734 = vpop.f32.mrf.mxu0
    %v735 = vadd.f32 0.0, %v734
    %736 = vdwg.mxu0
    %v737 = vadd.f32 %v663, %v718
    %v738 = vadd.f32 %v664, %v720
    %v739 = vadd.f32 %v665, %v723
    %v740 = vadd.f32 %v666, %v725
    %v741 = vadd.f32 %v667, %v728
    %v742 = vadd.f32 %v668, %v730
    %v743 = vadd.f32 %v669, %v733
    %v744 = vadd.f32 %v670, %v735
    %v745 = vsel %vm290, %v737, 0.0
    %746 = vadd.xlane.f32.xlu0 %v745
    %v747 = vpop.xlane.xlu0 %746
    %v748 = vsel %vm290, %v738, 0.0
    %749 = vadd.xlane.f32.xlu0 %v748
    %v750 = vpop.xlane.xlu0 %749
    %v751 = vsel %vm290, %v739, 0.0
    %752 = vadd.xlane.f32.xlu0 %v751
    %v753 = vpop.xlane.xlu0 %752
    %v754 = vsel %vm290, %v740, 0.0
    %755 = vadd.xlane.f32.xlu0 %v754
    %v756 = vpop.xlane.xlu0 %755
    %v757 = vsel %vm290, %v741, 0.0
    %758 = vadd.xlane.f32.xlu0 %v757
    %v759 = vpop.xlane.xlu0 %758
    %v760 = vsel %vm290, %v742, 0.0
    %761 = vadd.xlane.f32.xlu0 %v760
    %v762 = vpop.xlane.xlu0 %761
    %v763 = vsel %vm290, %v743, 0.0
    %764 = vadd.xlane.f32.xlu0 %v763
    %v765 = vpop.xlane.xlu0 %764
    %v766 = vsel %vm290, %v744, 0.0
    %767 = vadd.xlane.f32.xlu0 %v766
    %v768 = vpop.xlane.xlu0 %767
    %v769 = vrcp.pop 8.0
    %v770 = vmul.f32 8.0, %v769
    %v771 = vsub.f32 1.0, %v770
    %v772 = vmul.f32 %v769, %v771
    %v773 = vadd.f32 %v769, %v772
    %vm774 = vweird.f32 %v769
    %v775 = vsel %vm774, %v769, %v773
    %v776 = vmul.f32 %v747, %v775
    %v777 = vmul.f32 %v750, %v775
    %v778 = vmul.f32 %v753, %v775
    %v779 = vmul.f32 %v756, %v775
    %v780 = vmul.f32 %v759, %v775
    %v781 = vmul.f32 %v762, %v775
    %v782 = vmul.f32 %v765, %v775
    %v783 = vmul.f32 %v768, %v775
    %v784 = vmul.f32 %v737, %v737
    %v785 = vmul.f32 %v738, %v738
    %v786 = vmul.f32 %v739, %v739
    %v787 = vmul.f32 %v740, %v740
    %v788 = vmul.f32 %v741, %v741
    %v789 = vmul.f32 %v742, %v742
    %v790 = vmul.f32 %v743, %v743
    %v791 = vmul.f32 %v744, %v744
    %v792 = vsel %vm290, %v784, 0.0
    %793 = vadd.xlane.f32.xlu0 %v792
    %v794 = vpop.xlane.xlu0 %793
    %v795 = vsel %vm290, %v785, 0.0
    %796 = vadd.xlane.f32.xlu0 %v795
    %v797 = vpop.xlane.xlu0 %796
    %v798 = vsel %vm290, %v786, 0.0
    %799 = vadd.xlane.f32.xlu0 %v798
    %v800 = vpop.xlane.xlu0 %799
    %v801 = vsel %vm290, %v787, 0.0
    %802 = vadd.xlane.f32.xlu0 %v801
    %v803 = vpop.xlane.xlu0 %802
    %v804 = vsel %vm290, %v788, 0.0
    %805 = vadd.xlane.f32.xlu0 %v804
    %v806 = vpop.xlane.xlu0 %805
    %v807 = vsel %vm290, %v789, 0.0
    %808 = vadd.xlane.f32.xlu0 %v807
    %v809 = vpop.xlane.xlu0 %808
    %v810 = vsel %vm290, %v790, 0.0
    %811 = vadd.xlane.f32.xlu0 %v810
    %v812 = vpop.xlane.xlu0 %811
    %v813 = vsel %vm290, %v791, 0.0
    %814 = vadd.xlane.f32.xlu0 %v813
    %v815 = vpop.xlane.xlu0 %814
    %v816 = vmul.f32 %v794, %v775
    %v817 = vmul.f32 %v797, %v775
    %v818 = vmul.f32 %v800, %v775
    %v819 = vmul.f32 %v803, %v775
    %v820 = vmul.f32 %v806, %v775
    %v821 = vmul.f32 %v809, %v775
    %v822 = vmul.f32 %v812, %v775
    %v823 = vmul.f32 %v815, %v775
    %v824 = vmul.f32 %v776, %v776
    %v825 = vmul.f32 %v777, %v777
    %v826 = vmul.f32 %v778, %v778
    %v827 = vmul.f32 %v779, %v779
    %v828 = vmul.f32 %v780, %v780
    %v829 = vmul.f32 %v781, %v781
    %v830 = vmul.f32 %v782, %v782
    %v831 = vmul.f32 %v783, %v783
    %v832 = vsub.f32 %v816, %v824
    %v833 = vsub.f32 %v817, %v825
    %v834 = vsub.f32 %v818, %v826
    %v835 = vsub.f32 %v819, %v827
    %v836 = vsub.f32 %v820, %v828
    %v837 = vsub.f32 %v821, %v829
    %v838 = vsub.f32 %v822, %v830
    %v839 = vsub.f32 %v823, %v831
    %v840 = vmax.f32 %v832, 0.0
    %v841 = vmax.f32 %v833, 0.0
    %v842 = vmax.f32 %v834, 0.0
    %v843 = vmax.f32 %v835, 0.0
    %v844 = vmax.f32 %v836, 0.0
    %v845 = vmax.f32 %v837, 0.0
    %v846 = vmax.f32 %v838, 0.0
    %v847 = vmax.f32 %v839, 0.0
    %v848 = vld [vmem:[%s3] sm:$0xff]
    %v849 = vld [vmem:[%s3 + $0x8] sm:$0xff]
    %v850 = vld [vmem:[%s3 + $0x10] sm:$0xff]
    %v851 = vld [vmem:[%s3 + $0x18] sm:$0xff]
    %v852 = vld [vmem:[%s3 + $0x20] sm:$0xff]
    %v853 = vld [vmem:[%s3 + $0x28] sm:$0xff]
    %v854 = vld [vmem:[%s3 + $0x30] sm:$0xff]
    %v855 = vld [vmem:[%s3 + $0x38] sm:$0xff]
    %v856 = vadd.f32 %v840, 1e-05
    %v857 = vadd.f32 %v841, 1e-05
    %v858 = vadd.f32 %v842, 1e-05
    %v859 = vadd.f32 %v843, 1e-05
    %v860 = vadd.f32 %v844, 1e-05
    %v861 = vadd.f32 %v845, 1e-05
    %v862 = vadd.f32 %v846, 1e-05
    %v863 = vadd.f32 %v847, 1e-05
    %v864 = vrsqrt.pop %v856
    %v865 = vmul.f32 %v864, %v856
    %v866 = vmul.f32 %v865, %v864
    %v867 = vmul.f32 0.5, %v866
    %v868 = vsub.f32 1.5, %v867
    %v869 = vmul.f32 %v864, %v868
    %vm870 = vweird.f32 %v856
    %vm871 = vweird.f32 %v864
    %vm872 = vmor %vm870, %vm871
    %v873 = vsel %vm872, %v864, %v869
    %v874 = vrsqrt.pop %v857
    %v875 = vmul.f32 %v874, %v857
    %v876 = vmul.f32 %v875, %v874
    %v877 = vmul.f32 0.5, %v876
    %v878 = vsub.f32 1.5, %v877
    %v879 = vmul.f32 %v874, %v878
    %vm880 = vweird.f32 %v857
    %vm881 = vweird.f32 %v874
    %vm882 = vmor %vm880, %vm881
    %v883 = vsel %vm882, %v874, %v879
    %v884 = vrsqrt.pop %v858
    %v885 = vmul.f32 %v884, %v858
    %v886 = vmul.f32 %v885, %v884
    %v887 = vmul.f32 0.5, %v886
    %v888 = vsub.f32 1.5, %v887
    %v889 = vmul.f32 %v884, %v888
    %vm890 = vweird.f32 %v858
    %vm891 = vweird.f32 %v884
    %vm892 = vmor %vm890, %vm891
    %v893 = vsel %vm892, %v884, %v889
    %v894 = vrsqrt.pop %v859
    %v895 = vmul.f32 %v894, %v859
    %v896 = vmul.f32 %v895, %v894
    %v897 = vmul.f32 0.5, %v896
    %v898 = vsub.f32 1.5, %v897
    %v899 = vmul.f32 %v894, %v898
    %vm900 = vweird.f32 %v859
    %vm901 = vweird.f32 %v894
    %vm902 = vmor %vm900, %vm901
    %v903 = vsel %vm902, %v894, %v899
    %v904 = vrsqrt.pop %v860
    %v905 = vmul.f32 %v904, %v860
    %v906 = vmul.f32 %v905, %v904
    %v907 = vmul.f32 0.5, %v906
    %v908 = vsub.f32 1.5, %v907
    %v909 = vmul.f32 %v904, %v908
    %vm910 = vweird.f32 %v860
    %vm911 = vweird.f32 %v904
    %vm912 = vmor %vm910, %vm911
    %v913 = vsel %vm912, %v904, %v909
    %v914 = vrsqrt.pop %v861
    %v915 = vmul.f32 %v914, %v861
    %v916 = vmul.f32 %v915, %v914
    %v917 = vmul.f32 0.5, %v916
    %v918 = vsub.f32 1.5, %v917
    %v919 = vmul.f32 %v914, %v918
    %vm920 = vweird.f32 %v861
    %vm921 = vweird.f32 %v914
    %vm922 = vmor %vm920, %vm921
    %v923 = vsel %vm922, %v914, %v919
    %v924 = vrsqrt.pop %v862
    %v925 = vmul.f32 %v924, %v862
    %v926 = vmul.f32 %v925, %v924
    %v927 = vmul.f32 0.5, %v926
    %v928 = vsub.f32 1.5, %v927
    %v929 = vmul.f32 %v924, %v928
    %vm930 = vweird.f32 %v862
    %vm931 = vweird.f32 %v924
    %vm932 = vmor %vm930, %vm931
    %v933 = vsel %vm932, %v924, %v929
    %v934 = vrsqrt.pop %v863
    %v935 = vmul.f32 %v934, %v863
    %v936 = vmul.f32 %v935, %v934
    %v937 = vmul.f32 0.5, %v936
    %v938 = vsub.f32 1.5, %v937
    %v939 = vmul.f32 %v934, %v938
    %vm940 = vweird.f32 %v863
    %vm941 = vweird.f32 %v934
    %vm942 = vmor %vm940, %vm941
    %v943 = vsel %vm942, %v934, %v939
    %v944 = vmul.f32 %v848, %v873
    %v945 = vmul.f32 %v849, %v883
    %v946 = vmul.f32 %v850, %v893
    %v947 = vmul.f32 %v851, %v903
    %v948 = vmul.f32 %v852, %v913
    %v949 = vmul.f32 %v853, %v923
    %v950 = vmul.f32 %v854, %v933
    %v951 = vmul.f32 %v855, %v943
    %v952 = vld [vmem:[%s4] sm:$0xff]
    %v953 = vld [vmem:[%s4 + $0x8] sm:$0xff]
    %v954 = vld [vmem:[%s4 + $0x10] sm:$0xff]
    %v955 = vld [vmem:[%s4 + $0x18] sm:$0xff]
    %v956 = vld [vmem:[%s4 + $0x20] sm:$0xff]
    %v957 = vld [vmem:[%s4 + $0x28] sm:$0xff]
    %v958 = vld [vmem:[%s4 + $0x30] sm:$0xff]
    %v959 = vld [vmem:[%s4 + $0x38] sm:$0xff]
    %v960 = vmul.f32 %v776, %v944
    %v961 = vmul.f32 %v777, %v945
    %v962 = vmul.f32 %v778, %v946
    %v963 = vmul.f32 %v779, %v947
    %v964 = vmul.f32 %v780, %v948
    %v965 = vmul.f32 %v781, %v949
    %v966 = vmul.f32 %v782, %v950
    %v967 = vmul.f32 %v783, %v951
    %v968 = vsub.f32 %v952, %v960
    %v969 = vsub.f32 %v953, %v961
    %v970 = vsub.f32 %v954, %v962
    %v971 = vsub.f32 %v955, %v963
    %v972 = vsub.f32 %v956, %v964
    %v973 = vsub.f32 %v957, %v965
    %v974 = vsub.f32 %v958, %v966
    %v975 = vsub.f32 %v959, %v967
    %977 = vset.pattern.permute.xlu0 0
    %978 = vperm.xlu0 %977, %v944
    %v979 = vpop.permute.xlu0 %978
    %982 = vset.pattern.permute.xlu0 0
    %983 = vperm.xlu0 %982, %v945
    %v984 = vpop.permute.xlu0 %983
    %987 = vset.pattern.permute.xlu0 0
    %988 = vperm.xlu0 %987, %v946
    %v989 = vpop.permute.xlu0 %988
    %992 = vset.pattern.permute.xlu0 0
    %993 = vperm.xlu0 %992, %v947
    %v994 = vpop.permute.xlu0 %993
    %997 = vset.pattern.permute.xlu0 0
    %998 = vperm.xlu0 %997, %v948
    %v999 = vpop.permute.xlu0 %998
    %1002 = vset.pattern.permute.xlu0 0
    %1003 = vperm.xlu0 %1002, %v949
    %v1004 = vpop.permute.xlu0 %1003
    %1007 = vset.pattern.permute.xlu0 0
    %1008 = vperm.xlu0 %1007, %v950
    %v1009 = vpop.permute.xlu0 %1008
    %1012 = vset.pattern.permute.xlu0 0
    %1013 = vperm.xlu0 %1012, %v951
    %v1014 = vpop.permute.xlu0 %1013
    %v1016 = vmul.f32 %v737, %v979
    %v1017 = vmul.f32 %v738, %v984
    %v1018 = vmul.f32 %v739, %v989
    %v1019 = vmul.f32 %v740, %v994
    %v1020 = vmul.f32 %v741, %v999
    %v1021 = vmul.f32 %v742, %v1004
    %v1022 = vmul.f32 %v743, %v1009
    %v1023 = vmul.f32 %v744, %v1014
    %1025 = vset.pattern.permute.xlu0 0
    %1026 = vperm.xlu0 %1025, %v968
    %v1027 = vpop.permute.xlu0 %1026
    %1030 = vset.pattern.permute.xlu0 0
    %1031 = vperm.xlu0 %1030, %v969
    %v1032 = vpop.permute.xlu0 %1031
    %1035 = vset.pattern.permute.xlu0 0
    %1036 = vperm.xlu0 %1035, %v970
    %v1037 = vpop.permute.xlu0 %1036
    %1040 = vset.pattern.permute.xlu0 0
    %1041 = vperm.xlu0 %1040, %v971
    %v1042 = vpop.permute.xlu0 %1041
    %1045 = vset.pattern.permute.xlu0 0
    %1046 = vperm.xlu0 %1045, %v972
    %v1047 = vpop.permute.xlu0 %1046
    %1050 = vset.pattern.permute.xlu0 0
    %1051 = vperm.xlu0 %1050, %v973
    %v1052 = vpop.permute.xlu0 %1051
    %1055 = vset.pattern.permute.xlu0 0
    %1056 = vperm.xlu0 %1055, %v974
    %v1057 = vpop.permute.xlu0 %1056
    %1060 = vset.pattern.permute.xlu0 0
    %1061 = vperm.xlu0 %1060, %v975
    %v1062 = vpop.permute.xlu0 %1061
    %v1064 = vadd.f32 %v1016, %v1027
    %v1065 = vadd.f32 %v1017, %v1032
    %v1066 = vadd.f32 %v1018, %v1037
    %v1067 = vadd.f32 %v1019, %v1042
    %v1068 = vadd.f32 %v1020, %v1047
    %v1069 = vadd.f32 %v1021, %v1052
    %v1070 = vadd.f32 %v1022, %v1057
    %v1071 = vadd.f32 %v1023, %v1062
    %v1072 = vmax.f32 %v1064, 0.0
    %v1073 = vmax.f32 %v1065, 0.0
    %v1074 = vmax.f32 %v1066, 0.0
    %v1075 = vmax.f32 %v1067, 0.0
    %v1076 = vmax.f32 %v1068, 0.0
    %v1077 = vmax.f32 %v1069, 0.0
    %v1078 = vmax.f32 %v1070, 0.0
    %v1079 = vmax.f32 %v1071, 0.0
    %v1080 = vpack.c.bf16 %v1073, %v1072
    %v1081 = vpack.c.bf16 %v1075, %v1074
    %v1082 = vpack.c.bf16 %v1077, %v1076
    %v1083 = vpack.c.bf16 %v1079, %v1078
    %v1084 = vld [vmem:[#allocation6] sm:$0xf]
    %v1085 = vld [vmem:[#allocation6 + $0x4] sm:$0xf]
    %v1086 = vld [vmem:[#allocation6 + $0x8] sm:$0xf]
    %v1087 = vld [vmem:[#allocation6 + $0xc] sm:$0xf]
    %v1088 = vld [vmem:[#allocation6 + $0x10] sm:$0xf]
    %v1089 = vld [vmem:[#allocation6 + $0x14] sm:$0xf]
    %v1090 = vld [vmem:[#allocation6 + $0x18] sm:$0xf]
    %v1091 = vld [vmem:[#allocation6 + $0x1c] sm:$0xf]
    %v1092 = vld [vmem:[#allocation6 + $0x20] sm:$0xf]
    %v1093 = vld [vmem:[#allocation6 + $0x24] sm:$0xf]
    %v1094 = vld [vmem:[#allocation6 + $0x28] sm:$0xf]
    %v1095 = vld [vmem:[#allocation6 + $0x2c] sm:$0xf]
    %v1096 = vld [vmem:[#allocation6 + $0x30] sm:$0xf]
    %v1097 = vld [vmem:[#allocation6 + $0x34] sm:$0xf]
    %v1098 = vld [vmem:[#allocation6 + $0x38] sm:$0xf]
    %v1099 = vld [vmem:[#allocation6 + $0x3c] sm:$0xf]
    %v1100 = vld [vmem:[#allocation6 + $0x40] sm:$0xf]
    %v1101 = vld [vmem:[#allocation6 + $0x44] sm:$0xf]
    %v1102 = vld [vmem:[#allocation6 + $0x48] sm:$0xf]
    %v1103 = vld [vmem:[#allocation6 + $0x4c] sm:$0xf]
    %v1104 = vld [vmem:[#allocation6 + $0x50] sm:$0xf]
    %v1105 = vld [vmem:[#allocation6 + $0x54] sm:$0xf]
    %v1106 = vld [vmem:[#allocation6 + $0x58] sm:$0xf]
    %v1107 = vld [vmem:[#allocation6 + $0x5c] sm:$0xf]
    %v1108 = vld [vmem:[#allocation6 + $0x60] sm:$0xf]
    %v1109 = vld [vmem:[#allocation6 + $0x64] sm:$0xf]
    %v1110 = vld [vmem:[#allocation6 + $0x68] sm:$0xf]
    %v1111 = vld [vmem:[#allocation6 + $0x6c] sm:$0xf]
    %v1112 = vld [vmem:[#allocation6 + $0x70] sm:$0xf]
    %v1113 = vld [vmem:[#allocation6 + $0x74] sm:$0xf]
    %v1114 = vld [vmem:[#allocation6 + $0x78] sm:$0xf]
    %v1115 = vld [vmem:[#allocation6 + $0x7c] sm:$0xf]
    %v1116 = vld [vmem:[#allocation6 + $0x80] sm:$0xf]
    %v1117 = vld [vmem:[#allocation6 + $0x84] sm:$0xf]
    %v1118 = vld [vmem:[#allocation6 + $0x88] sm:$0xf]
    %v1119 = vld [vmem:[#allocation6 + $0x8c] sm:$0xf]
    %v1120 = vld [vmem:[#allocation6 + $0x90] sm:$0xf]
    %v1121 = vld [vmem:[#allocation6 + $0x94] sm:$0xf]
    %v1122 = vld [vmem:[#allocation6 + $0x98] sm:$0xf]
    %v1123 = vld [vmem:[#allocation6 + $0x9c] sm:$0xf]
    %v1124 = vld [vmem:[#allocation6 + $0xa0] sm:$0xf]
    %v1125 = vld [vmem:[#allocation6 + $0xa4] sm:$0xf]
    %v1126 = vld [vmem:[#allocation6 + $0xa8] sm:$0xf]
    %v1127 = vld [vmem:[#allocation6 + $0xac] sm:$0xf]
    %v1128 = vld [vmem:[#allocation6 + $0xb0] sm:$0xf]
    %v1129 = vld [vmem:[#allocation6 + $0xb4] sm:$0xf]
    %v1130 = vld [vmem:[#allocation6 + $0xb8] sm:$0xf]
    %v1131 = vld [vmem:[#allocation6 + $0xbc] sm:$0xf]
    %v1132 = vld [vmem:[#allocation6 + $0xc0] sm:$0xf]
    %v1133 = vld [vmem:[#allocation6 + $0xc4] sm:$0xf]
    %v1134 = vld [vmem:[#allocation6 + $0xc8] sm:$0xf]
    %v1135 = vld [vmem:[#allocation6 + $0xcc] sm:$0xf]
    %v1136 = vld [vmem:[#allocation6 + $0xd0] sm:$0xf]
    %v1137 = vld [vmem:[#allocation6 + $0xd4] sm:$0xf]
    %v1138 = vld [vmem:[#allocation6 + $0xd8] sm:$0xf]
    %v1139 = vld [vmem:[#allocation6 + $0xdc] sm:$0xf]
    %v1140 = vld [vmem:[#allocation6 + $0xe0] sm:$0xf]
    %v1141 = vld [vmem:[#allocation6 + $0xe4] sm:$0xf]
    %v1142 = vld [vmem:[#allocation6 + $0xe8] sm:$0xf]
    %v1143 = vld [vmem:[#allocation6 + $0xec] sm:$0xf]
    %v1144 = vld [vmem:[#allocation6 + $0xf0] sm:$0xf]
    %v1145 = vld [vmem:[#allocation6 + $0xf4] sm:$0xf]
    %v1146 = vld [vmem:[#allocation6 + $0xf8] sm:$0xf]
    %v1147 = vld [vmem:[#allocation6 + $0xfc] sm:$0xf]
    %v1212 = vunpack.c.l.b16 %v1084
    %v1213 = vunpack.c.l.b16 %v1085
    %v1214 = vunpack.c.l.b16 %v1086
    %v1215 = vunpack.c.l.b16 %v1087
    %v1216 = vunpack.c.l.b16 %v1088
    %v1217 = vunpack.c.l.b16 %v1089
    %v1218 = vunpack.c.l.b16 %v1090
    %v1219 = vunpack.c.l.b16 %v1091
    %v1220 = vunpack.c.l.b16 %v1092
    %v1221 = vunpack.c.l.b16 %v1093
    %v1222 = vunpack.c.l.b16 %v1094
    %v1223 = vunpack.c.l.b16 %v1095
    %v1224 = vunpack.c.l.b16 %v1096
    %v1225 = vunpack.c.l.b16 %v1097
    %v1226 = vunpack.c.l.b16 %v1098
    %v1227 = vunpack.c.l.b16 %v1099
    %v1228 = vunpack.c.l.b16 %v1100
    %v1229 = vunpack.c.l.b16 %v1101
    %v1230 = vunpack.c.l.b16 %v1102
    %v1231 = vunpack.c.l.b16 %v1103
    %v1232 = vunpack.c.l.b16 %v1104
    %v1233 = vunpack.c.l.b16 %v1105
    %v1234 = vunpack.c.l.b16 %v1106
    %v1235 = vunpack.c.l.b16 %v1107
    %v1236 = vunpack.c.l.b16 %v1108
    %v1237 = vunpack.c.l.b16 %v1109
    %v1238 = vunpack.c.l.b16 %v1110
    %v1239 = vunpack.c.l.b16 %v1111
    %v1240 = vunpack.c.l.b16 %v1112
    %v1241 = vunpack.c.l.b16 %v1113
    %v1242 = vunpack.c.l.b16 %v1114
    %v1243 = vunpack.c.l.b16 %v1115
    %v1244 = vunpack.c.l.b16 %v1116
    %v1245 = vunpack.c.l.b16 %v1117
    %v1246 = vunpack.c.l.b16 %v1118
    %v1247 = vunpack.c.l.b16 %v1119
    %v1248 = vunpack.c.l.b16 %v1120
    %v1249 = vunpack.c.l.b16 %v1121
    %v1250 = vunpack.c.l.b16 %v1122
    %v1251 = vunpack.c.l.b16 %v1123
    %v1252 = vunpack.c.l.b16 %v1124
    %v1253 = vunpack.c.l.b16 %v1125
    %v1254 = vunpack.c.l.b16 %v1126
    %v1255 = vunpack.c.l.b16 %v1127
    %v1256 = vunpack.c.l.b16 %v1128
    %v1257 = vunpack.c.l.b16 %v1129
    %v1258 = vunpack.c.l.b16 %v1130
    %v1259 = vunpack.c.l.b16 %v1131
    %v1260 = vunpack.c.l.b16 %v1132
    %v1261 = vunpack.c.l.b16 %v1133
    %v1262 = vunpack.c.l.b16 %v1134
    %v1263 = vunpack.c.l.b16 %v1135
    %v1264 = vunpack.c.l.b16 %v1136
    %v1265 = vunpack.c.l.b16 %v1137
    %v1266 = vunpack.c.l.b16 %v1138
    %v1267 = vunpack.c.l.b16 %v1139
    %v1268 = vunpack.c.l.b16 %v1140
    %v1269 = vunpack.c.l.b16 %v1141
    %v1270 = vunpack.c.l.b16 %v1142
    %v1271 = vunpack.c.l.b16 %v1143
    %v1272 = vunpack.c.l.b16 %v1144
    %v1273 = vunpack.c.l.b16 %v1145
    %v1274 = vunpack.c.l.b16 %v1146
    %v1275 = vunpack.c.l.b16 %v1147
    %v1276 = vpack.c.b16 %v1213, %v1212
    %v1277 = vpack.c.b16 %v1215, %v1214
    %v1278 = vpack.c.b16 %v1217, %v1216
    %v1279 = vpack.c.b16 %v1219, %v1218
    %v1280 = vpack.c.b16 %v1221, %v1220
    %v1281 = vpack.c.b16 %v1223, %v1222
    %v1282 = vpack.c.b16 %v1225, %v1224
    %v1283 = vpack.c.b16 %v1227, %v1226
    %v1284 = vpack.c.b16 %v1229, %v1228
    %v1285 = vpack.c.b16 %v1231, %v1230
    %v1286 = vpack.c.b16 %v1233, %v1232
    %v1287 = vpack.c.b16 %v1235, %v1234
    %v1288 = vpack.c.b16 %v1237, %v1236
    %v1289 = vpack.c.b16 %v1239, %v1238
    %v1290 = vpack.c.b16 %v1241, %v1240
    %v1291 = vpack.c.b16 %v1243, %v1242
    %v1292 = vpack.c.b16 %v1245, %v1244
    %v1293 = vpack.c.b16 %v1247, %v1246
    %v1294 = vpack.c.b16 %v1249, %v1248
    %v1295 = vpack.c.b16 %v1251, %v1250
    %v1296 = vpack.c.b16 %v1253, %v1252
    %v1297 = vpack.c.b16 %v1255, %v1254
    %v1298 = vpack.c.b16 %v1257, %v1256
    %v1299 = vpack.c.b16 %v1259, %v1258
    %v1300 = vpack.c.b16 %v1261, %v1260
    %v1301 = vpack.c.b16 %v1263, %v1262
    %v1302 = vpack.c.b16 %v1265, %v1264
    %v1303 = vpack.c.b16 %v1267, %v1266
    %v1304 = vpack.c.b16 %v1269, %v1268
    %v1305 = vpack.c.b16 %v1271, %v1270
    %v1306 = vpack.c.b16 %v1273, %v1272
    %v1307 = vpack.c.b16 %v1275, %v1274
    %vm1308 = vcmask 523264
    %v1310 = vsel %vm1308, %v1276, 0
    %v1313 = vsel %vm1308, %v1277, 0
    %v1316 = vsel %vm1308, %v1278, 0
    %v1319 = vsel %vm1308, %v1279, 0
    %v1322 = vsel %vm1308, %v1280, 0
    %v1325 = vsel %vm1308, %v1281, 0
    %v1328 = vsel %vm1308, %v1282, 0
    %v1331 = vsel %vm1308, %v1283, 0
    %v1334 = vsel %vm1308, %v1284, 0
    %v1337 = vsel %vm1308, %v1285, 0
    %v1340 = vsel %vm1308, %v1286, 0
    %v1343 = vsel %vm1308, %v1287, 0
    %v1346 = vsel %vm1308, %v1288, 0
    %v1349 = vsel %vm1308, %v1289, 0
    %v1352 = vsel %vm1308, %v1290, 0
    %v1355 = vsel %vm1308, %v1291, 0
    %v1358 = vsel %vm1308, %v1292, 0
    %v1361 = vsel %vm1308, %v1293, 0
    %v1364 = vsel %vm1308, %v1294, 0
    %v1367 = vsel %vm1308, %v1295, 0
    %v1370 = vsel %vm1308, %v1296, 0
    %v1373 = vsel %vm1308, %v1297, 0
    %v1376 = vsel %vm1308, %v1298, 0
    %v1379 = vsel %vm1308, %v1299, 0
    %v1382 = vsel %vm1308, %v1300, 0
    %v1385 = vsel %vm1308, %v1301, 0
    %v1388 = vsel %vm1308, %v1302, 0
    %v1391 = vsel %vm1308, %v1303, 0
    %v1394 = vsel %vm1308, %v1304, 0
    %v1397 = vsel %vm1308, %v1305, 0
    %v1400 = vsel %vm1308, %v1306, 0
    %v1403 = vsel %vm1308, %v1307, 0
    %1405 = vmatpush.bf16.msra.mxu0 0
    %1406 = vmatpush.bf16.msra.mxu0 0
    %1407 = vmatpush.bf16.msra.mxu0 0
    %1408 = vmatpush.bf16.msra.mxu0 0
    %1409 = vmatpush.bf16.msra.mxu0 %v1083
    %1410 = vmatpush.bf16.msra.mxu0 %v1082
    %1411 = vmatpush.bf16.msra.mxu0 %v1081
    %1412 = vmatpush.bf16.msra.mxu0 %v1080
    %1413 = vmatmul.bf16.gmra.mxu0 %v1310
    %v1414 = vpop.f32.mrf.mxu0
    %v1415 = vadd.f32 0.0, %v1414
    %v1416 = vpop.f32.mrf.mxu0
    %v1417 = vadd.f32 0.0, %v1416
    %1418 = vmatmul.bf16.gmra.mxu0 %v1313
    %v1419 = vpop.f32.mrf.mxu0
    %v1420 = vadd.f32 0.0, %v1419
    %v1421 = vpop.f32.mrf.mxu0
    %v1422 = vadd.f32 0.0, %v1421
    %1423 = vmatmul.bf16.gmra.mxu0 %v1316
    %v1424 = vpop.f32.mrf.mxu0
    %v1425 = vadd.f32 0.0, %v1424
    %v1426 = vpop.f32.mrf.mxu0
    %v1427 = vadd.f32 0.0, %v1426
    %1428 = vmatmul.bf16.gmra.mxu0 %v1319
    %v1429 = vpop.f32.mrf.mxu0
    %v1430 = vadd.f32 0.0, %v1429
    %v1431 = vpop.f32.mrf.mxu0
    %v1432 = vadd.f32 0.0, %v1431
    %1433 = vmatmul.bf16.gmra.mxu0 %v1322
    %v1434 = vpop.f32.mrf.mxu0
    %v1435 = vadd.f32 0.0, %v1434
    %v1436 = vpop.f32.mrf.mxu0
    %v1437 = vadd.f32 0.0, %v1436
    %1438 = vmatmul.bf16.gmra.mxu0 %v1325
    %v1439 = vpop.f32.mrf.mxu0
    %v1440 = vadd.f32 0.0, %v1439
    %v1441 = vpop.f32.mrf.mxu0
    %v1442 = vadd.f32 0.0, %v1441
    %1443 = vmatmul.bf16.gmra.mxu0 %v1328
    %v1444 = vpop.f32.mrf.mxu0
    %v1445 = vadd.f32 0.0, %v1444
    %v1446 = vpop.f32.mrf.mxu0
    %v1447 = vadd.f32 0.0, %v1446
    %1448 = vmatmul.bf16.gmra.mxu0 %v1331
    %v1449 = vpop.f32.mrf.mxu0
    %v1450 = vadd.f32 0.0, %v1449
    %v1451 = vpop.f32.mrf.mxu0
    %v1452 = vadd.f32 0.0, %v1451
    %1453 = vmatmul.bf16.gmra.mxu0 %v1334
    %v1454 = vpop.f32.mrf.mxu0
    %v1455 = vadd.f32 0.0, %v1454
    %v1456 = vpop.f32.mrf.mxu0
    %v1457 = vadd.f32 0.0, %v1456
    %1458 = vmatmul.bf16.gmra.mxu0 %v1337
    %v1459 = vpop.f32.mrf.mxu0
    %v1460 = vadd.f32 0.0, %v1459
    %v1461 = vpop.f32.mrf.mxu0
    %v1462 = vadd.f32 0.0, %v1461
    %1463 = vmatmul.bf16.gmra.mxu0 %v1340
    %v1464 = vpop.f32.mrf.mxu0
    %v1465 = vadd.f32 0.0, %v1464
    %v1466 = vpop.f32.mrf.mxu0
    %v1467 = vadd.f32 0.0, %v1466
    %1468 = vmatmul.bf16.gmra.mxu0 %v1343
    %v1469 = vpop.f32.mrf.mxu0
    %v1470 = vadd.f32 0.0, %v1469
    %v1471 = vpop.f32.mrf.mxu0
    %v1472 = vadd.f32 0.0, %v1471
    %1473 = vmatmul.bf16.gmra.mxu0 %v1346
    %v1474 = vpop.f32.mrf.mxu0
    %v1475 = vadd.f32 0.0, %v1474
    %v1476 = vpop.f32.mrf.mxu0
    %v1477 = vadd.f32 0.0, %v1476
    %1478 = vmatmul.bf16.gmra.mxu0 %v1349
    %v1479 = vpop.f32.mrf.mxu0
    %v1480 = vadd.f32 0.0, %v1479
    %v1481 = vpop.f32.mrf.mxu0
    %v1482 = vadd.f32 0.0, %v1481
    %1483 = vmatmul.bf16.gmra.mxu0 %v1352
    %v1484 = vpop.f32.mrf.mxu0
    %v1485 = vadd.f32 0.0, %v1484
    %v1486 = vpop.f32.mrf.mxu0
    %v1487 = vadd.f32 0.0, %v1486
    %1488 = vmatmul.bf16.gmra.mxu0 %v1355
    %v1489 = vpop.f32.mrf.mxu0
    %v1490 = vadd.f32 0.0, %v1489
    %v1491 = vpop.f32.mrf.mxu0
    %v1492 = vadd.f32 0.0, %v1491
    %1493 = vmatmul.bf16.gmra.mxu0 %v1358
    %v1494 = vpop.f32.mrf.mxu0
    %v1495 = vadd.f32 0.0, %v1494
    %v1496 = vpop.f32.mrf.mxu0
    %v1497 = vadd.f32 0.0, %v1496
    %1498 = vmatmul.bf16.gmra.mxu0 %v1361
    %v1499 = vpop.f32.mrf.mxu0
    %v1500 = vadd.f32 0.0, %v1499
    %v1501 = vpop.f32.mrf.mxu0
    %v1502 = vadd.f32 0.0, %v1501
    %1503 = vmatmul.bf16.gmra.mxu0 %v1364
    %v1504 = vpop.f32.mrf.mxu0
    %v1505 = vadd.f32 0.0, %v1504
    %v1506 = vpop.f32.mrf.mxu0
    %v1507 = vadd.f32 0.0, %v1506
    %1508 = vmatmul.bf16.gmra.mxu0 %v1367
    %v1509 = vpop.f32.mrf.mxu0
    %v1510 = vadd.f32 0.0, %v1509
    %v1511 = vpop.f32.mrf.mxu0
    %v1512 = vadd.f32 0.0, %v1511
    %1513 = vmatmul.bf16.gmra.mxu0 %v1370
    %v1514 = vpop.f32.mrf.mxu0
    %v1515 = vadd.f32 0.0, %v1514
    %v1516 = vpop.f32.mrf.mxu0
    %v1517 = vadd.f32 0.0, %v1516
    %1518 = vmatmul.bf16.gmra.mxu0 %v1373
    %v1519 = vpop.f32.mrf.mxu0
    %v1520 = vadd.f32 0.0, %v1519
    %v1521 = vpop.f32.mrf.mxu0
    %v1522 = vadd.f32 0.0, %v1521
    %1523 = vmatmul.bf16.gmra.mxu0 %v1376
    %v1524 = vpop.f32.mrf.mxu0
    %v1525 = vadd.f32 0.0, %v1524
    %v1526 = vpop.f32.mrf.mxu0
    %v1527 = vadd.f32 0.0, %v1526
    %1528 = vmatmul.bf16.gmra.mxu0 %v1379
    %v1529 = vpop.f32.mrf.mxu0
    %v1530 = vadd.f32 0.0, %v1529
    %v1531 = vpop.f32.mrf.mxu0
    %v1532 = vadd.f32 0.0, %v1531
    %1533 = vmatmul.bf16.gmra.mxu0 %v1382
    %v1534 = vpop.f32.mrf.mxu0
    %v1535 = vadd.f32 0.0, %v1534
    %v1536 = vpop.f32.mrf.mxu0
    %v1537 = vadd.f32 0.0, %v1536
    %1538 = vmatmul.bf16.gmra.mxu0 %v1385
    %v1539 = vpop.f32.mrf.mxu0
    %v1540 = vadd.f32 0.0, %v1539
    %v1541 = vpop.f32.mrf.mxu0
    %v1542 = vadd.f32 0.0, %v1541
    %1543 = vmatmul.bf16.gmra.mxu0 %v1388
    %v1544 = vpop.f32.mrf.mxu0
    %v1545 = vadd.f32 0.0, %v1544
    %v1546 = vpop.f32.mrf.mxu0
    %v1547 = vadd.f32 0.0, %v1546
    %1548 = vmatmul.bf16.gmra.mxu0 %v1391
    %v1549 = vpop.f32.mrf.mxu0
    %v1550 = vadd.f32 0.0, %v1549
    %v1551 = vpop.f32.mrf.mxu0
    %v1552 = vadd.f32 0.0, %v1551
    %1553 = vmatmul.bf16.gmra.mxu0 %v1394
    %v1554 = vpop.f32.mrf.mxu0
    %v1555 = vadd.f32 0.0, %v1554
    %v1556 = vpop.f32.mrf.mxu0
    %v1557 = vadd.f32 0.0, %v1556
    %1558 = vmatmul.bf16.gmra.mxu0 %v1397
    %v1559 = vpop.f32.mrf.mxu0
    %v1560 = vadd.f32 0.0, %v1559
    %v1561 = vpop.f32.mrf.mxu0
    %v1562 = vadd.f32 0.0, %v1561
    %1563 = vmatmul.bf16.gmra.mxu0 %v1400
    %v1564 = vpop.f32.mrf.mxu0
    %v1565 = vadd.f32 0.0, %v1564
    %v1566 = vpop.f32.mrf.mxu0
    %v1567 = vadd.f32 0.0, %v1566
    %1568 = vmatmul.bf16.gmra.mxu0 %v1403
    %v1569 = vpop.f32.mrf.mxu0
    %v1570 = vadd.f32 0.0, %v1569
    %v1571 = vpop.f32.mrf.mxu0
    %v1572 = vadd.f32 0.0, %v1571
    %1573 = vdwg.mxu0
    %v1574 = vpack.c.bf16 %v1415, %v1415
    %v1575 = vpack.c.bf16 %v1417, %v1417
    %v1576 = vpack.c.bf16 %v1420, %v1420
    %v1577 = vpack.c.bf16 %v1422, %v1422
    %v1578 = vpack.c.bf16 %v1425, %v1425
    %v1579 = vpack.c.bf16 %v1427, %v1427
    %v1580 = vpack.c.bf16 %v1430, %v1430
    %v1581 = vpack.c.bf16 %v1432, %v1432
    %v1582 = vpack.c.bf16 %v1435, %v1435
    %v1583 = vpack.c.bf16 %v1437, %v1437
    %v1584 = vpack.c.bf16 %v1440, %v1440
    %v1585 = vpack.c.bf16 %v1442, %v1442
    %v1586 = vpack.c.bf16 %v1445, %v1445
    %v1587 = vpack.c.bf16 %v1447, %v1447
    %v1588 = vpack.c.bf16 %v1450, %v1450
    %v1589 = vpack.c.bf16 %v1452, %v1452
    %v1590 = vpack.c.bf16 %v1455, %v1455
    %v1591 = vpack.c.bf16 %v1457, %v1457
    %v1592 = vpack.c.bf16 %v1460, %v1460
    %v1593 = vpack.c.bf16 %v1462, %v1462
    %v1594 = vpack.c.bf16 %v1465, %v1465
    %v1595 = vpack.c.bf16 %v1467, %v1467
    %v1596 = vpack.c.bf16 %v1470, %v1470
    %v1597 = vpack.c.bf16 %v1472, %v1472
    %v1598 = vpack.c.bf16 %v1475, %v1475
    %v1599 = vpack.c.bf16 %v1477, %v1477
    %v1600 = vpack.c.bf16 %v1480, %v1480
    %v1601 = vpack.c.bf16 %v1482, %v1482
    %v1602 = vpack.c.bf16 %v1485, %v1485
    %v1603 = vpack.c.bf16 %v1487, %v1487
    %v1604 = vpack.c.bf16 %v1490, %v1490
    %v1605 = vpack.c.bf16 %v1492, %v1492
    %v1606 = vpack.c.bf16 %v1495, %v1495
    %v1607 = vpack.c.bf16 %v1497, %v1497
    %v1608 = vpack.c.bf16 %v1500, %v1500
    %v1609 = vpack.c.bf16 %v1502, %v1502
    %v1610 = vpack.c.bf16 %v1505, %v1505
    %v1611 = vpack.c.bf16 %v1507, %v1507
    %v1612 = vpack.c.bf16 %v1510, %v1510
    %v1613 = vpack.c.bf16 %v1512, %v1512
    %v1614 = vpack.c.bf16 %v1515, %v1515
    %v1615 = vpack.c.bf16 %v1517, %v1517
    %v1616 = vpack.c.bf16 %v1520, %v1520
    %v1617 = vpack.c.bf16 %v1522, %v1522
    %v1618 = vpack.c.bf16 %v1525, %v1525
    %v1619 = vpack.c.bf16 %v1527, %v1527
    %v1620 = vpack.c.bf16 %v1530, %v1530
    %v1621 = vpack.c.bf16 %v1532, %v1532
    %v1622 = vpack.c.bf16 %v1535, %v1535
    %v1623 = vpack.c.bf16 %v1537, %v1537
    %v1624 = vpack.c.bf16 %v1540, %v1540
    %v1625 = vpack.c.bf16 %v1542, %v1542
    %v1626 = vpack.c.bf16 %v1545, %v1545
    %v1627 = vpack.c.bf16 %v1547, %v1547
    %v1628 = vpack.c.bf16 %v1550, %v1550
    %v1629 = vpack.c.bf16 %v1552, %v1552
    %v1630 = vpack.c.bf16 %v1555, %v1555
    %v1631 = vpack.c.bf16 %v1557, %v1557
    %v1632 = vpack.c.bf16 %v1560, %v1560
    %v1633 = vpack.c.bf16 %v1562, %v1562
    %v1634 = vpack.c.bf16 %v1565, %v1565
    %v1635 = vpack.c.bf16 %v1567, %v1567
    %v1636 = vpack.c.bf16 %v1570, %v1570
    %v1637 = vpack.c.bf16 %v1572, %v1572
    %v1638 = vld [vmem:[#allocation7] sm:$0xf]
    %s1639 = scalar_lea.vmem [#allocation7], 4
    %v1640 = vld [vmem:[%s1639] sm:$0xf]
    %v1645 = vunpack.c.l.b16 %v1578
    %v1646 = vunpack.c.l.b16 %v1579
    %v1647 = vunpack.c.l.b16 %v1580
    %v1648 = vunpack.c.l.b16 %v1581
    %v1649 = vpack.c.b16 %v1646, %v1645
    %v1650 = vpack.c.b16 %v1648, %v1647
    %v1652 = vsel %vm290, %v1649, 0
    %v1655 = vsel %vm290, %v1650, 0
    %v1658 = vsel %vm339, %v1640, 0
    %1660 = vmatpush.bf16.msra.mxu0 0
    %1661 = vmatpush.bf16.msra.mxu0 0
    %1662 = vmatpush.bf16.msra.mxu0 0
    %1663 = vmatpush.bf16.msra.mxu0 0
    %1664 = vmatpush.bf16.msra.mxu0 0
    %1665 = vmatpush.bf16.msra.mxu0 0
    %1666 = vmatpush.bf16.msra.mxu0 0
    %1667 = vmatpush.bf16.msra.mxu0 %v1658
    %1668 = vmatmul.bf16.gmra.mxu0 %v1652
    %v1669 = vpop.f32.mrf.mxu0
    %v1670 = vadd.f32 0.0, %v1669
    %v1671 = vpop.f32.mrf.mxu0
    %v1672 = vadd.f32 0.0, %v1671
    %1673 = vmatmul.bf16.gmra.mxu0 %v1655
    %v1674 = vpop.f32.mrf.mxu0
    %v1675 = vadd.f32 0.0, %v1674
    %v1676 = vpop.f32.mrf.mxu0
    %v1677 = vadd.f32 0.0, %v1676
    %1678 = vdwg.mxu0
    %v1683 = vunpack.c.l.b16 %v1574
    %v1684 = vunpack.c.l.b16 %v1575
    %v1685 = vunpack.c.l.b16 %v1576
    %v1686 = vunpack.c.l.b16 %v1577
    %v1687 = vpack.c.b16 %v1684, %v1683
    %v1688 = vpack.c.b16 %v1686, %v1685
    %v1690 = vsel %vm290, %v1687, 0
    %v1693 = vsel %vm290, %v1688, 0
    %v1696 = vsel %vm339, %v1638, 0
    %1698 = vmatpush.bf16.msra.mxu0 0
    %1699 = vmatpush.bf16.msra.mxu0 0
    %1700 = vmatpush.bf16.msra.mxu0 0
    %1701 = vmatpush.bf16.msra.mxu0 0
    %1702 = vmatpush.bf16.msra.mxu0 0
    %1703 = vmatpush.bf16.msra.mxu0 0
    %1704 = vmatpush.bf16.msra.mxu0 0
    %1705 = vmatpush.bf16.msra.mxu0 %v1696
    %1706 = vmatmul.bf16.gmra.mxu0 %v1690
    %v1707 = vpop.f32.mrf.mxu0
    %v1708 = vadd.f32 %v1670, %v1707
    %v1709 = vpop.f32.mrf.mxu0
    %v1710 = vadd.f32 %v1672, %v1709
    %1711 = vmatmul.bf16.gmra.mxu0 %v1693
    %v1712 = vpop.f32.mrf.mxu0
    %v1713 = vadd.f32 %v1675, %v1712
    %v1714 = vpop.f32.mrf.mxu0
    %v1715 = vadd.f32 %v1677, %v1714
    %1716 = vdwg.mxu0
    %s1717 = scalar_lea.vmem [#allocation7], 8
    %v1718 = vld [vmem:[%s1717] sm:$0xf]
    %v1723 = vunpack.c.l.b16 %v1582
    %v1724 = vunpack.c.l.b16 %v1583
    %v1725 = vunpack.c.l.b16 %v1584
    %v1726 = vunpack.c.l.b16 %v1585
    %v1727 = vpack.c.b16 %v1724, %v1723
    %v1728 = vpack.c.b16 %v1726, %v1725
    %v1730 = vsel %vm290, %v1727, 0
    %v1733 = vsel %vm290, %v1728, 0
    %v1736 = vsel %vm339, %v1718, 0
    %1738 = vmatpush.bf16.msra.mxu0 0
    %1739 = vmatpush.bf16.msra.mxu0 0
    %1740 = vmatpush.bf16.msra.mxu0 0
    %1741 = vmatpush.bf16.msra.mxu0 0
    %1742 = vmatpush.bf16.msra.mxu0 0
    %1743 = vmatpush.bf16.msra.mxu0 0
    %1744 = vmatpush.bf16.msra.mxu0 0
    %1745 = vmatpush.bf16.msra.mxu0 %v1736
    %1746 = vmatmul.bf16.gmra.mxu0 %v1730
    %v1747 = vpop.f32.mrf.mxu0
    %v1748 = vadd.f32 0.0, %v1747
    %v1749 = vpop.f32.mrf.mxu0
    %v1750 = vadd.f32 0.0, %v1749
    %1751 = vmatmul.bf16.gmra.mxu0 %v1733
    %v1752 = vpop.f32.mrf.mxu0
    %v1753 = vadd.f32 0.0, %v1752
    %v1754 = vpop.f32.mrf.mxu0
    %v1755 = vadd.f32 0.0, %v1754
    %1756 = vdwg.mxu0
    %v1757 = vadd.f32 %v1708, %v1748
    %v1758 = vadd.f32 %v1710, %v1750
    %v1759 = vadd.f32 %v1713, %v1753
    %v1760 = vadd.f32 %v1715, %v1755
    %s1761 = scalar_lea.vmem [#allocation7], 12
    %v1762 = vld [vmem:[%s1761] sm:$0xf]
    %v1767 = vunpack.c.l.b16 %v1586
    %v1768 = vunpack.c.l.b16 %v1587
    %v1769 = vunpack.c.l.b16 %v1588
    %v1770 = vunpack.c.l.b16 %v1589
    %v1771 = vpack.c.b16 %v1768, %v1767
    %v1772 = vpack.c.b16 %v1770, %v1769
    %v1774 = vsel %vm290, %v1771, 0
    %v1777 = vsel %vm290, %v1772, 0
    %v1780 = vsel %vm339, %v1762, 0
    %1782 = vmatpush.bf16.msra.mxu0 0
    %1783 = vmatpush.bf16.msra.mxu0 0
    %1784 = vmatpush.bf16.msra.mxu0 0
    %1785 = vmatpush.bf16.msra.mxu0 0
    %1786 = vmatpush.bf16.msra.mxu0 0
    %1787 = vmatpush.bf16.msra.mxu0 0
    %1788 = vmatpush.bf16.msra.mxu0 0
    %1789 = vmatpush.bf16.msra.mxu0 %v1780
    %1790 = vmatmul.bf16.gmra.mxu0 %v1774
    %v1791 = vpop.f32.mrf.mxu0
    %v1792 = vadd.f32 0.0, %v1791
    %v1793 = vpop.f32.mrf.mxu0
    %v1794 = vadd.f32 0.0, %v1793
    %1795 = vmatmul.bf16.gmra.mxu0 %v1777
    %v1796 = vpop.f32.mrf.mxu0
    %v1797 = vadd.f32 0.0, %v1796
    %v1798 = vpop.f32.mrf.mxu0
    %v1799 = vadd.f32 0.0, %v1798
    %1800 = vdwg.mxu0
    %v1801 = vadd.f32 %v1757, %v1792
    %v1802 = vadd.f32 %v1758, %v1794
    %v1803 = vadd.f32 %v1759, %v1797
    %v1804 = vadd.f32 %v1760, %v1799
    %s1805 = scalar_lea.vmem [#allocation7], 16
    %v1806 = vld [vmem:[%s1805] sm:$0xf]
    %v1811 = vunpack.c.l.b16 %v1590
    %v1812 = vunpack.c.l.b16 %v1591
    %v1813 = vunpack.c.l.b16 %v1592
    %v1814 = vunpack.c.l.b16 %v1593
    %v1815 = vpack.c.b16 %v1812, %v1811
    %v1816 = vpack.c.b16 %v1814, %v1813
    %v1818 = vsel %vm290, %v1815, 0
    %v1821 = vsel %vm290, %v1816, 0
    %v1824 = vsel %vm339, %v1806, 0
    %1826 = vmatpush.bf16.msra.mxu0 0
    %1827 = vmatpush.bf16.msra.mxu0 0
    %1828 = vmatpush.bf16.msra.mxu0 0
    %1829 = vmatpush.bf16.msra.mxu0 0
    %1830 = vmatpush.bf16.msra.mxu0 0
    %1831 = vmatpush.bf16.msra.mxu0 0
    %1832 = vmatpush.bf16.msra.mxu0 0
    %1833 = vmatpush.bf16.msra.mxu0 %v1824
    %1834 = vmatmul.bf16.gmra.mxu0 %v1818
    %v1835 = vpop.f32.mrf.mxu0
    %v1836 = vadd.f32 0.0, %v1835
    %v1837 = vpop.f32.mrf.mxu0
    %v1838 = vadd.f32 0.0, %v1837
    %1839 = vmatmul.bf16.gmra.mxu0 %v1821
    %v1840 = vpop.f32.mrf.mxu0
    %v1841 = vadd.f32 0.0, %v1840
    %v1842 = vpop.f32.mrf.mxu0
    %v1843 = vadd.f32 0.0, %v1842
    %1844 = vdwg.mxu0
    %v1845 = vadd.f32 %v1801, %v1836
    %v1846 = vadd.f32 %v1802, %v1838
    %v1847 = vadd.f32 %v1803, %v1841
    %v1848 = vadd.f32 %v1804, %v1843
    %s1849 = scalar_lea.vmem [#allocation7], 20
    %v1850 = vld [vmem:[%s1849] sm:$0xf]
    %v1855 = vunpack.c.l.b16 %v1594
    %v1856 = vunpack.c.l.b16 %v1595
    %v1857 = vunpack.c.l.b16 %v1596
    %v1858 = vunpack.c.l.b16 %v1597
    %v1859 = vpack.c.b16 %v1856, %v1855
    %v1860 = vpack.c.b16 %v1858, %v1857
    %v1862 = vsel %vm290, %v1859, 0
    %v1865 = vsel %vm290, %v1860, 0
    %v1868 = vsel %vm339, %v1850, 0
    %1870 = vmatpush.bf16.msra.mxu0 0
    %1871 = vmatpush.bf16.msra.mxu0 0
    %1872 = vmatpush.bf16.msra.mxu0 0
    %1873 = vmatpush.bf16.msra.mxu0 0
    %1874 = vmatpush.bf16.msra.mxu0 0
    %1875 = vmatpush.bf16.msra.mxu0 0
    %1876 = vmatpush.bf16.msra.mxu0 0
    %1877 = vmatpush.bf16.msra.mxu0 %v1868
    %1878 = vmatmul.bf16.gmra.mxu0 %v1862
    %v1879 = vpop.f32.mrf.mxu0
    %v1880 = vadd.f32 0.0, %v1879
    %v1881 = vpop.f32.mrf.mxu0
    %v1882 = vadd.f32 0.0, %v1881
    %1883 = vmatmul.bf16.gmra.mxu0 %v1865
    %v1884 = vpop.f32.mrf.mxu0
    %v1885 = vadd.f32 0.0, %v1884
    %v1886 = vpop.f32.mrf.mxu0
    %v1887 = vadd.f32 0.0, %v1886
    %1888 = vdwg.mxu0
    %v1889 = vadd.f32 %v1845, %v1880
    %v1890 = vadd.f32 %v1846, %v1882
    %v1891 = vadd.f32 %v1847, %v1885
    %v1892 = vadd.f32 %v1848, %v1887
    %s1893 = scalar_lea.vmem [#allocation7], 24
    %v1894 = vld [vmem:[%s1893] sm:$0xf]
    %v1899 = vunpack.c.l.b16 %v1598
    %v1900 = vunpack.c.l.b16 %v1599
    %v1901 = vunpack.c.l.b16 %v1600
    %v1902 = vunpack.c.l.b16 %v1601
    %v1903 = vpack.c.b16 %v1900, %v1899
    %v1904 = vpack.c.b16 %v1902, %v1901
    %v1906 = vsel %vm290, %v1903, 0
    %v1909 = vsel %vm290, %v1904, 0
    %v1912 = vsel %vm339, %v1894, 0
    %1914 = vmatpush.bf16.msra.mxu0 0
    %1915 = vmatpush.bf16.msra.mxu0 0
    %1916 = vmatpush.bf16.msra.mxu0 0
    %1917 = vmatpush.bf16.msra.mxu0 0
    %1918 = vmatpush.bf16.msra.mxu0 0
    %1919 = vmatpush.bf16.msra.mxu0 0
    %1920 = vmatpush.bf16.msra.mxu0 0
    %1921 = vmatpush.bf16.msra.mxu0 %v1912
    %1922 = vmatmul.bf16.gmra.mxu0 %v1906
    %v1923 = vpop.f32.mrf.mxu0
    %v1924 = vadd.f32 0.0, %v1923
    %v1925 = vpop.f32.mrf.mxu0
    %v1926 = vadd.f32 0.0, %v1925
    %1927 = vmatmul.bf16.gmra.mxu0 %v1909
    %v1928 = vpop.f32.mrf.mxu0
    %v1929 = vadd.f32 0.0, %v1928
    %v1930 = vpop.f32.mrf.mxu0
    %v1931 = vadd.f32 0.0, %v1930
    %1932 = vdwg.mxu0
    %v1933 = vadd.f32 %v1889, %v1924
    %v1934 = vadd.f32 %v1890, %v1926
    %v1935 = vadd.f32 %v1891, %v1929
    %v1936 = vadd.f32 %v1892, %v1931
    %s1937 = scalar_lea.vmem [#allocation7], 28
    %v1938 = vld [vmem:[%s1937] sm:$0xf]
    %v1943 = vunpack.c.l.b16 %v1602
    %v1944 = vunpack.c.l.b16 %v1603
    %v1945 = vunpack.c.l.b16 %v1604
    %v1946 = vunpack.c.l.b16 %v1605
    %v1947 = vpack.c.b16 %v1944, %v1943
    %v1948 = vpack.c.b16 %v1946, %v1945
    %v1950 = vsel %vm290, %v1947, 0
    %v1953 = vsel %vm290, %v1948, 0
    %v1956 = vsel %vm339, %v1938, 0
    %1958 = vmatpush.bf16.msra.mxu0 0
    %1959 = vmatpush.bf16.msra.mxu0 0
    %1960 = vmatpush.bf16.msra.mxu0 0
    %1961 = vmatpush.bf16.msra.mxu0 0
    %1962 = vmatpush.bf16.msra.mxu0 0
    %1963 = vmatpush.bf16.msra.mxu0 0
    %1964 = vmatpush.bf16.msra.mxu0 0
    %1965 = vmatpush.bf16.msra.mxu0 %v1956
    %1966 = vmatmul.bf16.gmra.mxu0 %v1950
    %v1967 = vpop.f32.mrf.mxu0
    %v1968 = vadd.f32 0.0, %v1967
    %v1969 = vpop.f32.mrf.mxu0
    %v1970 = vadd.f32 0.0, %v1969
    %1971 = vmatmul.bf16.gmra.mxu0 %v1953
    %v1972 = vpop.f32.mrf.mxu0
    %v1973 = vadd.f32 0.0, %v1972
    %v1974 = vpop.f32.mrf.mxu0
    %v1975 = vadd.f32 0.0, %v1974
    %1976 = vdwg.mxu0
    %v1977 = vadd.f32 %v1933, %v1968
    %v1978 = vadd.f32 %v1934, %v1970
    %v1979 = vadd.f32 %v1935, %v1973
    %v1980 = vadd.f32 %v1936, %v1975
    %s1981 = scalar_lea.vmem [#allocation7], 32
    %v1982 = vld [vmem:[%s1981] sm:$0xf]
    %v1987 = vunpack.c.l.b16 %v1606
    %v1988 = vunpack.c.l.b16 %v1607
    %v1989 = vunpack.c.l.b16 %v1608
    %v1990 = vunpack.c.l.b16 %v1609
    %v1991 = vpack.c.b16 %v1988, %v1987
    %v1992 = vpack.c.b16 %v1990, %v1989
    %v1994 = vsel %vm290, %v1991, 0
    %v1997 = vsel %vm290, %v1992, 0
    %v2000 = vsel %vm339, %v1982, 0
    %2002 = vmatpush.bf16.msra.mxu0 0
    %2003 = vmatpush.bf16.msra.mxu0 0
    %2004 = vmatpush.bf16.msra.mxu0 0
    %2005 = vmatpush.bf16.msra.mxu0 0
    %2006 = vmatpush.bf16.msra.mxu0 0
    %2007 = vmatpush.bf16.msra.mxu0 0
    %2008 = vmatpush.bf16.msra.mxu0 0
    %2009 = vmatpush.bf16.msra.mxu0 %v2000
    %2010 = vmatmul.bf16.gmra.mxu0 %v1994
    %v2011 = vpop.f32.mrf.mxu0
    %v2012 = vadd.f32 0.0, %v2011
    %v2013 = vpop.f32.mrf.mxu0
    %v2014 = vadd.f32 0.0, %v2013
    %2015 = vmatmul.bf16.gmra.mxu0 %v1997
    %v2016 = vpop.f32.mrf.mxu0
    %v2017 = vadd.f32 0.0, %v2016
    %v2018 = vpop.f32.mrf.mxu0
    %v2019 = vadd.f32 0.0, %v2018
    %2020 = vdwg.mxu0
    %v2021 = vadd.f32 %v1977, %v2012
    %v2022 = vadd.f32 %v1978, %v2014
    %v2023 = vadd.f32 %v1979, %v2017
    %v2024 = vadd.f32 %v1980, %v2019
    %s2025 = scalar_lea.vmem [#allocation7], 36
    %v2026 = vld [vmem:[%s2025] sm:$0xf]
    %v2031 = vunpack.c.l.b16 %v1610
    %v2032 = vunpack.c.l.b16 %v1611
    %v2033 = vunpack.c.l.b16 %v1612
    %v2034 = vunpack.c.l.b16 %v1613
    %v2035 = vpack.c.b16 %v2032, %v2031
    %v2036 = vpack.c.b16 %v2034, %v2033
    %v2038 = vsel %vm290, %v2035, 0
    %v2041 = vsel %vm290, %v2036, 0
    %v2044 = vsel %vm339, %v2026, 0
    %2046 = vmatpush.bf16.msra.mxu0 0
    %2047 = vmatpush.bf16.msra.mxu0 0
    %2048 = vmatpush.bf16.msra.mxu0 0
    %2049 = vmatpush.bf16.msra.mxu0 0
    %2050 = vmatpush.bf16.msra.mxu0 0
    %2051 = vmatpush.bf16.msra.mxu0 0
    %2052 = vmatpush.bf16.msra.mxu0 0
    %2053 = vmatpush.bf16.msra.mxu0 %v2044
    %2054 = vmatmul.bf16.gmra.mxu0 %v2038
    %v2055 = vpop.f32.mrf.mxu0
    %v2056 = vadd.f32 0.0, %v2055
    %v2057 = vpop.f32.mrf.mxu0
    %v2058 = vadd.f32 0.0, %v2057
    %2059 = vmatmul.bf16.gmra.mxu0 %v2041
    %v2060 = vpop.f32.mrf.mxu0
    %v2061 = vadd.f32 0.0, %v2060
    %v2062 = vpop.f32.mrf.mxu0
    %v2063 = vadd.f32 0.0, %v2062
    %2064 = vdwg.mxu0
    %v2065 = vadd.f32 %v2021, %v2056
    %v2066 = vadd.f32 %v2022, %v2058
    %v2067 = vadd.f32 %v2023, %v2061
    %v2068 = vadd.f32 %v2024, %v2063
    %s2069 = scalar_lea.vmem [#allocation7], 40
    %v2070 = vld [vmem:[%s2069] sm:$0xf]
    %v2075 = vunpack.c.l.b16 %v1614
    %v2076 = vunpack.c.l.b16 %v1615
    %v2077 = vunpack.c.l.b16 %v1616
    %v2078 = vunpack.c.l.b16 %v1617
    %v2079 = vpack.c.b16 %v2076, %v2075
    %v2080 = vpack.c.b16 %v2078, %v2077
    %v2082 = vsel %vm290, %v2079, 0
    %v2085 = vsel %vm290, %v2080, 0
    %v2088 = vsel %vm339, %v2070, 0
    %2090 = vmatpush.bf16.msra.mxu0 0
    %2091 = vmatpush.bf16.msra.mxu0 0
    %2092 = vmatpush.bf16.msra.mxu0 0
    %2093 = vmatpush.bf16.msra.mxu0 0
    %2094 = vmatpush.bf16.msra.mxu0 0
    %2095 = vmatpush.bf16.msra.mxu0 0
    %2096 = vmatpush.bf16.msra.mxu0 0
    %2097 = vmatpush.bf16.msra.mxu0 %v2088
    %2098 = vmatmul.bf16.gmra.mxu0 %v2082
    %v2099 = vpop.f32.mrf.mxu0
    %v2100 = vadd.f32 0.0, %v2099
    %v2101 = vpop.f32.mrf.mxu0
    %v2102 = vadd.f32 0.0, %v2101
    %2103 = vmatmul.bf16.gmra.mxu0 %v2085
    %v2104 = vpop.f32.mrf.mxu0
    %v2105 = vadd.f32 0.0, %v2104
    %v2106 = vpop.f32.mrf.mxu0
    %v2107 = vadd.f32 0.0, %v2106
    %2108 = vdwg.mxu0
    %v2109 = vadd.f32 %v2065, %v2100
    %v2110 = vadd.f32 %v2066, %v2102
    %v2111 = vadd.f32 %v2067, %v2105
    %v2112 = vadd.f32 %v2068, %v2107
    %s2113 = scalar_lea.vmem [#allocation7], 44
    %v2114 = vld [vmem:[%s2113] sm:$0xf]
    %v2119 = vunpack.c.l.b16 %v1618
    %v2120 = vunpack.c.l.b16 %v1619
    %v2121 = vunpack.c.l.b16 %v1620
    %v2122 = vunpack.c.l.b16 %v1621
    %v2123 = vpack.c.b16 %v2120, %v2119
    %v2124 = vpack.c.b16 %v2122, %v2121
    %v2126 = vsel %vm290, %v2123, 0
    %v2129 = vsel %vm290, %v2124, 0
    %v2132 = vsel %vm339, %v2114, 0
    %2134 = vmatpush.bf16.msra.mxu0 0
    %2135 = vmatpush.bf16.msra.mxu0 0
    %2136 = vmatpush.bf16.msra.mxu0 0
    %2137 = vmatpush.bf16.msra.mxu0 0
    %2138 = vmatpush.bf16.msra.mxu0 0
    %2139 = vmatpush.bf16.msra.mxu0 0
    %2140 = vmatpush.bf16.msra.mxu0 0
    %2141 = vmatpush.bf16.msra.mxu0 %v2132
    %2142 = vmatmul.bf16.gmra.mxu0 %v2126
    %v2143 = vpop.f32.mrf.mxu0
    %v2144 = vadd.f32 0.0, %v2143
    %v2145 = vpop.f32.mrf.mxu0
    %v2146 = vadd.f32 0.0, %v2145
    %2147 = vmatmul.bf16.gmra.mxu0 %v2129
    %v2148 = vpop.f32.mrf.mxu0
    %v2149 = vadd.f32 0.0, %v2148
    %v2150 = vpop.f32.mrf.mxu0
    %v2151 = vadd.f32 0.0, %v2150
    %2152 = vdwg.mxu0
    %v2153 = vadd.f32 %v2109, %v2144
    %v2154 = vadd.f32 %v2110, %v2146
    %v2155 = vadd.f32 %v2111, %v2149
    %v2156 = vadd.f32 %v2112, %v2151
    %s2157 = scalar_lea.vmem [#allocation7], 48
    %v2158 = vld [vmem:[%s2157] sm:$0xf]
    %v2163 = vunpack.c.l.b16 %v1622
    %v2164 = vunpack.c.l.b16 %v1623
    %v2165 = vunpack.c.l.b16 %v1624
    %v2166 = vunpack.c.l.b16 %v1625
    %v2167 = vpack.c.b16 %v2164, %v2163
    %v2168 = vpack.c.b16 %v2166, %v2165
    %v2170 = vsel %vm290, %v2167, 0
    %v2173 = vsel %vm290, %v2168, 0
    %v2176 = vsel %vm339, %v2158, 0
    %2178 = vmatpush.bf16.msra.mxu0 0
    %2179 = vmatpush.bf16.msra.mxu0 0
    %2180 = vmatpush.bf16.msra.mxu0 0
    %2181 = vmatpush.bf16.msra.mxu0 0
    %2182 = vmatpush.bf16.msra.mxu0 0
    %2183 = vmatpush.bf16.msra.mxu0 0
    %2184 = vmatpush.bf16.msra.mxu0 0
    %2185 = vmatpush.bf16.msra.mxu0 %v2176
    %2186 = vmatmul.bf16.gmra.mxu0 %v2170
    %v2187 = vpop.f32.mrf.mxu0
    %v2188 = vadd.f32 0.0, %v2187
    %v2189 = vpop.f32.mrf.mxu0
    %v2190 = vadd.f32 0.0, %v2189
    %2191 = vmatmul.bf16.gmra.mxu0 %v2173
    %v2192 = vpop.f32.mrf.mxu0
    %v2193 = vadd.f32 0.0, %v2192
    %v2194 = vpop.f32.mrf.mxu0
    %v2195 = vadd.f32 0.0, %v2194
    %2196 = vdwg.mxu0
    %v2197 = vadd.f32 %v2153, %v2188
    %v2198 = vadd.f32 %v2154, %v2190
    %v2199 = vadd.f32 %v2155, %v2193
    %v2200 = vadd.f32 %v2156, %v2195
    %s2201 = scalar_lea.vmem [#allocation7], 52
    %v2202 = vld [vmem:[%s2201] sm:$0xf]
    %v2207 = vunpack.c.l.b16 %v1626
    %v2208 = vunpack.c.l.b16 %v1627
    %v2209 = vunpack.c.l.b16 %v1628
    %v2210 = vunpack.c.l.b16 %v1629
    %v2211 = vpack.c.b16 %v2208, %v2207
    %v2212 = vpack.c.b16 %v2210, %v2209
    %v2214 = vsel %vm290, %v2211, 0
    %v2217 = vsel %vm290, %v2212, 0
    %v2220 = vsel %vm339, %v2202, 0
    %2222 = vmatpush.bf16.msra.mxu0 0
    %2223 = vmatpush.bf16.msra.mxu0 0
    %2224 = vmatpush.bf16.msra.mxu0 0
    %2225 = vmatpush.bf16.msra.mxu0 0
    %2226 = vmatpush.bf16.msra.mxu0 0
    %2227 = vmatpush.bf16.msra.mxu0 0
    %2228 = vmatpush.bf16.msra.mxu0 0
    %2229 = vmatpush.bf16.msra.mxu0 %v2220
    %2230 = vmatmul.bf16.gmra.mxu0 %v2214
    %v2231 = vpop.f32.mrf.mxu0
    %v2232 = vadd.f32 0.0, %v2231
    %v2233 = vpop.f32.mrf.mxu0
    %v2234 = vadd.f32 0.0, %v2233
    %2235 = vmatmul.bf16.gmra.mxu0 %v2217
    %v2236 = vpop.f32.mrf.mxu0
    %v2237 = vadd.f32 0.0, %v2236
    %v2238 = vpop.f32.mrf.mxu0
    %v2239 = vadd.f32 0.0, %v2238
    %2240 = vdwg.mxu0
    %v2241 = vadd.f32 %v2197, %v2232
    %v2242 = vadd.f32 %v2198, %v2234
    %v2243 = vadd.f32 %v2199, %v2237
    %v2244 = vadd.f32 %v2200, %v2239
    %s2245 = scalar_lea.vmem [#allocation7], 56
    %v2246 = vld [vmem:[%s2245] sm:$0xf]
    %v2251 = vunpack.c.l.b16 %v1630
    %v2252 = vunpack.c.l.b16 %v1631
    %v2253 = vunpack.c.l.b16 %v1632
    %v2254 = vunpack.c.l.b16 %v1633
    %v2255 = vpack.c.b16 %v2252, %v2251
    %v2256 = vpack.c.b16 %v2254, %v2253
    %v2258 = vsel %vm290, %v2255, 0
    %v2261 = vsel %vm290, %v2256, 0
    %v2264 = vsel %vm339, %v2246, 0
    %2266 = vmatpush.bf16.msra.mxu0 0
    %2267 = vmatpush.bf16.msra.mxu0 0
    %2268 = vmatpush.bf16.msra.mxu0 0
    %2269 = vmatpush.bf16.msra.mxu0 0
    %2270 = vmatpush.bf16.msra.mxu0 0
    %2271 = vmatpush.bf16.msra.mxu0 0
    %2272 = vmatpush.bf16.msra.mxu0 0
    %2273 = vmatpush.bf16.msra.mxu0 %v2264
    %2274 = vmatmul.bf16.gmra.mxu0 %v2258
    %v2275 = vpop.f32.mrf.mxu0
    %v2276 = vadd.f32 0.0, %v2275
    %v2277 = vpop.f32.mrf.mxu0
    %v2278 = vadd.f32 0.0, %v2277
    %2279 = vmatmul.bf16.gmra.mxu0 %v2261
    %v2280 = vpop.f32.mrf.mxu0
    %v2281 = vadd.f32 0.0, %v2280
    %v2282 = vpop.f32.mrf.mxu0
    %v2283 = vadd.f32 0.0, %v2282
    %2284 = vdwg.mxu0
    %v2285 = vadd.f32 %v2241, %v2276
    %v2286 = vadd.f32 %v2242, %v2278
    %v2287 = vadd.f32 %v2243, %v2281
    %v2288 = vadd.f32 %v2244, %v2283
    %s2289 = scalar_lea.vmem [#allocation7], 60
    %v2290 = vld [vmem:[%s2289] sm:$0xf]
    %v2295 = vunpack.c.l.b16 %v1634
    %v2296 = vunpack.c.l.b16 %v1635
    %v2297 = vunpack.c.l.b16 %v1636
    %v2298 = vunpack.c.l.b16 %v1637
    %v2299 = vpack.c.b16 %v2296, %v2295
    %v2300 = vpack.c.b16 %v2298, %v2297
    %v2302 = vsel %vm290, %v2299, 0
    %v2305 = vsel %vm290, %v2300, 0
    %v2308 = vsel %vm339, %v2290, 0
    %2310 = vmatpush.bf16.msra.mxu0 0
    %2311 = vmatpush.bf16.msra.mxu0 0
    %2312 = vmatpush.bf16.msra.mxu0 0
    %2313 = vmatpush.bf16.msra.mxu0 0
    %2314 = vmatpush.bf16.msra.mxu0 0
    %2315 = vmatpush.bf16.msra.mxu0 0
    %2316 = vmatpush.bf16.msra.mxu0 0
    %2317 = vmatpush.bf16.msra.mxu0 %v2308
    %2318 = vmatmul.bf16.gmra.mxu0 %v2302
    %v2319 = vpop.f32.mrf.mxu0
    %v2320 = vadd.f32 0.0, %v2319
    %v2321 = vpop.f32.mrf.mxu0
    %v2322 = vadd.f32 0.0, %v2321
    %2323 = vmatmul.bf16.gmra.mxu0 %v2305
    %v2324 = vpop.f32.mrf.mxu0
    %v2325 = vadd.f32 0.0, %v2324
    %v2326 = vpop.f32.mrf.mxu0
    %v2327 = vadd.f32 0.0, %v2326
    %2328 = vdwg.mxu0
    %v2329 = vadd.f32 %v2285, %v2320
    %v2330 = vadd.f32 %v2286, %v2322
    %v2331 = vadd.f32 %v2287, %v2325
    %v2332 = vadd.f32 %v2288, %v2327
    %vm2333 = vcmask 261120
    %v2334 = vsel %vm2333, %v2329, 0.0
    %2335 = vadd.xlane.f32.xlu0 %v2334
    %v2336 = vpop.xlane.xlu0 %2335
    %v2337 = vsel %vm2333, %v2330, 0.0
    %2338 = vadd.xlane.f32.xlu0 %v2337
    %v2339 = vpop.xlane.xlu0 %2338
    %v2340 = vsel %vm2333, %v2331, 0.0
    %2341 = vadd.xlane.f32.xlu0 %v2340
    %v2342 = vpop.xlane.xlu0 %2341
    %v2343 = vsel %vm2333, %v2332, 0.0
    %2344 = vadd.xlane.f32.xlu0 %v2343
    %v2345 = vpop.xlane.xlu0 %2344
    %v2346 = vrcp.pop 32.0
    %v2347 = vmul.f32 32.0, %v2346
    %v2348 = vsub.f32 1.0, %v2347
    %v2349 = vmul.f32 %v2346, %v2348
    %v2350 = vadd.f32 %v2346, %v2349
    %vm2351 = vweird.f32 %v2346
    %v2352 = vsel %vm2351, %v2346, %v2350
    %v2353 = vmul.f32 %v2336, %v2352
    %v2354 = vmul.f32 %v2339, %v2352
    %v2355 = vmul.f32 %v2342, %v2352
    %v2356 = vmul.f32 %v2345, %v2352
    %v2357 = vmul.f32 %v2329, %v2329
    %v2358 = vmul.f32 %v2330, %v2330
    %v2359 = vmul.f32 %v2331, %v2331
    %v2360 = vmul.f32 %v2332, %v2332
    %v2361 = vsel %vm2333, %v2357, 0.0
    %2362 = vadd.xlane.f32.xlu0 %v2361
    %v2363 = vpop.xlane.xlu0 %2362
    %v2364 = vsel %vm2333, %v2358, 0.0
    %2365 = vadd.xlane.f32.xlu0 %v2364
    %v2366 = vpop.xlane.xlu0 %2365
    %v2367 = vsel %vm2333, %v2359, 0.0
    %2368 = vadd.xlane.f32.xlu0 %v2367
    %v2369 = vpop.xlane.xlu0 %2368
    %v2370 = vsel %vm2333, %v2360, 0.0
    %2371 = vadd.xlane.f32.xlu0 %v2370
    %v2372 = vpop.xlane.xlu0 %2371
    %v2373 = vmul.f32 %v2363, %v2352
    %v2374 = vmul.f32 %v2366, %v2352
    %v2375 = vmul.f32 %v2369, %v2352
    %v2376 = vmul.f32 %v2372, %v2352
    %v2377 = vmul.f32 %v2353, %v2353
    %v2378 = vmul.f32 %v2354, %v2354
    %v2379 = vmul.f32 %v2355, %v2355
    %v2380 = vmul.f32 %v2356, %v2356
    %v2381 = vsub.f32 %v2373, %v2377
    %v2382 = vsub.f32 %v2374, %v2378
    %v2383 = vsub.f32 %v2375, %v2379
    %v2384 = vsub.f32 %v2376, %v2380
    %v2385 = vmax.f32 %v2381, 0.0
    %v2386 = vmax.f32 %v2382, 0.0
    %v2387 = vmax.f32 %v2383, 0.0
    %v2388 = vmax.f32 %v2384, 0.0
    %v2389 = vld [vmem:[%s7] sm:$0xff]
    %v2390 = vld [vmem:[%s7 + $0x8] sm:$0xff]
    %v2391 = vld [vmem:[%s7 + $0x10] sm:$0xff]
    %v2392 = vld [vmem:[%s7 + $0x18] sm:$0xff]
    %v2393 = vadd.f32 %v2385, 1e-05
    %v2394 = vadd.f32 %v2386, 1e-05
    %v2395 = vadd.f32 %v2387, 1e-05
    %v2396 = vadd.f32 %v2388, 1e-05
    %v2397 = vrsqrt.pop %v2393
    %v2398 = vmul.f32 %v2397, %v2393
    %v2399 = vmul.f32 %v2398, %v2397
    %v2400 = vmul.f32 0.5, %v2399
    %v2401 = vsub.f32 1.5, %v2400
    %v2402 = vmul.f32 %v2397, %v2401
    %vm2403 = vweird.f32 %v2393
    %vm2404 = vweird.f32 %v2397
    %vm2405 = vmor %vm2403, %vm2404
    %v2406 = vsel %vm2405, %v2397, %v2402
    %v2407 = vrsqrt.pop %v2394
    %v2408 = vmul.f32 %v2407, %v2394
    %v2409 = vmul.f32 %v2408, %v2407
    %v2410 = vmul.f32 0.5, %v2409
    %v2411 = vsub.f32 1.5, %v2410
    %v2412 = vmul.f32 %v2407, %v2411
    %vm2413 = vweird.f32 %v2394
    %vm2414 = vweird.f32 %v2407
    %vm2415 = vmor %vm2413, %vm2414
    %v2416 = vsel %vm2415, %v2407, %v2412
    %v2417 = vrsqrt.pop %v2395
    %v2418 = vmul.f32 %v2417, %v2395
    %v2419 = vmul.f32 %v2418, %v2417
    %v2420 = vmul.f32 0.5, %v2419
    %v2421 = vsub.f32 1.5, %v2420
    %v2422 = vmul.f32 %v2417, %v2421
    %vm2423 = vweird.f32 %v2395
    %vm2424 = vweird.f32 %v2417
    %vm2425 = vmor %vm2423, %vm2424
    %v2426 = vsel %vm2425, %v2417, %v2422
    %v2427 = vrsqrt.pop %v2396
    %v2428 = vmul.f32 %v2427, %v2396
    %v2429 = vmul.f32 %v2428, %v2427
    %v2430 = vmul.f32 0.5, %v2429
    %v2431 = vsub.f32 1.5, %v2430
    %v2432 = vmul.f32 %v2427, %v2431
    %vm2433 = vweird.f32 %v2396
    %vm2434 = vweird.f32 %v2427
    %vm2435 = vmor %vm2433, %vm2434
    %v2436 = vsel %vm2435, %v2427, %v2432
    %v2437 = vmul.f32 %v2389, %v2406
    %v2438 = vmul.f32 %v2390, %v2416
    %v2439 = vmul.f32 %v2391, %v2426
    %v2440 = vmul.f32 %v2392, %v2436
    %v2441 = vld [vmem:[%s8] sm:$0xff]
    %v2442 = vld [vmem:[%s8 + $0x8] sm:$0xff]
    %v2443 = vld [vmem:[%s8 + $0x10] sm:$0xff]
    %v2444 = vld [vmem:[%s8 + $0x18] sm:$0xff]
    %v2445 = vmul.f32 %v2353, %v2437
    %v2446 = vmul.f32 %v2354, %v2438
    %v2447 = vmul.f32 %v2355, %v2439
    %v2448 = vmul.f32 %v2356, %v2440
    %v2449 = vsub.f32 %v2441, %v2445
    %v2450 = vsub.f32 %v2442, %v2446
    %v2451 = vsub.f32 %v2443, %v2447
    %v2452 = vsub.f32 %v2444, %v2448
    %2454 = vset.pattern.permute.xlu0 0
    %2455 = vperm.xlu0 %2454, %v2437
    %v2456 = vpop.permute.xlu0 %2455
    %2459 = vset.pattern.permute.xlu0 0
    %2460 = vperm.xlu0 %2459, %v2438
    %v2461 = vpop.permute.xlu0 %2460
    %2464 = vset.pattern.permute.xlu0 0
    %2465 = vperm.xlu0 %2464, %v2439
    %v2466 = vpop.permute.xlu0 %2465
    %2469 = vset.pattern.permute.xlu0 0
    %2470 = vperm.xlu0 %2469, %v2440
    %v2471 = vpop.permute.xlu0 %2470
    %v2473 = vmul.f32 %v2329, %v2456
    %v2474 = vmul.f32 %v2330, %v2461
    %v2475 = vmul.f32 %v2331, %v2466
    %v2476 = vmul.f32 %v2332, %v2471
    %2478 = vset.pattern.permute.xlu0 0
    %2479 = vperm.xlu0 %2478, %v2449
    %v2480 = vpop.permute.xlu0 %2479
    %2483 = vset.pattern.permute.xlu0 0
    %2484 = vperm.xlu0 %2483, %v2450
    %v2485 = vpop.permute.xlu0 %2484
    %2488 = vset.pattern.permute.xlu0 0
    %2489 = vperm.xlu0 %2488, %v2451
    %v2490 = vpop.permute.xlu0 %2489
    %2493 = vset.pattern.permute.xlu0 0
    %2494 = vperm.xlu0 %2493, %v2452
    %v2495 = vpop.permute.xlu0 %2494
    %v2497 = vadd.f32 %v2473, %v2480
    %v2498 = vadd.f32 %v2474, %v2485
    %v2499 = vadd.f32 %v2475, %v2490
    %v2500 = vadd.f32 %v2476, %v2495
    %v2501 = vmax.f32 %v2497, 0.0
    %v2502 = vmax.f32 %v2498, 0.0
    %v2503 = vmax.f32 %v2499, 0.0
    %v2504 = vmax.f32 %v2500, 0.0
    %v2505 = vpack.c.bf16 %v2502, %v2501
    %v2506 = vpack.c.bf16 %v2504, %v2503
    %v2507 = vld [vmem:[#allocation9] sm:$0xf]
    %v2508 = vld [vmem:[#allocation9 + $0x4] sm:$0xf]
    %v2509 = vld [vmem:[#allocation9 + $0x8] sm:$0xf]
    %v2510 = vld [vmem:[#allocation9 + $0xc] sm:$0xf]
    %v2511 = vld [vmem:[#allocation9 + $0x10] sm:$0xf]
    %v2512 = vld [vmem:[#allocation9 + $0x14] sm:$0xf]
    %v2513 = vld [vmem:[#allocation9 + $0x18] sm:$0xf]
    %v2514 = vld [vmem:[#allocation9 + $0x1c] sm:$0xf]
    %v2515 = vld [vmem:[#allocation9 + $0x20] sm:$0xf]
    %v2516 = vld [vmem:[#allocation9 + $0x24] sm:$0xf]
    %v2517 = vld [vmem:[#allocation9 + $0x28] sm:$0xf]
    %v2518 = vld [vmem:[#allocation9 + $0x2c] sm:$0xf]
    %v2519 = vld [vmem:[#allocation9 + $0x30] sm:$0xf]
    %v2520 = vld [vmem:[#allocation9 + $0x34] sm:$0xf]
    %v2521 = vld [vmem:[#allocation9 + $0x38] sm:$0xf]
    %v2522 = vld [vmem:[#allocation9 + $0x3c] sm:$0xf]
    %v2523 = vld [vmem:[#allocation9 + $0x40] sm:$0xf]
    %v2524 = vld [vmem:[#allocation9 + $0x44] sm:$0xf]
    %v2525 = vld [vmem:[#allocation9 + $0x48] sm:$0xf]
    %v2526 = vld [vmem:[#allocation9 + $0x4c] sm:$0xf]
    %v2527 = vld [vmem:[#allocation9 + $0x50] sm:$0xf]
    %v2528 = vld [vmem:[#allocation9 + $0x54] sm:$0xf]
    %v2529 = vld [vmem:[#allocation9 + $0x58] sm:$0xf]
    %v2530 = vld [vmem:[#allocation9 + $0x5c] sm:$0xf]
    %v2531 = vld [vmem:[#allocation9 + $0x60] sm:$0xf]
    %v2532 = vld [vmem:[#allocation9 + $0x64] sm:$0xf]
    %v2533 = vld [vmem:[#allocation9 + $0x68] sm:$0xf]
    %v2534 = vld [vmem:[#allocation9 + $0x6c] sm:$0xf]
    %v2535 = vld [vmem:[#allocation9 + $0x70] sm:$0xf]
    %v2536 = vld [vmem:[#allocation9 + $0x74] sm:$0xf]
    %v2537 = vld [vmem:[#allocation9 + $0x78] sm:$0xf]
    %v2538 = vld [vmem:[#allocation9 + $0x7c] sm:$0xf]
    %v2571 = vunpack.c.l.b16 %v2507
    %v2572 = vunpack.c.l.b16 %v2508
    %v2573 = vunpack.c.l.b16 %v2509
    %v2574 = vunpack.c.l.b16 %v2510
    %v2575 = vunpack.c.l.b16 %v2511
    %v2576 = vunpack.c.l.b16 %v2512
    %v2577 = vunpack.c.l.b16 %v2513
    %v2578 = vunpack.c.l.b16 %v2514
    %v2579 = vunpack.c.l.b16 %v2515
    %v2580 = vunpack.c.l.b16 %v2516
    %v2581 = vunpack.c.l.b16 %v2517
    %v2582 = vunpack.c.l.b16 %v2518
    %v2583 = vunpack.c.l.b16 %v2519
    %v2584 = vunpack.c.l.b16 %v2520
    %v2585 = vunpack.c.l.b16 %v2521
    %v2586 = vunpack.c.l.b16 %v2522
    %v2587 = vunpack.c.l.b16 %v2523
    %v2588 = vunpack.c.l.b16 %v2524
    %v2589 = vunpack.c.l.b16 %v2525
    %v2590 = vunpack.c.l.b16 %v2526
    %v2591 = vunpack.c.l.b16 %v2527
    %v2592 = vunpack.c.l.b16 %v2528
    %v2593 = vunpack.c.l.b16 %v2529
    %v2594 = vunpack.c.l.b16 %v2530
    %v2595 = vunpack.c.l.b16 %v2531
    %v2596 = vunpack.c.l.b16 %v2532
    %v2597 = vunpack.c.l.b16 %v2533
    %v2598 = vunpack.c.l.b16 %v2534
    %v2599 = vunpack.c.l.b16 %v2535
    %v2600 = vunpack.c.l.b16 %v2536
    %v2601 = vunpack.c.l.b16 %v2537
    %v2602 = vunpack.c.l.b16 %v2538
    %v2603 = vpack.c.b16 %v2572, %v2571
    %v2604 = vpack.c.b16 %v2574, %v2573
    %v2605 = vpack.c.b16 %v2576, %v2575
    %v2606 = vpack.c.b16 %v2578, %v2577
    %v2607 = vpack.c.b16 %v2580, %v2579
    %v2608 = vpack.c.b16 %v2582, %v2581
    %v2609 = vpack.c.b16 %v2584, %v2583
    %v2610 = vpack.c.b16 %v2586, %v2585
    %v2611 = vpack.c.b16 %v2588, %v2587
    %v2612 = vpack.c.b16 %v2590, %v2589
    %v2613 = vpack.c.b16 %v2592, %v2591
    %v2614 = vpack.c.b16 %v2594, %v2593
    %v2615 = vpack.c.b16 %v2596, %v2595
    %v2616 = vpack.c.b16 %v2598, %v2597
    %v2617 = vpack.c.b16 %v2600, %v2599
    %v2618 = vpack.c.b16 %v2602, %v2601
    %v2620 = vsel %vm2333, %v2603, 0
    %v2623 = vsel %vm2333, %v2604, 0
    %v2626 = vsel %vm2333, %v2605, 0
    %v2629 = vsel %vm2333, %v2606, 0
    %v2632 = vsel %vm2333, %v2607, 0
    %v2635 = vsel %vm2333, %v2608, 0
    %v2638 = vsel %vm2333, %v2609, 0
    %v2641 = vsel %vm2333, %v2610, 0
    %v2644 = vsel %vm2333, %v2611, 0
    %v2647 = vsel %vm2333, %v2612, 0
    %v2650 = vsel %vm2333, %v2613, 0
    %v2653 = vsel %vm2333, %v2614, 0
    %v2656 = vsel %vm2333, %v2615, 0
    %v2659 = vsel %vm2333, %v2616, 0
    %v2662 = vsel %vm2333, %v2617, 0
    %v2665 = vsel %vm2333, %v2618, 0
    %2667 = vmatpush.bf16.msra.mxu0 0
    %2668 = vmatpush.bf16.msra.mxu0 0
    %2669 = vmatpush.bf16.msra.mxu0 0
    %2670 = vmatpush.bf16.msra.mxu0 0
    %2671 = vmatpush.bf16.msra.mxu0 0
    %2672 = vmatpush.bf16.msra.mxu0 0
    %2673 = vmatpush.bf16.msra.mxu0 %v2506
    %2674 = vmatpush.bf16.msra.mxu0 %v2505
    %2675 = vmatmul.bf16.gmra.mxu0 %v2620
    %v2676 = vpop.f32.mrf.mxu0
    %v2677 = vadd.f32 0.0, %v2676
    %v2678 = vpop.f32.mrf.mxu0
    %v2679 = vadd.f32 0.0, %v2678
    %2680 = vmatmul.bf16.gmra.mxu0 %v2623
    %v2681 = vpop.f32.mrf.mxu0
    %v2682 = vadd.f32 0.0, %v2681
    %v2683 = vpop.f32.mrf.mxu0
    %v2684 = vadd.f32 0.0, %v2683
    %2685 = vmatmul.bf16.gmra.mxu0 %v2626
    %v2686 = vpop.f32.mrf.mxu0
    %v2687 = vadd.f32 0.0, %v2686
    %v2688 = vpop.f32.mrf.mxu0
    %v2689 = vadd.f32 0.0, %v2688
    %2690 = vmatmul.bf16.gmra.mxu0 %v2629
    %v2691 = vpop.f32.mrf.mxu0
    %v2692 = vadd.f32 0.0, %v2691
    %v2693 = vpop.f32.mrf.mxu0
    %v2694 = vadd.f32 0.0, %v2693
    %2695 = vmatmul.bf16.gmra.mxu0 %v2632
    %v2696 = vpop.f32.mrf.mxu0
    %v2697 = vadd.f32 0.0, %v2696
    %v2698 = vpop.f32.mrf.mxu0
    %v2699 = vadd.f32 0.0, %v2698
    %2700 = vmatmul.bf16.gmra.mxu0 %v2635
    %v2701 = vpop.f32.mrf.mxu0
    %v2702 = vadd.f32 0.0, %v2701
    %v2703 = vpop.f32.mrf.mxu0
    %v2704 = vadd.f32 0.0, %v2703
    %2705 = vmatmul.bf16.gmra.mxu0 %v2638
    %v2706 = vpop.f32.mrf.mxu0
    %v2707 = vadd.f32 0.0, %v2706
    %v2708 = vpop.f32.mrf.mxu0
    %v2709 = vadd.f32 0.0, %v2708
    %2710 = vmatmul.bf16.gmra.mxu0 %v2641
    %v2711 = vpop.f32.mrf.mxu0
    %v2712 = vadd.f32 0.0, %v2711
    %v2713 = vpop.f32.mrf.mxu0
    %v2714 = vadd.f32 0.0, %v2713
    %2715 = vmatmul.bf16.gmra.mxu0 %v2644
    %v2716 = vpop.f32.mrf.mxu0
    %v2717 = vadd.f32 0.0, %v2716
    %v2718 = vpop.f32.mrf.mxu0
    %v2719 = vadd.f32 0.0, %v2718
    %2720 = vmatmul.bf16.gmra.mxu0 %v2647
    %v2721 = vpop.f32.mrf.mxu0
    %v2722 = vadd.f32 0.0, %v2721
    %v2723 = vpop.f32.mrf.mxu0
    %v2724 = vadd.f32 0.0, %v2723
    %2725 = vmatmul.bf16.gmra.mxu0 %v2650
    %v2726 = vpop.f32.mrf.mxu0
    %v2727 = vadd.f32 0.0, %v2726
    %v2728 = vpop.f32.mrf.mxu0
    %v2729 = vadd.f32 0.0, %v2728
    %2730 = vmatmul.bf16.gmra.mxu0 %v2653
    %v2731 = vpop.f32.mrf.mxu0
    %v2732 = vadd.f32 0.0, %v2731
    %v2733 = vpop.f32.mrf.mxu0
    %v2734 = vadd.f32 0.0, %v2733
    %2735 = vmatmul.bf16.gmra.mxu0 %v2656
    %v2736 = vpop.f32.mrf.mxu0
    %v2737 = vadd.f32 0.0, %v2736
    %v2738 = vpop.f32.mrf.mxu0
    %v2739 = vadd.f32 0.0, %v2738
    %2740 = vmatmul.bf16.gmra.mxu0 %v2659
    %v2741 = vpop.f32.mrf.mxu0
    %v2742 = vadd.f32 0.0, %v2741
    %v2743 = vpop.f32.mrf.mxu0
    %v2744 = vadd.f32 0.0, %v2743
    %2745 = vmatmul.bf16.gmra.mxu0 %v2662
    %v2746 = vpop.f32.mrf.mxu0
    %v2747 = vadd.f32 0.0, %v2746
    %v2748 = vpop.f32.mrf.mxu0
    %v2749 = vadd.f32 0.0, %v2748
    %2750 = vmatmul.bf16.gmra.mxu0 %v2665
    %v2751 = vpop.f32.mrf.mxu0
    %v2752 = vadd.f32 0.0, %v2751
    %v2753 = vpop.f32.mrf.mxu0
    %v2754 = vadd.f32 0.0, %v2753
    %2755 = vdwg.mxu0
    %v2756 = vpack.c.bf16 %v2677, %v2677
    %v2757 = vpack.c.bf16 %v2679, %v2679
    %v2758 = vpack.c.bf16 %v2682, %v2682
    %v2759 = vpack.c.bf16 %v2684, %v2684
    %v2760 = vpack.c.bf16 %v2687, %v2687
    %v2761 = vpack.c.bf16 %v2689, %v2689
    %v2762 = vpack.c.bf16 %v2692, %v2692
    %v2763 = vpack.c.bf16 %v2694, %v2694
    %v2764 = vpack.c.bf16 %v2697, %v2697
    %v2765 = vpack.c.bf16 %v2699, %v2699
    %v2766 = vpack.c.bf16 %v2702, %v2702
    %v2767 = vpack.c.bf16 %v2704, %v2704
    %v2768 = vpack.c.bf16 %v2707, %v2707
    %v2769 = vpack.c.bf16 %v2709, %v2709
    %v2770 = vpack.c.bf16 %v2712, %v2712
    %v2771 = vpack.c.bf16 %v2714, %v2714
    %v2772 = vpack.c.bf16 %v2717, %v2717
    %v2773 = vpack.c.bf16 %v2719, %v2719
    %v2774 = vpack.c.bf16 %v2722, %v2722
    %v2775 = vpack.c.bf16 %v2724, %v2724
    %v2776 = vpack.c.bf16 %v2727, %v2727
    %v2777 = vpack.c.bf16 %v2729, %v2729
    %v2778 = vpack.c.bf16 %v2732, %v2732
    %v2779 = vpack.c.bf16 %v2734, %v2734
    %v2780 = vpack.c.bf16 %v2737, %v2737
    %v2781 = vpack.c.bf16 %v2739, %v2739
    %v2782 = vpack.c.bf16 %v2742, %v2742
    %v2783 = vpack.c.bf16 %v2744, %v2744
    %v2784 = vpack.c.bf16 %v2747, %v2747
    %v2785 = vpack.c.bf16 %v2749, %v2749
    %v2786 = vpack.c.bf16 %v2752, %v2752
    %v2787 = vpack.c.bf16 %v2754, %v2754
    %v2788 = vld [vmem:[#allocation10] sm:$0xf]
    %v2789 = vld [vmem:[#allocation10 + $0x4] sm:$0xf]
    %v2790 = vld [vmem:[#allocation10 + $0x8] sm:$0xf]
    %v2791 = vld [vmem:[#allocation10 + $0xc] sm:$0xf]
    %s2792 = scalar_lea.vmem [#allocation10], 16
    %v2793 = vld [vmem:[%s2792] sm:$0xf]
    %v2794 = vld [vmem:[%s2792 + $0x4] sm:$0xf]
    %v2795 = vld [vmem:[%s2792 + $0x8] sm:$0xf]
    %v2796 = vld [vmem:[%s2792 + $0xc] sm:$0xf]
    %v2799 = vunpack.c.l.b16 %v2758
    %v2800 = vunpack.c.l.b16 %v2759
    %v2801 = vpack.c.b16 %v2800, %v2799
    %v2806 = vunpack.c.l.b16 %v2793
    %v2807 = vunpack.c.l.b16 %v2794
    %v2808 = vunpack.c.l.b16 %v2795
    %v2809 = vunpack.c.l.b16 %v2796
    %v2810 = vpack.c.b16 %v2807, %v2806
    %v2811 = vpack.c.b16 %v2809, %v2808
    %v2815 = vsel %vm2333, %v2801, 0
    %2817 = vmatpush.bf16.msra.mxu0 0
    %2818 = vmatpush.bf16.msra.mxu0 0
    %2819 = vmatpush.bf16.msra.mxu0 0
    %2820 = vmatpush.bf16.msra.mxu0 0
    %2821 = vmatpush.bf16.msra.mxu0 0
    %2822 = vmatpush.bf16.msra.mxu0 0
    %2823 = vmatpush.bf16.msra.mxu0 %v2811
    %2824 = vmatpush.bf16.msra.mxu0 %v2810
    %2825 = vmatmul.bf16.gmra.mxu0 %v2815
    %v2826 = vpop.f32.mrf.mxu0
    %v2827 = vadd.f32 0.0, %v2826
    %v2828 = vpop.f32.mrf.mxu0
    %v2829 = vadd.f32 0.0, %v2828
    %2830 = vdwg.mxu0
    %v2833 = vunpack.c.l.b16 %v2756
    %v2834 = vunpack.c.l.b16 %v2757
    %v2835 = vpack.c.b16 %v2834, %v2833
    %v2840 = vunpack.c.l.b16 %v2788
    %v2841 = vunpack.c.l.b16 %v2789
    %v2842 = vunpack.c.l.b16 %v2790
    %v2843 = vunpack.c.l.b16 %v2791
    %v2844 = vpack.c.b16 %v2841, %v2840
    %v2845 = vpack.c.b16 %v2843, %v2842
    %v2849 = vsel %vm2333, %v2835, 0
    %2851 = vmatpush.bf16.msra.mxu0 0
    %2852 = vmatpush.bf16.msra.mxu0 0
    %2853 = vmatpush.bf16.msra.mxu0 0
    %2854 = vmatpush.bf16.msra.mxu0 0
    %2855 = vmatpush.bf16.msra.mxu0 0
    %2856 = vmatpush.bf16.msra.mxu0 0
    %2857 = vmatpush.bf16.msra.mxu0 %v2845
    %2858 = vmatpush.bf16.msra.mxu0 %v2844
    %2859 = vmatmul.bf16.gmra.mxu0 %v2849
    %v2860 = vpop.f32.mrf.mxu0
    %v2861 = vadd.f32 %v2827, %v2860
    %v2862 = vpop.f32.mrf.mxu0
    %v2863 = vadd.f32 %v2829, %v2862
    %2864 = vdwg.mxu0
    %s2865 = scalar_lea.vmem [#allocation10], 32
    %v2866 = vld [vmem:[%s2865] sm:$0xf]
    %v2867 = vld [vmem:[%s2865 + $0x4] sm:$0xf]
    %v2868 = vld [vmem:[%s2865 + $0x8] sm:$0xf]
    %v2869 = vld [vmem:[%s2865 + $0xc] sm:$0xf]
    %v2872 = vunpack.c.l.b16 %v2760
    %v2873 = vunpack.c.l.b16 %v2761
    %v2874 = vpack.c.b16 %v2873, %v2872
    %v2879 = vunpack.c.l.b16 %v2866
    %v2880 = vunpack.c.l.b16 %v2867
    %v2881 = vunpack.c.l.b16 %v2868
    %v2882 = vunpack.c.l.b16 %v2869
    %v2883 = vpack.c.b16 %v2880, %v2879
    %v2884 = vpack.c.b16 %v2882, %v2881
    %v2888 = vsel %vm2333, %v2874, 0
    %2890 = vmatpush.bf16.msra.mxu0 0
    %2891 = vmatpush.bf16.msra.mxu0 0
    %2892 = vmatpush.bf16.msra.mxu0 0
    %2893 = vmatpush.bf16.msra.mxu0 0
    %2894 = vmatpush.bf16.msra.mxu0 0
    %2895 = vmatpush.bf16.msra.mxu0 0
    %2896 = vmatpush.bf16.msra.mxu0 %v2884
    %2897 = vmatpush.bf16.msra.mxu0 %v2883
    %2898 = vmatmul.bf16.gmra.mxu0 %v2888
    %v2899 = vpop.f32.mrf.mxu0
    %v2900 = vadd.f32 0.0, %v2899
    %v2901 = vpop.f32.mrf.mxu0
    %v2902 = vadd.f32 0.0, %v2901
    %2903 = vdwg.mxu0
    %v2904 = vadd.f32 %v2861, %v2900
    %v2905 = vadd.f32 %v2863, %v2902
    %s2906 = scalar_lea.vmem [#allocation10], 48
    %v2907 = vld [vmem:[%s2906] sm:$0xf]
    %v2908 = vld [vmem:[%s2906 + $0x4] sm:$0xf]
    %v2909 = vld [vmem:[%s2906 + $0x8] sm:$0xf]
    %v2910 = vld [vmem:[%s2906 + $0xc] sm:$0xf]
    %v2913 = vunpack.c.l.b16 %v2762
    %v2914 = vunpack.c.l.b16 %v2763
    %v2915 = vpack.c.b16 %v2914, %v2913
    %v2920 = vunpack.c.l.b16 %v2907
    %v2921 = vunpack.c.l.b16 %v2908
    %v2922 = vunpack.c.l.b16 %v2909
    %v2923 = vunpack.c.l.b16 %v2910
    %v2924 = vpack.c.b16 %v2921, %v2920
    %v2925 = vpack.c.b16 %v2923, %v2922
    %v2929 = vsel %vm2333, %v2915, 0
    %2931 = vmatpush.bf16.msra.mxu0 0
    %2932 = vmatpush.bf16.msra.mxu0 0
    %2933 = vmatpush.bf16.msra.mxu0 0
    %2934 = vmatpush.bf16.msra.mxu0 0
    %2935 = vmatpush.bf16.msra.mxu0 0
    %2936 = vmatpush.bf16.msra.mxu0 0
    %2937 = vmatpush.bf16.msra.mxu0 %v2925
    %2938 = vmatpush.bf16.msra.mxu0 %v2924
    %2939 = vmatmul.bf16.gmra.mxu0 %v2929
    %v2940 = vpop.f32.mrf.mxu0
    %v2941 = vadd.f32 0.0, %v2940
    %v2942 = vpop.f32.mrf.mxu0
    %v2943 = vadd.f32 0.0, %v2942
    %2944 = vdwg.mxu0
    %v2945 = vadd.f32 %v2904, %v2941
    %v2946 = vadd.f32 %v2905, %v2943
    %s2947 = scalar_lea.vmem [#allocation10], 64
    %v2948 = vld [vmem:[%s2947] sm:$0xf]
    %v2949 = vld [vmem:[%s2947 + $0x4] sm:$0xf]
    %v2950 = vld [vmem:[%s2947 + $0x8] sm:$0xf]
    %v2951 = vld [vmem:[%s2947 + $0xc] sm:$0xf]
    %v2954 = vunpack.c.l.b16 %v2764
    %v2955 = vunpack.c.l.b16 %v2765
    %v2956 = vpack.c.b16 %v2955, %v2954
    %v2961 = vunpack.c.l.b16 %v2948
    %v2962 = vunpack.c.l.b16 %v2949
    %v2963 = vunpack.c.l.b16 %v2950
    %v2964 = vunpack.c.l.b16 %v2951
    %v2965 = vpack.c.b16 %v2962, %v2961
    %v2966 = vpack.c.b16 %v2964, %v2963
    %v2970 = vsel %vm2333, %v2956, 0
    %2972 = vmatpush.bf16.msra.mxu0 0
    %2973 = vmatpush.bf16.msra.mxu0 0
    %2974 = vmatpush.bf16.msra.mxu0 0
    %2975 = vmatpush.bf16.msra.mxu0 0
    %2976 = vmatpush.bf16.msra.mxu0 0
    %2977 = vmatpush.bf16.msra.mxu0 0
    %2978 = vmatpush.bf16.msra.mxu0 %v2966
    %2979 = vmatpush.bf16.msra.mxu0 %v2965
    %2980 = vmatmul.bf16.gmra.mxu0 %v2970
    %v2981 = vpop.f32.mrf.mxu0
    %v2982 = vadd.f32 0.0, %v2981
    %v2983 = vpop.f32.mrf.mxu0
    %v2984 = vadd.f32 0.0, %v2983
    %2985 = vdwg.mxu0
    %v2986 = vadd.f32 %v2945, %v2982
    %v2987 = vadd.f32 %v2946, %v2984
    %s2988 = scalar_lea.vmem [#allocation10], 80
    %v2989 = vld [vmem:[%s2988] sm:$0xf]
    %v2990 = vld [vmem:[%s2988 + $0x4] sm:$0xf]
    %v2991 = vld [vmem:[%s2988 + $0x8] sm:$0xf]
    %v2992 = vld [vmem:[%s2988 + $0xc] sm:$0xf]
    %v2995 = vunpack.c.l.b16 %v2766
    %v2996 = vunpack.c.l.b16 %v2767
    %v2997 = vpack.c.b16 %v2996, %v2995
    %v3002 = vunpack.c.l.b16 %v2989
    %v3003 = vunpack.c.l.b16 %v2990
    %v3004 = vunpack.c.l.b16 %v2991
    %v3005 = vunpack.c.l.b16 %v2992
    %v3006 = vpack.c.b16 %v3003, %v3002
    %v3007 = vpack.c.b16 %v3005, %v3004
    %v3011 = vsel %vm2333, %v2997, 0
    %3013 = vmatpush.bf16.msra.mxu0 0
    %3014 = vmatpush.bf16.msra.mxu0 0
    %3015 = vmatpush.bf16.msra.mxu0 0
    %3016 = vmatpush.bf16.msra.mxu0 0
    %3017 = vmatpush.bf16.msra.mxu0 0
    %3018 = vmatpush.bf16.msra.mxu0 0
    %3019 = vmatpush.bf16.msra.mxu0 %v3007
    %3020 = vmatpush.bf16.msra.mxu0 %v3006
    %3021 = vmatmul.bf16.gmra.mxu0 %v3011
    %v3022 = vpop.f32.mrf.mxu0
    %v3023 = vadd.f32 0.0, %v3022
    %v3024 = vpop.f32.mrf.mxu0
    %v3025 = vadd.f32 0.0, %v3024
    %3026 = vdwg.mxu0
    %v3027 = vadd.f32 %v2986, %v3023
    %v3028 = vadd.f32 %v2987, %v3025
    %s3029 = scalar_lea.vmem [#allocation10], 96
    %v3030 = vld [vmem:[%s3029] sm:$0xf]
    %v3031 = vld [vmem:[%s3029 + $0x4] sm:$0xf]
    %v3032 = vld [vmem:[%s3029 + $0x8] sm:$0xf]
    %v3033 = vld [vmem:[%s3029 + $0xc] sm:$0xf]
    %v3036 = vunpack.c.l.b16 %v2768
    %v3037 = vunpack.c.l.b16 %v2769
    %v3038 = vpack.c.b16 %v3037, %v3036
    %v3043 = vunpack.c.l.b16 %v3030
    %v3044 = vunpack.c.l.b16 %v3031
    %v3045 = vunpack.c.l.b16 %v3032
    %v3046 = vunpack.c.l.b16 %v3033
    %v3047 = vpack.c.b16 %v3044, %v3043
    %v3048 = vpack.c.b16 %v3046, %v3045
    %v3052 = vsel %vm2333, %v3038, 0
    %3054 = vmatpush.bf16.msra.mxu0 0
    %3055 = vmatpush.bf16.msra.mxu0 0
    %3056 = vmatpush.bf16.msra.mxu0 0
    %3057 = vmatpush.bf16.msra.mxu0 0
    %3058 = vmatpush.bf16.msra.mxu0 0
    %3059 = vmatpush.bf16.msra.mxu0 0
    %3060 = vmatpush.bf16.msra.mxu0 %v3048
    %3061 = vmatpush.bf16.msra.mxu0 %v3047
    %3062 = vmatmul.bf16.gmra.mxu0 %v3052
    %v3063 = vpop.f32.mrf.mxu0
    %v3064 = vadd.f32 0.0, %v3063
    %v3065 = vpop.f32.mrf.mxu0
    %v3066 = vadd.f32 0.0, %v3065
    %3067 = vdwg.mxu0
    %v3068 = vadd.f32 %v3027, %v3064
    %v3069 = vadd.f32 %v3028, %v3066
    %s3070 = scalar_lea.vmem [#allocation10], 112
    %v3071 = vld [vmem:[%s3070] sm:$0xf]
    %v3072 = vld [vmem:[%s3070 + $0x4] sm:$0xf]
    %v3073 = vld [vmem:[%s3070 + $0x8] sm:$0xf]
    %v3074 = vld [vmem:[%s3070 + $0xc] sm:$0xf]
    %v3077 = vunpack.c.l.b16 %v2770
    %v3078 = vunpack.c.l.b16 %v2771
    %v3079 = vpack.c.b16 %v3078, %v3077
    %v3084 = vunpack.c.l.b16 %v3071
    %v3085 = vunpack.c.l.b16 %v3072
    %v3086 = vunpack.c.l.b16 %v3073
    %v3087 = vunpack.c.l.b16 %v3074
    %v3088 = vpack.c.b16 %v3085, %v3084
    %v3089 = vpack.c.b16 %v3087, %v3086
    %v3093 = vsel %vm2333, %v3079, 0
    %3095 = vmatpush.bf16.msra.mxu0 0
    %3096 = vmatpush.bf16.msra.mxu0 0
    %3097 = vmatpush.bf16.msra.mxu0 0
    %3098 = vmatpush.bf16.msra.mxu0 0
    %3099 = vmatpush.bf16.msra.mxu0 0
    %3100 = vmatpush.bf16.msra.mxu0 0
    %3101 = vmatpush.bf16.msra.mxu0 %v3089
    %3102 = vmatpush.bf16.msra.mxu0 %v3088
    %3103 = vmatmul.bf16.gmra.mxu0 %v3093
    %v3104 = vpop.f32.mrf.mxu0
    %v3105 = vadd.f32 0.0, %v3104
    %v3106 = vpop.f32.mrf.mxu0
    %v3107 = vadd.f32 0.0, %v3106
    %3108 = vdwg.mxu0
    %v3109 = vadd.f32 %v3068, %v3105
    %v3110 = vadd.f32 %v3069, %v3107
    %s3111 = scalar_lea.vmem [#allocation10], 128
    %v3112 = vld [vmem:[%s3111] sm:$0xf]
    %v3113 = vld [vmem:[%s3111 + $0x4] sm:$0xf]
    %v3114 = vld [vmem:[%s3111 + $0x8] sm:$0xf]
    %v3115 = vld [vmem:[%s3111 + $0xc] sm:$0xf]
    %v3118 = vunpack.c.l.b16 %v2772
    %v3119 = vunpack.c.l.b16 %v2773
    %v3120 = vpack.c.b16 %v3119, %v3118
    %v3125 = vunpack.c.l.b16 %v3112
    %v3126 = vunpack.c.l.b16 %v3113
    %v3127 = vunpack.c.l.b16 %v3114
    %v3128 = vunpack.c.l.b16 %v3115
    %v3129 = vpack.c.b16 %v3126, %v3125
    %v3130 = vpack.c.b16 %v3128, %v3127
    %v3134 = vsel %vm2333, %v3120, 0
    %3136 = vmatpush.bf16.msra.mxu0 0
    %3137 = vmatpush.bf16.msra.mxu0 0
    %3138 = vmatpush.bf16.msra.mxu0 0
    %3139 = vmatpush.bf16.msra.mxu0 0
    %3140 = vmatpush.bf16.msra.mxu0 0
    %3141 = vmatpush.bf16.msra.mxu0 0
    %3142 = vmatpush.bf16.msra.mxu0 %v3130
    %3143 = vmatpush.bf16.msra.mxu0 %v3129
    %3144 = vmatmul.bf16.gmra.mxu0 %v3134
    %v3145 = vpop.f32.mrf.mxu0
    %v3146 = vadd.f32 0.0, %v3145
    %v3147 = vpop.f32.mrf.mxu0
    %v3148 = vadd.f32 0.0, %v3147
    %3149 = vdwg.mxu0
    %v3150 = vadd.f32 %v3109, %v3146
    %v3151 = vadd.f32 %v3110, %v3148
    %s3152 = scalar_lea.vmem [#allocation10], 144
    %v3153 = vld [vmem:[%s3152] sm:$0xf]
    %v3154 = vld [vmem:[%s3152 + $0x4] sm:$0xf]
    %v3155 = vld [vmem:[%s3152 + $0x8] sm:$0xf]
    %v3156 = vld [vmem:[%s3152 + $0xc] sm:$0xf]
    %v3159 = vunpack.c.l.b16 %v2774
    %v3160 = vunpack.c.l.b16 %v2775
    %v3161 = vpack.c.b16 %v3160, %v3159
    %v3166 = vunpack.c.l.b16 %v3153
    %v3167 = vunpack.c.l.b16 %v3154
    %v3168 = vunpack.c.l.b16 %v3155
    %v3169 = vunpack.c.l.b16 %v3156
    %v3170 = vpack.c.b16 %v3167, %v3166
    %v3171 = vpack.c.b16 %v3169, %v3168
    %v3175 = vsel %vm2333, %v3161, 0
    %3177 = vmatpush.bf16.msra.mxu0 0
    %3178 = vmatpush.bf16.msra.mxu0 0
    %3179 = vmatpush.bf16.msra.mxu0 0
    %3180 = vmatpush.bf16.msra.mxu0 0
    %3181 = vmatpush.bf16.msra.mxu0 0
    %3182 = vmatpush.bf16.msra.mxu0 0
    %3183 = vmatpush.bf16.msra.mxu0 %v3171
    %3184 = vmatpush.bf16.msra.mxu0 %v3170
    %3185 = vmatmul.bf16.gmra.mxu0 %v3175
    %v3186 = vpop.f32.mrf.mxu0
    %v3187 = vadd.f32 0.0, %v3186
    %v3188 = vpop.f32.mrf.mxu0
    %v3189 = vadd.f32 0.0, %v3188
    %3190 = vdwg.mxu0
    %v3191 = vadd.f32 %v3150, %v3187
    %v3192 = vadd.f32 %v3151, %v3189
    %s3193 = scalar_lea.vmem [#allocation10], 160
    %v3194 = vld [vmem:[%s3193] sm:$0xf]
    %v3195 = vld [vmem:[%s3193 + $0x4] sm:$0xf]
    %v3196 = vld [vmem:[%s3193 + $0x8] sm:$0xf]
    %v3197 = vld [vmem:[%s3193 + $0xc] sm:$0xf]
    %v3200 = vunpack.c.l.b16 %v2776
    %v3201 = vunpack.c.l.b16 %v2777
    %v3202 = vpack.c.b16 %v3201, %v3200
    %v3207 = vunpack.c.l.b16 %v3194
    %v3208 = vunpack.c.l.b16 %v3195
    %v3209 = vunpack.c.l.b16 %v3196
    %v3210 = vunpack.c.l.b16 %v3197
    %v3211 = vpack.c.b16 %v3208, %v3207
    %v3212 = vpack.c.b16 %v3210, %v3209
    %v3216 = vsel %vm2333, %v3202, 0
    %3218 = vmatpush.bf16.msra.mxu0 0
    %3219 = vmatpush.bf16.msra.mxu0 0
    %3220 = vmatpush.bf16.msra.mxu0 0
    %3221 = vmatpush.bf16.msra.mxu0 0
    %3222 = vmatpush.bf16.msra.mxu0 0
    %3223 = vmatpush.bf16.msra.mxu0 0
    %3224 = vmatpush.bf16.msra.mxu0 %v3212
    %3225 = vmatpush.bf16.msra.mxu0 %v3211
    %3226 = vmatmul.bf16.gmra.mxu0 %v3216
    %v3227 = vpop.f32.mrf.mxu0
    %v3228 = vadd.f32 0.0, %v3227
    %v3229 = vpop.f32.mrf.mxu0
    %v3230 = vadd.f32 0.0, %v3229
    %3231 = vdwg.mxu0
    %v3232 = vadd.f32 %v3191, %v3228
    %v3233 = vadd.f32 %v3192, %v3230
    %s3234 = scalar_lea.vmem [#allocation10], 176
    %v3235 = vld [vmem:[%s3234] sm:$0xf]
    %v3236 = vld [vmem:[%s3234 + $0x4] sm:$0xf]
    %v3237 = vld [vmem:[%s3234 + $0x8] sm:$0xf]
    %v3238 = vld [vmem:[%s3234 + $0xc] sm:$0xf]
    %v3241 = vunpack.c.l.b16 %v2778
    %v3242 = vunpack.c.l.b16 %v2779
    %v3243 = vpack.c.b16 %v3242, %v3241
    %v3248 = vunpack.c.l.b16 %v3235
    %v3249 = vunpack.c.l.b16 %v3236
    %v3250 = vunpack.c.l.b16 %v3237
    %v3251 = vunpack.c.l.b16 %v3238
    %v3252 = vpack.c.b16 %v3249, %v3248
    %v3253 = vpack.c.b16 %v3251, %v3250
    %v3257 = vsel %vm2333, %v3243, 0
    %3259 = vmatpush.bf16.msra.mxu0 0
    %3260 = vmatpush.bf16.msra.mxu0 0
    %3261 = vmatpush.bf16.msra.mxu0 0
    %3262 = vmatpush.bf16.msra.mxu0 0
    %3263 = vmatpush.bf16.msra.mxu0 0
    %3264 = vmatpush.bf16.msra.mxu0 0
    %3265 = vmatpush.bf16.msra.mxu0 %v3253
    %3266 = vmatpush.bf16.msra.mxu0 %v3252
    %3267 = vmatmul.bf16.gmra.mxu0 %v3257
    %v3268 = vpop.f32.mrf.mxu0
    %v3269 = vadd.f32 0.0, %v3268
    %v3270 = vpop.f32.mrf.mxu0
    %v3271 = vadd.f32 0.0, %v3270
    %3272 = vdwg.mxu0
    %v3273 = vadd.f32 %v3232, %v3269
    %v3274 = vadd.f32 %v3233, %v3271
    %s3275 = scalar_lea.vmem [#allocation10], 192
    %v3276 = vld [vmem:[%s3275] sm:$0xf]
    %v3277 = vld [vmem:[%s3275 + $0x4] sm:$0xf]
    %v3278 = vld [vmem:[%s3275 + $0x8] sm:$0xf]
    %v3279 = vld [vmem:[%s3275 + $0xc] sm:$0xf]
    %v3282 = vunpack.c.l.b16 %v2780
    %v3283 = vunpack.c.l.b16 %v2781
    %v3284 = vpack.c.b16 %v3283, %v3282
    %v3289 = vunpack.c.l.b16 %v3276
    %v3290 = vunpack.c.l.b16 %v3277
    %v3291 = vunpack.c.l.b16 %v3278
    %v3292 = vunpack.c.l.b16 %v3279
    %v3293 = vpack.c.b16 %v3290, %v3289
    %v3294 = vpack.c.b16 %v3292, %v3291
    %v3298 = vsel %vm2333, %v3284, 0
    %3300 = vmatpush.bf16.msra.mxu0 0
    %3301 = vmatpush.bf16.msra.mxu0 0
    %3302 = vmatpush.bf16.msra.mxu0 0
    %3303 = vmatpush.bf16.msra.mxu0 0
    %3304 = vmatpush.bf16.msra.mxu0 0
    %3305 = vmatpush.bf16.msra.mxu0 0
    %3306 = vmatpush.bf16.msra.mxu0 %v3294
    %3307 = vmatpush.bf16.msra.mxu0 %v3293
    %3308 = vmatmul.bf16.gmra.mxu0 %v3298
    %v3309 = vpop.f32.mrf.mxu0
    %v3310 = vadd.f32 0.0, %v3309
    %v3311 = vpop.f32.mrf.mxu0
    %v3312 = vadd.f32 0.0, %v3311
    %3313 = vdwg.mxu0
    %v3314 = vadd.f32 %v3273, %v3310
    %v3315 = vadd.f32 %v3274, %v3312
    %s3316 = scalar_lea.vmem [#allocation10], 208
    %v3317 = vld [vmem:[%s3316] sm:$0xf]
    %v3318 = vld [vmem:[%s3316 + $0x4] sm:$0xf]
    %v3319 = vld [vmem:[%s3316 + $0x8] sm:$0xf]
    %v3320 = vld [vmem:[%s3316 + $0xc] sm:$0xf]
    %v3323 = vunpack.c.l.b16 %v2782
    %v3324 = vunpack.c.l.b16 %v2783
    %v3325 = vpack.c.b16 %v3324, %v3323
    %v3330 = vunpack.c.l.b16 %v3317
    %v3331 = vunpack.c.l.b16 %v3318
    %v3332 = vunpack.c.l.b16 %v3319
    %v3333 = vunpack.c.l.b16 %v3320
    %v3334 = vpack.c.b16 %v3331, %v3330
    %v3335 = vpack.c.b16 %v3333, %v3332
    %v3339 = vsel %vm2333, %v3325, 0
    %3341 = vmatpush.bf16.msra.mxu0 0
    %3342 = vmatpush.bf16.msra.mxu0 0
    %3343 = vmatpush.bf16.msra.mxu0 0
    %3344 = vmatpush.bf16.msra.mxu0 0
    %3345 = vmatpush.bf16.msra.mxu0 0
    %3346 = vmatpush.bf16.msra.mxu0 0
    %3347 = vmatpush.bf16.msra.mxu0 %v3335
    %3348 = vmatpush.bf16.msra.mxu0 %v3334
    %3349 = vmatmul.bf16.gmra.mxu0 %v3339
    %v3350 = vpop.f32.mrf.mxu0
    %v3351 = vadd.f32 0.0, %v3350
    %v3352 = vpop.f32.mrf.mxu0
    %v3353 = vadd.f32 0.0, %v3352
    %3354 = vdwg.mxu0
    %v3355 = vadd.f32 %v3314, %v3351
    %v3356 = vadd.f32 %v3315, %v3353
    %s3357 = scalar_lea.vmem [#allocation10], 224
    %v3358 = vld [vmem:[%s3357] sm:$0xf]
    %v3359 = vld [vmem:[%s3357 + $0x4] sm:$0xf]
    %v3360 = vld [vmem:[%s3357 + $0x8] sm:$0xf]
    %v3361 = vld [vmem:[%s3357 + $0xc] sm:$0xf]
    %v3364 = vunpack.c.l.b16 %v2784
    %v3365 = vunpack.c.l.b16 %v2785
    %v3366 = vpack.c.b16 %v3365, %v3364
    %v3371 = vunpack.c.l.b16 %v3358
    %v3372 = vunpack.c.l.b16 %v3359
    %v3373 = vunpack.c.l.b16 %v3360
    %v3374 = vunpack.c.l.b16 %v3361
    %v3375 = vpack.c.b16 %v3372, %v3371
    %v3376 = vpack.c.b16 %v3374, %v3373
    %v3380 = vsel %vm2333, %v3366, 0
    %3382 = vmatpush.bf16.msra.mxu0 0
    %3383 = vmatpush.bf16.msra.mxu0 0
    %3384 = vmatpush.bf16.msra.mxu0 0
    %3385 = vmatpush.bf16.msra.mxu0 0
    %3386 = vmatpush.bf16.msra.mxu0 0
    %3387 = vmatpush.bf16.msra.mxu0 0
    %3388 = vmatpush.bf16.msra.mxu0 %v3376
    %3389 = vmatpush.bf16.msra.mxu0 %v3375
    %3390 = vmatmul.bf16.gmra.mxu0 %v3380
    %v3391 = vpop.f32.mrf.mxu0
    %v3392 = vadd.f32 0.0, %v3391
    %v3393 = vpop.f32.mrf.mxu0
    %v3394 = vadd.f32 0.0, %v3393
    %3395 = vdwg.mxu0
    %v3396 = vadd.f32 %v3355, %v3392
    %v3397 = vadd.f32 %v3356, %v3394
    %s3398 = scalar_lea.vmem [#allocation10], 240
    %v3399 = vld [vmem:[%s3398] sm:$0xf]
    %v3400 = vld [vmem:[%s3398 + $0x4] sm:$0xf]
    %v3401 = vld [vmem:[%s3398 + $0x8] sm:$0xf]
    %v3402 = vld [vmem:[%s3398 + $0xc] sm:$0xf]
    %v3405 = vunpack.c.l.b16 %v2786
    %v3406 = vunpack.c.l.b16 %v2787
    %v3407 = vpack.c.b16 %v3406, %v3405
    %v3412 = vunpack.c.l.b16 %v3399
    %v3413 = vunpack.c.l.b16 %v3400
    %v3414 = vunpack.c.l.b16 %v3401
    %v3415 = vunpack.c.l.b16 %v3402
    %v3416 = vpack.c.b16 %v3413, %v3412
    %v3417 = vpack.c.b16 %v3415, %v3414
    %v3421 = vsel %vm2333, %v3407, 0
    %3423 = vmatpush.bf16.msra.mxu0 0
    %3424 = vmatpush.bf16.msra.mxu0 0
    %3425 = vmatpush.bf16.msra.mxu0 0
    %3426 = vmatpush.bf16.msra.mxu0 0
    %3427 = vmatpush.bf16.msra.mxu0 0
    %3428 = vmatpush.bf16.msra.mxu0 0
    %3429 = vmatpush.bf16.msra.mxu0 %v3417
    %3430 = vmatpush.bf16.msra.mxu0 %v3416
    %3431 = vmatmul.bf16.gmra.mxu0 %v3421
    %v3432 = vpop.f32.mrf.mxu0
    %v3433 = vadd.f32 0.0, %v3432
    %v3434 = vpop.f32.mrf.mxu0
    %v3435 = vadd.f32 0.0, %v3434
    %3436 = vdwg.mxu0
    %v3437 = vadd.f32 %v3396, %v3433
    %v3438 = vadd.f32 %v3397, %v3435
    %3439 = vadd.xlane.f32.xlu0 %v3437
    %v3440 = vpop.xlane.xlu0 %3439
    %3441 = vadd.xlane.f32.xlu0 %v3438
    %v3442 = vpop.xlane.xlu0 %3441
    %v3443 = vrcp.pop 128.0
    %v3444 = vmul.f32 128.0, %v3443
    %v3445 = vsub.f32 1.0, %v3444
    %v3446 = vmul.f32 %v3443, %v3445
    %v3447 = vadd.f32 %v3443, %v3446
    %vm3448 = vweird.f32 %v3443
    %v3449 = vsel %vm3448, %v3443, %v3447
    %v3450 = vmul.f32 %v3440, %v3449
    %v3451 = vmul.f32 %v3442, %v3449
    %v3452 = vmul.f32 %v3437, %v3437
    %v3453 = vmul.f32 %v3438, %v3438
    %3454 = vadd.xlane.f32.xlu0 %v3452
    %v3455 = vpop.xlane.xlu0 %3454
    %3456 = vadd.xlane.f32.xlu0 %v3453
    %v3457 = vpop.xlane.xlu0 %3456
    %v3458 = vmul.f32 %v3455, %v3449
    %v3459 = vmul.f32 %v3457, %v3449
    %v3460 = vmul.f32 %v3450, %v3450
    %v3461 = vmul.f32 %v3451, %v3451
    %v3462 = vsub.f32 %v3458, %v3460
    %v3463 = vsub.f32 %v3459, %v3461
    %v3464 = vmax.f32 %v3462, 0.0
    %v3465 = vmax.f32 %v3463, 0.0
    %v3466 = vld [vmem:[%s11] sm:$0xff]
    %v3467 = vld [vmem:[%s11 + $0x8] sm:$0xff]
    %v3468 = vadd.f32 %v3464, 1e-05
    %v3469 = vadd.f32 %v3465, 1e-05
    %v3470 = vrsqrt.pop %v3468
    %v3471 = vmul.f32 %v3470, %v3468
    %v3472 = vmul.f32 %v3471, %v3470
    %v3473 = vmul.f32 0.5, %v3472
    %v3474 = vsub.f32 1.5, %v3473
    %v3475 = vmul.f32 %v3470, %v3474
    %vm3476 = vweird.f32 %v3468
    %vm3477 = vweird.f32 %v3470
    %vm3478 = vmor %vm3476, %vm3477
    %v3479 = vsel %vm3478, %v3470, %v3475
    %v3480 = vrsqrt.pop %v3469
    %v3481 = vmul.f32 %v3480, %v3469
    %v3482 = vmul.f32 %v3481, %v3480
    %v3483 = vmul.f32 0.5, %v3482
    %v3484 = vsub.f32 1.5, %v3483
    %v3485 = vmul.f32 %v3480, %v3484
    %vm3486 = vweird.f32 %v3469
    %vm3487 = vweird.f32 %v3480
    %vm3488 = vmor %vm3486, %vm3487
    %v3489 = vsel %vm3488, %v3480, %v3485
    %v3490 = vmul.f32 %v3466, %v3479
    %v3491 = vmul.f32 %v3467, %v3489
    %v3492 = vld [vmem:[%s12] sm:$0xff]
    %v3493 = vld [vmem:[%s12 + $0x8] sm:$0xff]
    %v3494 = vmul.f32 %v3450, %v3490
    %v3495 = vmul.f32 %v3451, %v3491
    %v3496 = vsub.f32 %v3492, %v3494
    %v3497 = vsub.f32 %v3493, %v3495
    %3499 = vset.pattern.permute.xlu0 0
    %3500 = vperm.xlu0 %3499, %v3490
    %v3501 = vpop.permute.xlu0 %3500
    %3504 = vset.pattern.permute.xlu0 0
    %3505 = vperm.xlu0 %3504, %v3491
    %v3506 = vpop.permute.xlu0 %3505
    %v3508 = vmul.f32 %v3437, %v3501
    %v3509 = vmul.f32 %v3438, %v3506
    %3511 = vset.pattern.permute.xlu0 0
    %3512 = vperm.xlu0 %3511, %v3496
    %v3513 = vpop.permute.xlu0 %3512
    %3516 = vset.pattern.permute.xlu0 0
    %3517 = vperm.xlu0 %3516, %v3497
    %v3518 = vpop.permute.xlu0 %3517
    %v3520 = vadd.f32 %v3508, %v3513
    %v3521 = vadd.f32 %v3509, %v3518
    %v3522 = vmax.f32 %v3520, 0.0
    %v3523 = vmax.f32 %v3521, 0.0
    %v3524 = vpack.c.bf16 %v3523, %v3522
    %v3525 = vld [vmem:[#allocation12] sm:$0xf]
    %v3526 = vld [vmem:[#allocation12 + $0x4] sm:$0xf]
    %v3527 = vld [vmem:[#allocation12 + $0x8] sm:$0xf]
    %v3528 = vld [vmem:[#allocation12 + $0xc] sm:$0xf]
    %v3529 = vld [vmem:[#allocation12 + $0x10] sm:$0xf]
    %v3530 = vld [vmem:[#allocation12 + $0x14] sm:$0xf]
    %v3531 = vld [vmem:[#allocation12 + $0x18] sm:$0xf]
    %v3532 = vld [vmem:[#allocation12 + $0x1c] sm:$0xf]
    %v3533 = vld [vmem:[#allocation12 + $0x20] sm:$0xf]
    %v3534 = vld [vmem:[#allocation12 + $0x24] sm:$0xf]
    %v3535 = vld [vmem:[#allocation12 + $0x28] sm:$0xf]
    %v3536 = vld [vmem:[#allocation12 + $0x2c] sm:$0xf]
    %v3537 = vld [vmem:[#allocation12 + $0x30] sm:$0xf]
    %v3538 = vld [vmem:[#allocation12 + $0x34] sm:$0xf]
    %v3539 = vld [vmem:[#allocation12 + $0x38] sm:$0xf]
    %v3540 = vld [vmem:[#allocation12 + $0x3c] sm:$0xf]
    %v3557 = vunpack.c.l.b16 %v3525
    %v3558 = vunpack.c.l.b16 %v3526
    %v3559 = vunpack.c.l.b16 %v3527
    %v3560 = vunpack.c.l.b16 %v3528
    %v3561 = vunpack.c.l.b16 %v3529
    %v3562 = vunpack.c.l.b16 %v3530
    %v3563 = vunpack.c.l.b16 %v3531
    %v3564 = vunpack.c.l.b16 %v3532
    %v3565 = vunpack.c.l.b16 %v3533
    %v3566 = vunpack.c.l.b16 %v3534
    %v3567 = vunpack.c.l.b16 %v3535
    %v3568 = vunpack.c.l.b16 %v3536
    %v3569 = vunpack.c.l.b16 %v3537
    %v3570 = vunpack.c.l.b16 %v3538
    %v3571 = vunpack.c.l.b16 %v3539
    %v3572 = vunpack.c.l.b16 %v3540
    %v3573 = vpack.c.b16 %v3558, %v3557
    %v3574 = vpack.c.b16 %v3560, %v3559
    %v3575 = vpack.c.b16 %v3562, %v3561
    %v3576 = vpack.c.b16 %v3564, %v3563
    %v3577 = vpack.c.b16 %v3566, %v3565
    %v3578 = vpack.c.b16 %v3568, %v3567
    %v3579 = vpack.c.b16 %v3570, %v3569
    %v3580 = vpack.c.b16 %v3572, %v3571
    %vm3581 = vcmask 130048
    %v3583 = vsel %vm3581, %v3573, 0
    %v3586 = vsel %vm3581, %v3574, 0
    %v3589 = vsel %vm3581, %v3575, 0
    %v3592 = vsel %vm3581, %v3576, 0
    %v3595 = vsel %vm3581, %v3577, 0
    %v3598 = vsel %vm3581, %v3578, 0
    %v3601 = vsel %vm3581, %v3579, 0
    %v3604 = vsel %vm3581, %v3580, 0
    %3606 = vmatpush.bf16.msra.mxu0 0
    %3607 = vmatpush.bf16.msra.mxu0 0
    %3608 = vmatpush.bf16.msra.mxu0 0
    %3609 = vmatpush.bf16.msra.mxu0 0
    %3610 = vmatpush.bf16.msra.mxu0 0
    %3611 = vmatpush.bf16.msra.mxu0 0
    %3612 = vmatpush.bf16.msra.mxu0 0
    %3613 = vmatpush.bf16.msra.mxu0 %v3524
    %3614 = vmatmul.bf16.gmra.mxu0 %v3583
    %v3615 = vpop.f32.mrf.mxu0
    %v3616 = vadd.f32 0.0, %v3615
    %v3617 = vpop.f32.mrf.mxu0
    %v3618 = vadd.f32 0.0, %v3617
    %3619 = vmatmul.bf16.gmra.mxu0 %v3586
    %v3620 = vpop.f32.mrf.mxu0
    %v3621 = vadd.f32 0.0, %v3620
    %v3622 = vpop.f32.mrf.mxu0
    %v3623 = vadd.f32 0.0, %v3622
    %3624 = vmatmul.bf16.gmra.mxu0 %v3589
    %v3625 = vpop.f32.mrf.mxu0
    %v3626 = vadd.f32 0.0, %v3625
    %v3627 = vpop.f32.mrf.mxu0
    %v3628 = vadd.f32 0.0, %v3627
    %3629 = vmatmul.bf16.gmra.mxu0 %v3592
    %v3630 = vpop.f32.mrf.mxu0
    %v3631 = vadd.f32 0.0, %v3630
    %v3632 = vpop.f32.mrf.mxu0
    %v3633 = vadd.f32 0.0, %v3632
    %3634 = vmatmul.bf16.gmra.mxu0 %v3595
    %v3635 = vpop.f32.mrf.mxu0
    %v3636 = vadd.f32 0.0, %v3635
    %v3637 = vpop.f32.mrf.mxu0
    %v3638 = vadd.f32 0.0, %v3637
    %3639 = vmatmul.bf16.gmra.mxu0 %v3598
    %v3640 = vpop.f32.mrf.mxu0
    %v3641 = vadd.f32 0.0, %v3640
    %v3642 = vpop.f32.mrf.mxu0
    %v3643 = vadd.f32 0.0, %v3642
    %3644 = vmatmul.bf16.gmra.mxu0 %v3601
    %v3645 = vpop.f32.mrf.mxu0
    %v3646 = vadd.f32 0.0, %v3645
    %v3647 = vpop.f32.mrf.mxu0
    %v3648 = vadd.f32 0.0, %v3647
    %3649 = vmatmul.bf16.gmra.mxu0 %v3604
    %v3650 = vpop.f32.mrf.mxu0
    %v3651 = vadd.f32 0.0, %v3650
    %v3652 = vpop.f32.mrf.mxu0
    %v3653 = vadd.f32 0.0, %v3652
    %3654 = vdwg.mxu0
    %v3655 = vpack.c.bf16 %v3616, %v3616
    %v3656 = vpack.c.bf16 %v3618, %v3618
    %v3657 = vpack.c.bf16 %v3621, %v3621
    %v3658 = vpack.c.bf16 %v3623, %v3623
    %v3659 = vpack.c.bf16 %v3626, %v3626
    %v3660 = vpack.c.bf16 %v3628, %v3628
    %v3661 = vpack.c.bf16 %v3631, %v3631
    %v3662 = vpack.c.bf16 %v3633, %v3633
    %v3663 = vpack.c.bf16 %v3636, %v3636
    %v3664 = vpack.c.bf16 %v3638, %v3638
    %v3665 = vpack.c.bf16 %v3641, %v3641
    %v3666 = vpack.c.bf16 %v3643, %v3643
    %v3667 = vpack.c.bf16 %v3646, %v3646
    %v3668 = vpack.c.bf16 %v3648, %v3648
    %v3669 = vpack.c.bf16 %v3651, %v3651
    %v3670 = vpack.c.bf16 %v3653, %v3653
    %v3671 = vld [vmem:[#allocation13] sm:$0xff]
    %v3672 = vld [vmem:[#allocation13 + $0x8] sm:$0xff]
    %v3673 = vld [vmem:[#allocation13 + $0x10] sm:$0xff]
    %v3674 = vld [vmem:[#allocation13 + $0x18] sm:$0xff]
    %v3675 = vld [vmem:[#allocation13 + $0x20] sm:$0xff]
    %v3676 = vld [vmem:[#allocation13 + $0x28] sm:$0xff]
    %v3677 = vld [vmem:[#allocation13 + $0x30] sm:$0xff]
    %v3678 = vld [vmem:[#allocation13 + $0x38] sm:$0xff]
    %v3679 = vld [vmem:[#allocation13 + $0x40] sm:$0xff]
    %v3680 = vld [vmem:[#allocation13 + $0x48] sm:$0xff]
    %v3681 = vld [vmem:[#allocation13 + $0x50] sm:$0xff]
    %v3682 = vld [vmem:[#allocation13 + $0x58] sm:$0xff]
    %v3683 = vld [vmem:[#allocation13 + $0x60] sm:$0xff]
    %v3684 = vld [vmem:[#allocation13 + $0x68] sm:$0xff]
    %v3685 = vld [vmem:[#allocation13 + $0x70] sm:$0xff]
    %v3686 = vld [vmem:[#allocation13 + $0x78] sm:$0xff]
    %v3687 = vld [vmem:[#allocation13 + $0x80] sm:$0xff]
    %v3688 = vld [vmem:[#allocation13 + $0x88] sm:$0xff]
    %v3689 = vld [vmem:[#allocation13 + $0x90] sm:$0xff]
    %v3690 = vld [vmem:[#allocation13 + $0x98] sm:$0xff]
    %v3691 = vld [vmem:[#allocation13 + $0xa0] sm:$0xff]
    %v3692 = vld [vmem:[#allocation13 + $0xa8] sm:$0xff]
    %v3693 = vld [vmem:[#allocation13 + $0xb0] sm:$0xff]
    %v3694 = vld [vmem:[#allocation13 + $0xb8] sm:$0xff]
    %v3695 = vld [vmem:[#allocation13 + $0xc0] sm:$0xff]
    %v3696 = vld [vmem:[#allocation13 + $0xc8] sm:$0xff]
    %v3697 = vld [vmem:[#allocation13 + $0xd0] sm:$0xff]
    %v3698 = vld [vmem:[#allocation13 + $0xd8] sm:$0xff]
    %v3699 = vld [vmem:[#allocation13 + $0xe0] sm:$0xff]
    %v3700 = vld [vmem:[#allocation13 + $0xe8] sm:$0xff]
    %v3701 = vld [vmem:[#allocation13 + $0xf0] sm:$0xff]
    %v3702 = vld [vmem:[#allocation13 + $0xf8] sm:$0xff]
    %s3703 = scalar_lea.vmem [#allocation13], 256
    %v3704 = vld [vmem:[%s3703] sm:$0xff]
    %v3705 = vld [vmem:[%s3703 + $0x8] sm:$0xff]
    %v3706 = vld [vmem:[%s3703 + $0x10] sm:$0xff]
    %v3707 = vld [vmem:[%s3703 + $0x18] sm:$0xff]
    %v3708 = vld [vmem:[%s3703 + $0x20] sm:$0xff]
    %v3709 = vld [vmem:[%s3703 + $0x28] sm:$0xff]
    %v3710 = vld [vmem:[%s3703 + $0x30] sm:$0xff]
    %v3711 = vld [vmem:[%s3703 + $0x38] sm:$0xff]
    %v3712 = vld [vmem:[%s3703 + $0x40] sm:$0xff]
    %v3713 = vld [vmem:[%s3703 + $0x48] sm:$0xff]
    %v3714 = vld [vmem:[%s3703 + $0x50] sm:$0xff]
    %v3715 = vld [vmem:[%s3703 + $0x58] sm:$0xff]
    %v3716 = vld [vmem:[%s3703 + $0x60] sm:$0xff]
    %v3717 = vld [vmem:[%s3703 + $0x68] sm:$0xff]
    %v3718 = vld [vmem:[%s3703 + $0x70] sm:$0xff]
    %v3719 = vld [vmem:[%s3703 + $0x78] sm:$0xff]
    %v3720 = vld [vmem:[%s3703 + $0x80] sm:$0xff]
    %v3721 = vld [vmem:[%s3703 + $0x88] sm:$0xff]
    %v3722 = vld [vmem:[%s3703 + $0x90] sm:$0xff]
    %v3723 = vld [vmem:[%s3703 + $0x98] sm:$0xff]
    %v3724 = vld [vmem:[%s3703 + $0xa0] sm:$0xff]
    %v3725 = vld [vmem:[%s3703 + $0xa8] sm:$0xff]
    %v3726 = vld [vmem:[%s3703 + $0xb0] sm:$0xff]
    %v3727 = vld [vmem:[%s3703 + $0xb8] sm:$0xff]
    %v3728 = vld [vmem:[%s3703 + $0xc0] sm:$0xff]
    %v3729 = vld [vmem:[%s3703 + $0xc8] sm:$0xff]
    %v3730 = vld [vmem:[%s3703 + $0xd0] sm:$0xff]
    %v3731 = vld [vmem:[%s3703 + $0xd8] sm:$0xff]
    %v3732 = vld [vmem:[%s3703 + $0xe0] sm:$0xff]
    %v3733 = vld [vmem:[%s3703 + $0xe8] sm:$0xff]
    %v3734 = vld [vmem:[%s3703 + $0xf0] sm:$0xff]
    %v3735 = vld [vmem:[%s3703 + $0xf8] sm:$0xff]
    %v3768 = vunpack.c.l.b16 %v3704
    %v3769 = vunpack.c.h.b16 %v3704
    %v3770 = vunpack.c.l.b16 %v3705
    %v3771 = vunpack.c.h.b16 %v3705
    %v3772 = vunpack.c.l.b16 %v3706
    %v3773 = vunpack.c.h.b16 %v3706
    %v3774 = vunpack.c.l.b16 %v3707
    %v3775 = vunpack.c.h.b16 %v3707
    %v3776 = vunpack.c.l.b16 %v3708
    %v3777 = vunpack.c.h.b16 %v3708
    %v3778 = vunpack.c.l.b16 %v3709
    %v3779 = vunpack.c.h.b16 %v3709
    %v3780 = vunpack.c.l.b16 %v3710
    %v3781 = vunpack.c.h.b16 %v3710
    %v3782 = vunpack.c.l.b16 %v3711
    %v3783 = vunpack.c.h.b16 %v3711
    %v3784 = vunpack.c.l.b16 %v3712
    %v3785 = vunpack.c.h.b16 %v3712
    %v3786 = vunpack.c.l.b16 %v3713
    %v3787 = vunpack.c.h.b16 %v3713
    %v3788 = vunpack.c.l.b16 %v3714
    %v3789 = vunpack.c.h.b16 %v3714
    %v3790 = vunpack.c.l.b16 %v3715
    %v3791 = vunpack.c.h.b16 %v3715
    %v3792 = vunpack.c.l.b16 %v3716
    %v3793 = vunpack.c.h.b16 %v3716
    %v3794 = vunpack.c.l.b16 %v3717
    %v3795 = vunpack.c.h.b16 %v3717
    %v3796 = vunpack.c.l.b16 %v3718
    %v3797 = vunpack.c.h.b16 %v3718
    %v3798 = vunpack.c.l.b16 %v3719
    %v3799 = vunpack.c.h.b16 %v3719
    %v3800 = vunpack.c.l.b16 %v3720
    %v3801 = vunpack.c.h.b16 %v3720
    %v3802 = vunpack.c.l.b16 %v3721
    %v3803 = vunpack.c.h.b16 %v3721
    %v3804 = vunpack.c.l.b16 %v3722
    %v3805 = vunpack.c.h.b16 %v3722
    %v3806 = vunpack.c.l.b16 %v3723
    %v3807 = vunpack.c.h.b16 %v3723
    %v3808 = vunpack.c.l.b16 %v3724
    %v3809 = vunpack.c.h.b16 %v3724
    %v3810 = vunpack.c.l.b16 %v3725
    %v3811 = vunpack.c.h.b16 %v3725
    %v3812 = vunpack.c.l.b16 %v3726
    %v3813 = vunpack.c.h.b16 %v3726
    %v3814 = vunpack.c.l.b16 %v3727
    %v3815 = vunpack.c.h.b16 %v3727
    %v3816 = vunpack.c.l.b16 %v3728
    %v3817 = vunpack.c.h.b16 %v3728
    %v3818 = vunpack.c.l.b16 %v3729
    %v3819 = vunpack.c.h.b16 %v3729
    %v3820 = vunpack.c.l.b16 %v3730
    %v3821 = vunpack.c.h.b16 %v3730
    %v3822 = vunpack.c.l.b16 %v3731
    %v3823 = vunpack.c.h.b16 %v3731
    %v3824 = vunpack.c.l.b16 %v3732
    %v3825 = vunpack.c.h.b16 %v3732
    %v3826 = vunpack.c.l.b16 %v3733
    %v3827 = vunpack.c.h.b16 %v3733
    %v3828 = vunpack.c.l.b16 %v3734
    %v3829 = vunpack.c.h.b16 %v3734
    %v3830 = vunpack.c.l.b16 %v3735
    %v3831 = vunpack.c.h.b16 %v3735
    %v3832 = vpack.c.b16 %v3772, %v3768
    %v3833 = vpack.c.b16 %v3773, %v3769
    %v3834 = vpack.c.b16 %v3774, %v3770
    %v3835 = vpack.c.b16 %v3775, %v3771
    %v3836 = vpack.c.b16 %v3780, %v3776
    %v3837 = vpack.c.b16 %v3781, %v3777
    %v3838 = vpack.c.b16 %v3782, %v3778
    %v3839 = vpack.c.b16 %v3783, %v3779
    %v3840 = vpack.c.b16 %v3788, %v3784
    %v3841 = vpack.c.b16 %v3789, %v3785
    %v3842 = vpack.c.b16 %v3790, %v3786
    %v3843 = vpack.c.b16 %v3791, %v3787
    %v3844 = vpack.c.b16 %v3796, %v3792
    %v3845 = vpack.c.b16 %v3797, %v3793
    %v3846 = vpack.c.b16 %v3798, %v3794
    %v3847 = vpack.c.b16 %v3799, %v3795
    %v3848 = vpack.c.b16 %v3804, %v3800
    %v3849 = vpack.c.b16 %v3805, %v3801
    %v3850 = vpack.c.b16 %v3806, %v3802
    %v3851 = vpack.c.b16 %v3807, %v3803
    %v3852 = vpack.c.b16 %v3812, %v3808
    %v3853 = vpack.c.b16 %v3813, %v3809
    %v3854 = vpack.c.b16 %v3814, %v3810
    %v3855 = vpack.c.b16 %v3815, %v3811
    %v3856 = vpack.c.b16 %v3820, %v3816
    %v3857 = vpack.c.b16 %v3821, %v3817
    %v3858 = vpack.c.b16 %v3822, %v3818
    %v3859 = vpack.c.b16 %v3823, %v3819
    %v3860 = vpack.c.b16 %v3828, %v3824
    %v3861 = vpack.c.b16 %v3829, %v3825
    %v3862 = vpack.c.b16 %v3830, %v3826
    %v3863 = vpack.c.b16 %v3831, %v3827
    %3896 = vmatpush.bf16.msra.mxu0 %v3860
    %3897 = vmatpush.bf16.msra.mxu0 %v3856
    %3898 = vmatpush.bf16.msra.mxu0 %v3852
    %3899 = vmatpush.bf16.msra.mxu0 %v3848
    %3900 = vmatpush.bf16.msra.mxu0 %v3844
    %3901 = vmatpush.bf16.msra.mxu0 %v3840
    %3902 = vmatpush.bf16.msra.mxu0 %v3836
    %3903 = vmatpush.bf16.msra.mxu0 %v3832
    %3904 = vmatmul.bf16.gmra.mxu0 %v3656
    %v3905 = vpop.f32.mrf.mxu0
    %v3906 = vadd.f32 0.0, %v3905
    %v3907 = vpop.f32.mrf.mxu0
    %3908 = vdwg.mxu0
    %3909 = vmatpush.bf16.msra.mxu0 %v3861
    %3910 = vmatpush.bf16.msra.mxu0 %v3857
    %3911 = vmatpush.bf16.msra.mxu0 %v3853
    %3912 = vmatpush.bf16.msra.mxu0 %v3849
    %3913 = vmatpush.bf16.msra.mxu0 %v3845
    %3914 = vmatpush.bf16.msra.mxu0 %v3841
    %3915 = vmatpush.bf16.msra.mxu0 %v3837
    %3916 = vmatpush.bf16.msra.mxu0 %v3833
    %3917 = vmatmul.bf16.gmra.mxu0 %v3656
    %v3918 = vpop.f32.mrf.mxu0
    %v3919 = vadd.f32 0.0, %v3918
    %v3920 = vpop.f32.mrf.mxu0
    %3921 = vdwg.mxu0
    %3922 = vmatpush.bf16.msra.mxu0 %v3862
    %3923 = vmatpush.bf16.msra.mxu0 %v3858
    %3924 = vmatpush.bf16.msra.mxu0 %v3854
    %3925 = vmatpush.bf16.msra.mxu0 %v3850
    %3926 = vmatpush.bf16.msra.mxu0 %v3846
    %3927 = vmatpush.bf16.msra.mxu0 %v3842
    %3928 = vmatpush.bf16.msra.mxu0 %v3838
    %3929 = vmatpush.bf16.msra.mxu0 %v3834
    %3930 = vmatmul.bf16.gmra.mxu0 %v3656
    %v3931 = vpop.f32.mrf.mxu0
    %v3932 = vadd.f32 0.0, %v3931
    %v3933 = vpop.f32.mrf.mxu0
    %3934 = vdwg.mxu0
    %3935 = vmatpush.bf16.msra.mxu0 %v3863
    %3936 = vmatpush.bf16.msra.mxu0 %v3859
    %3937 = vmatpush.bf16.msra.mxu0 %v3855
    %3938 = vmatpush.bf16.msra.mxu0 %v3851
    %3939 = vmatpush.bf16.msra.mxu0 %v3847
    %3940 = vmatpush.bf16.msra.mxu0 %v3843
    %3941 = vmatpush.bf16.msra.mxu0 %v3839
    %3942 = vmatpush.bf16.msra.mxu0 %v3835
    %3943 = vmatmul.bf16.gmra.mxu0 %v3656
    %v3944 = vpop.f32.mrf.mxu0
    %v3945 = vadd.f32 0.0, %v3944
    %v3946 = vpop.f32.mrf.mxu0
    %3947 = vdwg.mxu0
    %v3980 = vunpack.c.l.b16 %v3671
    %v3981 = vunpack.c.h.b16 %v3671
    %v3982 = vunpack.c.l.b16 %v3672
    %v3983 = vunpack.c.h.b16 %v3672
    %v3984 = vunpack.c.l.b16 %v3673
    %v3985 = vunpack.c.h.b16 %v3673
    %v3986 = vunpack.c.l.b16 %v3674
    %v3987 = vunpack.c.h.b16 %v3674
    %v3988 = vunpack.c.l.b16 %v3675
    %v3989 = vunpack.c.h.b16 %v3675
    %v3990 = vunpack.c.l.b16 %v3676
    %v3991 = vunpack.c.h.b16 %v3676
    %v3992 = vunpack.c.l.b16 %v3677
    %v3993 = vunpack.c.h.b16 %v3677
    %v3994 = vunpack.c.l.b16 %v3678
    %v3995 = vunpack.c.h.b16 %v3678
    %v3996 = vunpack.c.l.b16 %v3679
    %v3997 = vunpack.c.h.b16 %v3679
    %v3998 = vunpack.c.l.b16 %v3680
    %v3999 = vunpack.c.h.b16 %v3680
    %v4000 = vunpack.c.l.b16 %v3681
    %v4001 = vunpack.c.h.b16 %v3681
    %v4002 = vunpack.c.l.b16 %v3682
    %v4003 = vunpack.c.h.b16 %v3682
    %v4004 = vunpack.c.l.b16 %v3683
    %v4005 = vunpack.c.h.b16 %v3683
    %v4006 = vunpack.c.l.b16 %v3684
    %v4007 = vunpack.c.h.b16 %v3684
    %v4008 = vunpack.c.l.b16 %v3685
    %v4009 = vunpack.c.h.b16 %v3685
    %v4010 = vunpack.c.l.b16 %v3686
    %v4011 = vunpack.c.h.b16 %v3686
    %v4012 = vunpack.c.l.b16 %v3687
    %v4013 = vunpack.c.h.b16 %v3687
    %v4014 = vunpack.c.l.b16 %v3688
    %v4015 = vunpack.c.h.b16 %v3688
    %v4016 = vunpack.c.l.b16 %v3689
    %v4017 = vunpack.c.h.b16 %v3689
    %v4018 = vunpack.c.l.b16 %v3690
    %v4019 = vunpack.c.h.b16 %v3690
    %v4020 = vunpack.c.l.b16 %v3691
    %v4021 = vunpack.c.h.b16 %v3691
    %v4022 = vunpack.c.l.b16 %v3692
    %v4023 = vunpack.c.h.b16 %v3692
    %v4024 = vunpack.c.l.b16 %v3693
    %v4025 = vunpack.c.h.b16 %v3693
    %v4026 = vunpack.c.l.b16 %v3694
    %v4027 = vunpack.c.h.b16 %v3694
    %v4028 = vunpack.c.l.b16 %v3695
    %v4029 = vunpack.c.h.b16 %v3695
    %v4030 = vunpack.c.l.b16 %v3696
    %v4031 = vunpack.c.h.b16 %v3696
    %v4032 = vunpack.c.l.b16 %v3697
    %v4033 = vunpack.c.h.b16 %v3697
    %v4034 = vunpack.c.l.b16 %v3698
    %v4035 = vunpack.c.h.b16 %v3698
    %v4036 = vunpack.c.l.b16 %v3699
    %v4037 = vunpack.c.h.b16 %v3699
    %v4038 = vunpack.c.l.b16 %v3700
    %v4039 = vunpack.c.h.b16 %v3700
    %v4040 = vunpack.c.l.b16 %v3701
    %v4041 = vunpack.c.h.b16 %v3701
    %v4042 = vunpack.c.l.b16 %v3702
    %v4043 = vunpack.c.h.b16 %v3702
    %v4044 = vpack.c.b16 %v3984, %v3980
    %v4045 = vpack.c.b16 %v3985, %v3981
    %v4046 = vpack.c.b16 %v3986, %v3982
    %v4047 = vpack.c.b16 %v3987, %v3983
    %v4048 = vpack.c.b16 %v3992, %v3988
    %v4049 = vpack.c.b16 %v3993, %v3989
    %v4050 = vpack.c.b16 %v3994, %v3990
    %v4051 = vpack.c.b16 %v3995, %v3991
    %v4052 = vpack.c.b16 %v4000, %v3996
    %v4053 = vpack.c.b16 %v4001, %v3997
    %v4054 = vpack.c.b16 %v4002, %v3998
    %v4055 = vpack.c.b16 %v4003, %v3999
    %v4056 = vpack.c.b16 %v4008, %v4004
    %v4057 = vpack.c.b16 %v4009, %v4005
    %v4058 = vpack.c.b16 %v4010, %v4006
    %v4059 = vpack.c.b16 %v4011, %v4007
    %v4060 = vpack.c.b16 %v4016, %v4012
    %v4061 = vpack.c.b16 %v4017, %v4013
    %v4062 = vpack.c.b16 %v4018, %v4014
    %v4063 = vpack.c.b16 %v4019, %v4015
    %v4064 = vpack.c.b16 %v4024, %v4020
    %v4065 = vpack.c.b16 %v4025, %v4021
    %v4066 = vpack.c.b16 %v4026, %v4022
    %v4067 = vpack.c.b16 %v4027, %v4023
    %v4068 = vpack.c.b16 %v4032, %v4028
    %v4069 = vpack.c.b16 %v4033, %v4029
    %v4070 = vpack.c.b16 %v4034, %v4030
    %v4071 = vpack.c.b16 %v4035, %v4031
    %v4072 = vpack.c.b16 %v4040, %v4036
    %v4073 = vpack.c.b16 %v4041, %v4037
    %v4074 = vpack.c.b16 %v4042, %v4038
    %v4075 = vpack.c.b16 %v4043, %v4039
    %4108 = vmatpush.bf16.msra.mxu0 %v4072
    %4109 = vmatpush.bf16.msra.mxu0 %v4068
    %4110 = vmatpush.bf16.msra.mxu0 %v4064
    %4111 = vmatpush.bf16.msra.mxu0 %v4060
    %4112 = vmatpush.bf16.msra.mxu0 %v4056
    %4113 = vmatpush.bf16.msra.mxu0 %v4052
    %4114 = vmatpush.bf16.msra.mxu0 %v4048
    %4115 = vmatpush.bf16.msra.mxu0 %v4044
    %4116 = vmatmul.bf16.gmra.mxu0 %v3655
    %v4117 = vpop.f32.mrf.mxu0
    %v4118 = vadd.f32 %v3906, %v4117
    %v4119 = vpop.f32.mrf.mxu0
    %4120 = vdwg.mxu0
    %4121 = vmatpush.bf16.msra.mxu0 %v4073
    %4122 = vmatpush.bf16.msra.mxu0 %v4069
    %4123 = vmatpush.bf16.msra.mxu0 %v4065
    %4124 = vmatpush.bf16.msra.mxu0 %v4061
    %4125 = vmatpush.bf16.msra.mxu0 %v4057
    %4126 = vmatpush.bf16.msra.mxu0 %v4053
    %4127 = vmatpush.bf16.msra.mxu0 %v4049
    %4128 = vmatpush.bf16.msra.mxu0 %v4045
    %4129 = vmatmul.bf16.gmra.mxu0 %v3655
    %v4130 = vpop.f32.mrf.mxu0
    %v4131 = vadd.f32 %v3919, %v4130
    %v4132 = vpop.f32.mrf.mxu0
    %4133 = vdwg.mxu0
    %4134 = vmatpush.bf16.msra.mxu0 %v4074
    %4135 = vmatpush.bf16.msra.mxu0 %v4070
    %4136 = vmatpush.bf16.msra.mxu0 %v4066
    %4137 = vmatpush.bf16.msra.mxu0 %v4062
    %4138 = vmatpush.bf16.msra.mxu0 %v4058
    %4139 = vmatpush.bf16.msra.mxu0 %v4054
    %4140 = vmatpush.bf16.msra.mxu0 %v4050
    %4141 = vmatpush.bf16.msra.mxu0 %v4046
    %4142 = vmatmul.bf16.gmra.mxu0 %v3655
    %v4143 = vpop.f32.mrf.mxu0
    %v4144 = vadd.f32 %v3932, %v4143
    %v4145 = vpop.f32.mrf.mxu0
    %4146 = vdwg.mxu0
    %4147 = vmatpush.bf16.msra.mxu0 %v4075
    %4148 = vmatpush.bf16.msra.mxu0 %v4071
    %4149 = vmatpush.bf16.msra.mxu0 %v4067
    %4150 = vmatpush.bf16.msra.mxu0 %v4063
    %4151 = vmatpush.bf16.msra.mxu0 %v4059
    %4152 = vmatpush.bf16.msra.mxu0 %v4055
    %4153 = vmatpush.bf16.msra.mxu0 %v4051
    %4154 = vmatpush.bf16.msra.mxu0 %v4047
    %4155 = vmatmul.bf16.gmra.mxu0 %v3655
    %v4156 = vpop.f32.mrf.mxu0
    %v4157 = vadd.f32 %v3945, %v4156
    %v4158 = vpop.f32.mrf.mxu0
    %4159 = vdwg.mxu0
    %s4160 = scalar_lea.vmem [#allocation13], 512
    %v4161 = vld [vmem:[%s4160] sm:$0xff]
    %v4162 = vld [vmem:[%s4160 + $0x8] sm:$0xff]
    %v4163 = vld [vmem:[%s4160 + $0x10] sm:$0xff]
    %v4164 = vld [vmem:[%s4160 + $0x18] sm:$0xff]
    %v4165 = vld [vmem:[%s4160 + $0x20] sm:$0xff]
    %v4166 = vld [vmem:[%s4160 + $0x28] sm:$0xff]
    %v4167 = vld [vmem:[%s4160 + $0x30] sm:$0xff]
    %v4168 = vld [vmem:[%s4160 + $0x38] sm:$0xff]
    %v4169 = vld [vmem:[%s4160 + $0x40] sm:$0xff]
    %v4170 = vld [vmem:[%s4160 + $0x48] sm:$0xff]
    %v4171 = vld [vmem:[%s4160 + $0x50] sm:$0xff]
    %v4172 = vld [vmem:[%s4160 + $0x58] sm:$0xff]
    %v4173 = vld [vmem:[%s4160 + $0x60] sm:$0xff]
    %v4174 = vld [vmem:[%s4160 + $0x68] sm:$0xff]
    %v4175 = vld [vmem:[%s4160 + $0x70] sm:$0xff]
    %v4176 = vld [vmem:[%s4160 + $0x78] sm:$0xff]
    %v4177 = vld [vmem:[%s4160 + $0x80] sm:$0xff]
    %v4178 = vld [vmem:[%s4160 + $0x88] sm:$0xff]
    %v4179 = vld [vmem:[%s4160 + $0x90] sm:$0xff]
    %v4180 = vld [vmem:[%s4160 + $0x98] sm:$0xff]
    %v4181 = vld [vmem:[%s4160 + $0xa0] sm:$0xff]
    %v4182 = vld [vmem:[%s4160 + $0xa8] sm:$0xff]
    %v4183 = vld [vmem:[%s4160 + $0xb0] sm:$0xff]
    %v4184 = vld [vmem:[%s4160 + $0xb8] sm:$0xff]
    %v4185 = vld [vmem:[%s4160 + $0xc0] sm:$0xff]
    %v4186 = vld [vmem:[%s4160 + $0xc8] sm:$0xff]
    %v4187 = vld [vmem:[%s4160 + $0xd0] sm:$0xff]
    %v4188 = vld [vmem:[%s4160 + $0xd8] sm:$0xff]
    %v4189 = vld [vmem:[%s4160 + $0xe0] sm:$0xff]
    %v4190 = vld [vmem:[%s4160 + $0xe8] sm:$0xff]
    %v4191 = vld [vmem:[%s4160 + $0xf0] sm:$0xff]
    %v4192 = vld [vmem:[%s4160 + $0xf8] sm:$0xff]
    %v4225 = vunpack.c.l.b16 %v4161
    %v4226 = vunpack.c.h.b16 %v4161
    %v4227 = vunpack.c.l.b16 %v4162
    %v4228 = vunpack.c.h.b16 %v4162
    %v4229 = vunpack.c.l.b16 %v4163
    %v4230 = vunpack.c.h.b16 %v4163
    %v4231 = vunpack.c.l.b16 %v4164
    %v4232 = vunpack.c.h.b16 %v4164
    %v4233 = vunpack.c.l.b16 %v4165
    %v4234 = vunpack.c.h.b16 %v4165
    %v4235 = vunpack.c.l.b16 %v4166
    %v4236 = vunpack.c.h.b16 %v4166
    %v4237 = vunpack.c.l.b16 %v4167
    %v4238 = vunpack.c.h.b16 %v4167
    %v4239 = vunpack.c.l.b16 %v4168
    %v4240 = vunpack.c.h.b16 %v4168
    %v4241 = vunpack.c.l.b16 %v4169
    %v4242 = vunpack.c.h.b16 %v4169
    %v4243 = vunpack.c.l.b16 %v4170
    %v4244 = vunpack.c.h.b16 %v4170
    %v4245 = vunpack.c.l.b16 %v4171
    %v4246 = vunpack.c.h.b16 %v4171
    %v4247 = vunpack.c.l.b16 %v4172
    %v4248 = vunpack.c.h.b16 %v4172
    %v4249 = vunpack.c.l.b16 %v4173
    %v4250 = vunpack.c.h.b16 %v4173
    %v4251 = vunpack.c.l.b16 %v4174
    %v4252 = vunpack.c.h.b16 %v4174
    %v4253 = vunpack.c.l.b16 %v4175
    %v4254 = vunpack.c.h.b16 %v4175
    %v4255 = vunpack.c.l.b16 %v4176
    %v4256 = vunpack.c.h.b16 %v4176
    %v4257 = vunpack.c.l.b16 %v4177
    %v4258 = vunpack.c.h.b16 %v4177
    %v4259 = vunpack.c.l.b16 %v4178
    %v4260 = vunpack.c.h.b16 %v4178
    %v4261 = vunpack.c.l.b16 %v4179
    %v4262 = vunpack.c.h.b16 %v4179
    %v4263 = vunpack.c.l.b16 %v4180
    %v4264 = vunpack.c.h.b16 %v4180
    %v4265 = vunpack.c.l.b16 %v4181
    %v4266 = vunpack.c.h.b16 %v4181
    %v4267 = vunpack.c.l.b16 %v4182
    %v4268 = vunpack.c.h.b16 %v4182
    %v4269 = vunpack.c.l.b16 %v4183
    %v4270 = vunpack.c.h.b16 %v4183
    %v4271 = vunpack.c.l.b16 %v4184
    %v4272 = vunpack.c.h.b16 %v4184
    %v4273 = vunpack.c.l.b16 %v4185
    %v4274 = vunpack.c.h.b16 %v4185
    %v4275 = vunpack.c.l.b16 %v4186
    %v4276 = vunpack.c.h.b16 %v4186
    %v4277 = vunpack.c.l.b16 %v4187
    %v4278 = vunpack.c.h.b16 %v4187
    %v4279 = vunpack.c.l.b16 %v4188
    %v4280 = vunpack.c.h.b16 %v4188
    %v4281 = vunpack.c.l.b16 %v4189
    %v4282 = vunpack.c.h.b16 %v4189
    %v4283 = vunpack.c.l.b16 %v4190
    %v4284 = vunpack.c.h.b16 %v4190
    %v4285 = vunpack.c.l.b16 %v4191
    %v4286 = vunpack.c.h.b16 %v4191
    %v4287 = vunpack.c.l.b16 %v4192
    %v4288 = vunpack.c.h.b16 %v4192
    %v4289 = vpack.c.b16 %v4229, %v4225
    %v4290 = vpack.c.b16 %v4230, %v4226
    %v4291 = vpack.c.b16 %v4231, %v4227
    %v4292 = vpack.c.b16 %v4232, %v4228
    %v4293 = vpack.c.b16 %v4237, %v4233
    %v4294 = vpack.c.b16 %v4238, %v4234
    %v4295 = vpack.c.b16 %v4239, %v4235
    %v4296 = vpack.c.b16 %v4240, %v4236
    %v4297 = vpack.c.b16 %v4245, %v4241
    %v4298 = vpack.c.b16 %v4246, %v4242
    %v4299 = vpack.c.b16 %v4247, %v4243
    %v4300 = vpack.c.b16 %v4248, %v4244
    %v4301 = vpack.c.b16 %v4253, %v4249
    %v4302 = vpack.c.b16 %v4254, %v4250
    %v4303 = vpack.c.b16 %v4255, %v4251
    %v4304 = vpack.c.b16 %v4256, %v4252
    %v4305 = vpack.c.b16 %v4261, %v4257
    %v4306 = vpack.c.b16 %v4262, %v4258
    %v4307 = vpack.c.b16 %v4263, %v4259
    %v4308 = vpack.c.b16 %v4264, %v4260
    %v4309 = vpack.c.b16 %v4269, %v4265
    %v4310 = vpack.c.b16 %v4270, %v4266
    %v4311 = vpack.c.b16 %v4271, %v4267
    %v4312 = vpack.c.b16 %v4272, %v4268
    %v4313 = vpack.c.b16 %v4277, %v4273
    %v4314 = vpack.c.b16 %v4278, %v4274
    %v4315 = vpack.c.b16 %v4279, %v4275
    %v4316 = vpack.c.b16 %v4280, %v4276
    %v4317 = vpack.c.b16 %v4285, %v4281
    %v4318 = vpack.c.b16 %v4286, %v4282
    %v4319 = vpack.c.b16 %v4287, %v4283
    %v4320 = vpack.c.b16 %v4288, %v4284
    %4353 = vmatpush.bf16.msra.mxu0 %v4317
    %4354 = vmatpush.bf16.msra.mxu0 %v4313
    %4355 = vmatpush.bf16.msra.mxu0 %v4309
    %4356 = vmatpush.bf16.msra.mxu0 %v4305
    %4357 = vmatpush.bf16.msra.mxu0 %v4301
    %4358 = vmatpush.bf16.msra.mxu0 %v4297
    %4359 = vmatpush.bf16.msra.mxu0 %v4293
    %4360 = vmatpush.bf16.msra.mxu0 %v4289
    %4361 = vmatmul.bf16.gmra.mxu0 %v3657
    %v4362 = vpop.f32.mrf.mxu0
    %v4363 = vadd.f32 0.0, %v4362
    %v4364 = vpop.f32.mrf.mxu0
    %4365 = vdwg.mxu0
    %4366 = vmatpush.bf16.msra.mxu0 %v4318
    %4367 = vmatpush.bf16.msra.mxu0 %v4314
    %4368 = vmatpush.bf16.msra.mxu0 %v4310
    %4369 = vmatpush.bf16.msra.mxu0 %v4306
    %4370 = vmatpush.bf16.msra.mxu0 %v4302
    %4371 = vmatpush.bf16.msra.mxu0 %v4298
    %4372 = vmatpush.bf16.msra.mxu0 %v4294
    %4373 = vmatpush.bf16.msra.mxu0 %v4290
    %4374 = vmatmul.bf16.gmra.mxu0 %v3657
    %v4375 = vpop.f32.mrf.mxu0
    %v4376 = vadd.f32 0.0, %v4375
    %v4377 = vpop.f32.mrf.mxu0
    %4378 = vdwg.mxu0
    %4379 = vmatpush.bf16.msra.mxu0 %v4319
    %4380 = vmatpush.bf16.msra.mxu0 %v4315
    %4381 = vmatpush.bf16.msra.mxu0 %v4311
    %4382 = vmatpush.bf16.msra.mxu0 %v4307
    %4383 = vmatpush.bf16.msra.mxu0 %v4303
    %4384 = vmatpush.bf16.msra.mxu0 %v4299
    %4385 = vmatpush.bf16.msra.mxu0 %v4295
    %4386 = vmatpush.bf16.msra.mxu0 %v4291
    %4387 = vmatmul.bf16.gmra.mxu0 %v3657
    %v4388 = vpop.f32.mrf.mxu0
    %v4389 = vadd.f32 0.0, %v4388
    %v4390 = vpop.f32.mrf.mxu0
    %4391 = vdwg.mxu0
    %4392 = vmatpush.bf16.msra.mxu0 %v4320
    %4393 = vmatpush.bf16.msra.mxu0 %v4316
    %4394 = vmatpush.bf16.msra.mxu0 %v4312
    %4395 = vmatpush.bf16.msra.mxu0 %v4308
    %4396 = vmatpush.bf16.msra.mxu0 %v4304
    %4397 = vmatpush.bf16.msra.mxu0 %v4300
    %4398 = vmatpush.bf16.msra.mxu0 %v4296
    %4399 = vmatpush.bf16.msra.mxu0 %v4292
    %4400 = vmatmul.bf16.gmra.mxu0 %v3657
    %v4401 = vpop.f32.mrf.mxu0
    %v4402 = vadd.f32 0.0, %v4401
    %v4403 = vpop.f32.mrf.mxu0
    %4404 = vdwg.mxu0
    %v4405 = vadd.f32 %v4118, %v4363
    %v4406 = vadd.f32 %v4131, %v4376
    %v4407 = vadd.f32 %v4144, %v4389
    %v4408 = vadd.f32 %v4157, %v4402
    %s4409 = scalar_lea.vmem [#allocation13], 768
    %v4410 = vld [vmem:[%s4409] sm:$0xff]
    %v4411 = vld [vmem:[%s4409 + $0x8] sm:$0xff]
    %v4412 = vld [vmem:[%s4409 + $0x10] sm:$0xff]
    %v4413 = vld [vmem:[%s4409 + $0x18] sm:$0xff]
    %v4414 = vld [vmem:[%s4409 + $0x20] sm:$0xff]
    %v4415 = vld [vmem:[%s4409 + $0x28] sm:$0xff]
    %v4416 = vld [vmem:[%s4409 + $0x30] sm:$0xff]
    %v4417 = vld [vmem:[%s4409 + $0x38] sm:$0xff]
    %v4418 = vld [vmem:[%s4409 + $0x40] sm:$0xff]
    %v4419 = vld [vmem:[%s4409 + $0x48] sm:$0xff]
    %v4420 = vld [vmem:[%s4409 + $0x50] sm:$0xff]
    %v4421 = vld [vmem:[%s4409 + $0x58] sm:$0xff]
    %v4422 = vld [vmem:[%s4409 + $0x60] sm:$0xff]
    %v4423 = vld [vmem:[%s4409 + $0x68] sm:$0xff]
    %v4424 = vld [vmem:[%s4409 + $0x70] sm:$0xff]
    %v4425 = vld [vmem:[%s4409 + $0x78] sm:$0xff]
    %v4426 = vld [vmem:[%s4409 + $0x80] sm:$0xff]
    %v4427 = vld [vmem:[%s4409 + $0x88] sm:$0xff]
    %v4428 = vld [vmem:[%s4409 + $0x90] sm:$0xff]
    %v4429 = vld [vmem:[%s4409 + $0x98] sm:$0xff]
    %v4430 = vld [vmem:[%s4409 + $0xa0] sm:$0xff]
    %v4431 = vld [vmem:[%s4409 + $0xa8] sm:$0xff]
    %v4432 = vld [vmem:[%s4409 + $0xb0] sm:$0xff]
    %v4433 = vld [vmem:[%s4409 + $0xb8] sm:$0xff]
    %v4434 = vld [vmem:[%s4409 + $0xc0] sm:$0xff]
    %v4435 = vld [vmem:[%s4409 + $0xc8] sm:$0xff]
    %v4436 = vld [vmem:[%s4409 + $0xd0] sm:$0xff]
    %v4437 = vld [vmem:[%s4409 + $0xd8] sm:$0xff]
    %v4438 = vld [vmem:[%s4409 + $0xe0] sm:$0xff]
    %v4439 = vld [vmem:[%s4409 + $0xe8] sm:$0xff]
    %v4440 = vld [vmem:[%s4409 + $0xf0] sm:$0xff]
    %v4441 = vld [vmem:[%s4409 + $0xf8] sm:$0xff]
    %v4474 = vunpack.c.l.b16 %v4410
    %v4475 = vunpack.c.h.b16 %v4410
    %v4476 = vunpack.c.l.b16 %v4411
    %v4477 = vunpack.c.h.b16 %v4411
    %v4478 = vunpack.c.l.b16 %v4412
    %v4479 = vunpack.c.h.b16 %v4412
    %v4480 = vunpack.c.l.b16 %v4413
    %v4481 = vunpack.c.h.b16 %v4413
    %v4482 = vunpack.c.l.b16 %v4414
    %v4483 = vunpack.c.h.b16 %v4414
    %v4484 = vunpack.c.l.b16 %v4415
    %v4485 = vunpack.c.h.b16 %v4415
    %v4486 = vunpack.c.l.b16 %v4416
    %v4487 = vunpack.c.h.b16 %v4416
    %v4488 = vunpack.c.l.b16 %v4417
    %v4489 = vunpack.c.h.b16 %v4417
    %v4490 = vunpack.c.l.b16 %v4418
    %v4491 = vunpack.c.h.b16 %v4418
    %v4492 = vunpack.c.l.b16 %v4419
    %v4493 = vunpack.c.h.b16 %v4419
    %v4494 = vunpack.c.l.b16 %v4420
    %v4495 = vunpack.c.h.b16 %v4420
    %v4496 = vunpack.c.l.b16 %v4421
    %v4497 = vunpack.c.h.b16 %v4421
    %v4498 = vunpack.c.l.b16 %v4422
    %v4499 = vunpack.c.h.b16 %v4422
    %v4500 = vunpack.c.l.b16 %v4423
    %v4501 = vunpack.c.h.b16 %v4423
    %v4502 = vunpack.c.l.b16 %v4424
    %v4503 = vunpack.c.h.b16 %v4424
    %v4504 = vunpack.c.l.b16 %v4425
    %v4505 = vunpack.c.h.b16 %v4425
    %v4506 = vunpack.c.l.b16 %v4426
    %v4507 = vunpack.c.h.b16 %v4426
    %v4508 = vunpack.c.l.b16 %v4427
    %v4509 = vunpack.c.h.b16 %v4427
    %v4510 = vunpack.c.l.b16 %v4428
    %v4511 = vunpack.c.h.b16 %v4428
    %v4512 = vunpack.c.l.b16 %v4429
    %v4513 = vunpack.c.h.b16 %v4429
    %v4514 = vunpack.c.l.b16 %v4430
    %v4515 = vunpack.c.h.b16 %v4430
    %v4516 = vunpack.c.l.b16 %v4431
    %v4517 = vunpack.c.h.b16 %v4431
    %v4518 = vunpack.c.l.b16 %v4432
    %v4519 = vunpack.c.h.b16 %v4432
    %v4520 = vunpack.c.l.b16 %v4433
    %v4521 = vunpack.c.h.b16 %v4433
    %v4522 = vunpack.c.l.b16 %v4434
    %v4523 = vunpack.c.h.b16 %v4434
    %v4524 = vunpack.c.l.b16 %v4435
    %v4525 = vunpack.c.h.b16 %v4435
    %v4526 = vunpack.c.l.b16 %v4436
    %v4527 = vunpack.c.h.b16 %v4436
    %v4528 = vunpack.c.l.b16 %v4437
    %v4529 = vunpack.c.h.b16 %v4437
    %v4530 = vunpack.c.l.b16 %v4438
    %v4531 = vunpack.c.h.b16 %v4438
    %v4532 = vunpack.c.l.b16 %v4439
    %v4533 = vunpack.c.h.b16 %v4439
    %v4534 = vunpack.c.l.b16 %v4440
    %v4535 = vunpack.c.h.b16 %v4440
    %v4536 = vunpack.c.l.b16 %v4441
    %v4537 = vunpack.c.h.b16 %v4441
    %v4538 = vpack.c.b16 %v4478, %v4474
    %v4539 = vpack.c.b16 %v4479, %v4475
    %v4540 = vpack.c.b16 %v4480, %v4476
    %v4541 = vpack.c.b16 %v4481, %v4477
    %v4542 = vpack.c.b16 %v4486, %v4482
    %v4543 = vpack.c.b16 %v4487, %v4483
    %v4544 = vpack.c.b16 %v4488, %v4484
    %v4545 = vpack.c.b16 %v4489, %v4485
    %v4546 = vpack.c.b16 %v4494, %v4490
    %v4547 = vpack.c.b16 %v4495, %v4491
    %v4548 = vpack.c.b16 %v4496, %v4492
    %v4549 = vpack.c.b16 %v4497, %v4493
    %v4550 = vpack.c.b16 %v4502, %v4498
    %v4551 = vpack.c.b16 %v4503, %v4499
    %v4552 = vpack.c.b16 %v4504, %v4500
    %v4553 = vpack.c.b16 %v4505, %v4501
    %v4554 = vpack.c.b16 %v4510, %v4506
    %v4555 = vpack.c.b16 %v4511, %v4507
    %v4556 = vpack.c.b16 %v4512, %v4508
    %v4557 = vpack.c.b16 %v4513, %v4509
    %v4558 = vpack.c.b16 %v4518, %v4514
    %v4559 = vpack.c.b16 %v4519, %v4515
    %v4560 = vpack.c.b16 %v4520, %v4516
    %v4561 = vpack.c.b16 %v4521, %v4517
    %v4562 = vpack.c.b16 %v4526, %v4522
    %v4563 = vpack.c.b16 %v4527, %v4523
    %v4564 = vpack.c.b16 %v4528, %v4524
    %v4565 = vpack.c.b16 %v4529, %v4525
    %v4566 = vpack.c.b16 %v4534, %v4530
    %v4567 = vpack.c.b16 %v4535, %v4531
    %v4568 = vpack.c.b16 %v4536, %v4532
    %v4569 = vpack.c.b16 %v4537, %v4533
    %4602 = vmatpush.bf16.msra.mxu0 %v4566
    %4603 = vmatpush.bf16.msra.mxu0 %v4562
    %4604 = vmatpush.bf16.msra.mxu0 %v4558
    %4605 = vmatpush.bf16.msra.mxu0 %v4554
    %4606 = vmatpush.bf16.msra.mxu0 %v4550
    %4607 = vmatpush.bf16.msra.mxu0 %v4546
    %4608 = vmatpush.bf16.msra.mxu0 %v4542
    %4609 = vmatpush.bf16.msra.mxu0 %v4538
    %4610 = vmatmul.bf16.gmra.mxu0 %v3658
    %v4611 = vpop.f32.mrf.mxu0
    %v4612 = vadd.f32 0.0, %v4611
    %v4613 = vpop.f32.mrf.mxu0
    %4614 = vdwg.mxu0
    %4615 = vmatpush.bf16.msra.mxu0 %v4567
    %4616 = vmatpush.bf16.msra.mxu0 %v4563
    %4617 = vmatpush.bf16.msra.mxu0 %v4559
    %4618 = vmatpush.bf16.msra.mxu0 %v4555
    %4619 = vmatpush.bf16.msra.mxu0 %v4551
    %4620 = vmatpush.bf16.msra.mxu0 %v4547
    %4621 = vmatpush.bf16.msra.mxu0 %v4543
    %4622 = vmatpush.bf16.msra.mxu0 %v4539
    %4623 = vmatmul.bf16.gmra.mxu0 %v3658
    %v4624 = vpop.f32.mrf.mxu0
    %v4625 = vadd.f32 0.0, %v4624
    %v4626 = vpop.f32.mrf.mxu0
    %4627 = vdwg.mxu0
    %4628 = vmatpush.bf16.msra.mxu0 %v4568
    %4629 = vmatpush.bf16.msra.mxu0 %v4564
    %4630 = vmatpush.bf16.msra.mxu0 %v4560
    %4631 = vmatpush.bf16.msra.mxu0 %v4556
    %4632 = vmatpush.bf16.msra.mxu0 %v4552
    %4633 = vmatpush.bf16.msra.mxu0 %v4548
    %4634 = vmatpush.bf16.msra.mxu0 %v4544
    %4635 = vmatpush.bf16.msra.mxu0 %v4540
    %4636 = vmatmul.bf16.gmra.mxu0 %v3658
    %v4637 = vpop.f32.mrf.mxu0
    %v4638 = vadd.f32 0.0, %v4637
    %v4639 = vpop.f32.mrf.mxu0
    %4640 = vdwg.mxu0
    %4641 = vmatpush.bf16.msra.mxu0 %v4569
    %4642 = vmatpush.bf16.msra.mxu0 %v4565
    %4643 = vmatpush.bf16.msra.mxu0 %v4561
    %4644 = vmatpush.bf16.msra.mxu0 %v4557
    %4645 = vmatpush.bf16.msra.mxu0 %v4553
    %4646 = vmatpush.bf16.msra.mxu0 %v4549
    %4647 = vmatpush.bf16.msra.mxu0 %v4545
    %4648 = vmatpush.bf16.msra.mxu0 %v4541
    %4649 = vmatmul.bf16.gmra.mxu0 %v3658
    %v4650 = vpop.f32.mrf.mxu0
    %v4651 = vadd.f32 0.0, %v4650
    %v4652 = vpop.f32.mrf.mxu0
    %4653 = vdwg.mxu0
    %v4654 = vadd.f32 %v4405, %v4612
    %v4655 = vadd.f32 %v4406, %v4625
    %v4656 = vadd.f32 %v4407, %v4638
    %v4657 = vadd.f32 %v4408, %v4651
    %s4658 = scalar_lea.vmem [#allocation13], 1024
    %v4659 = vld [vmem:[%s4658] sm:$0xff]
    %v4660 = vld [vmem:[%s4658 + $0x8] sm:$0xff]
    %v4661 = vld [vmem:[%s4658 + $0x10] sm:$0xff]
    %v4662 = vld [vmem:[%s4658 + $0x18] sm:$0xff]
    %v4663 = vld [vmem:[%s4658 + $0x20] sm:$0xff]
    %v4664 = vld [vmem:[%s4658 + $0x28] sm:$0xff]
    %v4665 = vld [vmem:[%s4658 + $0x30] sm:$0xff]
    %v4666 = vld [vmem:[%s4658 + $0x38] sm:$0xff]
    %v4667 = vld [vmem:[%s4658 + $0x40] sm:$0xff]
    %v4668 = vld [vmem:[%s4658 + $0x48] sm:$0xff]
    %v4669 = vld [vmem:[%s4658 + $0x50] sm:$0xff]
    %v4670 = vld [vmem:[%s4658 + $0x58] sm:$0xff]
    %v4671 = vld [vmem:[%s4658 + $0x60] sm:$0xff]
    %v4672 = vld [vmem:[%s4658 + $0x68] sm:$0xff]
    %v4673 = vld [vmem:[%s4658 + $0x70] sm:$0xff]
    %v4674 = vld [vmem:[%s4658 + $0x78] sm:$0xff]
    %v4675 = vld [vmem:[%s4658 + $0x80] sm:$0xff]
    %v4676 = vld [vmem:[%s4658 + $0x88] sm:$0xff]
    %v4677 = vld [vmem:[%s4658 + $0x90] sm:$0xff]
    %v4678 = vld [vmem:[%s4658 + $0x98] sm:$0xff]
    %v4679 = vld [vmem:[%s4658 + $0xa0] sm:$0xff]
    %v4680 = vld [vmem:[%s4658 + $0xa8] sm:$0xff]
    %v4681 = vld [vmem:[%s4658 + $0xb0] sm:$0xff]
    %v4682 = vld [vmem:[%s4658 + $0xb8] sm:$0xff]
    %v4683 = vld [vmem:[%s4658 + $0xc0] sm:$0xff]
    %v4684 = vld [vmem:[%s4658 + $0xc8] sm:$0xff]
    %v4685 = vld [vmem:[%s4658 + $0xd0] sm:$0xff]
    %v4686 = vld [vmem:[%s4658 + $0xd8] sm:$0xff]
    %v4687 = vld [vmem:[%s4658 + $0xe0] sm:$0xff]
    %v4688 = vld [vmem:[%s4658 + $0xe8] sm:$0xff]
    %v4689 = vld [vmem:[%s4658 + $0xf0] sm:$0xff]
    %v4690 = vld [vmem:[%s4658 + $0xf8] sm:$0xff]
    %v4723 = vunpack.c.l.b16 %v4659
    %v4724 = vunpack.c.h.b16 %v4659
    %v4725 = vunpack.c.l.b16 %v4660
    %v4726 = vunpack.c.h.b16 %v4660
    %v4727 = vunpack.c.l.b16 %v4661
    %v4728 = vunpack.c.h.b16 %v4661
    %v4729 = vunpack.c.l.b16 %v4662
    %v4730 = vunpack.c.h.b16 %v4662
    %v4731 = vunpack.c.l.b16 %v4663
    %v4732 = vunpack.c.h.b16 %v4663
    %v4733 = vunpack.c.l.b16 %v4664
    %v4734 = vunpack.c.h.b16 %v4664
    %v4735 = vunpack.c.l.b16 %v4665
    %v4736 = vunpack.c.h.b16 %v4665
    %v4737 = vunpack.c.l.b16 %v4666
    %v4738 = vunpack.c.h.b16 %v4666
    %v4739 = vunpack.c.l.b16 %v4667
    %v4740 = vunpack.c.h.b16 %v4667
    %v4741 = vunpack.c.l.b16 %v4668
    %v4742 = vunpack.c.h.b16 %v4668
    %v4743 = vunpack.c.l.b16 %v4669
    %v4744 = vunpack.c.h.b16 %v4669
    %v4745 = vunpack.c.l.b16 %v4670
    %v4746 = vunpack.c.h.b16 %v4670
    %v4747 = vunpack.c.l.b16 %v4671
    %v4748 = vunpack.c.h.b16 %v4671
    %v4749 = vunpack.c.l.b16 %v4672
    %v4750 = vunpack.c.h.b16 %v4672
    %v4751 = vunpack.c.l.b16 %v4673
    %v4752 = vunpack.c.h.b16 %v4673
    %v4753 = vunpack.c.l.b16 %v4674
    %v4754 = vunpack.c.h.b16 %v4674
    %v4755 = vunpack.c.l.b16 %v4675
    %v4756 = vunpack.c.h.b16 %v4675
    %v4757 = vunpack.c.l.b16 %v4676
    %v4758 = vunpack.c.h.b16 %v4676
    %v4759 = vunpack.c.l.b16 %v4677
    %v4760 = vunpack.c.h.b16 %v4677
    %v4761 = vunpack.c.l.b16 %v4678
    %v4762 = vunpack.c.h.b16 %v4678
    %v4763 = vunpack.c.l.b16 %v4679
    %v4764 = vunpack.c.h.b16 %v4679
    %v4765 = vunpack.c.l.b16 %v4680
    %v4766 = vunpack.c.h.b16 %v4680
    %v4767 = vunpack.c.l.b16 %v4681
    %v4768 = vunpack.c.h.b16 %v4681
    %v4769 = vunpack.c.l.b16 %v4682
    %v4770 = vunpack.c.h.b16 %v4682
    %v4771 = vunpack.c.l.b16 %v4683
    %v4772 = vunpack.c.h.b16 %v4683
    %v4773 = vunpack.c.l.b16 %v4684
    %v4774 = vunpack.c.h.b16 %v4684
    %v4775 = vunpack.c.l.b16 %v4685
    %v4776 = vunpack.c.h.b16 %v4685
    %v4777 = vunpack.c.l.b16 %v4686
    %v4778 = vunpack.c.h.b16 %v4686
    %v4779 = vunpack.c.l.b16 %v4687
    %v4780 = vunpack.c.h.b16 %v4687
    %v4781 = vunpack.c.l.b16 %v4688
    %v4782 = vunpack.c.h.b16 %v4688
    %v4783 = vunpack.c.l.b16 %v4689
    %v4784 = vunpack.c.h.b16 %v4689
    %v4785 = vunpack.c.l.b16 %v4690
    %v4786 = vunpack.c.h.b16 %v4690
    %v4787 = vpack.c.b16 %v4727, %v4723
    %v4788 = vpack.c.b16 %v4728, %v4724
    %v4789 = vpack.c.b16 %v4729, %v4725
    %v4790 = vpack.c.b16 %v4730, %v4726
    %v4791 = vpack.c.b16 %v4735, %v4731
    %v4792 = vpack.c.b16 %v4736, %v4732
    %v4793 = vpack.c.b16 %v4737, %v4733
    %v4794 = vpack.c.b16 %v4738, %v4734
    %v4795 = vpack.c.b16 %v4743, %v4739
    %v4796 = vpack.c.b16 %v4744, %v4740
    %v4797 = vpack.c.b16 %v4745, %v4741
    %v4798 = vpack.c.b16 %v4746, %v4742
    %v4799 = vpack.c.b16 %v4751, %v4747
    %v4800 = vpack.c.b16 %v4752, %v4748
    %v4801 = vpack.c.b16 %v4753, %v4749
    %v4802 = vpack.c.b16 %v4754, %v4750
    %v4803 = vpack.c.b16 %v4759, %v4755
    %v4804 = vpack.c.b16 %v4760, %v4756
    %v4805 = vpack.c.b16 %v4761, %v4757
    %v4806 = vpack.c.b16 %v4762, %v4758
    %v4807 = vpack.c.b16 %v4767, %v4763
    %v4808 = vpack.c.b16 %v4768, %v4764
    %v4809 = vpack.c.b16 %v4769, %v4765
    %v4810 = vpack.c.b16 %v4770, %v4766
    %v4811 = vpack.c.b16 %v4775, %v4771
    %v4812 = vpack.c.b16 %v4776, %v4772
    %v4813 = vpack.c.b16 %v4777, %v4773
    %v4814 = vpack.c.b16 %v4778, %v4774
    %v4815 = vpack.c.b16 %v4783, %v4779
    %v4816 = vpack.c.b16 %v4784, %v4780
    %v4817 = vpack.c.b16 %v4785, %v4781
    %v4818 = vpack.c.b16 %v4786, %v4782
    %4851 = vmatpush.bf16.msra.mxu0 %v4815
    %4852 = vmatpush.bf16.msra.mxu0 %v4811
    %4853 = vmatpush.bf16.msra.mxu0 %v4807
    %4854 = vmatpush.bf16.msra.mxu0 %v4803
    %4855 = vmatpush.bf16.msra.mxu0 %v4799
    %4856 = vmatpush.bf16.msra.mxu0 %v4795
    %4857 = vmatpush.bf16.msra.mxu0 %v4791
    %4858 = vmatpush.bf16.msra.mxu0 %v4787
    %4859 = vmatmul.bf16.gmra.mxu0 %v3659
    %v4860 = vpop.f32.mrf.mxu0
    %v4861 = vadd.f32 0.0, %v4860
    %v4862 = vpop.f32.mrf.mxu0
    %4863 = vdwg.mxu0
    %4864 = vmatpush.bf16.msra.mxu0 %v4816
    %4865 = vmatpush.bf16.msra.mxu0 %v4812
    %4866 = vmatpush.bf16.msra.mxu0 %v4808
    %4867 = vmatpush.bf16.msra.mxu0 %v4804
    %4868 = vmatpush.bf16.msra.mxu0 %v4800
    %4869 = vmatpush.bf16.msra.mxu0 %v4796
    %4870 = vmatpush.bf16.msra.mxu0 %v4792
    %4871 = vmatpush.bf16.msra.mxu0 %v4788
    %4872 = vmatmul.bf16.gmra.mxu0 %v3659
    %v4873 = vpop.f32.mrf.mxu0
    %v4874 = vadd.f32 0.0, %v4873
    %v4875 = vpop.f32.mrf.mxu0
    %4876 = vdwg.mxu0
    %4877 = vmatpush.bf16.msra.mxu0 %v4817
    %4878 = vmatpush.bf16.msra.mxu0 %v4813
    %4879 = vmatpush.bf16.msra.mxu0 %v4809
    %4880 = vmatpush.bf16.msra.mxu0 %v4805
    %4881 = vmatpush.bf16.msra.mxu0 %v4801
    %4882 = vmatpush.bf16.msra.mxu0 %v4797
    %4883 = vmatpush.bf16.msra.mxu0 %v4793
    %4884 = vmatpush.bf16.msra.mxu0 %v4789
    %4885 = vmatmul.bf16.gmra.mxu0 %v3659
    %v4886 = vpop.f32.mrf.mxu0
    %v4887 = vadd.f32 0.0, %v4886
    %v4888 = vpop.f32.mrf.mxu0
    %4889 = vdwg.mxu0
    %4890 = vmatpush.bf16.msra.mxu0 %v4818
    %4891 = vmatpush.bf16.msra.mxu0 %v4814
    %4892 = vmatpush.bf16.msra.mxu0 %v4810
    %4893 = vmatpush.bf16.msra.mxu0 %v4806
    %4894 = vmatpush.bf16.msra.mxu0 %v4802
    %4895 = vmatpush.bf16.msra.mxu0 %v4798
    %4896 = vmatpush.bf16.msra.mxu0 %v4794
    %4897 = vmatpush.bf16.msra.mxu0 %v4790
    %4898 = vmatmul.bf16.gmra.mxu0 %v3659
    %v4899 = vpop.f32.mrf.mxu0
    %v4900 = vadd.f32 0.0, %v4899
    %v4901 = vpop.f32.mrf.mxu0
    %4902 = vdwg.mxu0
    %v4903 = vadd.f32 %v4654, %v4861
    %v4904 = vadd.f32 %v4655, %v4874
    %v4905 = vadd.f32 %v4656, %v4887
    %v4906 = vadd.f32 %v4657, %v4900
    %s4907 = scalar_lea.vmem [#allocation13], 1280
    %v4908 = vld [vmem:[%s4907] sm:$0xff]
    %v4909 = vld [vmem:[%s4907 + $0x8] sm:$0xff]
    %v4910 = vld [vmem:[%s4907 + $0x10] sm:$0xff]
    %v4911 = vld [vmem:[%s4907 + $0x18] sm:$0xff]
    %v4912 = vld [vmem:[%s4907 + $0x20] sm:$0xff]
    %v4913 = vld [vmem:[%s4907 + $0x28] sm:$0xff]
    %v4914 = vld [vmem:[%s4907 + $0x30] sm:$0xff]
    %v4915 = vld [vmem:[%s4907 + $0x38] sm:$0xff]
    %v4916 = vld [vmem:[%s4907 + $0x40] sm:$0xff]
    %v4917 = vld [vmem:[%s4907 + $0x48] sm:$0xff]
    %v4918 = vld [vmem:[%s4907 + $0x50] sm:$0xff]
    %v4919 = vld [vmem:[%s4907 + $0x58] sm:$0xff]
    %v4920 = vld [vmem:[%s4907 + $0x60] sm:$0xff]
    %v4921 = vld [vmem:[%s4907 + $0x68] sm:$0xff]
    %v4922 = vld [vmem:[%s4907 + $0x70] sm:$0xff]
    %v4923 = vld [vmem:[%s4907 + $0x78] sm:$0xff]
    %v4924 = vld [vmem:[%s4907 + $0x80] sm:$0xff]
    %v4925 = vld [vmem:[%s4907 + $0x88] sm:$0xff]
    %v4926 = vld [vmem:[%s4907 + $0x90] sm:$0xff]
    %v4927 = vld [vmem:[%s4907 + $0x98] sm:$0xff]
    %v4928 = vld [vmem:[%s4907 + $0xa0] sm:$0xff]
    %v4929 = vld [vmem:[%s4907 + $0xa8] sm:$0xff]
    %v4930 = vld [vmem:[%s4907 + $0xb0] sm:$0xff]
    %v4931 = vld [vmem:[%s4907 + $0xb8] sm:$0xff]
    %v4932 = vld [vmem:[%s4907 + $0xc0] sm:$0xff]
    %v4933 = vld [vmem:[%s4907 + $0xc8] sm:$0xff]
    %v4934 = vld [vmem:[%s4907 + $0xd0] sm:$0xff]
    %v4935 = vld [vmem:[%s4907 + $0xd8] sm:$0xff]
    %v4936 = vld [vmem:[%s4907 + $0xe0] sm:$0xff]
    %v4937 = vld [vmem:[%s4907 + $0xe8] sm:$0xff]
    %v4938 = vld [vmem:[%s4907 + $0xf0] sm:$0xff]
    %v4939 = vld [vmem:[%s4907 + $0xf8] sm:$0xff]
    %v4972 = vunpack.c.l.b16 %v4908
    %v4973 = vunpack.c.h.b16 %v4908
    %v4974 = vunpack.c.l.b16 %v4909
    %v4975 = vunpack.c.h.b16 %v4909
    %v4976 = vunpack.c.l.b16 %v4910
    %v4977 = vunpack.c.h.b16 %v4910
    %v4978 = vunpack.c.l.b16 %v4911
    %v4979 = vunpack.c.h.b16 %v4911
    %v4980 = vunpack.c.l.b16 %v4912
    %v4981 = vunpack.c.h.b16 %v4912
    %v4982 = vunpack.c.l.b16 %v4913
    %v4983 = vunpack.c.h.b16 %v4913
    %v4984 = vunpack.c.l.b16 %v4914
    %v4985 = vunpack.c.h.b16 %v4914
    %v4986 = vunpack.c.l.b16 %v4915
    %v4987 = vunpack.c.h.b16 %v4915
    %v4988 = vunpack.c.l.b16 %v4916
    %v4989 = vunpack.c.h.b16 %v4916
    %v4990 = vunpack.c.l.b16 %v4917
    %v4991 = vunpack.c.h.b16 %v4917
    %v4992 = vunpack.c.l.b16 %v4918
    %v4993 = vunpack.c.h.b16 %v4918
    %v4994 = vunpack.c.l.b16 %v4919
    %v4995 = vunpack.c.h.b16 %v4919
    %v4996 = vunpack.c.l.b16 %v4920
    %v4997 = vunpack.c.h.b16 %v4920
    %v4998 = vunpack.c.l.b16 %v4921
    %v4999 = vunpack.c.h.b16 %v4921
    %v5000 = vunpack.c.l.b16 %v4922
    %v5001 = vunpack.c.h.b16 %v4922
    %v5002 = vunpack.c.l.b16 %v4923
    %v5003 = vunpack.c.h.b16 %v4923
    %v5004 = vunpack.c.l.b16 %v4924
    %v5005 = vunpack.c.h.b16 %v4924
    %v5006 = vunpack.c.l.b16 %v4925
    %v5007 = vunpack.c.h.b16 %v4925
    %v5008 = vunpack.c.l.b16 %v4926
    %v5009 = vunpack.c.h.b16 %v4926
    %v5010 = vunpack.c.l.b16 %v4927
    %v5011 = vunpack.c.h.b16 %v4927
    %v5012 = vunpack.c.l.b16 %v4928
    %v5013 = vunpack.c.h.b16 %v4928
    %v5014 = vunpack.c.l.b16 %v4929
    %v5015 = vunpack.c.h.b16 %v4929
    %v5016 = vunpack.c.l.b16 %v4930
    %v5017 = vunpack.c.h.b16 %v4930
    %v5018 = vunpack.c.l.b16 %v4931
    %v5019 = vunpack.c.h.b16 %v4931
    %v5020 = vunpack.c.l.b16 %v4932
    %v5021 = vunpack.c.h.b16 %v4932
    %v5022 = vunpack.c.l.b16 %v4933
    %v5023 = vunpack.c.h.b16 %v4933
    %v5024 = vunpack.c.l.b16 %v4934
    %v5025 = vunpack.c.h.b16 %v4934
    %v5026 = vunpack.c.l.b16 %v4935
    %v5027 = vunpack.c.h.b16 %v4935
    %v5028 = vunpack.c.l.b16 %v4936
    %v5029 = vunpack.c.h.b16 %v4936
    %v5030 = vunpack.c.l.b16 %v4937
    %v5031 = vunpack.c.h.b16 %v4937
    %v5032 = vunpack.c.l.b16 %v4938
    %v5033 = vunpack.c.h.b16 %v4938
    %v5034 = vunpack.c.l.b16 %v4939
    %v5035 = vunpack.c.h.b16 %v4939
    %v5036 = vpack.c.b16 %v4976, %v4972
    %v5037 = vpack.c.b16 %v4977, %v4973
    %v5038 = vpack.c.b16 %v4978, %v4974
    %v5039 = vpack.c.b16 %v4979, %v4975
    %v5040 = vpack.c.b16 %v4984, %v4980
    %v5041 = vpack.c.b16 %v4985, %v4981
    %v5042 = vpack.c.b16 %v4986, %v4982
    %v5043 = vpack.c.b16 %v4987, %v4983
    %v5044 = vpack.c.b16 %v4992, %v4988
    %v5045 = vpack.c.b16 %v4993, %v4989
    %v5046 = vpack.c.b16 %v4994, %v4990
    %v5047 = vpack.c.b16 %v4995, %v4991
    %v5048 = vpack.c.b16 %v5000, %v4996
    %v5049 = vpack.c.b16 %v5001, %v4997
    %v5050 = vpack.c.b16 %v5002, %v4998
    %v5051 = vpack.c.b16 %v5003, %v4999
    %v5052 = vpack.c.b16 %v5008, %v5004
    %v5053 = vpack.c.b16 %v5009, %v5005
    %v5054 = vpack.c.b16 %v5010, %v5006
    %v5055 = vpack.c.b16 %v5011, %v5007
    %v5056 = vpack.c.b16 %v5016, %v5012
    %v5057 = vpack.c.b16 %v5017, %v5013
    %v5058 = vpack.c.b16 %v5018, %v5014
    %v5059 = vpack.c.b16 %v5019, %v5015
    %v5060 = vpack.c.b16 %v5024, %v5020
    %v5061 = vpack.c.b16 %v5025, %v5021
    %v5062 = vpack.c.b16 %v5026, %v5022
    %v5063 = vpack.c.b16 %v5027, %v5023
    %v5064 = vpack.c.b16 %v5032, %v5028
    %v5065 = vpack.c.b16 %v5033, %v5029
    %v5066 = vpack.c.b16 %v5034, %v5030
    %v5067 = vpack.c.b16 %v5035, %v5031
    %5100 = vmatpush.bf16.msra.mxu0 %v5064
    %5101 = vmatpush.bf16.msra.mxu0 %v5060
    %5102 = vmatpush.bf16.msra.mxu0 %v5056
    %5103 = vmatpush.bf16.msra.mxu0 %v5052
    %5104 = vmatpush.bf16.msra.mxu0 %v5048
    %5105 = vmatpush.bf16.msra.mxu0 %v5044
    %5106 = vmatpush.bf16.msra.mxu0 %v5040
    %5107 = vmatpush.bf16.msra.mxu0 %v5036
    %5108 = vmatmul.bf16.gmra.mxu0 %v3660
    %v5109 = vpop.f32.mrf.mxu0
    %v5110 = vadd.f32 0.0, %v5109
    %v5111 = vpop.f32.mrf.mxu0
    %5112 = vdwg.mxu0
    %5113 = vmatpush.bf16.msra.mxu0 %v5065
    %5114 = vmatpush.bf16.msra.mxu0 %v5061
    %5115 = vmatpush.bf16.msra.mxu0 %v5057
    %5116 = vmatpush.bf16.msra.mxu0 %v5053
    %5117 = vmatpush.bf16.msra.mxu0 %v5049
    %5118 = vmatpush.bf16.msra.mxu0 %v5045
    %5119 = vmatpush.bf16.msra.mxu0 %v5041
    %5120 = vmatpush.bf16.msra.mxu0 %v5037
    %5121 = vmatmul.bf16.gmra.mxu0 %v3660
    %v5122 = vpop.f32.mrf.mxu0
    %v5123 = vadd.f32 0.0, %v5122
    %v5124 = vpop.f32.mrf.mxu0
    %5125 = vdwg.mxu0
    %5126 = vmatpush.bf16.msra.mxu0 %v5066
    %5127 = vmatpush.bf16.msra.mxu0 %v5062
    %5128 = vmatpush.bf16.msra.mxu0 %v5058
    %5129 = vmatpush.bf16.msra.mxu0 %v5054
    %5130 = vmatpush.bf16.msra.mxu0 %v5050
    %5131 = vmatpush.bf16.msra.mxu0 %v5046
    %5132 = vmatpush.bf16.msra.mxu0 %v5042
    %5133 = vmatpush.bf16.msra.mxu0 %v5038
    %5134 = vmatmul.bf16.gmra.mxu0 %v3660
    %v5135 = vpop.f32.mrf.mxu0
    %v5136 = vadd.f32 0.0, %v5135
    %v5137 = vpop.f32.mrf.mxu0
    %5138 = vdwg.mxu0
    %5139 = vmatpush.bf16.msra.mxu0 %v5067
    %5140 = vmatpush.bf16.msra.mxu0 %v5063
    %5141 = vmatpush.bf16.msra.mxu0 %v5059
    %5142 = vmatpush.bf16.msra.mxu0 %v5055
    %5143 = vmatpush.bf16.msra.mxu0 %v5051
    %5144 = vmatpush.bf16.msra.mxu0 %v5047
    %5145 = vmatpush.bf16.msra.mxu0 %v5043
    %5146 = vmatpush.bf16.msra.mxu0 %v5039
    %5147 = vmatmul.bf16.gmra.mxu0 %v3660
    %v5148 = vpop.f32.mrf.mxu0
    %v5149 = vadd.f32 0.0, %v5148
    %v5150 = vpop.f32.mrf.mxu0
    %5151 = vdwg.mxu0
    %v5152 = vadd.f32 %v4903, %v5110
    %v5153 = vadd.f32 %v4904, %v5123
    %v5154 = vadd.f32 %v4905, %v5136
    %v5155 = vadd.f32 %v4906, %v5149
    %s5156 = scalar_lea.vmem [#allocation13], 1536
    %v5157 = vld [vmem:[%s5156] sm:$0xff]
    %v5158 = vld [vmem:[%s5156 + $0x8] sm:$0xff]
    %v5159 = vld [vmem:[%s5156 + $0x10] sm:$0xff]
    %v5160 = vld [vmem:[%s5156 + $0x18] sm:$0xff]
    %v5161 = vld [vmem:[%s5156 + $0x20] sm:$0xff]
    %v5162 = vld [vmem:[%s5156 + $0x28] sm:$0xff]
    %v5163 = vld [vmem:[%s5156 + $0x30] sm:$0xff]
    %v5164 = vld [vmem:[%s5156 + $0x38] sm:$0xff]
    %v5165 = vld [vmem:[%s5156 + $0x40] sm:$0xff]
    %v5166 = vld [vmem:[%s5156 + $0x48] sm:$0xff]
    %v5167 = vld [vmem:[%s5156 + $0x50] sm:$0xff]
    %v5168 = vld [vmem:[%s5156 + $0x58] sm:$0xff]
    %v5169 = vld [vmem:[%s5156 + $0x60] sm:$0xff]
    %v5170 = vld [vmem:[%s5156 + $0x68] sm:$0xff]
    %v5171 = vld [vmem:[%s5156 + $0x70] sm:$0xff]
    %v5172 = vld [vmem:[%s5156 + $0x78] sm:$0xff]
    %v5173 = vld [vmem:[%s5156 + $0x80] sm:$0xff]
    %v5174 = vld [vmem:[%s5156 + $0x88] sm:$0xff]
    %v5175 = vld [vmem:[%s5156 + $0x90] sm:$0xff]
    %v5176 = vld [vmem:[%s5156 + $0x98] sm:$0xff]
    %v5177 = vld [vmem:[%s5156 + $0xa0] sm:$0xff]
    %v5178 = vld [vmem:[%s5156 + $0xa8] sm:$0xff]
    %v5179 = vld [vmem:[%s5156 + $0xb0] sm:$0xff]
    %v5180 = vld [vmem:[%s5156 + $0xb8] sm:$0xff]
    %v5181 = vld [vmem:[%s5156 + $0xc0] sm:$0xff]
    %v5182 = vld [vmem:[%s5156 + $0xc8] sm:$0xff]
    %v5183 = vld [vmem:[%s5156 + $0xd0] sm:$0xff]
    %v5184 = vld [vmem:[%s5156 + $0xd8] sm:$0xff]
    %v5185 = vld [vmem:[%s5156 + $0xe0] sm:$0xff]
    %v5186 = vld [vmem:[%s5156 + $0xe8] sm:$0xff]
    %v5187 = vld [vmem:[%s5156 + $0xf0] sm:$0xff]
    %v5188 = vld [vmem:[%s5156 + $0xf8] sm:$0xff]
    %v5221 = vunpack.c.l.b16 %v5157
    %v5222 = vunpack.c.h.b16 %v5157
    %v5223 = vunpack.c.l.b16 %v5158
    %v5224 = vunpack.c.h.b16 %v5158
    %v5225 = vunpack.c.l.b16 %v5159
    %v5226 = vunpack.c.h.b16 %v5159
    %v5227 = vunpack.c.l.b16 %v5160
    %v5228 = vunpack.c.h.b16 %v5160
    %v5229 = vunpack.c.l.b16 %v5161
    %v5230 = vunpack.c.h.b16 %v5161
    %v5231 = vunpack.c.l.b16 %v5162
    %v5232 = vunpack.c.h.b16 %v5162
    %v5233 = vunpack.c.l.b16 %v5163
    %v5234 = vunpack.c.h.b16 %v5163
    %v5235 = vunpack.c.l.b16 %v5164
    %v5236 = vunpack.c.h.b16 %v5164
    %v5237 = vunpack.c.l.b16 %v5165
    %v5238 = vunpack.c.h.b16 %v5165
    %v5239 = vunpack.c.l.b16 %v5166
    %v5240 = vunpack.c.h.b16 %v5166
    %v5241 = vunpack.c.l.b16 %v5167
    %v5242 = vunpack.c.h.b16 %v5167
    %v5243 = vunpack.c.l.b16 %v5168
    %v5244 = vunpack.c.h.b16 %v5168
    %v5245 = vunpack.c.l.b16 %v5169
    %v5246 = vunpack.c.h.b16 %v5169
    %v5247 = vunpack.c.l.b16 %v5170
    %v5248 = vunpack.c.h.b16 %v5170
    %v5249 = vunpack.c.l.b16 %v5171
    %v5250 = vunpack.c.h.b16 %v5171
    %v5251 = vunpack.c.l.b16 %v5172
    %v5252 = vunpack.c.h.b16 %v5172
    %v5253 = vunpack.c.l.b16 %v5173
    %v5254 = vunpack.c.h.b16 %v5173
    %v5255 = vunpack.c.l.b16 %v5174
    %v5256 = vunpack.c.h.b16 %v5174
    %v5257 = vunpack.c.l.b16 %v5175
    %v5258 = vunpack.c.h.b16 %v5175
    %v5259 = vunpack.c.l.b16 %v5176
    %v5260 = vunpack.c.h.b16 %v5176
    %v5261 = vunpack.c.l.b16 %v5177
    %v5262 = vunpack.c.h.b16 %v5177
    %v5263 = vunpack.c.l.b16 %v5178
    %v5264 = vunpack.c.h.b16 %v5178
    %v5265 = vunpack.c.l.b16 %v5179
    %v5266 = vunpack.c.h.b16 %v5179
    %v5267 = vunpack.c.l.b16 %v5180
    %v5268 = vunpack.c.h.b16 %v5180
    %v5269 = vunpack.c.l.b16 %v5181
    %v5270 = vunpack.c.h.b16 %v5181
    %v5271 = vunpack.c.l.b16 %v5182
    %v5272 = vunpack.c.h.b16 %v5182
    %v5273 = vunpack.c.l.b16 %v5183
    %v5274 = vunpack.c.h.b16 %v5183
    %v5275 = vunpack.c.l.b16 %v5184
    %v5276 = vunpack.c.h.b16 %v5184
    %v5277 = vunpack.c.l.b16 %v5185
    %v5278 = vunpack.c.h.b16 %v5185
    %v5279 = vunpack.c.l.b16 %v5186
    %v5280 = vunpack.c.h.b16 %v5186
    %v5281 = vunpack.c.l.b16 %v5187
    %v5282 = vunpack.c.h.b16 %v5187
    %v5283 = vunpack.c.l.b16 %v5188
    %v5284 = vunpack.c.h.b16 %v5188
    %v5285 = vpack.c.b16 %v5225, %v5221
    %v5286 = vpack.c.b16 %v5226, %v5222
    %v5287 = vpack.c.b16 %v5227, %v5223
    %v5288 = vpack.c.b16 %v5228, %v5224
    %v5289 = vpack.c.b16 %v5233, %v5229
    %v5290 = vpack.c.b16 %v5234, %v5230
    %v5291 = vpack.c.b16 %v5235, %v5231
    %v5292 = vpack.c.b16 %v5236, %v5232
    %v5293 = vpack.c.b16 %v5241, %v5237
    %v5294 = vpack.c.b16 %v5242, %v5238
    %v5295 = vpack.c.b16 %v5243, %v5239
    %v5296 = vpack.c.b16 %v5244, %v5240
    %v5297 = vpack.c.b16 %v5249, %v5245
    %v5298 = vpack.c.b16 %v5250, %v5246
    %v5299 = vpack.c.b16 %v5251, %v5247
    %v5300 = vpack.c.b16 %v5252, %v5248
    %v5301 = vpack.c.b16 %v5257, %v5253
    %v5302 = vpack.c.b16 %v5258, %v5254
    %v5303 = vpack.c.b16 %v5259, %v5255
    %v5304 = vpack.c.b16 %v5260, %v5256
    %v5305 = vpack.c.b16 %v5265, %v5261
    %v5306 = vpack.c.b16 %v5266, %v5262
    %v5307 = vpack.c.b16 %v5267, %v5263
    %v5308 = vpack.c.b16 %v5268, %v5264
    %v5309 = vpack.c.b16 %v5273, %v5269
    %v5310 = vpack.c.b16 %v5274, %v5270
    %v5311 = vpack.c.b16 %v5275, %v5271
    %v5312 = vpack.c.b16 %v5276, %v5272
    %v5313 = vpack.c.b16 %v5281, %v5277
    %v5314 = vpack.c.b16 %v5282, %v5278
    %v5315 = vpack.c.b16 %v5283, %v5279
    %v5316 = vpack.c.b16 %v5284, %v5280
    %5349 = vmatpush.bf16.msra.mxu0 %v5313
    %5350 = vmatpush.bf16.msra.mxu0 %v5309
    %5351 = vmatpush.bf16.msra.mxu0 %v5305
    %5352 = vmatpush.bf16.msra.mxu0 %v5301
    %5353 = vmatpush.bf16.msra.mxu0 %v5297
    %5354 = vmatpush.bf16.msra.mxu0 %v5293
    %5355 = vmatpush.bf16.msra.mxu0 %v5289
    %5356 = vmatpush.bf16.msra.mxu0 %v5285
    %5357 = vmatmul.bf16.gmra.mxu0 %v3661
    %v5358 = vpop.f32.mrf.mxu0
    %v5359 = vadd.f32 0.0, %v5358
    %v5360 = vpop.f32.mrf.mxu0
    %5361 = vdwg.mxu0
    %5362 = vmatpush.bf16.msra.mxu0 %v5314
    %5363 = vmatpush.bf16.msra.mxu0 %v5310
    %5364 = vmatpush.bf16.msra.mxu0 %v5306
    %5365 = vmatpush.bf16.msra.mxu0 %v5302
    %5366 = vmatpush.bf16.msra.mxu0 %v5298
    %5367 = vmatpush.bf16.msra.mxu0 %v5294
    %5368 = vmatpush.bf16.msra.mxu0 %v5290
    %5369 = vmatpush.bf16.msra.mxu0 %v5286
    %5370 = vmatmul.bf16.gmra.mxu0 %v3661
    %v5371 = vpop.f32.mrf.mxu0
    %v5372 = vadd.f32 0.0, %v5371
    %v5373 = vpop.f32.mrf.mxu0
    %5374 = vdwg.mxu0
    %5375 = vmatpush.bf16.msra.mxu0 %v5315
    %5376 = vmatpush.bf16.msra.mxu0 %v5311
    %5377 = vmatpush.bf16.msra.mxu0 %v5307
    %5378 = vmatpush.bf16.msra.mxu0 %v5303
    %5379 = vmatpush.bf16.msra.mxu0 %v5299
    %5380 = vmatpush.bf16.msra.mxu0 %v5295
    %5381 = vmatpush.bf16.msra.mxu0 %v5291
    %5382 = vmatpush.bf16.msra.mxu0 %v5287
    %5383 = vmatmul.bf16.gmra.mxu0 %v3661
    %v5384 = vpop.f32.mrf.mxu0
    %v5385 = vadd.f32 0.0, %v5384
    %v5386 = vpop.f32.mrf.mxu0
    %5387 = vdwg.mxu0
    %5388 = vmatpush.bf16.msra.mxu0 %v5316
    %5389 = vmatpush.bf16.msra.mxu0 %v5312
    %5390 = vmatpush.bf16.msra.mxu0 %v5308
    %5391 = vmatpush.bf16.msra.mxu0 %v5304
    %5392 = vmatpush.bf16.msra.mxu0 %v5300
    %5393 = vmatpush.bf16.msra.mxu0 %v5296
    %5394 = vmatpush.bf16.msra.mxu0 %v5292
    %5395 = vmatpush.bf16.msra.mxu0 %v5288
    %5396 = vmatmul.bf16.gmra.mxu0 %v3661
    %v5397 = vpop.f32.mrf.mxu0
    %v5398 = vadd.f32 0.0, %v5397
    %v5399 = vpop.f32.mrf.mxu0
    %5400 = vdwg.mxu0
    %v5401 = vadd.f32 %v5152, %v5359
    %v5402 = vadd.f32 %v5153, %v5372
    %v5403 = vadd.f32 %v5154, %v5385
    %v5404 = vadd.f32 %v5155, %v5398
    %s5405 = scalar_lea.vmem [#allocation13], 1792
    %v5406 = vld [vmem:[%s5405] sm:$0xff]
    %v5407 = vld [vmem:[%s5405 + $0x8] sm:$0xff]
    %v5408 = vld [vmem:[%s5405 + $0x10] sm:$0xff]
    %v5409 = vld [vmem:[%s5405 + $0x18] sm:$0xff]
    %v5410 = vld [vmem:[%s5405 + $0x20] sm:$0xff]
    %v5411 = vld [vmem:[%s5405 + $0x28] sm:$0xff]
    %v5412 = vld [vmem:[%s5405 + $0x30] sm:$0xff]
    %v5413 = vld [vmem:[%s5405 + $0x38] sm:$0xff]
    %v5414 = vld [vmem:[%s5405 + $0x40] sm:$0xff]
    %v5415 = vld [vmem:[%s5405 + $0x48] sm:$0xff]
    %v5416 = vld [vmem:[%s5405 + $0x50] sm:$0xff]
    %v5417 = vld [vmem:[%s5405 + $0x58] sm:$0xff]
    %v5418 = vld [vmem:[%s5405 + $0x60] sm:$0xff]
    %v5419 = vld [vmem:[%s5405 + $0x68] sm:$0xff]
    %v5420 = vld [vmem:[%s5405 + $0x70] sm:$0xff]
    %v5421 = vld [vmem:[%s5405 + $0x78] sm:$0xff]
    %v5422 = vld [vmem:[%s5405 + $0x80] sm:$0xff]
    %v5423 = vld [vmem:[%s5405 + $0x88] sm:$0xff]
    %v5424 = vld [vmem:[%s5405 + $0x90] sm:$0xff]
    %v5425 = vld [vmem:[%s5405 + $0x98] sm:$0xff]
    %v5426 = vld [vmem:[%s5405 + $0xa0] sm:$0xff]
    %v5427 = vld [vmem:[%s5405 + $0xa8] sm:$0xff]
    %v5428 = vld [vmem:[%s5405 + $0xb0] sm:$0xff]
    %v5429 = vld [vmem:[%s5405 + $0xb8] sm:$0xff]
    %v5430 = vld [vmem:[%s5405 + $0xc0] sm:$0xff]
    %v5431 = vld [vmem:[%s5405 + $0xc8] sm:$0xff]
    %v5432 = vld [vmem:[%s5405 + $0xd0] sm:$0xff]
    %v5433 = vld [vmem:[%s5405 + $0xd8] sm:$0xff]
    %v5434 = vld [vmem:[%s5405 + $0xe0] sm:$0xff]
    %v5435 = vld [vmem:[%s5405 + $0xe8] sm:$0xff]
    %v5436 = vld [vmem:[%s5405 + $0xf0] sm:$0xff]
    %v5437 = vld [vmem:[%s5405 + $0xf8] sm:$0xff]
    %v5470 = vunpack.c.l.b16 %v5406
    %v5471 = vunpack.c.h.b16 %v5406
    %v5472 = vunpack.c.l.b16 %v5407
    %v5473 = vunpack.c.h.b16 %v5407
    %v5474 = vunpack.c.l.b16 %v5408
    %v5475 = vunpack.c.h.b16 %v5408
    %v5476 = vunpack.c.l.b16 %v5409
    %v5477 = vunpack.c.h.b16 %v5409
    %v5478 = vunpack.c.l.b16 %v5410
    %v5479 = vunpack.c.h.b16 %v5410
    %v5480 = vunpack.c.l.b16 %v5411
    %v5481 = vunpack.c.h.b16 %v5411
    %v5482 = vunpack.c.l.b16 %v5412
    %v5483 = vunpack.c.h.b16 %v5412
    %v5484 = vunpack.c.l.b16 %v5413
    %v5485 = vunpack.c.h.b16 %v5413
    %v5486 = vunpack.c.l.b16 %v5414
    %v5487 = vunpack.c.h.b16 %v5414
    %v5488 = vunpack.c.l.b16 %v5415
    %v5489 = vunpack.c.h.b16 %v5415
    %v5490 = vunpack.c.l.b16 %v5416
    %v5491 = vunpack.c.h.b16 %v5416
    %v5492 = vunpack.c.l.b16 %v5417
    %v5493 = vunpack.c.h.b16 %v5417
    %v5494 = vunpack.c.l.b16 %v5418
    %v5495 = vunpack.c.h.b16 %v5418
    %v5496 = vunpack.c.l.b16 %v5419
    %v5497 = vunpack.c.h.b16 %v5419
    %v5498 = vunpack.c.l.b16 %v5420
    %v5499 = vunpack.c.h.b16 %v5420
    %v5500 = vunpack.c.l.b16 %v5421
    %v5501 = vunpack.c.h.b16 %v5421
    %v5502 = vunpack.c.l.b16 %v5422
    %v5503 = vunpack.c.h.b16 %v5422
    %v5504 = vunpack.c.l.b16 %v5423
    %v5505 = vunpack.c.h.b16 %v5423
    %v5506 = vunpack.c.l.b16 %v5424
    %v5507 = vunpack.c.h.b16 %v5424
    %v5508 = vunpack.c.l.b16 %v5425
    %v5509 = vunpack.c.h.b16 %v5425
    %v5510 = vunpack.c.l.b16 %v5426
    %v5511 = vunpack.c.h.b16 %v5426
    %v5512 = vunpack.c.l.b16 %v5427
    %v5513 = vunpack.c.h.b16 %v5427
    %v5514 = vunpack.c.l.b16 %v5428
    %v5515 = vunpack.c.h.b16 %v5428
    %v5516 = vunpack.c.l.b16 %v5429
    %v5517 = vunpack.c.h.b16 %v5429
    %v5518 = vunpack.c.l.b16 %v5430
    %v5519 = vunpack.c.h.b16 %v5430
    %v5520 = vunpack.c.l.b16 %v5431
    %v5521 = vunpack.c.h.b16 %v5431
    %v5522 = vunpack.c.l.b16 %v5432
    %v5523 = vunpack.c.h.b16 %v5432
    %v5524 = vunpack.c.l.b16 %v5433
    %v5525 = vunpack.c.h.b16 %v5433
    %v5526 = vunpack.c.l.b16 %v5434
    %v5527 = vunpack.c.h.b16 %v5434
    %v5528 = vunpack.c.l.b16 %v5435
    %v5529 = vunpack.c.h.b16 %v5435
    %v5530 = vunpack.c.l.b16 %v5436
    %v5531 = vunpack.c.h.b16 %v5436
    %v5532 = vunpack.c.l.b16 %v5437
    %v5533 = vunpack.c.h.b16 %v5437
    %v5534 = vpack.c.b16 %v5474, %v5470
    %v5535 = vpack.c.b16 %v5475, %v5471
    %v5536 = vpack.c.b16 %v5476, %v5472
    %v5537 = vpack.c.b16 %v5477, %v5473
    %v5538 = vpack.c.b16 %v5482, %v5478
    %v5539 = vpack.c.b16 %v5483, %v5479
    %v5540 = vpack.c.b16 %v5484, %v5480
    %v5541 = vpack.c.b16 %v5485, %v5481
    %v5542 = vpack.c.b16 %v5490, %v5486
    %v5543 = vpack.c.b16 %v5491, %v5487
    %v5544 = vpack.c.b16 %v5492, %v5488
    %v5545 = vpack.c.b16 %v5493, %v5489
    %v5546 = vpack.c.b16 %v5498, %v5494
    %v5547 = vpack.c.b16 %v5499, %v5495
    %v5548 = vpack.c.b16 %v5500, %v5496
    %v5549 = vpack.c.b16 %v5501, %v5497
    %v5550 = vpack.c.b16 %v5506, %v5502
    %v5551 = vpack.c.b16 %v5507, %v5503
    %v5552 = vpack.c.b16 %v5508, %v5504
    %v5553 = vpack.c.b16 %v5509, %v5505
    %v5554 = vpack.c.b16 %v5514, %v5510
    %v5555 = vpack.c.b16 %v5515, %v5511
    %v5556 = vpack.c.b16 %v5516, %v5512
    %v5557 = vpack.c.b16 %v5517, %v5513
    %v5558 = vpack.c.b16 %v5522, %v5518
    %v5559 = vpack.c.b16 %v5523, %v5519
    %v5560 = vpack.c.b16 %v5524, %v5520
    %v5561 = vpack.c.b16 %v5525, %v5521
    %v5562 = vpack.c.b16 %v5530, %v5526
    %v5563 = vpack.c.b16 %v5531, %v5527
    %v5564 = vpack.c.b16 %v5532, %v5528
    %v5565 = vpack.c.b16 %v5533, %v5529
    %5598 = vmatpush.bf16.msra.mxu0 %v5562
    %5599 = vmatpush.bf16.msra.mxu0 %v5558
    %5600 = vmatpush.bf16.msra.mxu0 %v5554
    %5601 = vmatpush.bf16.msra.mxu0 %v5550
    %5602 = vmatpush.bf16.msra.mxu0 %v5546
    %5603 = vmatpush.bf16.msra.mxu0 %v5542
    %5604 = vmatpush.bf16.msra.mxu0 %v5538
    %5605 = vmatpush.bf16.msra.mxu0 %v5534
    %5606 = vmatmul.bf16.gmra.mxu0 %v3662
    %v5607 = vpop.f32.mrf.mxu0
    %v5608 = vadd.f32 0.0, %v5607
    %v5609 = vpop.f32.mrf.mxu0
    %5610 = vdwg.mxu0
    %5611 = vmatpush.bf16.msra.mxu0 %v5563
    %5612 = vmatpush.bf16.msra.mxu0 %v5559
    %5613 = vmatpush.bf16.msra.mxu0 %v5555
    %5614 = vmatpush.bf16.msra.mxu0 %v5551
    %5615 = vmatpush.bf16.msra.mxu0 %v5547
    %5616 = vmatpush.bf16.msra.mxu0 %v5543
    %5617 = vmatpush.bf16.msra.mxu0 %v5539
    %5618 = vmatpush.bf16.msra.mxu0 %v5535
    %5619 = vmatmul.bf16.gmra.mxu0 %v3662
    %v5620 = vpop.f32.mrf.mxu0
    %v5621 = vadd.f32 0.0, %v5620
    %v5622 = vpop.f32.mrf.mxu0
    %5623 = vdwg.mxu0
    %5624 = vmatpush.bf16.msra.mxu0 %v5564
    %5625 = vmatpush.bf16.msra.mxu0 %v5560
    %5626 = vmatpush.bf16.msra.mxu0 %v5556
    %5627 = vmatpush.bf16.msra.mxu0 %v5552
    %5628 = vmatpush.bf16.msra.mxu0 %v5548
    %5629 = vmatpush.bf16.msra.mxu0 %v5544
    %5630 = vmatpush.bf16.msra.mxu0 %v5540
    %5631 = vmatpush.bf16.msra.mxu0 %v5536
    %5632 = vmatmul.bf16.gmra.mxu0 %v3662
    %v5633 = vpop.f32.mrf.mxu0
    %v5634 = vadd.f32 0.0, %v5633
    %v5635 = vpop.f32.mrf.mxu0
    %5636 = vdwg.mxu0
    %5637 = vmatpush.bf16.msra.mxu0 %v5565
    %5638 = vmatpush.bf16.msra.mxu0 %v5561
    %5639 = vmatpush.bf16.msra.mxu0 %v5557
    %5640 = vmatpush.bf16.msra.mxu0 %v5553
    %5641 = vmatpush.bf16.msra.mxu0 %v5549
    %5642 = vmatpush.bf16.msra.mxu0 %v5545
    %5643 = vmatpush.bf16.msra.mxu0 %v5541
    %5644 = vmatpush.bf16.msra.mxu0 %v5537
    %5645 = vmatmul.bf16.gmra.mxu0 %v3662
    %v5646 = vpop.f32.mrf.mxu0
    %v5647 = vadd.f32 0.0, %v5646
    %v5648 = vpop.f32.mrf.mxu0
    %5649 = vdwg.mxu0
    %v5650 = vadd.f32 %v5401, %v5608
    %v5651 = vadd.f32 %v5402, %v5621
    %v5652 = vadd.f32 %v5403, %v5634
    %v5653 = vadd.f32 %v5404, %v5647
    %s5654 = scalar_lea.vmem [#allocation13], 2048
    %v5655 = vld [vmem:[%s5654] sm:$0xff]
    %v5656 = vld [vmem:[%s5654 + $0x8] sm:$0xff]
    %v5657 = vld [vmem:[%s5654 + $0x10] sm:$0xff]
    %v5658 = vld [vmem:[%s5654 + $0x18] sm:$0xff]
    %v5659 = vld [vmem:[%s5654 + $0x20] sm:$0xff]
    %v5660 = vld [vmem:[%s5654 + $0x28] sm:$0xff]
    %v5661 = vld [vmem:[%s5654 + $0x30] sm:$0xff]
    %v5662 = vld [vmem:[%s5654 + $0x38] sm:$0xff]
    %v5663 = vld [vmem:[%s5654 + $0x40] sm:$0xff]
    %v5664 = vld [vmem:[%s5654 + $0x48] sm:$0xff]
    %v5665 = vld [vmem:[%s5654 + $0x50] sm:$0xff]
    %v5666 = vld [vmem:[%s5654 + $0x58] sm:$0xff]
    %v5667 = vld [vmem:[%s5654 + $0x60] sm:$0xff]
    %v5668 = vld [vmem:[%s5654 + $0x68] sm:$0xff]
    %v5669 = vld [vmem:[%s5654 + $0x70] sm:$0xff]
    %v5670 = vld [vmem:[%s5654 + $0x78] sm:$0xff]
    %v5671 = vld [vmem:[%s5654 + $0x80] sm:$0xff]
    %v5672 = vld [vmem:[%s5654 + $0x88] sm:$0xff]
    %v5673 = vld [vmem:[%s5654 + $0x90] sm:$0xff]
    %v5674 = vld [vmem:[%s5654 + $0x98] sm:$0xff]
    %v5675 = vld [vmem:[%s5654 + $0xa0] sm:$0xff]
    %v5676 = vld [vmem:[%s5654 + $0xa8] sm:$0xff]
    %v5677 = vld [vmem:[%s5654 + $0xb0] sm:$0xff]
    %v5678 = vld [vmem:[%s5654 + $0xb8] sm:$0xff]
    %v5679 = vld [vmem:[%s5654 + $0xc0] sm:$0xff]
    %v5680 = vld [vmem:[%s5654 + $0xc8] sm:$0xff]
    %v5681 = vld [vmem:[%s5654 + $0xd0] sm:$0xff]
    %v5682 = vld [vmem:[%s5654 + $0xd8] sm:$0xff]
    %v5683 = vld [vmem:[%s5654 + $0xe0] sm:$0xff]
    %v5684 = vld [vmem:[%s5654 + $0xe8] sm:$0xff]
    %v5685 = vld [vmem:[%s5654 + $0xf0] sm:$0xff]
    %v5686 = vld [vmem:[%s5654 + $0xf8] sm:$0xff]
    %v5719 = vunpack.c.l.b16 %v5655
    %v5720 = vunpack.c.h.b16 %v5655
    %v5721 = vunpack.c.l.b16 %v5656
    %v5722 = vunpack.c.h.b16 %v5656
    %v5723 = vunpack.c.l.b16 %v5657
    %v5724 = vunpack.c.h.b16 %v5657
    %v5725 = vunpack.c.l.b16 %v5658
    %v5726 = vunpack.c.h.b16 %v5658
    %v5727 = vunpack.c.l.b16 %v5659
    %v5728 = vunpack.c.h.b16 %v5659
    %v5729 = vunpack.c.l.b16 %v5660
    %v5730 = vunpack.c.h.b16 %v5660
    %v5731 = vunpack.c.l.b16 %v5661
    %v5732 = vunpack.c.h.b16 %v5661
    %v5733 = vunpack.c.l.b16 %v5662
    %v5734 = vunpack.c.h.b16 %v5662
    %v5735 = vunpack.c.l.b16 %v5663
    %v5736 = vunpack.c.h.b16 %v5663
    %v5737 = vunpack.c.l.b16 %v5664
    %v5738 = vunpack.c.h.b16 %v5664
    %v5739 = vunpack.c.l.b16 %v5665
    %v5740 = vunpack.c.h.b16 %v5665
    %v5741 = vunpack.c.l.b16 %v5666
    %v5742 = vunpack.c.h.b16 %v5666
    %v5743 = vunpack.c.l.b16 %v5667
    %v5744 = vunpack.c.h.b16 %v5667
    %v5745 = vunpack.c.l.b16 %v5668
    %v5746 = vunpack.c.h.b16 %v5668
    %v5747 = vunpack.c.l.b16 %v5669
    %v5748 = vunpack.c.h.b16 %v5669
    %v5749 = vunpack.c.l.b16 %v5670
    %v5750 = vunpack.c.h.b16 %v5670
    %v5751 = vunpack.c.l.b16 %v5671
    %v5752 = vunpack.c.h.b16 %v5671
    %v5753 = vunpack.c.l.b16 %v5672
    %v5754 = vunpack.c.h.b16 %v5672
    %v5755 = vunpack.c.l.b16 %v5673
    %v5756 = vunpack.c.h.b16 %v5673
    %v5757 = vunpack.c.l.b16 %v5674
    %v5758 = vunpack.c.h.b16 %v5674
    %v5759 = vunpack.c.l.b16 %v5675
    %v5760 = vunpack.c.h.b16 %v5675
    %v5761 = vunpack.c.l.b16 %v5676
    %v5762 = vunpack.c.h.b16 %v5676
    %v5763 = vunpack.c.l.b16 %v5677
    %v5764 = vunpack.c.h.b16 %v5677
    %v5765 = vunpack.c.l.b16 %v5678
    %v5766 = vunpack.c.h.b16 %v5678
    %v5767 = vunpack.c.l.b16 %v5679
    %v5768 = vunpack.c.h.b16 %v5679
    %v5769 = vunpack.c.l.b16 %v5680
    %v5770 = vunpack.c.h.b16 %v5680
    %v5771 = vunpack.c.l.b16 %v5681
    %v5772 = vunpack.c.h.b16 %v5681
    %v5773 = vunpack.c.l.b16 %v5682
    %v5774 = vunpack.c.h.b16 %v5682
    %v5775 = vunpack.c.l.b16 %v5683
    %v5776 = vunpack.c.h.b16 %v5683
    %v5777 = vunpack.c.l.b16 %v5684
    %v5778 = vunpack.c.h.b16 %v5684
    %v5779 = vunpack.c.l.b16 %v5685
    %v5780 = vunpack.c.h.b16 %v5685
    %v5781 = vunpack.c.l.b16 %v5686
    %v5782 = vunpack.c.h.b16 %v5686
    %v5783 = vpack.c.b16 %v5723, %v5719
    %v5784 = vpack.c.b16 %v5724, %v5720
    %v5785 = vpack.c.b16 %v5725, %v5721
    %v5786 = vpack.c.b16 %v5726, %v5722
    %v5787 = vpack.c.b16 %v5731, %v5727
    %v5788 = vpack.c.b16 %v5732, %v5728
    %v5789 = vpack.c.b16 %v5733, %v5729
    %v5790 = vpack.c.b16 %v5734, %v5730
    %v5791 = vpack.c.b16 %v5739, %v5735
    %v5792 = vpack.c.b16 %v5740, %v5736
    %v5793 = vpack.c.b16 %v5741, %v5737
    %v5794 = vpack.c.b16 %v5742, %v5738
    %v5795 = vpack.c.b16 %v5747, %v5743
    %v5796 = vpack.c.b16 %v5748, %v5744
    %v5797 = vpack.c.b16 %v5749, %v5745
    %v5798 = vpack.c.b16 %v5750, %v5746
    %v5799 = vpack.c.b16 %v5755, %v5751
    %v5800 = vpack.c.b16 %v5756, %v5752
    %v5801 = vpack.c.b16 %v5757, %v5753
    %v5802 = vpack.c.b16 %v5758, %v5754
    %v5803 = vpack.c.b16 %v5763, %v5759
    %v5804 = vpack.c.b16 %v5764, %v5760
    %v5805 = vpack.c.b16 %v5765, %v5761
    %v5806 = vpack.c.b16 %v5766, %v5762
    %v5807 = vpack.c.b16 %v5771, %v5767
    %v5808 = vpack.c.b16 %v5772, %v5768
    %v5809 = vpack.c.b16 %v5773, %v5769
    %v5810 = vpack.c.b16 %v5774, %v5770
    %v5811 = vpack.c.b16 %v5779, %v5775
    %v5812 = vpack.c.b16 %v5780, %v5776
    %v5813 = vpack.c.b16 %v5781, %v5777
    %v5814 = vpack.c.b16 %v5782, %v5778
    %5847 = vmatpush.bf16.msra.mxu0 %v5811
    %5848 = vmatpush.bf16.msra.mxu0 %v5807
    %5849 = vmatpush.bf16.msra.mxu0 %v5803
    %5850 = vmatpush.bf16.msra.mxu0 %v5799
    %5851 = vmatpush.bf16.msra.mxu0 %v5795
    %5852 = vmatpush.bf16.msra.mxu0 %v5791
    %5853 = vmatpush.bf16.msra.mxu0 %v5787
    %5854 = vmatpush.bf16.msra.mxu0 %v5783
    %5855 = vmatmul.bf16.gmra.mxu0 %v3663
    %v5856 = vpop.f32.mrf.mxu0
    %v5857 = vadd.f32 0.0, %v5856
    %v5858 = vpop.f32.mrf.mxu0
    %5859 = vdwg.mxu0
    %5860 = vmatpush.bf16.msra.mxu0 %v5812
    %5861 = vmatpush.bf16.msra.mxu0 %v5808
    %5862 = vmatpush.bf16.msra.mxu0 %v5804
    %5863 = vmatpush.bf16.msra.mxu0 %v5800
    %5864 = vmatpush.bf16.msra.mxu0 %v5796
    %5865 = vmatpush.bf16.msra.mxu0 %v5792
    %5866 = vmatpush.bf16.msra.mxu0 %v5788
    %5867 = vmatpush.bf16.msra.mxu0 %v5784
    %5868 = vmatmul.bf16.gmra.mxu0 %v3663
    %v5869 = vpop.f32.mrf.mxu0
    %v5870 = vadd.f32 0.0, %v5869
    %v5871 = vpop.f32.mrf.mxu0
    %5872 = vdwg.mxu0
    %5873 = vmatpush.bf16.msra.mxu0 %v5813
    %5874 = vmatpush.bf16.msra.mxu0 %v5809
    %5875 = vmatpush.bf16.msra.mxu0 %v5805
    %5876 = vmatpush.bf16.msra.mxu0 %v5801
    %5877 = vmatpush.bf16.msra.mxu0 %v5797
    %5878 = vmatpush.bf16.msra.mxu0 %v5793
    %5879 = vmatpush.bf16.msra.mxu0 %v5789
    %5880 = vmatpush.bf16.msra.mxu0 %v5785
    %5881 = vmatmul.bf16.gmra.mxu0 %v3663
    %v5882 = vpop.f32.mrf.mxu0
    %v5883 = vadd.f32 0.0, %v5882
    %v5884 = vpop.f32.mrf.mxu0
    %5885 = vdwg.mxu0
    %5886 = vmatpush.bf16.msra.mxu0 %v5814
    %5887 = vmatpush.bf16.msra.mxu0 %v5810
    %5888 = vmatpush.bf16.msra.mxu0 %v5806
    %5889 = vmatpush.bf16.msra.mxu0 %v5802
    %5890 = vmatpush.bf16.msra.mxu0 %v5798
    %5891 = vmatpush.bf16.msra.mxu0 %v5794
    %5892 = vmatpush.bf16.msra.mxu0 %v5790
    %5893 = vmatpush.bf16.msra.mxu0 %v5786
    %5894 = vmatmul.bf16.gmra.mxu0 %v3663
    %v5895 = vpop.f32.mrf.mxu0
    %v5896 = vadd.f32 0.0, %v5895
    %v5897 = vpop.f32.mrf.mxu0
    %5898 = vdwg.mxu0
    %v5899 = vadd.f32 %v5650, %v5857
    %v5900 = vadd.f32 %v5651, %v5870
    %v5901 = vadd.f32 %v5652, %v5883
    %v5902 = vadd.f32 %v5653, %v5896
    %s5903 = scalar_lea.vmem [#allocation13], 2304
    %v5904 = vld [vmem:[%s5903] sm:$0xff]
    %v5905 = vld [vmem:[%s5903 + $0x8] sm:$0xff]
    %v5906 = vld [vmem:[%s5903 + $0x10] sm:$0xff]
    %v5907 = vld [vmem:[%s5903 + $0x18] sm:$0xff]
    %v5908 = vld [vmem:[%s5903 + $0x20] sm:$0xff]
    %v5909 = vld [vmem:[%s5903 + $0x28] sm:$0xff]
    %v5910 = vld [vmem:[%s5903 + $0x30] sm:$0xff]
    %v5911 = vld [vmem:[%s5903 + $0x38] sm:$0xff]
    %v5912 = vld [vmem:[%s5903 + $0x40] sm:$0xff]
    %v5913 = vld [vmem:[%s5903 + $0x48] sm:$0xff]
    %v5914 = vld [vmem:[%s5903 + $0x50] sm:$0xff]
    %v5915 = vld [vmem:[%s5903 + $0x58] sm:$0xff]
    %v5916 = vld [vmem:[%s5903 + $0x60] sm:$0xff]
    %v5917 = vld [vmem:[%s5903 + $0x68] sm:$0xff]
    %v5918 = vld [vmem:[%s5903 + $0x70] sm:$0xff]
    %v5919 = vld [vmem:[%s5903 + $0x78] sm:$0xff]
    %v5920 = vld [vmem:[%s5903 + $0x80] sm:$0xff]
    %v5921 = vld [vmem:[%s5903 + $0x88] sm:$0xff]
    %v5922 = vld [vmem:[%s5903 + $0x90] sm:$0xff]
    %v5923 = vld [vmem:[%s5903 + $0x98] sm:$0xff]
    %v5924 = vld [vmem:[%s5903 + $0xa0] sm:$0xff]
    %v5925 = vld [vmem:[%s5903 + $0xa8] sm:$0xff]
    %v5926 = vld [vmem:[%s5903 + $0xb0] sm:$0xff]
    %v5927 = vld [vmem:[%s5903 + $0xb8] sm:$0xff]
    %v5928 = vld [vmem:[%s5903 + $0xc0] sm:$0xff]
    %v5929 = vld [vmem:[%s5903 + $0xc8] sm:$0xff]
    %v5930 = vld [vmem:[%s5903 + $0xd0] sm:$0xff]
    %v5931 = vld [vmem:[%s5903 + $0xd8] sm:$0xff]
    %v5932 = vld [vmem:[%s5903 + $0xe0] sm:$0xff]
    %v5933 = vld [vmem:[%s5903 + $0xe8] sm:$0xff]
    %v5934 = vld [vmem:[%s5903 + $0xf0] sm:$0xff]
    %v5935 = vld [vmem:[%s5903 + $0xf8] sm:$0xff]
    %v5968 = vunpack.c.l.b16 %v5904
    %v5969 = vunpack.c.h.b16 %v5904
    %v5970 = vunpack.c.l.b16 %v5905
    %v5971 = vunpack.c.h.b16 %v5905
    %v5972 = vunpack.c.l.b16 %v5906
    %v5973 = vunpack.c.h.b16 %v5906
    %v5974 = vunpack.c.l.b16 %v5907
    %v5975 = vunpack.c.h.b16 %v5907
    %v5976 = vunpack.c.l.b16 %v5908
    %v5977 = vunpack.c.h.b16 %v5908
    %v5978 = vunpack.c.l.b16 %v5909
    %v5979 = vunpack.c.h.b16 %v5909
    %v5980 = vunpack.c.l.b16 %v5910
    %v5981 = vunpack.c.h.b16 %v5910
    %v5982 = vunpack.c.l.b16 %v5911
    %v5983 = vunpack.c.h.b16 %v5911
    %v5984 = vunpack.c.l.b16 %v5912
    %v5985 = vunpack.c.h.b16 %v5912
    %v5986 = vunpack.c.l.b16 %v5913
    %v5987 = vunpack.c.h.b16 %v5913
    %v5988 = vunpack.c.l.b16 %v5914
    %v5989 = vunpack.c.h.b16 %v5914
    %v5990 = vunpack.c.l.b16 %v5915
    %v5991 = vunpack.c.h.b16 %v5915
    %v5992 = vunpack.c.l.b16 %v5916
    %v5993 = vunpack.c.h.b16 %v5916
    %v5994 = vunpack.c.l.b16 %v5917
    %v5995 = vunpack.c.h.b16 %v5917
    %v5996 = vunpack.c.l.b16 %v5918
    %v5997 = vunpack.c.h.b16 %v5918
    %v5998 = vunpack.c.l.b16 %v5919
    %v5999 = vunpack.c.h.b16 %v5919
    %v6000 = vunpack.c.l.b16 %v5920
    %v6001 = vunpack.c.h.b16 %v5920
    %v6002 = vunpack.c.l.b16 %v5921
    %v6003 = vunpack.c.h.b16 %v5921
    %v6004 = vunpack.c.l.b16 %v5922
    %v6005 = vunpack.c.h.b16 %v5922
    %v6006 = vunpack.c.l.b16 %v5923
    %v6007 = vunpack.c.h.b16 %v5923
    %v6008 = vunpack.c.l.b16 %v5924
    %v6009 = vunpack.c.h.b16 %v5924
    %v6010 = vunpack.c.l.b16 %v5925
    %v6011 = vunpack.c.h.b16 %v5925
    %v6012 = vunpack.c.l.b16 %v5926
    %v6013 = vunpack.c.h.b16 %v5926
    %v6014 = vunpack.c.l.b16 %v5927
    %v6015 = vunpack.c.h.b16 %v5927
    %v6016 = vunpack.c.l.b16 %v5928
    %v6017 = vunpack.c.h.b16 %v5928
    %v6018 = vunpack.c.l.b16 %v5929
    %v6019 = vunpack.c.h.b16 %v5929
    %v6020 = vunpack.c.l.b16 %v5930
    %v6021 = vunpack.c.h.b16 %v5930
    %v6022 = vunpack.c.l.b16 %v5931
    %v6023 = vunpack.c.h.b16 %v5931
    %v6024 = vunpack.c.l.b16 %v5932
    %v6025 = vunpack.c.h.b16 %v5932
    %v6026 = vunpack.c.l.b16 %v5933
    %v6027 = vunpack.c.h.b16 %v5933
    %v6028 = vunpack.c.l.b16 %v5934
    %v6029 = vunpack.c.h.b16 %v5934
    %v6030 = vunpack.c.l.b16 %v5935
    %v6031 = vunpack.c.h.b16 %v5935
    %v6032 = vpack.c.b16 %v5972, %v5968
    %v6033 = vpack.c.b16 %v5973, %v5969
    %v6034 = vpack.c.b16 %v5974, %v5970
    %v6035 = vpack.c.b16 %v5975, %v5971
    %v6036 = vpack.c.b16 %v5980, %v5976
    %v6037 = vpack.c.b16 %v5981, %v5977
    %v6038 = vpack.c.b16 %v5982, %v5978
    %v6039 = vpack.c.b16 %v5983, %v5979
    %v6040 = vpack.c.b16 %v5988, %v5984
    %v6041 = vpack.c.b16 %v5989, %v5985
    %v6042 = vpack.c.b16 %v5990, %v5986
    %v6043 = vpack.c.b16 %v5991, %v5987
    %v6044 = vpack.c.b16 %v5996, %v5992
    %v6045 = vpack.c.b16 %v5997, %v5993
    %v6046 = vpack.c.b16 %v5998, %v5994
    %v6047 = vpack.c.b16 %v5999, %v5995
    %v6048 = vpack.c.b16 %v6004, %v6000
    %v6049 = vpack.c.b16 %v6005, %v6001
    %v6050 = vpack.c.b16 %v6006, %v6002
    %v6051 = vpack.c.b16 %v6007, %v6003
    %v6052 = vpack.c.b16 %v6012, %v6008
    %v6053 = vpack.c.b16 %v6013, %v6009
    %v6054 = vpack.c.b16 %v6014, %v6010
    %v6055 = vpack.c.b16 %v6015, %v6011
    %v6056 = vpack.c.b16 %v6020, %v6016
    %v6057 = vpack.c.b16 %v6021, %v6017
    %v6058 = vpack.c.b16 %v6022, %v6018
    %v6059 = vpack.c.b16 %v6023, %v6019
    %v6060 = vpack.c.b16 %v6028, %v6024
    %v6061 = vpack.c.b16 %v6029, %v6025
    %v6062 = vpack.c.b16 %v6030, %v6026
    %v6063 = vpack.c.b16 %v6031, %v6027
    %6096 = vmatpush.bf16.msra.mxu0 %v6060
    %6097 = vmatpush.bf16.msra.mxu0 %v6056
    %6098 = vmatpush.bf16.msra.mxu0 %v6052
    %6099 = vmatpush.bf16.msra.mxu0 %v6048
    %6100 = vmatpush.bf16.msra.mxu0 %v6044
    %6101 = vmatpush.bf16.msra.mxu0 %v6040
    %6102 = vmatpush.bf16.msra.mxu0 %v6036
    %6103 = vmatpush.bf16.msra.mxu0 %v6032
    %6104 = vmatmul.bf16.gmra.mxu0 %v3664
    %v6105 = vpop.f32.mrf.mxu0
    %v6106 = vadd.f32 0.0, %v6105
    %v6107 = vpop.f32.mrf.mxu0
    %6108 = vdwg.mxu0
    %6109 = vmatpush.bf16.msra.mxu0 %v6061
    %6110 = vmatpush.bf16.msra.mxu0 %v6057
    %6111 = vmatpush.bf16.msra.mxu0 %v6053
    %6112 = vmatpush.bf16.msra.mxu0 %v6049
    %6113 = vmatpush.bf16.msra.mxu0 %v6045
    %6114 = vmatpush.bf16.msra.mxu0 %v6041
    %6115 = vmatpush.bf16.msra.mxu0 %v6037
    %6116 = vmatpush.bf16.msra.mxu0 %v6033
    %6117 = vmatmul.bf16.gmra.mxu0 %v3664
    %v6118 = vpop.f32.mrf.mxu0
    %v6119 = vadd.f32 0.0, %v6118
    %v6120 = vpop.f32.mrf.mxu0
    %6121 = vdwg.mxu0
    %6122 = vmatpush.bf16.msra.mxu0 %v6062
    %6123 = vmatpush.bf16.msra.mxu0 %v6058
    %6124 = vmatpush.bf16.msra.mxu0 %v6054
    %6125 = vmatpush.bf16.msra.mxu0 %v6050
    %6126 = vmatpush.bf16.msra.mxu0 %v6046
    %6127 = vmatpush.bf16.msra.mxu0 %v6042
    %6128 = vmatpush.bf16.msra.mxu0 %v6038
    %6129 = vmatpush.bf16.msra.mxu0 %v6034
    %6130 = vmatmul.bf16.gmra.mxu0 %v3664
    %v6131 = vpop.f32.mrf.mxu0
    %v6132 = vadd.f32 0.0, %v6131
    %v6133 = vpop.f32.mrf.mxu0
    %6134 = vdwg.mxu0
    %6135 = vmatpush.bf16.msra.mxu0 %v6063
    %6136 = vmatpush.bf16.msra.mxu0 %v6059
    %6137 = vmatpush.bf16.msra.mxu0 %v6055
    %6138 = vmatpush.bf16.msra.mxu0 %v6051
    %6139 = vmatpush.bf16.msra.mxu0 %v6047
    %6140 = vmatpush.bf16.msra.mxu0 %v6043
    %6141 = vmatpush.bf16.msra.mxu0 %v6039
    %6142 = vmatpush.bf16.msra.mxu0 %v6035
    %6143 = vmatmul.bf16.gmra.mxu0 %v3664
    %v6144 = vpop.f32.mrf.mxu0
    %v6145 = vadd.f32 0.0, %v6144
    %v6146 = vpop.f32.mrf.mxu0
    %6147 = vdwg.mxu0
    %v6148 = vadd.f32 %v5899, %v6106
    %v6149 = vadd.f32 %v5900, %v6119
    %v6150 = vadd.f32 %v5901, %v6132
    %v6151 = vadd.f32 %v5902, %v6145
    %s6152 = scalar_lea.vmem [#allocation13], 2560
    %v6153 = vld [vmem:[%s6152] sm:$0xff]
    %v6154 = vld [vmem:[%s6152 + $0x8] sm:$0xff]
    %v6155 = vld [vmem:[%s6152 + $0x10] sm:$0xff]
    %v6156 = vld [vmem:[%s6152 + $0x18] sm:$0xff]
    %v6157 = vld [vmem:[%s6152 + $0x20] sm:$0xff]
    %v6158 = vld [vmem:[%s6152 + $0x28] sm:$0xff]
    %v6159 = vld [vmem:[%s6152 + $0x30] sm:$0xff]
    %v6160 = vld [vmem:[%s6152 + $0x38] sm:$0xff]
    %v6161 = vld [vmem:[%s6152 + $0x40] sm:$0xff]
    %v6162 = vld [vmem:[%s6152 + $0x48] sm:$0xff]
    %v6163 = vld [vmem:[%s6152 + $0x50] sm:$0xff]
    %v6164 = vld [vmem:[%s6152 + $0x58] sm:$0xff]
    %v6165 = vld [vmem:[%s6152 + $0x60] sm:$0xff]
    %v6166 = vld [vmem:[%s6152 + $0x68] sm:$0xff]
    %v6167 = vld [vmem:[%s6152 + $0x70] sm:$0xff]
    %v6168 = vld [vmem:[%s6152 + $0x78] sm:$0xff]
    %v6169 = vld [vmem:[%s6152 + $0x80] sm:$0xff]
    %v6170 = vld [vmem:[%s6152 + $0x88] sm:$0xff]
    %v6171 = vld [vmem:[%s6152 + $0x90] sm:$0xff]
    %v6172 = vld [vmem:[%s6152 + $0x98] sm:$0xff]
    %v6173 = vld [vmem:[%s6152 + $0xa0] sm:$0xff]
    %v6174 = vld [vmem:[%s6152 + $0xa8] sm:$0xff]
    %v6175 = vld [vmem:[%s6152 + $0xb0] sm:$0xff]
    %v6176 = vld [vmem:[%s6152 + $0xb8] sm:$0xff]
    %v6177 = vld [vmem:[%s6152 + $0xc0] sm:$0xff]
    %v6178 = vld [vmem:[%s6152 + $0xc8] sm:$0xff]
    %v6179 = vld [vmem:[%s6152 + $0xd0] sm:$0xff]
    %v6180 = vld [vmem:[%s6152 + $0xd8] sm:$0xff]
    %v6181 = vld [vmem:[%s6152 + $0xe0] sm:$0xff]
    %v6182 = vld [vmem:[%s6152 + $0xe8] sm:$0xff]
    %v6183 = vld [vmem:[%s6152 + $0xf0] sm:$0xff]
    %v6184 = vld [vmem:[%s6152 + $0xf8] sm:$0xff]
    %v6217 = vunpack.c.l.b16 %v6153
    %v6218 = vunpack.c.h.b16 %v6153
    %v6219 = vunpack.c.l.b16 %v6154
    %v6220 = vunpack.c.h.b16 %v6154
    %v6221 = vunpack.c.l.b16 %v6155
    %v6222 = vunpack.c.h.b16 %v6155
    %v6223 = vunpack.c.l.b16 %v6156
    %v6224 = vunpack.c.h.b16 %v6156
    %v6225 = vunpack.c.l.b16 %v6157
    %v6226 = vunpack.c.h.b16 %v6157
    %v6227 = vunpack.c.l.b16 %v6158
    %v6228 = vunpack.c.h.b16 %v6158
    %v6229 = vunpack.c.l.b16 %v6159
    %v6230 = vunpack.c.h.b16 %v6159
    %v6231 = vunpack.c.l.b16 %v6160
    %v6232 = vunpack.c.h.b16 %v6160
    %v6233 = vunpack.c.l.b16 %v6161
    %v6234 = vunpack.c.h.b16 %v6161
    %v6235 = vunpack.c.l.b16 %v6162
    %v6236 = vunpack.c.h.b16 %v6162
    %v6237 = vunpack.c.l.b16 %v6163
    %v6238 = vunpack.c.h.b16 %v6163
    %v6239 = vunpack.c.l.b16 %v6164
    %v6240 = vunpack.c.h.b16 %v6164
    %v6241 = vunpack.c.l.b16 %v6165
    %v6242 = vunpack.c.h.b16 %v6165
    %v6243 = vunpack.c.l.b16 %v6166
    %v6244 = vunpack.c.h.b16 %v6166
    %v6245 = vunpack.c.l.b16 %v6167
    %v6246 = vunpack.c.h.b16 %v6167
    %v6247 = vunpack.c.l.b16 %v6168
    %v6248 = vunpack.c.h.b16 %v6168
    %v6249 = vunpack.c.l.b16 %v6169
    %v6250 = vunpack.c.h.b16 %v6169
    %v6251 = vunpack.c.l.b16 %v6170
    %v6252 = vunpack.c.h.b16 %v6170
    %v6253 = vunpack.c.l.b16 %v6171
    %v6254 = vunpack.c.h.b16 %v6171
    %v6255 = vunpack.c.l.b16 %v6172
    %v6256 = vunpack.c.h.b16 %v6172
    %v6257 = vunpack.c.l.b16 %v6173
    %v6258 = vunpack.c.h.b16 %v6173
    %v6259 = vunpack.c.l.b16 %v6174
    %v6260 = vunpack.c.h.b16 %v6174
    %v6261 = vunpack.c.l.b16 %v6175
    %v6262 = vunpack.c.h.b16 %v6175
    %v6263 = vunpack.c.l.b16 %v6176
    %v6264 = vunpack.c.h.b16 %v6176
    %v6265 = vunpack.c.l.b16 %v6177
    %v6266 = vunpack.c.h.b16 %v6177
    %v6267 = vunpack.c.l.b16 %v6178
    %v6268 = vunpack.c.h.b16 %v6178
    %v6269 = vunpack.c.l.b16 %v6179
    %v6270 = vunpack.c.h.b16 %v6179
    %v6271 = vunpack.c.l.b16 %v6180
    %v6272 = vunpack.c.h.b16 %v6180
    %v6273 = vunpack.c.l.b16 %v6181
    %v6274 = vunpack.c.h.b16 %v6181
    %v6275 = vunpack.c.l.b16 %v6182
    %v6276 = vunpack.c.h.b16 %v6182
    %v6277 = vunpack.c.l.b16 %v6183
    %v6278 = vunpack.c.h.b16 %v6183
    %v6279 = vunpack.c.l.b16 %v6184
    %v6280 = vunpack.c.h.b16 %v6184
    %v6281 = vpack.c.b16 %v6221, %v6217
    %v6282 = vpack.c.b16 %v6222, %v6218
    %v6283 = vpack.c.b16 %v6223, %v6219
    %v6284 = vpack.c.b16 %v6224, %v6220
    %v6285 = vpack.c.b16 %v6229, %v6225
    %v6286 = vpack.c.b16 %v6230, %v6226
    %v6287 = vpack.c.b16 %v6231, %v6227
    %v6288 = vpack.c.b16 %v6232, %v6228
    %v6289 = vpack.c.b16 %v6237, %v6233
    %v6290 = vpack.c.b16 %v6238, %v6234
    %v6291 = vpack.c.b16 %v6239, %v6235
    %v6292 = vpack.c.b16 %v6240, %v6236
    %v6293 = vpack.c.b16 %v6245, %v6241
    %v6294 = vpack.c.b16 %v6246, %v6242
    %v6295 = vpack.c.b16 %v6247, %v6243
    %v6296 = vpack.c.b16 %v6248, %v6244
    %v6297 = vpack.c.b16 %v6253, %v6249
    %v6298 = vpack.c.b16 %v6254, %v6250
    %v6299 = vpack.c.b16 %v6255, %v6251
    %v6300 = vpack.c.b16 %v6256, %v6252
    %v6301 = vpack.c.b16 %v6261, %v6257
    %v6302 = vpack.c.b16 %v6262, %v6258
    %v6303 = vpack.c.b16 %v6263, %v6259
    %v6304 = vpack.c.b16 %v6264, %v6260
    %v6305 = vpack.c.b16 %v6269, %v6265
    %v6306 = vpack.c.b16 %v6270, %v6266
    %v6307 = vpack.c.b16 %v6271, %v6267
    %v6308 = vpack.c.b16 %v6272, %v6268
    %v6309 = vpack.c.b16 %v6277, %v6273
    %v6310 = vpack.c.b16 %v6278, %v6274
    %v6311 = vpack.c.b16 %v6279, %v6275
    %v6312 = vpack.c.b16 %v6280, %v6276
    %6345 = vmatpush.bf16.msra.mxu0 %v6309
    %6346 = vmatpush.bf16.msra.mxu0 %v6305
    %6347 = vmatpush.bf16.msra.mxu0 %v6301
    %6348 = vmatpush.bf16.msra.mxu0 %v6297
    %6349 = vmatpush.bf16.msra.mxu0 %v6293
    %6350 = vmatpush.bf16.msra.mxu0 %v6289
    %6351 = vmatpush.bf16.msra.mxu0 %v6285
    %6352 = vmatpush.bf16.msra.mxu0 %v6281
    %6353 = vmatmul.bf16.gmra.mxu0 %v3665
    %v6354 = vpop.f32.mrf.mxu0
    %v6355 = vadd.f32 0.0, %v6354
    %v6356 = vpop.f32.mrf.mxu0
    %6357 = vdwg.mxu0
    %6358 = vmatpush.bf16.msra.mxu0 %v6310
    %6359 = vmatpush.bf16.msra.mxu0 %v6306
    %6360 = vmatpush.bf16.msra.mxu0 %v6302
    %6361 = vmatpush.bf16.msra.mxu0 %v6298
    %6362 = vmatpush.bf16.msra.mxu0 %v6294
    %6363 = vmatpush.bf16.msra.mxu0 %v6290
    %6364 = vmatpush.bf16.msra.mxu0 %v6286
    %6365 = vmatpush.bf16.msra.mxu0 %v6282
    %6366 = vmatmul.bf16.gmra.mxu0 %v3665
    %v6367 = vpop.f32.mrf.mxu0
    %v6368 = vadd.f32 0.0, %v6367
    %v6369 = vpop.f32.mrf.mxu0
    %6370 = vdwg.mxu0
    %6371 = vmatpush.bf16.msra.mxu0 %v6311
    %6372 = vmatpush.bf16.msra.mxu0 %v6307
    %6373 = vmatpush.bf16.msra.mxu0 %v6303
    %6374 = vmatpush.bf16.msra.mxu0 %v6299
    %6375 = vmatpush.bf16.msra.mxu0 %v6295
    %6376 = vmatpush.bf16.msra.mxu0 %v6291
    %6377 = vmatpush.bf16.msra.mxu0 %v6287
    %6378 = vmatpush.bf16.msra.mxu0 %v6283
    %6379 = vmatmul.bf16.gmra.mxu0 %v3665
    %v6380 = vpop.f32.mrf.mxu0
    %v6381 = vadd.f32 0.0, %v6380
    %v6382 = vpop.f32.mrf.mxu0
    %6383 = vdwg.mxu0
    %6384 = vmatpush.bf16.msra.mxu0 %v6312
    %6385 = vmatpush.bf16.msra.mxu0 %v6308
    %6386 = vmatpush.bf16.msra.mxu0 %v6304
    %6387 = vmatpush.bf16.msra.mxu0 %v6300
    %6388 = vmatpush.bf16.msra.mxu0 %v6296
    %6389 = vmatpush.bf16.msra.mxu0 %v6292
    %6390 = vmatpush.bf16.msra.mxu0 %v6288
    %6391 = vmatpush.bf16.msra.mxu0 %v6284
    %6392 = vmatmul.bf16.gmra.mxu0 %v3665
    %v6393 = vpop.f32.mrf.mxu0
    %v6394 = vadd.f32 0.0, %v6393
    %v6395 = vpop.f32.mrf.mxu0
    %6396 = vdwg.mxu0
    %v6397 = vadd.f32 %v6148, %v6355
    %v6398 = vadd.f32 %v6149, %v6368
    %v6399 = vadd.f32 %v6150, %v6381
    %v6400 = vadd.f32 %v6151, %v6394
    %s6401 = scalar_lea.vmem [#allocation13], 2816
    %v6402 = vld [vmem:[%s6401] sm:$0xff]
    %v6403 = vld [vmem:[%s6401 + $0x8] sm:$0xff]
    %v6404 = vld [vmem:[%s6401 + $0x10] sm:$0xff]
    %v6405 = vld [vmem:[%s6401 + $0x18] sm:$0xff]
    %v6406 = vld [vmem:[%s6401 + $0x20] sm:$0xff]
    %v6407 = vld [vmem:[%s6401 + $0x28] sm:$0xff]
    %v6408 = vld [vmem:[%s6401 + $0x30] sm:$0xff]
    %v6409 = vld [vmem:[%s6401 + $0x38] sm:$0xff]
    %v6410 = vld [vmem:[%s6401 + $0x40] sm:$0xff]
    %v6411 = vld [vmem:[%s6401 + $0x48] sm:$0xff]
    %v6412 = vld [vmem:[%s6401 + $0x50] sm:$0xff]
    %v6413 = vld [vmem:[%s6401 + $0x58] sm:$0xff]
    %v6414 = vld [vmem:[%s6401 + $0x60] sm:$0xff]
    %v6415 = vld [vmem:[%s6401 + $0x68] sm:$0xff]
    %v6416 = vld [vmem:[%s6401 + $0x70] sm:$0xff]
    %v6417 = vld [vmem:[%s6401 + $0x78] sm:$0xff]
    %v6418 = vld [vmem:[%s6401 + $0x80] sm:$0xff]
    %v6419 = vld [vmem:[%s6401 + $0x88] sm:$0xff]
    %v6420 = vld [vmem:[%s6401 + $0x90] sm:$0xff]
    %v6421 = vld [vmem:[%s6401 + $0x98] sm:$0xff]
    %v6422 = vld [vmem:[%s6401 + $0xa0] sm:$0xff]
    %v6423 = vld [vmem:[%s6401 + $0xa8] sm:$0xff]
    %v6424 = vld [vmem:[%s6401 + $0xb0] sm:$0xff]
    %v6425 = vld [vmem:[%s6401 + $0xb8] sm:$0xff]
    %v6426 = vld [vmem:[%s6401 + $0xc0] sm:$0xff]
    %v6427 = vld [vmem:[%s6401 + $0xc8] sm:$0xff]
    %v6428 = vld [vmem:[%s6401 + $0xd0] sm:$0xff]
    %v6429 = vld [vmem:[%s6401 + $0xd8] sm:$0xff]
    %v6430 = vld [vmem:[%s6401 + $0xe0] sm:$0xff]
    %v6431 = vld [vmem:[%s6401 + $0xe8] sm:$0xff]
    %v6432 = vld [vmem:[%s6401 + $0xf0] sm:$0xff]
    %v6433 = vld [vmem:[%s6401 + $0xf8] sm:$0xff]
    %v6466 = vunpack.c.l.b16 %v6402
    %v6467 = vunpack.c.h.b16 %v6402
    %v6468 = vunpack.c.l.b16 %v6403
    %v6469 = vunpack.c.h.b16 %v6403
    %v6470 = vunpack.c.l.b16 %v6404
    %v6471 = vunpack.c.h.b16 %v6404
    %v6472 = vunpack.c.l.b16 %v6405
    %v6473 = vunpack.c.h.b16 %v6405
    %v6474 = vunpack.c.l.b16 %v6406
    %v6475 = vunpack.c.h.b16 %v6406
    %v6476 = vunpack.c.l.b16 %v6407
    %v6477 = vunpack.c.h.b16 %v6407
    %v6478 = vunpack.c.l.b16 %v6408
    %v6479 = vunpack.c.h.b16 %v6408
    %v6480 = vunpack.c.l.b16 %v6409
    %v6481 = vunpack.c.h.b16 %v6409
    %v6482 = vunpack.c.l.b16 %v6410
    %v6483 = vunpack.c.h.b16 %v6410
    %v6484 = vunpack.c.l.b16 %v6411
    %v6485 = vunpack.c.h.b16 %v6411
    %v6486 = vunpack.c.l.b16 %v6412
    %v6487 = vunpack.c.h.b16 %v6412
    %v6488 = vunpack.c.l.b16 %v6413
    %v6489 = vunpack.c.h.b16 %v6413
    %v6490 = vunpack.c.l.b16 %v6414
    %v6491 = vunpack.c.h.b16 %v6414
    %v6492 = vunpack.c.l.b16 %v6415
    %v6493 = vunpack.c.h.b16 %v6415
    %v6494 = vunpack.c.l.b16 %v6416
    %v6495 = vunpack.c.h.b16 %v6416
    %v6496 = vunpack.c.l.b16 %v6417
    %v6497 = vunpack.c.h.b16 %v6417
    %v6498 = vunpack.c.l.b16 %v6418
    %v6499 = vunpack.c.h.b16 %v6418
    %v6500 = vunpack.c.l.b16 %v6419
    %v6501 = vunpack.c.h.b16 %v6419
    %v6502 = vunpack.c.l.b16 %v6420
    %v6503 = vunpack.c.h.b16 %v6420
    %v6504 = vunpack.c.l.b16 %v6421
    %v6505 = vunpack.c.h.b16 %v6421
    %v6506 = vunpack.c.l.b16 %v6422
    %v6507 = vunpack.c.h.b16 %v6422
    %v6508 = vunpack.c.l.b16 %v6423
    %v6509 = vunpack.c.h.b16 %v6423
    %v6510 = vunpack.c.l.b16 %v6424
    %v6511 = vunpack.c.h.b16 %v6424
    %v6512 = vunpack.c.l.b16 %v6425
    %v6513 = vunpack.c.h.b16 %v6425
    %v6514 = vunpack.c.l.b16 %v6426
    %v6515 = vunpack.c.h.b16 %v6426
    %v6516 = vunpack.c.l.b16 %v6427
    %v6517 = vunpack.c.h.b16 %v6427
    %v6518 = vunpack.c.l.b16 %v6428
    %v6519 = vunpack.c.h.b16 %v6428
    %v6520 = vunpack.c.l.b16 %v6429
    %v6521 = vunpack.c.h.b16 %v6429
    %v6522 = vunpack.c.l.b16 %v6430
    %v6523 = vunpack.c.h.b16 %v6430
    %v6524 = vunpack.c.l.b16 %v6431
    %v6525 = vunpack.c.h.b16 %v6431
    %v6526 = vunpack.c.l.b16 %v6432
    %v6527 = vunpack.c.h.b16 %v6432
    %v6528 = vunpack.c.l.b16 %v6433
    %v6529 = vunpack.c.h.b16 %v6433
    %v6530 = vpack.c.b16 %v6470, %v6466
    %v6531 = vpack.c.b16 %v6471, %v6467
    %v6532 = vpack.c.b16 %v6472, %v6468
    %v6533 = vpack.c.b16 %v6473, %v6469
    %v6534 = vpack.c.b16 %v6478, %v6474
    %v6535 = vpack.c.b16 %v6479, %v6475
    %v6536 = vpack.c.b16 %v6480, %v6476
    %v6537 = vpack.c.b16 %v6481, %v6477
    %v6538 = vpack.c.b16 %v6486, %v6482
    %v6539 = vpack.c.b16 %v6487, %v6483
    %v6540 = vpack.c.b16 %v6488, %v6484
    %v6541 = vpack.c.b16 %v6489, %v6485
    %v6542 = vpack.c.b16 %v6494, %v6490
    %v6543 = vpack.c.b16 %v6495, %v6491
    %v6544 = vpack.c.b16 %v6496, %v6492
    %v6545 = vpack.c.b16 %v6497, %v6493
    %v6546 = vpack.c.b16 %v6502, %v6498
    %v6547 = vpack.c.b16 %v6503, %v6499
    %v6548 = vpack.c.b16 %v6504, %v6500
    %v6549 = vpack.c.b16 %v6505, %v6501
    %v6550 = vpack.c.b16 %v6510, %v6506
    %v6551 = vpack.c.b16 %v6511, %v6507
    %v6552 = vpack.c.b16 %v6512, %v6508
    %v6553 = vpack.c.b16 %v6513, %v6509
    %v6554 = vpack.c.b16 %v6518, %v6514
    %v6555 = vpack.c.b16 %v6519, %v6515
    %v6556 = vpack.c.b16 %v6520, %v6516
    %v6557 = vpack.c.b16 %v6521, %v6517
    %v6558 = vpack.c.b16 %v6526, %v6522
    %v6559 = vpack.c.b16 %v6527, %v6523
    %v6560 = vpack.c.b16 %v6528, %v6524
    %v6561 = vpack.c.b16 %v6529, %v6525
    %6594 = vmatpush.bf16.msra.mxu0 %v6558
    %6595 = vmatpush.bf16.msra.mxu0 %v6554
    %6596 = vmatpush.bf16.msra.mxu0 %v6550
    %6597 = vmatpush.bf16.msra.mxu0 %v6546
    %6598 = vmatpush.bf16.msra.mxu0 %v6542
    %6599 = vmatpush.bf16.msra.mxu0 %v6538
    %6600 = vmatpush.bf16.msra.mxu0 %v6534
    %6601 = vmatpush.bf16.msra.mxu0 %v6530
    %6602 = vmatmul.bf16.gmra.mxu0 %v3666
    %v6603 = vpop.f32.mrf.mxu0
    %v6604 = vadd.f32 0.0, %v6603
    %v6605 = vpop.f32.mrf.mxu0
    %6606 = vdwg.mxu0
    %6607 = vmatpush.bf16.msra.mxu0 %v6559
    %6608 = vmatpush.bf16.msra.mxu0 %v6555
    %6609 = vmatpush.bf16.msra.mxu0 %v6551
    %6610 = vmatpush.bf16.msra.mxu0 %v6547
    %6611 = vmatpush.bf16.msra.mxu0 %v6543
    %6612 = vmatpush.bf16.msra.mxu0 %v6539
    %6613 = vmatpush.bf16.msra.mxu0 %v6535
    %6614 = vmatpush.bf16.msra.mxu0 %v6531
    %6615 = vmatmul.bf16.gmra.mxu0 %v3666
    %v6616 = vpop.f32.mrf.mxu0
    %v6617 = vadd.f32 0.0, %v6616
    %v6618 = vpop.f32.mrf.mxu0
    %6619 = vdwg.mxu0
    %6620 = vmatpush.bf16.msra.mxu0 %v6560
    %6621 = vmatpush.bf16.msra.mxu0 %v6556
    %6622 = vmatpush.bf16.msra.mxu0 %v6552
    %6623 = vmatpush.bf16.msra.mxu0 %v6548
    %6624 = vmatpush.bf16.msra.mxu0 %v6544
    %6625 = vmatpush.bf16.msra.mxu0 %v6540
    %6626 = vmatpush.bf16.msra.mxu0 %v6536
    %6627 = vmatpush.bf16.msra.mxu0 %v6532
    %6628 = vmatmul.bf16.gmra.mxu0 %v3666
    %v6629 = vpop.f32.mrf.mxu0
    %v6630 = vadd.f32 0.0, %v6629
    %v6631 = vpop.f32.mrf.mxu0
    %6632 = vdwg.mxu0
    %6633 = vmatpush.bf16.msra.mxu0 %v6561
    %6634 = vmatpush.bf16.msra.mxu0 %v6557
    %6635 = vmatpush.bf16.msra.mxu0 %v6553
    %6636 = vmatpush.bf16.msra.mxu0 %v6549
    %6637 = vmatpush.bf16.msra.mxu0 %v6545
    %6638 = vmatpush.bf16.msra.mxu0 %v6541
    %6639 = vmatpush.bf16.msra.mxu0 %v6537
    %6640 = vmatpush.bf16.msra.mxu0 %v6533
    %6641 = vmatmul.bf16.gmra.mxu0 %v3666
    %v6642 = vpop.f32.mrf.mxu0
    %v6643 = vadd.f32 0.0, %v6642
    %v6644 = vpop.f32.mrf.mxu0
    %6645 = vdwg.mxu0
    %v6646 = vadd.f32 %v6397, %v6604
    %v6647 = vadd.f32 %v6398, %v6617
    %v6648 = vadd.f32 %v6399, %v6630
    %v6649 = vadd.f32 %v6400, %v6643
    %s6650 = scalar_lea.vmem [#allocation13], 3072
    %v6651 = vld [vmem:[%s6650] sm:$0xff]
    %v6652 = vld [vmem:[%s6650 + $0x8] sm:$0xff]
    %v6653 = vld [vmem:[%s6650 + $0x10] sm:$0xff]
    %v6654 = vld [vmem:[%s6650 + $0x18] sm:$0xff]
    %v6655 = vld [vmem:[%s6650 + $0x20] sm:$0xff]
    %v6656 = vld [vmem:[%s6650 + $0x28] sm:$0xff]
    %v6657 = vld [vmem:[%s6650 + $0x30] sm:$0xff]
    %v6658 = vld [vmem:[%s6650 + $0x38] sm:$0xff]
    %v6659 = vld [vmem:[%s6650 + $0x40] sm:$0xff]
    %v6660 = vld [vmem:[%s6650 + $0x48] sm:$0xff]
    %v6661 = vld [vmem:[%s6650 + $0x50] sm:$0xff]
    %v6662 = vld [vmem:[%s6650 + $0x58] sm:$0xff]
    %v6663 = vld [vmem:[%s6650 + $0x60] sm:$0xff]
    %v6664 = vld [vmem:[%s6650 + $0x68] sm:$0xff]
    %v6665 = vld [vmem:[%s6650 + $0x70] sm:$0xff]
    %v6666 = vld [vmem:[%s6650 + $0x78] sm:$0xff]
    %v6667 = vld [vmem:[%s6650 + $0x80] sm:$0xff]
    %v6668 = vld [vmem:[%s6650 + $0x88] sm:$0xff]
    %v6669 = vld [vmem:[%s6650 + $0x90] sm:$0xff]
    %v6670 = vld [vmem:[%s6650 + $0x98] sm:$0xff]
    %v6671 = vld [vmem:[%s6650 + $0xa0] sm:$0xff]
    %v6672 = vld [vmem:[%s6650 + $0xa8] sm:$0xff]
    %v6673 = vld [vmem:[%s6650 + $0xb0] sm:$0xff]
    %v6674 = vld [vmem:[%s6650 + $0xb8] sm:$0xff]
    %v6675 = vld [vmem:[%s6650 + $0xc0] sm:$0xff]
    %v6676 = vld [vmem:[%s6650 + $0xc8] sm:$0xff]
    %v6677 = vld [vmem:[%s6650 + $0xd0] sm:$0xff]
    %v6678 = vld [vmem:[%s6650 + $0xd8] sm:$0xff]
    %v6679 = vld [vmem:[%s6650 + $0xe0] sm:$0xff]
    %v6680 = vld [vmem:[%s6650 + $0xe8] sm:$0xff]
    %v6681 = vld [vmem:[%s6650 + $0xf0] sm:$0xff]
    %v6682 = vld [vmem:[%s6650 + $0xf8] sm:$0xff]
    %v6715 = vunpack.c.l.b16 %v6651
    %v6716 = vunpack.c.h.b16 %v6651
    %v6717 = vunpack.c.l.b16 %v6652
    %v6718 = vunpack.c.h.b16 %v6652
    %v6719 = vunpack.c.l.b16 %v6653
    %v6720 = vunpack.c.h.b16 %v6653
    %v6721 = vunpack.c.l.b16 %v6654
    %v6722 = vunpack.c.h.b16 %v6654
    %v6723 = vunpack.c.l.b16 %v6655
    %v6724 = vunpack.c.h.b16 %v6655
    %v6725 = vunpack.c.l.b16 %v6656
    %v6726 = vunpack.c.h.b16 %v6656
    %v6727 = vunpack.c.l.b16 %v6657
    %v6728 = vunpack.c.h.b16 %v6657
    %v6729 = vunpack.c.l.b16 %v6658
    %v6730 = vunpack.c.h.b16 %v6658
    %v6731 = vunpack.c.l.b16 %v6659
    %v6732 = vunpack.c.h.b16 %v6659
    %v6733 = vunpack.c.l.b16 %v6660
    %v6734 = vunpack.c.h.b16 %v6660
    %v6735 = vunpack.c.l.b16 %v6661
    %v6736 = vunpack.c.h.b16 %v6661
    %v6737 = vunpack.c.l.b16 %v6662
    %v6738 = vunpack.c.h.b16 %v6662
    %v6739 = vunpack.c.l.b16 %v6663
    %v6740 = vunpack.c.h.b16 %v6663
    %v6741 = vunpack.c.l.b16 %v6664
    %v6742 = vunpack.c.h.b16 %v6664
    %v6743 = vunpack.c.l.b16 %v6665
    %v6744 = vunpack.c.h.b16 %v6665
    %v6745 = vunpack.c.l.b16 %v6666
    %v6746 = vunpack.c.h.b16 %v6666
    %v6747 = vunpack.c.l.b16 %v6667
    %v6748 = vunpack.c.h.b16 %v6667
    %v6749 = vunpack.c.l.b16 %v6668
    %v6750 = vunpack.c.h.b16 %v6668
    %v6751 = vunpack.c.l.b16 %v6669
    %v6752 = vunpack.c.h.b16 %v6669
    %v6753 = vunpack.c.l.b16 %v6670
    %v6754 = vunpack.c.h.b16 %v6670
    %v6755 = vunpack.c.l.b16 %v6671
    %v6756 = vunpack.c.h.b16 %v6671
    %v6757 = vunpack.c.l.b16 %v6672
    %v6758 = vunpack.c.h.b16 %v6672
    %v6759 = vunpack.c.l.b16 %v6673
    %v6760 = vunpack.c.h.b16 %v6673
    %v6761 = vunpack.c.l.b16 %v6674
    %v6762 = vunpack.c.h.b16 %v6674
    %v6763 = vunpack.c.l.b16 %v6675
    %v6764 = vunpack.c.h.b16 %v6675
    %v6765 = vunpack.c.l.b16 %v6676
    %v6766 = vunpack.c.h.b16 %v6676
    %v6767 = vunpack.c.l.b16 %v6677
    %v6768 = vunpack.c.h.b16 %v6677
    %v6769 = vunpack.c.l.b16 %v6678
    %v6770 = vunpack.c.h.b16 %v6678
    %v6771 = vunpack.c.l.b16 %v6679
    %v6772 = vunpack.c.h.b16 %v6679
    %v6773 = vunpack.c.l.b16 %v6680
    %v6774 = vunpack.c.h.b16 %v6680
    %v6775 = vunpack.c.l.b16 %v6681
    %v6776 = vunpack.c.h.b16 %v6681
    %v6777 = vunpack.c.l.b16 %v6682
    %v6778 = vunpack.c.h.b16 %v6682
    %v6779 = vpack.c.b16 %v6719, %v6715
    %v6780 = vpack.c.b16 %v6720, %v6716
    %v6781 = vpack.c.b16 %v6721, %v6717
    %v6782 = vpack.c.b16 %v6722, %v6718
    %v6783 = vpack.c.b16 %v6727, %v6723
    %v6784 = vpack.c.b16 %v6728, %v6724
    %v6785 = vpack.c.b16 %v6729, %v6725
    %v6786 = vpack.c.b16 %v6730, %v6726
    %v6787 = vpack.c.b16 %v6735, %v6731
    %v6788 = vpack.c.b16 %v6736, %v6732
    %v6789 = vpack.c.b16 %v6737, %v6733
    %v6790 = vpack.c.b16 %v6738, %v6734
    %v6791 = vpack.c.b16 %v6743, %v6739
    %v6792 = vpack.c.b16 %v6744, %v6740
    %v6793 = vpack.c.b16 %v6745, %v6741
    %v6794 = vpack.c.b16 %v6746, %v6742
    %v6795 = vpack.c.b16 %v6751, %v6747
    %v6796 = vpack.c.b16 %v6752, %v6748
    %v6797 = vpack.c.b16 %v6753, %v6749
    %v6798 = vpack.c.b16 %v6754, %v6750
    %v6799 = vpack.c.b16 %v6759, %v6755
    %v6800 = vpack.c.b16 %v6760, %v6756
    %v6801 = vpack.c.b16 %v6761, %v6757
    %v6802 = vpack.c.b16 %v6762, %v6758
    %v6803 = vpack.c.b16 %v6767, %v6763
    %v6804 = vpack.c.b16 %v6768, %v6764
    %v6805 = vpack.c.b16 %v6769, %v6765
    %v6806 = vpack.c.b16 %v6770, %v6766
    %v6807 = vpack.c.b16 %v6775, %v6771
    %v6808 = vpack.c.b16 %v6776, %v6772
    %v6809 = vpack.c.b16 %v6777, %v6773
    %v6810 = vpack.c.b16 %v6778, %v6774
    %6843 = vmatpush.bf16.msra.mxu0 %v6807
    %6844 = vmatpush.bf16.msra.mxu0 %v6803
    %6845 = vmatpush.bf16.msra.mxu0 %v6799
    %6846 = vmatpush.bf16.msra.mxu0 %v6795
    %6847 = vmatpush.bf16.msra.mxu0 %v6791
    %6848 = vmatpush.bf16.msra.mxu0 %v6787
    %6849 = vmatpush.bf16.msra.mxu0 %v6783
    %6850 = vmatpush.bf16.msra.mxu0 %v6779
    %6851 = vmatmul.bf16.gmra.mxu0 %v3667
    %v6852 = vpop.f32.mrf.mxu0
    %v6853 = vadd.f32 0.0, %v6852
    %v6854 = vpop.f32.mrf.mxu0
    %6855 = vdwg.mxu0
    %6856 = vmatpush.bf16.msra.mxu0 %v6808
    %6857 = vmatpush.bf16.msra.mxu0 %v6804
    %6858 = vmatpush.bf16.msra.mxu0 %v6800
    %6859 = vmatpush.bf16.msra.mxu0 %v6796
    %6860 = vmatpush.bf16.msra.mxu0 %v6792
    %6861 = vmatpush.bf16.msra.mxu0 %v6788
    %6862 = vmatpush.bf16.msra.mxu0 %v6784
    %6863 = vmatpush.bf16.msra.mxu0 %v6780
    %6864 = vmatmul.bf16.gmra.mxu0 %v3667
    %v6865 = vpop.f32.mrf.mxu0
    %v6866 = vadd.f32 0.0, %v6865
    %v6867 = vpop.f32.mrf.mxu0
    %6868 = vdwg.mxu0
    %6869 = vmatpush.bf16.msra.mxu0 %v6809
    %6870 = vmatpush.bf16.msra.mxu0 %v6805
    %6871 = vmatpush.bf16.msra.mxu0 %v6801
    %6872 = vmatpush.bf16.msra.mxu0 %v6797
    %6873 = vmatpush.bf16.msra.mxu0 %v6793
    %6874 = vmatpush.bf16.msra.mxu0 %v6789
    %6875 = vmatpush.bf16.msra.mxu0 %v6785
    %6876 = vmatpush.bf16.msra.mxu0 %v6781
    %6877 = vmatmul.bf16.gmra.mxu0 %v3667
    %v6878 = vpop.f32.mrf.mxu0
    %v6879 = vadd.f32 0.0, %v6878
    %v6880 = vpop.f32.mrf.mxu0
    %6881 = vdwg.mxu0
    %6882 = vmatpush.bf16.msra.mxu0 %v6810
    %6883 = vmatpush.bf16.msra.mxu0 %v6806
    %6884 = vmatpush.bf16.msra.mxu0 %v6802
    %6885 = vmatpush.bf16.msra.mxu0 %v6798
    %6886 = vmatpush.bf16.msra.mxu0 %v6794
    %6887 = vmatpush.bf16.msra.mxu0 %v6790
    %6888 = vmatpush.bf16.msra.mxu0 %v6786
    %6889 = vmatpush.bf16.msra.mxu0 %v6782
    %6890 = vmatmul.bf16.gmra.mxu0 %v3667
    %v6891 = vpop.f32.mrf.mxu0
    %v6892 = vadd.f32 0.0, %v6891
    %v6893 = vpop.f32.mrf.mxu0
    %6894 = vdwg.mxu0
    %v6895 = vadd.f32 %v6646, %v6853
    %v6896 = vadd.f32 %v6647, %v6866
    %v6897 = vadd.f32 %v6648, %v6879
    %v6898 = vadd.f32 %v6649, %v6892
    %s6899 = scalar_lea.vmem [#allocation13], 3328
    %v6900 = vld [vmem:[%s6899] sm:$0xff]
    %v6901 = vld [vmem:[%s6899 + $0x8] sm:$0xff]
    %v6902 = vld [vmem:[%s6899 + $0x10] sm:$0xff]
    %v6903 = vld [vmem:[%s6899 + $0x18] sm:$0xff]
    %v6904 = vld [vmem:[%s6899 + $0x20] sm:$0xff]
    %v6905 = vld [vmem:[%s6899 + $0x28] sm:$0xff]
    %v6906 = vld [vmem:[%s6899 + $0x30] sm:$0xff]
    %v6907 = vld [vmem:[%s6899 + $0x38] sm:$0xff]
    %v6908 = vld [vmem:[%s6899 + $0x40] sm:$0xff]
    %v6909 = vld [vmem:[%s6899 + $0x48] sm:$0xff]
    %v6910 = vld [vmem:[%s6899 + $0x50] sm:$0xff]
    %v6911 = vld [vmem:[%s6899 + $0x58] sm:$0xff]
    %v6912 = vld [vmem:[%s6899 + $0x60] sm:$0xff]
    %v6913 = vld [vmem:[%s6899 + $0x68] sm:$0xff]
    %v6914 = vld [vmem:[%s6899 + $0x70] sm:$0xff]
    %v6915 = vld [vmem:[%s6899 + $0x78] sm:$0xff]
    %v6916 = vld [vmem:[%s6899 + $0x80] sm:$0xff]
    %v6917 = vld [vmem:[%s6899 + $0x88] sm:$0xff]
    %v6918 = vld [vmem:[%s6899 + $0x90] sm:$0xff]
    %v6919 = vld [vmem:[%s6899 + $0x98] sm:$0xff]
    %v6920 = vld [vmem:[%s6899 + $0xa0] sm:$0xff]
    %v6921 = vld [vmem:[%s6899 + $0xa8] sm:$0xff]
    %v6922 = vld [vmem:[%s6899 + $0xb0] sm:$0xff]
    %v6923 = vld [vmem:[%s6899 + $0xb8] sm:$0xff]
    %v6924 = vld [vmem:[%s6899 + $0xc0] sm:$0xff]
    %v6925 = vld [vmem:[%s6899 + $0xc8] sm:$0xff]
    %v6926 = vld [vmem:[%s6899 + $0xd0] sm:$0xff]
    %v6927 = vld [vmem:[%s6899 + $0xd8] sm:$0xff]
    %v6928 = vld [vmem:[%s6899 + $0xe0] sm:$0xff]
    %v6929 = vld [vmem:[%s6899 + $0xe8] sm:$0xff]
    %v6930 = vld [vmem:[%s6899 + $0xf0] sm:$0xff]
    %v6931 = vld [vmem:[%s6899 + $0xf8] sm:$0xff]
    %v6964 = vunpack.c.l.b16 %v6900
    %v6965 = vunpack.c.h.b16 %v6900
    %v6966 = vunpack.c.l.b16 %v6901
    %v6967 = vunpack.c.h.b16 %v6901
    %v6968 = vunpack.c.l.b16 %v6902
    %v6969 = vunpack.c.h.b16 %v6902
    %v6970 = vunpack.c.l.b16 %v6903
    %v6971 = vunpack.c.h.b16 %v6903
    %v6972 = vunpack.c.l.b16 %v6904
    %v6973 = vunpack.c.h.b16 %v6904
    %v6974 = vunpack.c.l.b16 %v6905
    %v6975 = vunpack.c.h.b16 %v6905
    %v6976 = vunpack.c.l.b16 %v6906
    %v6977 = vunpack.c.h.b16 %v6906
    %v6978 = vunpack.c.l.b16 %v6907
    %v6979 = vunpack.c.h.b16 %v6907
    %v6980 = vunpack.c.l.b16 %v6908
    %v6981 = vunpack.c.h.b16 %v6908
    %v6982 = vunpack.c.l.b16 %v6909
    %v6983 = vunpack.c.h.b16 %v6909
    %v6984 = vunpack.c.l.b16 %v6910
    %v6985 = vunpack.c.h.b16 %v6910
    %v6986 = vunpack.c.l.b16 %v6911
    %v6987 = vunpack.c.h.b16 %v6911
    %v6988 = vunpack.c.l.b16 %v6912
    %v6989 = vunpack.c.h.b16 %v6912
    %v6990 = vunpack.c.l.b16 %v6913
    %v6991 = vunpack.c.h.b16 %v6913
    %v6992 = vunpack.c.l.b16 %v6914
    %v6993 = vunpack.c.h.b16 %v6914
    %v6994 = vunpack.c.l.b16 %v6915
    %v6995 = vunpack.c.h.b16 %v6915
    %v6996 = vunpack.c.l.b16 %v6916
    %v6997 = vunpack.c.h.b16 %v6916
    %v6998 = vunpack.c.l.b16 %v6917
    %v6999 = vunpack.c.h.b16 %v6917
    %v7000 = vunpack.c.l.b16 %v6918
    %v7001 = vunpack.c.h.b16 %v6918
    %v7002 = vunpack.c.l.b16 %v6919
    %v7003 = vunpack.c.h.b16 %v6919
    %v7004 = vunpack.c.l.b16 %v6920
    %v7005 = vunpack.c.h.b16 %v6920
    %v7006 = vunpack.c.l.b16 %v6921
    %v7007 = vunpack.c.h.b16 %v6921
    %v7008 = vunpack.c.l.b16 %v6922
    %v7009 = vunpack.c.h.b16 %v6922
    %v7010 = vunpack.c.l.b16 %v6923
    %v7011 = vunpack.c.h.b16 %v6923
    %v7012 = vunpack.c.l.b16 %v6924
    %v7013 = vunpack.c.h.b16 %v6924
    %v7014 = vunpack.c.l.b16 %v6925
    %v7015 = vunpack.c.h.b16 %v6925
    %v7016 = vunpack.c.l.b16 %v6926
    %v7017 = vunpack.c.h.b16 %v6926
    %v7018 = vunpack.c.l.b16 %v6927
    %v7019 = vunpack.c.h.b16 %v6927
    %v7020 = vunpack.c.l.b16 %v6928
    %v7021 = vunpack.c.h.b16 %v6928
    %v7022 = vunpack.c.l.b16 %v6929
    %v7023 = vunpack.c.h.b16 %v6929
    %v7024 = vunpack.c.l.b16 %v6930
    %v7025 = vunpack.c.h.b16 %v6930
    %v7026 = vunpack.c.l.b16 %v6931
    %v7027 = vunpack.c.h.b16 %v6931
    %v7028 = vpack.c.b16 %v6968, %v6964
    %v7029 = vpack.c.b16 %v6969, %v6965
    %v7030 = vpack.c.b16 %v6970, %v6966
    %v7031 = vpack.c.b16 %v6971, %v6967
    %v7032 = vpack.c.b16 %v6976, %v6972
    %v7033 = vpack.c.b16 %v6977, %v6973
    %v7034 = vpack.c.b16 %v6978, %v6974
    %v7035 = vpack.c.b16 %v6979, %v6975
    %v7036 = vpack.c.b16 %v6984, %v6980
    %v7037 = vpack.c.b16 %v6985, %v6981
    %v7038 = vpack.c.b16 %v6986, %v6982
    %v7039 = vpack.c.b16 %v6987, %v6983
    %v7040 = vpack.c.b16 %v6992, %v6988
    %v7041 = vpack.c.b16 %v6993, %v6989
    %v7042 = vpack.c.b16 %v6994, %v6990
    %v7043 = vpack.c.b16 %v6995, %v6991
    %v7044 = vpack.c.b16 %v7000, %v6996
    %v7045 = vpack.c.b16 %v7001, %v6997
    %v7046 = vpack.c.b16 %v7002, %v6998
    %v7047 = vpack.c.b16 %v7003, %v6999
    %v7048 = vpack.c.b16 %v7008, %v7004
    %v7049 = vpack.c.b16 %v7009, %v7005
    %v7050 = vpack.c.b16 %v7010, %v7006
    %v7051 = vpack.c.b16 %v7011, %v7007
    %v7052 = vpack.c.b16 %v7016, %v7012
    %v7053 = vpack.c.b16 %v7017, %v7013
    %v7054 = vpack.c.b16 %v7018, %v7014
    %v7055 = vpack.c.b16 %v7019, %v7015
    %v7056 = vpack.c.b16 %v7024, %v7020
    %v7057 = vpack.c.b16 %v7025, %v7021
    %v7058 = vpack.c.b16 %v7026, %v7022
    %v7059 = vpack.c.b16 %v7027, %v7023
    %7092 = vmatpush.bf16.msra.mxu0 %v7056
    %7093 = vmatpush.bf16.msra.mxu0 %v7052
    %7094 = vmatpush.bf16.msra.mxu0 %v7048
    %7095 = vmatpush.bf16.msra.mxu0 %v7044
    %7096 = vmatpush.bf16.msra.mxu0 %v7040
    %7097 = vmatpush.bf16.msra.mxu0 %v7036
    %7098 = vmatpush.bf16.msra.mxu0 %v7032
    %7099 = vmatpush.bf16.msra.mxu0 %v7028
    %7100 = vmatmul.bf16.gmra.mxu0 %v3668
    %v7101 = vpop.f32.mrf.mxu0
    %v7102 = vadd.f32 0.0, %v7101
    %v7103 = vpop.f32.mrf.mxu0
    %7104 = vdwg.mxu0
    %7105 = vmatpush.bf16.msra.mxu0 %v7057
    %7106 = vmatpush.bf16.msra.mxu0 %v7053
    %7107 = vmatpush.bf16.msra.mxu0 %v7049
    %7108 = vmatpush.bf16.msra.mxu0 %v7045
    %7109 = vmatpush.bf16.msra.mxu0 %v7041
    %7110 = vmatpush.bf16.msra.mxu0 %v7037
    %7111 = vmatpush.bf16.msra.mxu0 %v7033
    %7112 = vmatpush.bf16.msra.mxu0 %v7029
    %7113 = vmatmul.bf16.gmra.mxu0 %v3668
    %v7114 = vpop.f32.mrf.mxu0
    %v7115 = vadd.f32 0.0, %v7114
    %v7116 = vpop.f32.mrf.mxu0
    %7117 = vdwg.mxu0
    %7118 = vmatpush.bf16.msra.mxu0 %v7058
    %7119 = vmatpush.bf16.msra.mxu0 %v7054
    %7120 = vmatpush.bf16.msra.mxu0 %v7050
    %7121 = vmatpush.bf16.msra.mxu0 %v7046
    %7122 = vmatpush.bf16.msra.mxu0 %v7042
    %7123 = vmatpush.bf16.msra.mxu0 %v7038
    %7124 = vmatpush.bf16.msra.mxu0 %v7034
    %7125 = vmatpush.bf16.msra.mxu0 %v7030
    %7126 = vmatmul.bf16.gmra.mxu0 %v3668
    %v7127 = vpop.f32.mrf.mxu0
    %v7128 = vadd.f32 0.0, %v7127
    %v7129 = vpop.f32.mrf.mxu0
    %7130 = vdwg.mxu0
    %7131 = vmatpush.bf16.msra.mxu0 %v7059
    %7132 = vmatpush.bf16.msra.mxu0 %v7055
    %7133 = vmatpush.bf16.msra.mxu0 %v7051
    %7134 = vmatpush.bf16.msra.mxu0 %v7047
    %7135 = vmatpush.bf16.msra.mxu0 %v7043
    %7136 = vmatpush.bf16.msra.mxu0 %v7039
    %7137 = vmatpush.bf16.msra.mxu0 %v7035
    %7138 = vmatpush.bf16.msra.mxu0 %v7031
    %7139 = vmatmul.bf16.gmra.mxu0 %v3668
    %v7140 = vpop.f32.mrf.mxu0
    %v7141 = vadd.f32 0.0, %v7140
    %v7142 = vpop.f32.mrf.mxu0
    %7143 = vdwg.mxu0
    %v7144 = vadd.f32 %v6895, %v7102
    %v7145 = vadd.f32 %v6896, %v7115
    %v7146 = vadd.f32 %v6897, %v7128
    %v7147 = vadd.f32 %v6898, %v7141
    %s7148 = scalar_lea.vmem [#allocation13], 3584
    %v7149 = vld [vmem:[%s7148] sm:$0xff]
    %v7150 = vld [vmem:[%s7148 + $0x8] sm:$0xff]
    %v7151 = vld [vmem:[%s7148 + $0x10] sm:$0xff]
    %v7152 = vld [vmem:[%s7148 + $0x18] sm:$0xff]
    %v7153 = vld [vmem:[%s7148 + $0x20] sm:$0xff]
    %v7154 = vld [vmem:[%s7148 + $0x28] sm:$0xff]
    %v7155 = vld [vmem:[%s7148 + $0x30] sm:$0xff]
    %v7156 = vld [vmem:[%s7148 + $0x38] sm:$0xff]
    %v7157 = vld [vmem:[%s7148 + $0x40] sm:$0xff]
    %v7158 = vld [vmem:[%s7148 + $0x48] sm:$0xff]
    %v7159 = vld [vmem:[%s7148 + $0x50] sm:$0xff]
    %v7160 = vld [vmem:[%s7148 + $0x58] sm:$0xff]
    %v7161 = vld [vmem:[%s7148 + $0x60] sm:$0xff]
    %v7162 = vld [vmem:[%s7148 + $0x68] sm:$0xff]
    %v7163 = vld [vmem:[%s7148 + $0x70] sm:$0xff]
    %v7164 = vld [vmem:[%s7148 + $0x78] sm:$0xff]
    %v7165 = vld [vmem:[%s7148 + $0x80] sm:$0xff]
    %v7166 = vld [vmem:[%s7148 + $0x88] sm:$0xff]
    %v7167 = vld [vmem:[%s7148 + $0x90] sm:$0xff]
    %v7168 = vld [vmem:[%s7148 + $0x98] sm:$0xff]
    %v7169 = vld [vmem:[%s7148 + $0xa0] sm:$0xff]
    %v7170 = vld [vmem:[%s7148 + $0xa8] sm:$0xff]
    %v7171 = vld [vmem:[%s7148 + $0xb0] sm:$0xff]
    %v7172 = vld [vmem:[%s7148 + $0xb8] sm:$0xff]
    %v7173 = vld [vmem:[%s7148 + $0xc0] sm:$0xff]
    %v7174 = vld [vmem:[%s7148 + $0xc8] sm:$0xff]
    %v7175 = vld [vmem:[%s7148 + $0xd0] sm:$0xff]
    %v7176 = vld [vmem:[%s7148 + $0xd8] sm:$0xff]
    %v7177 = vld [vmem:[%s7148 + $0xe0] sm:$0xff]
    %v7178 = vld [vmem:[%s7148 + $0xe8] sm:$0xff]
    %v7179 = vld [vmem:[%s7148 + $0xf0] sm:$0xff]
    %v7180 = vld [vmem:[%s7148 + $0xf8] sm:$0xff]
    %v7213 = vunpack.c.l.b16 %v7149
    %v7214 = vunpack.c.h.b16 %v7149
    %v7215 = vunpack.c.l.b16 %v7150
    %v7216 = vunpack.c.h.b16 %v7150
    %v7217 = vunpack.c.l.b16 %v7151
    %v7218 = vunpack.c.h.b16 %v7151
    %v7219 = vunpack.c.l.b16 %v7152
    %v7220 = vunpack.c.h.b16 %v7152
    %v7221 = vunpack.c.l.b16 %v7153
    %v7222 = vunpack.c.h.b16 %v7153
    %v7223 = vunpack.c.l.b16 %v7154
    %v7224 = vunpack.c.h.b16 %v7154
    %v7225 = vunpack.c.l.b16 %v7155
    %v7226 = vunpack.c.h.b16 %v7155
    %v7227 = vunpack.c.l.b16 %v7156
    %v7228 = vunpack.c.h.b16 %v7156
    %v7229 = vunpack.c.l.b16 %v7157
    %v7230 = vunpack.c.h.b16 %v7157
    %v7231 = vunpack.c.l.b16 %v7158
    %v7232 = vunpack.c.h.b16 %v7158
    %v7233 = vunpack.c.l.b16 %v7159
    %v7234 = vunpack.c.h.b16 %v7159
    %v7235 = vunpack.c.l.b16 %v7160
    %v7236 = vunpack.c.h.b16 %v7160
    %v7237 = vunpack.c.l.b16 %v7161
    %v7238 = vunpack.c.h.b16 %v7161
    %v7239 = vunpack.c.l.b16 %v7162
    %v7240 = vunpack.c.h.b16 %v7162
    %v7241 = vunpack.c.l.b16 %v7163
    %v7242 = vunpack.c.h.b16 %v7163
    %v7243 = vunpack.c.l.b16 %v7164
    %v7244 = vunpack.c.h.b16 %v7164
    %v7245 = vunpack.c.l.b16 %v7165
    %v7246 = vunpack.c.h.b16 %v7165
    %v7247 = vunpack.c.l.b16 %v7166
    %v7248 = vunpack.c.h.b16 %v7166
    %v7249 = vunpack.c.l.b16 %v7167
    %v7250 = vunpack.c.h.b16 %v7167
    %v7251 = vunpack.c.l.b16 %v7168
    %v7252 = vunpack.c.h.b16 %v7168
    %v7253 = vunpack.c.l.b16 %v7169
    %v7254 = vunpack.c.h.b16 %v7169
    %v7255 = vunpack.c.l.b16 %v7170
    %v7256 = vunpack.c.h.b16 %v7170
    %v7257 = vunpack.c.l.b16 %v7171
    %v7258 = vunpack.c.h.b16 %v7171
    %v7259 = vunpack.c.l.b16 %v7172
    %v7260 = vunpack.c.h.b16 %v7172
    %v7261 = vunpack.c.l.b16 %v7173
    %v7262 = vunpack.c.h.b16 %v7173
    %v7263 = vunpack.c.l.b16 %v7174
    %v7264 = vunpack.c.h.b16 %v7174
    %v7265 = vunpack.c.l.b16 %v7175
    %v7266 = vunpack.c.h.b16 %v7175
    %v7267 = vunpack.c.l.b16 %v7176
    %v7268 = vunpack.c.h.b16 %v7176
    %v7269 = vunpack.c.l.b16 %v7177
    %v7270 = vunpack.c.h.b16 %v7177
    %v7271 = vunpack.c.l.b16 %v7178
    %v7272 = vunpack.c.h.b16 %v7178
    %v7273 = vunpack.c.l.b16 %v7179
    %v7274 = vunpack.c.h.b16 %v7179
    %v7275 = vunpack.c.l.b16 %v7180
    %v7276 = vunpack.c.h.b16 %v7180
    %v7277 = vpack.c.b16 %v7217, %v7213
    %v7278 = vpack.c.b16 %v7218, %v7214
    %v7279 = vpack.c.b16 %v7219, %v7215
    %v7280 = vpack.c.b16 %v7220, %v7216
    %v7281 = vpack.c.b16 %v7225, %v7221
    %v7282 = vpack.c.b16 %v7226, %v7222
    %v7283 = vpack.c.b16 %v7227, %v7223
    %v7284 = vpack.c.b16 %v7228, %v7224
    %v7285 = vpack.c.b16 %v7233, %v7229
    %v7286 = vpack.c.b16 %v7234, %v7230
    %v7287 = vpack.c.b16 %v7235, %v7231
    %v7288 = vpack.c.b16 %v7236, %v7232
    %v7289 = vpack.c.b16 %v7241, %v7237
    %v7290 = vpack.c.b16 %v7242, %v7238
    %v7291 = vpack.c.b16 %v7243, %v7239
    %v7292 = vpack.c.b16 %v7244, %v7240
    %v7293 = vpack.c.b16 %v7249, %v7245
    %v7294 = vpack.c.b16 %v7250, %v7246
    %v7295 = vpack.c.b16 %v7251, %v7247
    %v7296 = vpack.c.b16 %v7252, %v7248
    %v7297 = vpack.c.b16 %v7257, %v7253
    %v7298 = vpack.c.b16 %v7258, %v7254
    %v7299 = vpack.c.b16 %v7259, %v7255
    %v7300 = vpack.c.b16 %v7260, %v7256
    %v7301 = vpack.c.b16 %v7265, %v7261
    %v7302 = vpack.c.b16 %v7266, %v7262
    %v7303 = vpack.c.b16 %v7267, %v7263
    %v7304 = vpack.c.b16 %v7268, %v7264
    %v7305 = vpack.c.b16 %v7273, %v7269
    %v7306 = vpack.c.b16 %v7274, %v7270
    %v7307 = vpack.c.b16 %v7275, %v7271
    %v7308 = vpack.c.b16 %v7276, %v7272
    %7341 = vmatpush.bf16.msra.mxu0 %v7305
    %7342 = vmatpush.bf16.msra.mxu0 %v7301
    %7343 = vmatpush.bf16.msra.mxu0 %v7297
    %7344 = vmatpush.bf16.msra.mxu0 %v7293
    %7345 = vmatpush.bf16.msra.mxu0 %v7289
    %7346 = vmatpush.bf16.msra.mxu0 %v7285
    %7347 = vmatpush.bf16.msra.mxu0 %v7281
    %7348 = vmatpush.bf16.msra.mxu0 %v7277
    %7349 = vmatmul.bf16.gmra.mxu0 %v3669
    %v7350 = vpop.f32.mrf.mxu0
    %v7351 = vadd.f32 0.0, %v7350
    %v7352 = vpop.f32.mrf.mxu0
    %7353 = vdwg.mxu0
    %7354 = vmatpush.bf16.msra.mxu0 %v7306
    %7355 = vmatpush.bf16.msra.mxu0 %v7302
    %7356 = vmatpush.bf16.msra.mxu0 %v7298
    %7357 = vmatpush.bf16.msra.mxu0 %v7294
    %7358 = vmatpush.bf16.msra.mxu0 %v7290
    %7359 = vmatpush.bf16.msra.mxu0 %v7286
    %7360 = vmatpush.bf16.msra.mxu0 %v7282
    %7361 = vmatpush.bf16.msra.mxu0 %v7278
    %7362 = vmatmul.bf16.gmra.mxu0 %v3669
    %v7363 = vpop.f32.mrf.mxu0
    %v7364 = vadd.f32 0.0, %v7363
    %v7365 = vpop.f32.mrf.mxu0
    %7366 = vdwg.mxu0
    %7367 = vmatpush.bf16.msra.mxu0 %v7307
    %7368 = vmatpush.bf16.msra.mxu0 %v7303
    %7369 = vmatpush.bf16.msra.mxu0 %v7299
    %7370 = vmatpush.bf16.msra.mxu0 %v7295
    %7371 = vmatpush.bf16.msra.mxu0 %v7291
    %7372 = vmatpush.bf16.msra.mxu0 %v7287
    %7373 = vmatpush.bf16.msra.mxu0 %v7283
    %7374 = vmatpush.bf16.msra.mxu0 %v7279
    %7375 = vmatmul.bf16.gmra.mxu0 %v3669
    %v7376 = vpop.f32.mrf.mxu0
    %v7377 = vadd.f32 0.0, %v7376
    %v7378 = vpop.f32.mrf.mxu0
    %7379 = vdwg.mxu0
    %7380 = vmatpush.bf16.msra.mxu0 %v7308
    %7381 = vmatpush.bf16.msra.mxu0 %v7304
    %7382 = vmatpush.bf16.msra.mxu0 %v7300
    %7383 = vmatpush.bf16.msra.mxu0 %v7296
    %7384 = vmatpush.bf16.msra.mxu0 %v7292
    %7385 = vmatpush.bf16.msra.mxu0 %v7288
    %7386 = vmatpush.bf16.msra.mxu0 %v7284
    %7387 = vmatpush.bf16.msra.mxu0 %v7280
    %7388 = vmatmul.bf16.gmra.mxu0 %v3669
    %v7389 = vpop.f32.mrf.mxu0
    %v7390 = vadd.f32 0.0, %v7389
    %v7391 = vpop.f32.mrf.mxu0
    %7392 = vdwg.mxu0
    %v7393 = vadd.f32 %v7144, %v7351
    %v7394 = vadd.f32 %v7145, %v7364
    %v7395 = vadd.f32 %v7146, %v7377
    %v7396 = vadd.f32 %v7147, %v7390
    %s7397 = scalar_lea.vmem [#allocation13], 3840
    %v7398 = vld [vmem:[%s7397] sm:$0xff]
    %v7399 = vld [vmem:[%s7397 + $0x8] sm:$0xff]
    %v7400 = vld [vmem:[%s7397 + $0x10] sm:$0xff]
    %v7401 = vld [vmem:[%s7397 + $0x18] sm:$0xff]
    %v7402 = vld [vmem:[%s7397 + $0x20] sm:$0xff]
    %v7403 = vld [vmem:[%s7397 + $0x28] sm:$0xff]
    %v7404 = vld [vmem:[%s7397 + $0x30] sm:$0xff]
    %v7405 = vld [vmem:[%s7397 + $0x38] sm:$0xff]
    %v7406 = vld [vmem:[%s7397 + $0x40] sm:$0xff]
    %v7407 = vld [vmem:[%s7397 + $0x48] sm:$0xff]
    %v7408 = vld [vmem:[%s7397 + $0x50] sm:$0xff]
    %v7409 = vld [vmem:[%s7397 + $0x58] sm:$0xff]
    %v7410 = vld [vmem:[%s7397 + $0x60] sm:$0xff]
    %v7411 = vld [vmem:[%s7397 + $0x68] sm:$0xff]
    %v7412 = vld [vmem:[%s7397 + $0x70] sm:$0xff]
    %v7413 = vld [vmem:[%s7397 + $0x78] sm:$0xff]
    %v7414 = vld [vmem:[%s7397 + $0x80] sm:$0xff]
    %v7415 = vld [vmem:[%s7397 + $0x88] sm:$0xff]
    %v7416 = vld [vmem:[%s7397 + $0x90] sm:$0xff]
    %v7417 = vld [vmem:[%s7397 + $0x98] sm:$0xff]
    %v7418 = vld [vmem:[%s7397 + $0xa0] sm:$0xff]
    %v7419 = vld [vmem:[%s7397 + $0xa8] sm:$0xff]
    %v7420 = vld [vmem:[%s7397 + $0xb0] sm:$0xff]
    %v7421 = vld [vmem:[%s7397 + $0xb8] sm:$0xff]
    %v7422 = vld [vmem:[%s7397 + $0xc0] sm:$0xff]
    %v7423 = vld [vmem:[%s7397 + $0xc8] sm:$0xff]
    %v7424 = vld [vmem:[%s7397 + $0xd0] sm:$0xff]
    %v7425 = vld [vmem:[%s7397 + $0xd8] sm:$0xff]
    %v7426 = vld [vmem:[%s7397 + $0xe0] sm:$0xff]
    %v7427 = vld [vmem:[%s7397 + $0xe8] sm:$0xff]
    %v7428 = vld [vmem:[%s7397 + $0xf0] sm:$0xff]
    %v7429 = vld [vmem:[%s7397 + $0xf8] sm:$0xff]
    %v7462 = vunpack.c.l.b16 %v7398
    %v7463 = vunpack.c.h.b16 %v7398
    %v7464 = vunpack.c.l.b16 %v7399
    %v7465 = vunpack.c.h.b16 %v7399
    %v7466 = vunpack.c.l.b16 %v7400
    %v7467 = vunpack.c.h.b16 %v7400
    %v7468 = vunpack.c.l.b16 %v7401
    %v7469 = vunpack.c.h.b16 %v7401
    %v7470 = vunpack.c.l.b16 %v7402
    %v7471 = vunpack.c.h.b16 %v7402
    %v7472 = vunpack.c.l.b16 %v7403
    %v7473 = vunpack.c.h.b16 %v7403
    %v7474 = vunpack.c.l.b16 %v7404
    %v7475 = vunpack.c.h.b16 %v7404
    %v7476 = vunpack.c.l.b16 %v7405
    %v7477 = vunpack.c.h.b16 %v7405
    %v7478 = vunpack.c.l.b16 %v7406
    %v7479 = vunpack.c.h.b16 %v7406
    %v7480 = vunpack.c.l.b16 %v7407
    %v7481 = vunpack.c.h.b16 %v7407
    %v7482 = vunpack.c.l.b16 %v7408
    %v7483 = vunpack.c.h.b16 %v7408
    %v7484 = vunpack.c.l.b16 %v7409
    %v7485 = vunpack.c.h.b16 %v7409
    %v7486 = vunpack.c.l.b16 %v7410
    %v7487 = vunpack.c.h.b16 %v7410
    %v7488 = vunpack.c.l.b16 %v7411
    %v7489 = vunpack.c.h.b16 %v7411
    %v7490 = vunpack.c.l.b16 %v7412
    %v7491 = vunpack.c.h.b16 %v7412
    %v7492 = vunpack.c.l.b16 %v7413
    %v7493 = vunpack.c.h.b16 %v7413
    %v7494 = vunpack.c.l.b16 %v7414
    %v7495 = vunpack.c.h.b16 %v7414
    %v7496 = vunpack.c.l.b16 %v7415
    %v7497 = vunpack.c.h.b16 %v7415
    %v7498 = vunpack.c.l.b16 %v7416
    %v7499 = vunpack.c.h.b16 %v7416
    %v7500 = vunpack.c.l.b16 %v7417
    %v7501 = vunpack.c.h.b16 %v7417
    %v7502 = vunpack.c.l.b16 %v7418
    %v7503 = vunpack.c.h.b16 %v7418
    %v7504 = vunpack.c.l.b16 %v7419
    %v7505 = vunpack.c.h.b16 %v7419
    %v7506 = vunpack.c.l.b16 %v7420
    %v7507 = vunpack.c.h.b16 %v7420
    %v7508 = vunpack.c.l.b16 %v7421
    %v7509 = vunpack.c.h.b16 %v7421
    %v7510 = vunpack.c.l.b16 %v7422
    %v7511 = vunpack.c.h.b16 %v7422
    %v7512 = vunpack.c.l.b16 %v7423
    %v7513 = vunpack.c.h.b16 %v7423
    %v7514 = vunpack.c.l.b16 %v7424
    %v7515 = vunpack.c.h.b16 %v7424
    %v7516 = vunpack.c.l.b16 %v7425
    %v7517 = vunpack.c.h.b16 %v7425
    %v7518 = vunpack.c.l.b16 %v7426
    %v7519 = vunpack.c.h.b16 %v7426
    %v7520 = vunpack.c.l.b16 %v7427
    %v7521 = vunpack.c.h.b16 %v7427
    %v7522 = vunpack.c.l.b16 %v7428
    %v7523 = vunpack.c.h.b16 %v7428
    %v7524 = vunpack.c.l.b16 %v7429
    %v7525 = vunpack.c.h.b16 %v7429
    %v7526 = vpack.c.b16 %v7466, %v7462
    %v7527 = vpack.c.b16 %v7467, %v7463
    %v7528 = vpack.c.b16 %v7468, %v7464
    %v7529 = vpack.c.b16 %v7469, %v7465
    %v7530 = vpack.c.b16 %v7474, %v7470
    %v7531 = vpack.c.b16 %v7475, %v7471
    %v7532 = vpack.c.b16 %v7476, %v7472
    %v7533 = vpack.c.b16 %v7477, %v7473
    %v7534 = vpack.c.b16 %v7482, %v7478
    %v7535 = vpack.c.b16 %v7483, %v7479
    %v7536 = vpack.c.b16 %v7484, %v7480
    %v7537 = vpack.c.b16 %v7485, %v7481
    %v7538 = vpack.c.b16 %v7490, %v7486
    %v7539 = vpack.c.b16 %v7491, %v7487
    %v7540 = vpack.c.b16 %v7492, %v7488
    %v7541 = vpack.c.b16 %v7493, %v7489
    %v7542 = vpack.c.b16 %v7498, %v7494
    %v7543 = vpack.c.b16 %v7499, %v7495
    %v7544 = vpack.c.b16 %v7500, %v7496
    %v7545 = vpack.c.b16 %v7501, %v7497
    %v7546 = vpack.c.b16 %v7506, %v7502
    %v7547 = vpack.c.b16 %v7507, %v7503
    %v7548 = vpack.c.b16 %v7508, %v7504
    %v7549 = vpack.c.b16 %v7509, %v7505
    %v7550 = vpack.c.b16 %v7514, %v7510
    %v7551 = vpack.c.b16 %v7515, %v7511
    %v7552 = vpack.c.b16 %v7516, %v7512
    %v7553 = vpack.c.b16 %v7517, %v7513
    %v7554 = vpack.c.b16 %v7522, %v7518
    %v7555 = vpack.c.b16 %v7523, %v7519
    %v7556 = vpack.c.b16 %v7524, %v7520
    %v7557 = vpack.c.b16 %v7525, %v7521
    %7590 = vmatpush.bf16.msra.mxu0 %v7554
    %7591 = vmatpush.bf16.msra.mxu0 %v7550
    %7592 = vmatpush.bf16.msra.mxu0 %v7546
    %7593 = vmatpush.bf16.msra.mxu0 %v7542
    %7594 = vmatpush.bf16.msra.mxu0 %v7538
    %7595 = vmatpush.bf16.msra.mxu0 %v7534
    %7596 = vmatpush.bf16.msra.mxu0 %v7530
    %7597 = vmatpush.bf16.msra.mxu0 %v7526
    %7598 = vmatmul.bf16.gmra.mxu0 %v3670
    %v7599 = vpop.f32.mrf.mxu0
    %v7600 = vadd.f32 0.0, %v7599
    %v7601 = vpop.f32.mrf.mxu0
    %7602 = vdwg.mxu0
    %7603 = vmatpush.bf16.msra.mxu0 %v7555
    %7604 = vmatpush.bf16.msra.mxu0 %v7551
    %7605 = vmatpush.bf16.msra.mxu0 %v7547
    %7606 = vmatpush.bf16.msra.mxu0 %v7543
    %7607 = vmatpush.bf16.msra.mxu0 %v7539
    %7608 = vmatpush.bf16.msra.mxu0 %v7535
    %7609 = vmatpush.bf16.msra.mxu0 %v7531
    %7610 = vmatpush.bf16.msra.mxu0 %v7527
    %7611 = vmatmul.bf16.gmra.mxu0 %v3670
    %v7612 = vpop.f32.mrf.mxu0
    %v7613 = vadd.f32 0.0, %v7612
    %v7614 = vpop.f32.mrf.mxu0
    %7615 = vdwg.mxu0
    %7616 = vmatpush.bf16.msra.mxu0 %v7556
    %7617 = vmatpush.bf16.msra.mxu0 %v7552
    %7618 = vmatpush.bf16.msra.mxu0 %v7548
    %7619 = vmatpush.bf16.msra.mxu0 %v7544
    %7620 = vmatpush.bf16.msra.mxu0 %v7540
    %7621 = vmatpush.bf16.msra.mxu0 %v7536
    %7622 = vmatpush.bf16.msra.mxu0 %v7532
    %7623 = vmatpush.bf16.msra.mxu0 %v7528
    %7624 = vmatmul.bf16.gmra.mxu0 %v3670
    %v7625 = vpop.f32.mrf.mxu0
    %v7626 = vadd.f32 0.0, %v7625
    %v7627 = vpop.f32.mrf.mxu0
    %7628 = vdwg.mxu0
    %7629 = vmatpush.bf16.msra.mxu0 %v7557
    %7630 = vmatpush.bf16.msra.mxu0 %v7553
    %7631 = vmatpush.bf16.msra.mxu0 %v7549
    %7632 = vmatpush.bf16.msra.mxu0 %v7545
    %7633 = vmatpush.bf16.msra.mxu0 %v7541
    %7634 = vmatpush.bf16.msra.mxu0 %v7537
    %7635 = vmatpush.bf16.msra.mxu0 %v7533
    %7636 = vmatpush.bf16.msra.mxu0 %v7529
    %7637 = vmatmul.bf16.gmra.mxu0 %v3670
    %v7638 = vpop.f32.mrf.mxu0
    %v7639 = vadd.f32 0.0, %v7638
    %v7640 = vpop.f32.mrf.mxu0
    %7641 = vdwg.mxu0
    %v7642 = vadd.f32 %v7393, %v7600
    %v7643 = vadd.f32 %v7394, %v7613
    %v7644 = vadd.f32 %v7395, %v7626
    %v7645 = vadd.f32 %v7396, %v7639
    %v7646 = vtanh.pop %v7642
    %v7647 = vtanh.pop %v7643
    %v7648 = vtanh.pop %v7644
    %v7649 = vtanh.pop %v7645
    %7650 = vst [vmem:[%s15] sm:$0xff] %v7646
    %7651 = vst [vmem:[%s15 + $0x8] sm:$0xff] %v7647
    %7652 = vst [vmem:[%s15 + $0x10] sm:$0xff] %v7648
    %7653 = vst [vmem:[%s15 + $0x18] sm:$0xff] %v7649
    // Predicated region
    $region94: #{generator_cnn_forward.1} parent=1 // pred_check
      _
    $region95: #{generator_cnn_forward.1} parent=1 // pred_check_branch
      %7655 = sbr.rel (0) target = $region97
    $region96: #{generator_cnn_forward.1} parent=1 // pred_region
      _
    $region97: #{generator_cnn_forward.1} parent=1 // pred_fallthru
      _
    // Predicated region
    $region98: #{generator_cnn_forward.1} parent=1 // pred_check
      _
    $region99: #{generator_cnn_forward.1} parent=1 // pred_check_branch
      %7657 = sbr.rel (0) target = $region101
    $region100: #{generator_cnn_forward.1} parent=1 // pred_region
      _
    $region101: #{generator_cnn_forward.1} parent=1 // pred_fallthru
      _
    %7658 = vsyncpa [#allocation3], 1
    %7659 = vsyncpa [#allocation5], 1
    %7660 = vsyncpa [#allocation8], 1
    %7661 = vsyncpa [#allocation11], 1
    %7662 = vsyncpa [#allocation14], 1

</llo_original>
